<compile_context>
chip_gen: v6e
topology: v6e:2x2x1
jax: 0.10.0
libtpu: 0.0.40
codegen_flags: <defaults>
</compile_context>

<pallas_src>
import functools

import jax
import jax.numpy as jnp
from jax.experimental import pallas as pl
from jax.experimental.pallas import tpu as pltpu

EPS = 1e-5        # PyTorch BatchNorm2d default eps
LANES = 128


def _round_up(x, m):
    return (x + m - 1) // m * m


def _vmem_limit_bytes():
    """Generation-aware VMEM limit (v7x: 64 MiB physical, v5e/v6e: 128 MiB)."""
    phys = 64 * 1024 * 1024
    try:
        info = pltpu.get_tpu_info()
        phys = int(getattr(info, "vmem_capacity_bytes", phys) or phys)
    except Exception:
        pass
    return max(16 * 1024 * 1024, min((phys * 3) // 4, 96 * 1024 * 1024))


def _pick_row_tile(ho, wo, cin, cpad, hp, wp, vmem_limit):
    """Largest TH dividing Ho whose Kernel-A working set fits the VMEM budget."""
    fixed = (2 * hp * wp * cin * 2           # resident padded image (bf16, double-buffered)
             + 2 * 3 * (3 * cin) * cpad * 2  # resident folded weights (bf16)
             + 2 * 2 * cpad * 4              # per-image stats block
             + (1 << 20))                    # slack for compiler scratch
    budget = max(vmem_limit - fixed, 1 << 20)
    valid = [th for th in range(1, ho + 1)
             if ho % th == 0 and ((th * wo) % 8 == 0 or th == ho)]

    def cost(th):
        m = th * wo
        return (2 * m * cpad * 2     # bf16 output block, double-buffered
                + m * cpad * 4       # f32 accumulator scratch
                + 2 * m * 3 * cin * 2)  # folded-LHS temporaries (rough)

    fitting = [th for th in valid if cost(th) <= budget and th * wo <= 4096]
    return max(fitting) if fitting else min(valid)


def _pick_flat_tile(s, cpad, budget_bytes):
    """Largest tile along the flattened H*W axis for the elementwise BN/ReLU pass."""
    valid = [ts for ts in range(1, s + 1) if s % ts == 0 and (ts % 8 == 0 or ts == s)]
    fitting = [ts for ts in valid if 2 * ts * cpad * (2 + 2) <= budget_bytes]
    return max(fitting) if fitting else min(valid)


def _conv_bias_stats_kernel(x_ref, w_ref, b_ref, out_ref, stats_ref, acc_ref):
    """Conv3x3 (+ bias) over TH output rows + streaming BatchNorm partial stats.

    x_ref:     (1, Hp, Wp, Cin)  bf16  whole padded image, resident across row tiles
    w_ref:     (3, 3*Cin, Cpad)  bf16  resident; horizontal taps folded into K
    b_ref:     (1, Cpad)         f32
    out_ref:   (1, TH*Wo, Cpad)  bf16  flat (row-major over H,W) conv output tile
    stats_ref: (1, 2, Cpad)      f32   per-image (sum, sum_sq), resident across row tiles
    acc_ref:   (TH*Wo, Cpad)     f32   VMEM scratch accumulator
    """
    t = pl.program_id(1)
    wp, cin = x_ref.shape[2], x_ref.shape[3]
    wo = wp - 2
    m, cpad = out_ref.shape[1], out_ref.shape[2]
    th = m // wo

    @pl.when(t == 0)
    def _init_stats():
        stats_ref[...] = jnp.zeros_like(stats_ref)

    # Bias folded into the accumulator init; 3 accumulating MXU matmuls (one per vertical
    # tap), with the 3 horizontal taps folded into the contraction dim (K = 3*Cin).
    acc_ref[...] = jnp.broadcast_to(b_ref[...], (m, cpad))
    for dy in range(3):
        band = x_ref[0, pl.ds(t * th + dy, th), :, :]                    # (TH, Wp, Cin)
        lhs = jnp.concatenate(
            [band[:, 0:wo, :], band[:, 1:wo + 1, :], band[:, 2:wo + 2, :]],
            axis=-1)                                                      # (TH, Wo, 3*Cin)
        acc_ref[...] += jnp.dot(lhs.reshape(m, 3 * cin), w_ref[dy],
                                preferred_element_type=jnp.float32)

    # bf16 intermediate written back (halves the HBM round trip to Kernel B).
    out_ref[...] = acc_ref[...][None].astype(out_ref.dtype)

    # Streaming BN stats from the f32 accumulator; single per-image write at the last tile.
    a = acc_ref[...]
    s = jnp.sum(a, axis=0, keepdims=True)                                 # (1, Cpad)
    ss = jnp.sum(a * a, axis=0, keepdims=True)                            # (1, Cpad)
    stats_ref[...] += jnp.concatenate([s, ss], axis=0)[None]


def _bn_relu_kernel(x_ref, scale_ref, shift_ref, o_ref):
    """y = relu(x * scale + shift): f32 math (v5e-friendly), bf16 in/out, lane-dense tiles."""
    x = x_ref[...].astype(jnp.float32)                                    # (1, TS, Cpad)
    scale = scale_ref[...].reshape(1, 1, -1)
    shift = shift_ref[...].reshape(1, 1, -1)
    o_ref[...] = jnp.maximum(x * scale + shift, 0.0).astype(o_ref.dtype)


def conv3x3_bn_relu(x_nhwc, w_oihw, bias, gamma, beta, padding=1):
    """One Conv2d(3x3, pad) + BatchNorm2d(training stats) + ReLU layer.

    x_nhwc: (N, H, W, Cc) bf16, channels possibly zero-padded (Cc >= real Cin).
    Returns (N, Ho, Wo, Cpad) bf16 with Cout zero-padded to a multiple of 128
    (padded lanes stay exactly 0 because weight/bias/gamma/beta padding is 0).
    """
    N, H, W, Cc = x_nhwc.shape
    Cout, Cin_real = w_oihw.shape[0], w_oihw.shape[1]
    assert Cc >= Cin_real, (Cc, Cin_real)
    Cpad = _round_up(Cout, LANES)
    Hp, Wp = H + 2 * padding, W + 2 * padding
    Ho, Wo = Hp - 2, Wp - 2
    S = Ho * Wo

    vmem_limit = _vmem_limit_bytes()

    # Spatial zero padding on the bf16 carried activation (channels already padded).
    xp = jnp.pad(x_nhwc.astype(jnp.bfloat16),
                 ((0, 0), (padding, padding), (padding, padding), (0, 0)))

    # Weights (O, I, 3, 3) -> (ky, kx, I, O); zero-pad I -> Cc and O -> Cpad;
    # fold kx into the contraction dim -> (3, 3*Cc, Cpad).
    w_k = jnp.transpose(w_oihw, (2, 3, 1, 0))
    w_k = jnp.pad(w_k, ((0, 0), (0, 0), (0, Cc - Cin_real), (0, Cpad - Cout)))
    w_k = w_k.reshape(3, 3 * Cc, Cpad).astype(jnp.bfloat16)
    b_p = jnp.pad(bias, (0, Cpad - Cout)).reshape(1, Cpad).astype(jnp.float32)

    TH = _pick_row_tile(Ho, Wo, Cc, Cpad, Hp, Wp, vmem_limit)
    M = TH * Wo
    n_t = Ho // TH

    flops = 2 * N * Ho * Wo * 9 * Cc * Cpad
    bytes_accessed = int(xp.size * 2 + w_k.size * 2 + b_p.size * 4
                         + N * S * Cpad * 2 + N * 2 * Cpad * 4)

    # ---------------- Kernel A: conv3x3 + bias + streaming BN partial stats ----------------
    conv_flat, stats = pl.pallas_call(
        _conv_bias_stats_kernel,
        out_shape=(jax.ShapeDtypeStruct((N, S, Cpad), jnp.bfloat16),
                   jax.ShapeDtypeStruct((N, 2, Cpad), jnp.float32)),
        grid=(N, n_t),
        in_specs=[
            # whole padded image: constant block index across row tiles -> resident, 1x read
            pl.BlockSpec((1, Hp, Wp, Cc), lambda n, t: (n, 0, 0, 0)),
            pl.BlockSpec((3, 3 * Cc, Cpad), lambda n, t: (0, 0, 0)),
            pl.BlockSpec((1, Cpad), lambda n, t: (0, 0)),
        ],
        out_specs=(
            pl.BlockSpec((1, M, Cpad), lambda n, t: (n, t, 0)),
            # per-image stats block, revisited across the row-tile ("arbitrary") axis
            pl.BlockSpec((1, 2, Cpad), lambda n, t: (n, 0, 0)),
        ),
        scratch_shapes=[pltpu.VMEM((M, Cpad), jnp.float32)],
        compiler_params=pltpu.CompilerParams(
            dimension_semantics=("parallel", "arbitrary"),
            vmem_limit_bytes=vmem_limit),
        cost_estimate=pl.CostEstimate(flops=flops, transcendentals=0,
                                      bytes_accessed=bytes_accessed),
    )(xp, w_k, b_p)

    # ---- BatchNorm2d training-mode stats (biased variance) from the streamed sums ----
    cnt = jnp.float32(N * S)
    sums = jnp.sum(stats, axis=0)                           # (2, Cpad)
    mean = sums[0] / cnt
    var = jnp.maximum(sums[1] / cnt - mean * mean, 0.0)     # guard E[x^2]-E[x]^2 cancellation
    inv = jax.lax.rsqrt(var + EPS)
    g_p = jnp.pad(gamma, (0, Cpad - Cout))
    bt_p = jnp.pad(beta, (0, Cpad - Cout))
    scale = (g_p * inv).reshape(1, Cpad).astype(jnp.float32)
    shift = (bt_p - mean * g_p * inv).reshape(1, Cpad).astype(jnp.float32)

    # ---------------- Kernel B: normalize + ReLU (fully parallel elementwise pass) ----------------
    TS = _pick_flat_tile(S, Cpad, 8 * 1024 * 1024)
    y_flat = pl.pallas_call(
        _bn_relu_kernel,
        out_shape=jax.ShapeDtypeStruct((N, S, Cpad), jnp.bfloat16),
        grid=(N, S // TS),
        in_specs=[
            pl.BlockSpec((1, TS, Cpad), lambda n, s: (n, s, 0)),
            pl.BlockSpec((1, Cpad), lambda n, s: (0, 0)),
            pl.BlockSpec((1, Cpad), lambda n, s: (0, 0)),
        ],
        out_specs=pl.BlockSpec((1, TS, Cpad), lambda n, s: (n, s, 0)),
        compiler_params=pltpu.CompilerParams(
            dimension_semantics=("parallel", "parallel"),
            vmem_limit_bytes=vmem_limit),
    )(conv_flat, scale, shift)

    return y_flat.reshape(N, Ho, Wo, Cpad)


def init_vgg16_block_params(key, list_channels):
    """Deterministic synthetic params matching nn.Conv2d / nn.BatchNorm2d shapes."""
    params = []
    for i in range(len(list_channels) - 1):
        cin, cout = list_channels[i], list_channels[i + 1]
        key, kw, kb = jax.random.split(key, 3)
        bound = 1.0 / jnp.sqrt(cin * 9.0)
        w = jax.random.uniform(kw, (cout, cin, 3, 3), jnp.float32, -bound, bound)
        b = jax.random.uniform(kb, (cout,), jnp.float32, -bound, bound)
        gamma = jnp.ones((cout,), jnp.float32)    # BatchNorm2d default init
        beta = jnp.zeros((cout,), jnp.float32)
        params.append((w, b, gamma, beta))
    return params


def vgg16_block_forward(x_nchw, params, padding=1):
    """Pallas implementation of VGG16Block.forward (NCHW in, NCHW out)."""
    x = jnp.transpose(x_nchw, (0, 2, 3, 1)).astype(jnp.bfloat16)   # NHWC, bf16 carried
    for (w, b, g, bt) in params:
        x = conv3x3_bn_relu(x, w, b, g, bt, padding=padding)       # stays Cpad-padded bf16
    x = x[..., :params[-1][0].shape[0]].astype(jnp.float32)        # strip lane padding once
    return jnp.transpose(x, (0, 3, 1, 2))


def reference_forward(x_nchw, params, padding=1):
    """Pure-JAX f32 reference (conv + training-mode BN + ReLU)."""
    x = x_nchw
    for (w, b, g, bt) in params:
        x = jax.lax.conv_general_dilated(
            x, w, (1, 1), [(padding, padding), (padding, padding)],
            dimension_numbers=("NCHW", "OIHW", "NCHW"))
        x = x + b.reshape(1, -1, 1, 1)
        mean = jnp.mean(x, axis=(0, 2, 3), keepdims=True)
        var = jnp.mean(jnp.square(x - mean), axis=(0, 2, 3), keepdims=True)
        x = (x - mean) * jax.lax.rsqrt(var + EPS)
        x = x * g.reshape(1, -1, 1, 1) + bt.reshape(1, -1, 1, 1)
        x = jnp.maximum(x, 0.0)
    return x


if __name__ == "__main__":
    key = jax.random.PRNGKey(0)
    k_x, k_p = jax.random.split(key)

    list_channels = [4, 8, 8]                                   # two (conv + bn + relu) layers
    x = jax.random.normal(k_x, (2, 4, 16, 16), jnp.float32)     # NCHW
    params = init_vgg16_block_params(k_p, list_channels)

    fwd = jax.jit(functools.partial(vgg16_block_forward, padding=1))
    out = jax.block_until_ready(fwd(x, params))
    ref = jax.block_until_ready(reference_forward(x, params, padding=1))

    assert out.shape == (2, 8, 16, 16), out.shape
    max_err = float(jnp.max(jnp.abs(out - ref)))
    # bf16 MXU operands AND bf16 intermediates carried between layers (per review) vs f32 ref.
    assert jnp.allclose(out, ref, atol=8e-2, rtol=8e-2), f"max abs err = {max_err}"

    print("KERNEL_OK")
</pallas_src>

<mosaic_0001>
module attributes {stable_mosaic.version = 11 : i64} {
  func.func @_conv_bias_stats_kernel(%arg0: i32, %arg1: i32, %arg2: memref<1x18x18x4xbf16, #tpu.memory_space<vmem>>, %arg3: memref<3x12x128xbf16, #tpu.memory_space<vmem>>, %arg4: memref<1x128xf32, #tpu.memory_space<vmem>>, %arg5: memref<1x256x128xbf16, #tpu.memory_space<vmem>>, %arg6: memref<1x2x128xf32, #tpu.memory_space<vmem>>, %arg7: memref<256x128xf32, #tpu.memory_space<vmem>>) attributes {dimension_semantics = [#tpu.dimension_semantics<parallel>, #tpu.dimension_semantics<arbitrary>], iteration_bounds = array<i64: 2, 1>, scalar_prefetch = 0 : i64, scratch_operands = 1 : i64, tpu.core_type = #tpu.core_type<tc>, window_params = [{transform_indices = @transform_0, window_bounds = array<i64: 1, 18, 18, 4>}, {pipeline_mode = #tpu.pipeline_mode<synchronous>, transform_indices = @transform_1, window_bounds = array<i64: 3, 12, 128>}, {pipeline_mode = #tpu.pipeline_mode<synchronous>, transform_indices = @transform_2, window_bounds = array<i64: 1, 128>}, {transform_indices = @transform_3, window_bounds = array<i64: 1, 256, 128>}, {transform_indices = @transform_4, window_bounds = array<i64: 1, 2, 128>}]} {
    %c0_i32 = arith.constant 0 : i32
    %0 = arith.cmpi eq, %arg1, %c0_i32 : i32
    %1 = arith.extui %0 : i1 to i32
    %c0_i32_0 = arith.constant 0 : i32
    %2 = arith.cmpi ne, %1, %c0_i32_0 : i32
    scf.if %2 {
      %cst_52 = arith.constant 0.000000e+00 : f32
      %70 = vector.broadcast %cst_52 : f32 to vector<1x2x128xf32>
      %c0_53 = arith.constant 0 : index
      %c0_54 = arith.constant 0 : index
      %c0_55 = arith.constant 0 : index
      %71 = vector.load %arg6[%c0_53, %c0_54, %c0_55] : memref<1x2x128xf32, #tpu.memory_space<vmem>>, vector<1x2x128xf32>
      tpu.vector_store %arg6[%c0_53, %c0_54, %c0_55], %70 {strides = array<i32>} : memref<1x2x128xf32, #tpu.memory_space<vmem>>, vector<1x2x128xf32>,
    } else {
    }
    %c0 = arith.constant 0 : index
    %c0_1 = arith.constant 0 : index
    %3 = vector.load %arg4[%c0, %c0_1] : memref<1x128xf32, #tpu.memory_space<vmem>>, vector<1x128xf32>
    %4 = vector.shape_cast %3 : vector<1x128xf32> to vector<1x128xf32>
    %5 = vector.broadcast %4 : vector<1x128xf32> to vector<256x128xf32>
    %c0_2 = arith.constant 0 : index
    %c0_3 = arith.constant 0 : index
    %6 = vector.load %arg7[%c0_2, %c0_3] : memref<256x128xf32, #tpu.memory_space<vmem>>, vector<256x128xf32>
    tpu.vector_store %arg7[%c0_2, %c0_3], %5 {strides = array<i32>} : memref<256x128xf32, #tpu.memory_space<vmem>>, vector<256x128xf32>,
    %c16_i32 = arith.constant 16 : i32
    %7 = arith.muli %arg1, %c16_i32 : i32
    %c0_i32_4 = arith.constant 0 : i32
    %8 = arith.addi %7, %c0_i32_4 : i32
    %c0_5 = arith.constant 0 : index
    %9 = arith.index_cast %8 : i32 to index
    %c0_6 = arith.constant 0 : index
    %c0_7 = arith.constant 0 : index
    %10 = vector.load %arg2[%c0_5, %9, %c0_6, %c0_7] : memref<1x18x18x4xbf16, #tpu.memory_space<vmem>>, vector<1x16x18x4xbf16>
    %11 = vector.shape_cast %10 : vector<1x16x18x4xbf16> to vector<16x18x4xbf16>
    %12 = vector.extract_strided_slice %11 {offsets = [0, 0, 0], sizes = [16, 16, 4], strides = [1, 1, 1]} : vector<16x18x4xbf16> to vector<16x16x4xbf16>
    %13 = vector.extract_strided_slice %11 {offsets = [0, 1, 0], sizes = [16, 16, 4], strides = [1, 1, 1]} : vector<16x18x4xbf16> to vector<16x16x4xbf16>
    %14 = vector.extract_strided_slice %11 {offsets = [0, 2, 0], sizes = [16, 16, 4], strides = [1, 1, 1]} : vector<16x18x4xbf16> to vector<16x16x4xbf16>
    %15 = tpu.concatenate %12, %13, %14 in 2 : vector<16x16x4xbf16>, vector<16x16x4xbf16>, vector<16x16x4xbf16> -> vector<16x16x12xbf16>
    %c0_8 = arith.constant 0 : index
    %c0_9 = arith.constant 0 : index
    %16 = vector.load %arg7[%c0_8, %c0_9] : memref<256x128xf32, #tpu.memory_space<vmem>>, vector<256x128xf32>
    %17 = vector.shape_cast %15 : vector<16x16x12xbf16> to vector<256x12xbf16>
    %c0_10 = arith.constant 0 : index
    %c0_11 = arith.constant 0 : index
    %c0_12 = arith.constant 0 : index
    %18 = vector.load %arg3[%c0_10, %c0_11, %c0_12] : memref<3x12x128xbf16, #tpu.memory_space<vmem>>, vector<1x12x128xbf16>
    %19 = vector.shape_cast %18 : vector<1x12x128xbf16> to vector<12x128xbf16>
    %cst = arith.constant dense<0.000000e+00> : vector<256x128xf32>
    %20 = tpu.matmul %17, %19, %cst {dimension_numbers = #tpu.dot_dimension_numbers<[1], [0], [0], [1], [0, 0, 1, 1], [], []>} : vector<256x12xbf16>, vector<12x128xbf16>, vector<256x128xf32> -> vector<256x128xf32>
    %21 = arith.addf %16, %20 : vector<256x128xf32>
    %c0_13 = arith.constant 0 : index
    %c0_14 = arith.constant 0 : index
    %22 = vector.load %arg7[%c0_13, %c0_14] : memref<256x128xf32, #tpu.memory_space<vmem>>, vector<256x128xf32>
    tpu.vector_store %arg7[%c0_13, %c0_14], %21 {strides = array<i32>} : memref<256x128xf32, #tpu.memory_space<vmem>>, vector<256x128xf32>,
    %c16_i32_15 = arith.constant 16 : i32
    %23 = arith.muli %arg1, %c16_i32_15 : i32
    %c1_i32 = arith.constant 1 : i32
    %24 = arith.addi %23, %c1_i32 : i32
    %c0_16 = arith.constant 0 : index
    %25 = arith.index_cast %24 : i32 to index
    %c0_17 = arith.constant 0 : index
    %c0_18 = arith.constant 0 : index
    %26 = vector.load %arg2[%c0_16, %25, %c0_17, %c0_18] : memref<1x18x18x4xbf16, #tpu.memory_space<vmem>>, vector<1x16x18x4xbf16>
    %27 = vector.shape_cast %26 : vector<1x16x18x4xbf16> to vector<16x18x4xbf16>
    %28 = vector.extract_strided_slice %27 {offsets = [0, 0, 0], sizes = [16, 16, 4], strides = [1, 1, 1]} : vector<16x18x4xbf16> to vector<16x16x4xbf16>
    %29 = vector.extract_strided_slice %27 {offsets = [0, 1, 0], sizes = [16, 16, 4], strides = [1, 1, 1]} : vector<16x18x4xbf16> to vector<16x16x4xbf16>
    %30 = vector.extract_strided_slice %27 {offsets = [0, 2, 0], sizes = [16, 16, 4], strides = [1, 1, 1]} : vector<16x18x4xbf16> to vector<16x16x4xbf16>
    %31 = tpu.concatenate %28, %29, %30 in 2 : vector<16x16x4xbf16>, vector<16x16x4xbf16>, vector<16x16x4xbf16> -> vector<16x16x12xbf16>
    %c0_19 = arith.constant 0 : index
    %c0_20 = arith.constant 0 : index
    %32 = vector.load %arg7[%c0_19, %c0_20] : memref<256x128xf32, #tpu.memory_space<vmem>>, vector<256x128xf32>
    %33 = vector.shape_cast %31 : vector<16x16x12xbf16> to vector<256x12xbf16>
    %c1 = arith.constant 1 : index
    %c0_21 = arith.constant 0 : index
    %c0_22 = arith.constant 0 : index
    %34 = vector.load %arg3[%c1, %c0_21, %c0_22] : memref<3x12x128xbf16, #tpu.memory_space<vmem>>, vector<1x12x128xbf16>
    %35 = vector.shape_cast %34 : vector<1x12x128xbf16> to vector<12x128xbf16>
    %cst_23 = arith.constant dense<0.000000e+00> : vector<256x128xf32>
    %36 = tpu.matmul %33, %35, %cst_23 {dimension_numbers = #tpu.dot_dimension_numbers<[1], [0], [0], [1], [0, 0, 1, 1], [], []>} : vector<256x12xbf16>, vector<12x128xbf16>, vector<256x128xf32> -> vector<256x128xf32>
    %37 = arith.addf %32, %36 : vector<256x128xf32>
    %c0_24 = arith.constant 0 : index
    %c0_25 = arith.constant 0 : index
    %38 = vector.load %arg7[%c0_24, %c0_25] : memref<256x128xf32, #tpu.memory_space<vmem>>, vector<256x128xf32>
    tpu.vector_store %arg7[%c0_24, %c0_25], %37 {strides = array<i32>} : memref<256x128xf32, #tpu.memory_space<vmem>>, vector<256x128xf32>,
    %c16_i32_26 = arith.constant 16 : i32
    %39 = arith.muli %arg1, %c16_i32_26 : i32
    %c2_i32 = arith.constant 2 : i32
    %40 = arith.addi %39, %c2_i32 : i32
    %c0_27 = arith.constant 0 : index
    %41 = arith.index_cast %40 : i32 to index
    %c0_28 = arith.constant 0 : index
    %c0_29 = arith.constant 0 : index
    %42 = vector.load %arg2[%c0_27, %41, %c0_28, %c0_29] : memref<1x18x18x4xbf16, #tpu.memory_space<vmem>>, vector<1x16x18x4xbf16>
    %43 = vector.shape_cast %42 : vector<1x16x18x4xbf16> to vector<16x18x4xbf16>
    %44 = vector.extract_strided_slice %43 {offsets = [0, 0, 0], sizes = [16, 16, 4], strides = [1, 1, 1]} : vector<16x18x4xbf16> to vector<16x16x4xbf16>
    %45 = vector.extract_strided_slice %43 {offsets = [0, 1, 0], sizes = [16, 16, 4], strides = [1, 1, 1]} : vector<16x18x4xbf16> to vector<16x16x4xbf16>
    %46 = vector.extract_strided_slice %43 {offsets = [0, 2, 0], sizes = [16, 16, 4], strides = [1, 1, 1]} : vector<16x18x4xbf16> to vector<16x16x4xbf16>
    %47 = tpu.concatenate %44, %45, %46 in 2 : vector<16x16x4xbf16>, vector<16x16x4xbf16>, vector<16x16x4xbf16> -> vector<16x16x12xbf16>
    %c0_30 = arith.constant 0 : index
    %c0_31 = arith.constant 0 : index
    %48 = vector.load %arg7[%c0_30, %c0_31] : memref<256x128xf32, #tpu.memory_space<vmem>>, vector<256x128xf32>
    %49 = vector.shape_cast %47 : vector<16x16x12xbf16> to vector<256x12xbf16>
    %c2 = arith.constant 2 : index
    %c0_32 = arith.constant 0 : index
    %c0_33 = arith.constant 0 : index
    %50 = vector.load %arg3[%c2, %c0_32, %c0_33] : memref<3x12x128xbf16, #tpu.memory_space<vmem>>, vector<1x12x128xbf16>
    %51 = vector.shape_cast %50 : vector<1x12x128xbf16> to vector<12x128xbf16>
    %cst_34 = arith.constant dense<0.000000e+00> : vector<256x128xf32>
    %52 = tpu.matmul %49, %51, %cst_34 {dimension_numbers = #tpu.dot_dimension_numbers<[1], [0], [0], [1], [0, 0, 1, 1], [], []>} : vector<256x12xbf16>, vector<12x128xbf16>, vector<256x128xf32> -> vector<256x128xf32>
    %53 = arith.addf %48, %52 : vector<256x128xf32>
    %c0_35 = arith.constant 0 : index
    %c0_36 = arith.constant 0 : index
    %54 = vector.load %arg7[%c0_35, %c0_36] : memref<256x128xf32, #tpu.memory_space<vmem>>, vector<256x128xf32>
    tpu.vector_store %arg7[%c0_35, %c0_36], %53 {strides = array<i32>} : memref<256x128xf32, #tpu.memory_space<vmem>>, vector<256x128xf32>,
    %c0_37 = arith.constant 0 : index
    %c0_38 = arith.constant 0 : index
    %55 = vector.load %arg7[%c0_37, %c0_38] : memref<256x128xf32, #tpu.memory_space<vmem>>, vector<256x128xf32>
    %56 = vector.shape_cast %55 : vector<256x128xf32> to vector<1x256x128xf32>
    %57 = arith.truncf %56 : vector<1x256x128xf32> to vector<1x256x128xbf16>
    %c0_39 = arith.constant 0 : index
    %c0_40 = arith.constant 0 : index
    %c0_41 = arith.constant 0 : index
    %58 = vector.load %arg5[%c0_39, %c0_40, %c0_41] : memref<1x256x128xbf16, #tpu.memory_space<vmem>>, vector<1x256x128xbf16>
    tpu.vector_store %arg5[%c0_39, %c0_40, %c0_41], %57 {strides = array<i32>} : memref<1x256x128xbf16, #tpu.memory_space<vmem>>, vector<1x256x128xbf16>,
    %c0_42 = arith.constant 0 : index
    %c0_43 = arith.constant 0 : index
    %59 = vector.load %arg7[%c0_42, %c0_43] : memref<256x128xf32, #tpu.memory_space<vmem>>, vector<256x128xf32>
    %cst_44 = arith.constant dense<0.000000e+00> : vector<128xf32>
    %60 = vector.multi_reduction <add>, %59, %cst_44 [0] : vector<256x128xf32> to vector<128xf32>
    %61 = vector.shape_cast %60 : vector<128xf32> to vector<1x128xf32>
    %62 = arith.mulf %59, %59 : vector<256x128xf32>
    %cst_45 = arith.constant dense<0.000000e+00> : vector<128xf32>
    %63 = vector.multi_reduction <add>, %62, %cst_45 [0] : vector<256x128xf32> to vector<128xf32>
    %64 = vector.shape_cast %63 : vector<128xf32> to vector<1x128xf32>
    %c0_46 = arith.constant 0 : index
    %c0_47 = arith.constant 0 : index
    %c0_48 = arith.constant 0 : index
    %65 = vector.load %arg6[%c0_46, %c0_47, %c0_48] : memref<1x2x128xf32, #tpu.memory_space<vmem>>, vector<1x2x128xf32>
    %66 = tpu.concatenate %61, %64 in 0 : vector<1x128xf32>, vector<1x128xf32> -> vector<2x128xf32>
    %67 = vector.shape_cast %66 : vector<2x128xf32> to vector<1x2x128xf32>
    %68 = arith.addf %65, %67 : vector<1x2x128xf32>
    %c0_49 = arith.constant 0 : index
    %c0_50 = arith.constant 0 : index
    %c0_51 = arith.constant 0 : index
    %69 = vector.load %arg6[%c0_49, %c0_50, %c0_51] : memref<1x2x128xf32, #tpu.memory_space<vmem>>, vector<1x2x128xf32>
    tpu.vector_store %arg6[%c0_49, %c0_50, %c0_51], %68 {strides = array<i32>} : memref<1x2x128xf32, #tpu.memory_space<vmem>>, vector<1x2x128xf32>,
    return
  }
  func.func @transform_0(%arg0: i32, %arg1: i32) -> (i32, i32, i32, i32) {
    %c0_i32 = arith.constant 0 : i32
    %c0_i32_0 = arith.constant 0 : i32
    %c0_i32_1 = arith.constant 0 : i32
    %c0_i32_2 = arith.constant 0 : i32
    return %arg0, %c0_i32, %c0_i32_0, %c0_i32_1 : i32, i32, i32, i32
  }
  func.func @transform_1(%arg0: i32, %arg1: i32) -> (i32, i32, i32) {
    %c0_i32 = arith.constant 0 : i32
    %c0_i32_0 = arith.constant 0 : i32
    %c0_i32_1 = arith.constant 0 : i32
    %c0_i32_2 = arith.constant 0 : i32
    return %c0_i32, %c0_i32_0, %c0_i32_1 : i32, i32, i32
  }
  func.func @transform_2(%arg0: i32, %arg1: i32) -> (i32, i32) {
    %c0_i32 = arith.constant 0 : i32
    %c0_i32_0 = arith.constant 0 : i32
    %c0_i32_1 = arith.constant 0 : i32
    return %c0_i32, %c0_i32_0 : i32, i32
  }
  func.func @transform_3(%arg0: i32, %arg1: i32) -> (i32, i32, i32) {
    %c0_i32 = arith.constant 0 : i32
    %c0_i32_0 = arith.constant 0 : i32
    return %arg0, %arg1, %c0_i32 : i32, i32, i32
  }
  func.func @transform_4(%arg0: i32, %arg1: i32) -> (i32, i32, i32) {
    %c0_i32 = arith.constant 0 : i32
    %c0_i32_0 = arith.constant 0 : i32
    %c0_i32_1 = arith.constant 0 : i32
    return %arg0, %c0_i32, %c0_i32_0 : i32, i32, i32
  }
}

module attributes {stable_mosaic.version = 11 : i64} {
  func.func @_bn_relu_kernel(%arg0: i32, %arg1: i32, %arg2: memref<1x256x128xbf16, #tpu.memory_space<vmem>>, %arg3: memref<1x128xf32, #tpu.memory_space<vmem>>, %arg4: memref<1x128xf32, #tpu.memory_space<vmem>>, %arg5: memref<1x256x128xbf16, #tpu.memory_space<vmem>>) attributes {dimension_semantics = [#tpu.dimension_semantics<parallel>, #tpu.dimension_semantics<parallel>], iteration_bounds = array<i64: 2, 1>, scalar_prefetch = 0 : i64, scratch_operands = 0 : i64, tpu.core_type = #tpu.core_type<tc>, window_params = [{transform_indices = @transform_0, window_bounds = array<i64: 1, 256, 128>}, {pipeline_mode = #tpu.pipeline_mode<synchronous>, transform_indices = @transform_1, window_bounds = array<i64: 1, 128>}, {pipeline_mode = #tpu.pipeline_mode<synchronous>, transform_indices = @transform_2, window_bounds = array<i64: 1, 128>}, {transform_indices = @transform_3, window_bounds = array<i64: 1, 256, 128>}]} {
    %c0 = arith.constant 0 : index
    %c0_0 = arith.constant 0 : index
    %c0_1 = arith.constant 0 : index
    %0 = vector.load %arg2[%c0, %c0_0, %c0_1] : memref<1x256x128xbf16, #tpu.memory_space<vmem>>, vector<1x256x128xbf16>
    %1 = arith.extf %0 : vector<1x256x128xbf16> to vector<1x256x128xf32>
    %c0_2 = arith.constant 0 : index
    %c0_3 = arith.constant 0 : index
    %2 = vector.load %arg3[%c0_2, %c0_3] : memref<1x128xf32, #tpu.memory_space<vmem>>, vector<1x128xf32>
    %3 = vector.shape_cast %2 : vector<1x128xf32> to vector<1x1x128xf32>
    %c0_4 = arith.constant 0 : index
    %c0_5 = arith.constant 0 : index
    %4 = vector.load %arg4[%c0_4, %c0_5] : memref<1x128xf32, #tpu.memory_space<vmem>>, vector<1x128xf32>
    %5 = vector.shape_cast %4 : vector<1x128xf32> to vector<1x1x128xf32>
    %6 = vector.broadcast %3 : vector<1x1x128xf32> to vector<1x256x128xf32>
    %7 = arith.mulf %1, %6 : vector<1x256x128xf32>
    %8 = vector.broadcast %5 : vector<1x1x128xf32> to vector<1x256x128xf32>
    %9 = arith.addf %7, %8 : vector<1x256x128xf32>
    %cst = arith.constant 0.000000e+00 : f32
    %10 = vector.broadcast %cst : f32 to vector<1x256x128xf32>
    %11 = arith.maximumf %9, %10 : vector<1x256x128xf32>
    %12 = arith.truncf %11 : vector<1x256x128xf32> to vector<1x256x128xbf16>
    %c0_6 = arith.constant 0 : index
    %c0_7 = arith.constant 0 : index
    %c0_8 = arith.constant 0 : index
    %13 = vector.load %arg5[%c0_6, %c0_7, %c0_8] : memref<1x256x128xbf16, #tpu.memory_space<vmem>>, vector<1x256x128xbf16>
    tpu.vector_store %arg5[%c0_6, %c0_7, %c0_8], %12 {strides = array<i32>} : memref<1x256x128xbf16, #tpu.memory_space<vmem>>, vector<1x256x128xbf16>,
    return
  }
  func.func @transform_0(%arg0: i32, %arg1: i32) -> (i32, i32, i32) {
    %c0_i32 = arith.constant 0 : i32
    %c0_i32_0 = arith.constant 0 : i32
    return %arg0, %arg1, %c0_i32 : i32, i32, i32
  }
  func.func @transform_1(%arg0: i32, %arg1: i32) -> (i32, i32) {
    %c0_i32 = arith.constant 0 : i32
    %c0_i32_0 = arith.constant 0 : i32
    %c0_i32_1 = arith.constant 0 : i32
    return %c0_i32, %c0_i32_0 : i32, i32
  }
  func.func @transform_2(%arg0: i32, %arg1: i32) -> (i32, i32) {
    %c0_i32 = arith.constant 0 : i32
    %c0_i32_0 = arith.constant 0 : i32
    %c0_i32_1 = arith.constant 0 : i32
    return %c0_i32, %c0_i32_0 : i32, i32
  }
  func.func @transform_3(%arg0: i32, %arg1: i32) -> (i32, i32, i32) {
    %c0_i32 = arith.constant 0 : i32
    %c0_i32_0 = arith.constant 0 : i32
    return %arg0, %arg1, %c0_i32 : i32, i32, i32
  }
}

module attributes {stable_mosaic.version = 11 : i64} {
  func.func @_conv_bias_stats_kernel(%arg0: i32, %arg1: i32, %arg2: memref<1x18x18x128xbf16, #tpu.memory_space<vmem>>, %arg3: memref<3x384x128xbf16, #tpu.memory_space<vmem>>, %arg4: memref<1x128xf32, #tpu.memory_space<vmem>>, %arg5: memref<1x256x128xbf16, #tpu.memory_space<vmem>>, %arg6: memref<1x2x128xf32, #tpu.memory_space<vmem>>, %arg7: memref<256x128xf32, #tpu.memory_space<vmem>>) attributes {dimension_semantics = [#tpu.dimension_semantics<parallel>, #tpu.dimension_semantics<arbitrary>], iteration_bounds = array<i64: 2, 1>, scalar_prefetch = 0 : i64, scratch_operands = 1 : i64, tpu.core_type = #tpu.core_type<tc>, window_params = [{transform_indices = @transform_0, window_bounds = array<i64: 1, 18, 18, 128>}, {pipeline_mode = #tpu.pipeline_mode<synchronous>, transform_indices = @transform_1, window_bounds = array<i64: 3, 384, 128>}, {pipeline_mode = #tpu.pipeline_mode<synchronous>, transform_indices = @transform_2, window_bounds = array<i64: 1, 128>}, {transform_indices = @transform_3, window_bounds = array<i64: 1, 256, 128>}, {transform_indices = @transform_4, window_bounds = array<i64: 1, 2, 128>}]} {
    %c0_i32 = arith.constant 0 : i32
    %0 = arith.cmpi eq, %arg1, %c0_i32 : i32
    %1 = arith.extui %0 : i1 to i32
    %c0_i32_0 = arith.constant 0 : i32
    %2 = arith.cmpi ne, %1, %c0_i32_0 : i32
    scf.if %2 {
      %cst_52 = arith.constant 0.000000e+00 : f32
      %70 = vector.broadcast %cst_52 : f32 to vector<1x2x128xf32>
      %c0_53 = arith.constant 0 : index
      %c0_54 = arith.constant 0 : index
      %c0_55 = arith.constant 0 : index
      %71 = vector.load %arg6[%c0_53, %c0_54, %c0_55] : memref<1x2x128xf32, #tpu.memory_space<vmem>>, vector<1x2x128xf32>
      tpu.vector_store %arg6[%c0_53, %c0_54, %c0_55], %70 {strides = array<i32>} : memref<1x2x128xf32, #tpu.memory_space<vmem>>, vector<1x2x128xf32>,
    } else {
    }
    %c0 = arith.constant 0 : index
    %c0_1 = arith.constant 0 : index
    %3 = vector.load %arg4[%c0, %c0_1] : memref<1x128xf32, #tpu.memory_space<vmem>>, vector<1x128xf32>
    %4 = vector.shape_cast %3 : vector<1x128xf32> to vector<1x128xf32>
    %5 = vector.broadcast %4 : vector<1x128xf32> to vector<256x128xf32>
    %c0_2 = arith.constant 0 : index
    %c0_3 = arith.constant 0 : index
    %6 = vector.load %arg7[%c0_2, %c0_3] : memref<256x128xf32, #tpu.memory_space<vmem>>, vector<256x128xf32>
    tpu.vector_store %arg7[%c0_2, %c0_3], %5 {strides = array<i32>} : memref<256x128xf32, #tpu.memory_space<vmem>>, vector<256x128xf32>,
    %c16_i32 = arith.constant 16 : i32
    %7 = arith.muli %arg1, %c16_i32 : i32
    %c0_i32_4 = arith.constant 0 : i32
    %8 = arith.addi %7, %c0_i32_4 : i32
    %c0_5 = arith.constant 0 : index
    %9 = arith.index_cast %8 : i32 to index
    %c0_6 = arith.constant 0 : index
    %c0_7 = arith.constant 0 : index
    %10 = vector.load %arg2[%c0_5, %9, %c0_6, %c0_7] : memref<1x18x18x128xbf16, #tpu.memory_space<vmem>>, vector<1x16x18x128xbf16>
    %11 = vector.shape_cast %10 : vector<1x16x18x128xbf16> to vector<16x18x128xbf16>
    %12 = vector.extract_strided_slice %11 {offsets = [0, 0, 0], sizes = [16, 16, 128], strides = [1, 1, 1]} : vector<16x18x128xbf16> to vector<16x16x128xbf16>
    %13 = vector.extract_strided_slice %11 {offsets = [0, 1, 0], sizes = [16, 16, 128], strides = [1, 1, 1]} : vector<16x18x128xbf16> to vector<16x16x128xbf16>
    %14 = vector.extract_strided_slice %11 {offsets = [0, 2, 0], sizes = [16, 16, 128], strides = [1, 1, 1]} : vector<16x18x128xbf16> to vector<16x16x128xbf16>
    %15 = tpu.concatenate %12, %13, %14 in 2 : vector<16x16x128xbf16>, vector<16x16x128xbf16>, vector<16x16x128xbf16> -> vector<16x16x384xbf16>
    %c0_8 = arith.constant 0 : index
    %c0_9 = arith.constant 0 : index
    %16 = vector.load %arg7[%c0_8, %c0_9] : memref<256x128xf32, #tpu.memory_space<vmem>>, vector<256x128xf32>
    %17 = vector.shape_cast %15 : vector<16x16x384xbf16> to vector<256x384xbf16>
    %c0_10 = arith.constant 0 : index
    %c0_11 = arith.constant 0 : index
    %c0_12 = arith.constant 0 : index
    %18 = vector.load %arg3[%c0_10, %c0_11, %c0_12] : memref<3x384x128xbf16, #tpu.memory_space<vmem>>, vector<1x384x128xbf16>
    %19 = vector.shape_cast %18 : vector<1x384x128xbf16> to vector<384x128xbf16>
    %cst = arith.constant dense<0.000000e+00> : vector<256x128xf32>
    %20 = tpu.matmul %17, %19, %cst {dimension_numbers = #tpu.dot_dimension_numbers<[1], [0], [0], [1], [0, 0, 1, 1], [], []>} : vector<256x384xbf16>, vector<384x128xbf16>, vector<256x128xf32> -> vector<256x128xf32>
    %21 = arith.addf %16, %20 : vector<256x128xf32>
    %c0_13 = arith.constant 0 : index
    %c0_14 = arith.constant 0 : index
    %22 = vector.load %arg7[%c0_13, %c0_14] : memref<256x128xf32, #tpu.memory_space<vmem>>, vector<256x128xf32>
    tpu.vector_store %arg7[%c0_13, %c0_14], %21 {strides = array<i32>} : memref<256x128xf32, #tpu.memory_space<vmem>>, vector<256x128xf32>,
    %c16_i32_15 = arith.constant 16 : i32
    %23 = arith.muli %arg1, %c16_i32_15 : i32
    %c1_i32 = arith.constant 1 : i32
    %24 = arith.addi %23, %c1_i32 : i32
    %c0_16 = arith.constant 0 : index
    %25 = arith.index_cast %24 : i32 to index
    %c0_17 = arith.constant 0 : index
    %c0_18 = arith.constant 0 : index
    %26 = vector.load %arg2[%c0_16, %25, %c0_17, %c0_18] : memref<1x18x18x128xbf16, #tpu.memory_space<vmem>>, vector<1x16x18x128xbf16>
    %27 = vector.shape_cast %26 : vector<1x16x18x128xbf16> to vector<16x18x128xbf16>
    %28 = vector.extract_strided_slice %27 {offsets = [0, 0, 0], sizes = [16, 16, 128], strides = [1, 1, 1]} : vector<16x18x128xbf16> to vector<16x16x128xbf16>
    %29 = vector.extract_strided_slice %27 {offsets = [0, 1, 0], sizes = [16, 16, 128], strides = [1, 1, 1]} : vector<16x18x128xbf16> to vector<16x16x128xbf16>
    %30 = vector.extract_strided_slice %27 {offsets = [0, 2, 0], sizes = [16, 16, 128], strides = [1, 1, 1]} : vector<16x18x128xbf16> to vector<16x16x128xbf16>
    %31 = tpu.concatenate %28, %29, %30 in 2 : vector<16x16x128xbf16>, vector<16x16x128xbf16>, vector<16x16x128xbf16> -> vector<16x16x384xbf16>
    %c0_19 = arith.constant 0 : index
    %c0_20 = arith.constant 0 : index
    %32 = vector.load %arg7[%c0_19, %c0_20] : memref<256x128xf32, #tpu.memory_space<vmem>>, vector<256x128xf32>
    %33 = vector.shape_cast %31 : vector<16x16x384xbf16> to vector<256x384xbf16>
    %c1 = arith.constant 1 : index
    %c0_21 = arith.constant 0 : index
    %c0_22 = arith.constant 0 : index
    %34 = vector.load %arg3[%c1, %c0_21, %c0_22] : memref<3x384x128xbf16, #tpu.memory_space<vmem>>, vector<1x384x128xbf16>
    %35 = vector.shape_cast %34 : vector<1x384x128xbf16> to vector<384x128xbf16>
    %cst_23 = arith.constant dense<0.000000e+00> : vector<256x128xf32>
    %36 = tpu.matmul %33, %35, %cst_23 {dimension_numbers = #tpu.dot_dimension_numbers<[1], [0], [0], [1], [0, 0, 1, 1], [], []>} : vector<256x384xbf16>, vector<384x128xbf16>, vector<256x128xf32> -> vector<256x128xf32>
    %37 = arith.addf %32, %36 : vector<256x128xf32>
    %c0_24 = arith.constant 0 : index
    %c0_25 = arith.constant 0 : index
    %38 = vector.load %arg7[%c0_24, %c0_25] : memref<256x128xf32, #tpu.memory_space<vmem>>, vector<256x128xf32>
    tpu.vector_store %arg7[%c0_24, %c0_25], %37 {strides = array<i32>} : memref<256x128xf32, #tpu.memory_space<vmem>>, vector<256x128xf32>,
    %c16_i32_26 = arith.constant 16 : i32
    %39 = arith.muli %arg1, %c16_i32_26 : i32
    %c2_i32 = arith.constant 2 : i32
    %40 = arith.addi %39, %c2_i32 : i32
    %c0_27 = arith.constant 0 : index
    %41 = arith.index_cast %40 : i32 to index
    %c0_28 = arith.constant 0 : index
    %c0_29 = arith.constant 0 : index
    %42 = vector.load %arg2[%c0_27, %41, %c0_28, %c0_29] : memref<1x18x18x128xbf16, #tpu.memory_space<vmem>>, vector<1x16x18x128xbf16>
    %43 = vector.shape_cast %42 : vector<1x16x18x128xbf16> to vector<16x18x128xbf16>
    %44 = vector.extract_strided_slice %43 {offsets = [0, 0, 0], sizes = [16, 16, 128], strides = [1, 1, 1]} : vector<16x18x128xbf16> to vector<16x16x128xbf16>
    %45 = vector.extract_strided_slice %43 {offsets = [0, 1, 0], sizes = [16, 16, 128], strides = [1, 1, 1]} : vector<16x18x128xbf16> to vector<16x16x128xbf16>
    %46 = vector.extract_strided_slice %43 {offsets = [0, 2, 0], sizes = [16, 16, 128], strides = [1, 1, 1]} : vector<16x18x128xbf16> to vector<16x16x128xbf16>
    %47 = tpu.concatenate %44, %45, %46 in 2 : vector<16x16x128xbf16>, vector<16x16x128xbf16>, vector<16x16x128xbf16> -> vector<16x16x384xbf16>
    %c0_30 = arith.constant 0 : index
    %c0_31 = arith.constant 0 : index
    %48 = vector.load %arg7[%c0_30, %c0_31] : memref<256x128xf32, #tpu.memory_space<vmem>>, vector<256x128xf32>
    %49 = vector.shape_cast %47 : vector<16x16x384xbf16> to vector<256x384xbf16>
    %c2 = arith.constant 2 : index
    %c0_32 = arith.constant 0 : index
    %c0_33 = arith.constant 0 : index
    %50 = vector.load %arg3[%c2, %c0_32, %c0_33] : memref<3x384x128xbf16, #tpu.memory_space<vmem>>, vector<1x384x128xbf16>
    %51 = vector.shape_cast %50 : vector<1x384x128xbf16> to vector<384x128xbf16>
    %cst_34 = arith.constant dense<0.000000e+00> : vector<256x128xf32>
    %52 = tpu.matmul %49, %51, %cst_34 {dimension_numbers = #tpu.dot_dimension_numbers<[1], [0], [0], [1], [0, 0, 1, 1], [], []>} : vector<256x384xbf16>, vector<384x128xbf16>, vector<256x128xf32> -> vector<256x128xf32>
    %53 = arith.addf %48, %52 : vector<256x128xf32>
    %c0_35 = arith.constant 0 : index
    %c0_36 = arith.constant 0 : index
    %54 = vector.load %arg7[%c0_35, %c0_36] : memref<256x128xf32, #tpu.memory_space<vmem>>, vector<256x128xf32>
    tpu.vector_store %arg7[%c0_35, %c0_36], %53 {strides = array<i32>} : memref<256x128xf32, #tpu.memory_space<vmem>>, vector<256x128xf32>,
    %c0_37 = arith.constant 0 : index
    %c0_38 = arith.constant 0 : index
    %55 = vector.load %arg7[%c0_37, %c0_38] : memref<256x128xf32, #tpu.memory_space<vmem>>, vector<256x128xf32>
    %56 = vector.shape_cast %55 : vector<256x128xf32> to vector<1x256x128xf32>
    %57 = arith.truncf %56 : vector<1x256x128xf32> to vector<1x256x128xbf16>
    %c0_39 = arith.constant 0 : index
    %c0_40 = arith.constant 0 : index
    %c0_41 = arith.constant 0 : index
    %58 = vector.load %arg5[%c0_39, %c0_40, %c0_41] : memref<1x256x128xbf16, #tpu.memory_space<vmem>>, vector<1x256x128xbf16>
    tpu.vector_store %arg5[%c0_39, %c0_40, %c0_41], %57 {strides = array<i32>} : memref<1x256x128xbf16, #tpu.memory_space<vmem>>, vector<1x256x128xbf16>,
    %c0_42 = arith.constant 0 : index
    %c0_43 = arith.constant 0 : index
    %59 = vector.load %arg7[%c0_42, %c0_43] : memref<256x128xf32, #tpu.memory_space<vmem>>, vector<256x128xf32>
    %cst_44 = arith.constant dense<0.000000e+00> : vector<128xf32>
    %60 = vector.multi_reduction <add>, %59, %cst_44 [0] : vector<256x128xf32> to vector<128xf32>
    %61 = vector.shape_cast %60 : vector<128xf32> to vector<1x128xf32>
    %62 = arith.mulf %59, %59 : vector<256x128xf32>
    %cst_45 = arith.constant dense<0.000000e+00> : vector<128xf32>
    %63 = vector.multi_reduction <add>, %62, %cst_45 [0] : vector<256x128xf32> to vector<128xf32>
    %64 = vector.shape_cast %63 : vector<128xf32> to vector<1x128xf32>
    %c0_46 = arith.constant 0 : index
    %c0_47 = arith.constant 0 : index
    %c0_48 = arith.constant 0 : index
    %65 = vector.load %arg6[%c0_46, %c0_47, %c0_48] : memref<1x2x128xf32, #tpu.memory_space<vmem>>, vector<1x2x128xf32>
    %66 = tpu.concatenate %61, %64 in 0 : vector<1x128xf32>, vector<1x128xf32> -> vector<2x128xf32>
    %67 = vector.shape_cast %66 : vector<2x128xf32> to vector<1x2x128xf32>
    %68 = arith.addf %65, %67 : vector<1x2x128xf32>
    %c0_49 = arith.constant 0 : index
    %c0_50 = arith.constant 0 : index
    %c0_51 = arith.constant 0 : index
    %69 = vector.load %arg6[%c0_49, %c0_50, %c0_51] : memref<1x2x128xf32, #tpu.memory_space<vmem>>, vector<1x2x128xf32>
    tpu.vector_store %arg6[%c0_49, %c0_50, %c0_51], %68 {strides = array<i32>} : memref<1x2x128xf32, #tpu.memory_space<vmem>>, vector<1x2x128xf32>,
    return
  }
  func.func @transform_0(%arg0: i32, %arg1: i32) -> (i32, i32, i32, i32) {
    %c0_i32 = arith.constant 0 : i32
    %c0_i32_0 = arith.constant 0 : i32
    %c0_i32_1 = arith.constant 0 : i32
    %c0_i32_2 = arith.constant 0 : i32
    return %arg0, %c0_i32, %c0_i32_0, %c0_i32_1 : i32, i32, i32, i32
  }
  func.func @transform_1(%arg0: i32, %arg1: i32) -> (i32, i32, i32) {
    %c0_i32 = arith.constant 0 : i32
    %c0_i32_0 = arith.constant 0 : i32
    %c0_i32_1 = arith.constant 0 : i32
    %c0_i32_2 = arith.constant 0 : i32
    return %c0_i32, %c0_i32_0, %c0_i32_1 : i32, i32, i32
  }
  func.func @transform_2(%arg0: i32, %arg1: i32) -> (i32, i32) {
    %c0_i32 = arith.constant 0 : i32
    %c0_i32_0 = arith.constant 0 : i32
    %c0_i32_1 = arith.constant 0 : i32
    return %c0_i32, %c0_i32_0 : i32, i32
  }
  func.func @transform_3(%arg0: i32, %arg1: i32) -> (i32, i32, i32) {
    %c0_i32 = arith.constant 0 : i32
    %c0_i32_0 = arith.constant 0 : i32
    return %arg0, %arg1, %c0_i32 : i32, i32, i32
  }
  func.func @transform_4(%arg0: i32, %arg1: i32) -> (i32, i32, i32) {
    %c0_i32 = arith.constant 0 : i32
    %c0_i32_0 = arith.constant 0 : i32
    %c0_i32_1 = arith.constant 0 : i32
    return %arg0, %c0_i32, %c0_i32_0 : i32, i32, i32
  }
}

</mosaic_0001>

<llo_original>
// kernel: vgg16_block_forward.5
$region0: #{vgg16_block_forward.5}
  #allocation0 [shape = 'u32[]', space=smem, size = 0x4, offset = 0x4, fixed_abs, tag = 'smem constant byte address 0x4 - core index']
  #allocation1 [shape = 'u32[144,128]{1,0:T(1,128)}', space=vmem, size = 0x12000, scoped, tag = 'internal scratch']
  %s0 = inlined_call_operand.vmem [shape: bf16[2,256,128], index: 0, kind: input, shape index: {}]
  %s1 = inlined_call_operand.vmem [shape: f32[1,128], index: 1, kind: input, shape index: {}]
  %s2 = inlined_call_operand.vmem [shape: f32[1,128], index: 2, kind: input, shape index: {}]
  %s3 = inlined_call_operand.vmem [shape: bf16[2,256,128], index: 3, kind: output, shape index: {}]
  %s4 = sld [smem:[#allocation0]]
  $region45: #{vgg16_block_forward.5} parent=0
    _
  %s6 = ssub.s32 1, %s4
  %s7 = scalar_select 0, %s6, %s4
  loop: start=0, step=1, limit=4
  $region2: #{vgg16_block_forward.5} parent=0 // loop_pre_header
    _
  $region3: #{vgg16_block_forward.5} parent=0 // loop_header
    %s9 = sphi 0, %s13
    %p10 = scmp.ge.s32.totalorder %s9, 4
    %s16 = sphi 0, %s28
    %s17 = sphi 0, %s24
    %s18 = sphi 0, %s16
    %s19 = sphi 0, %s17
    %s20 = sphi 0, %s18
    %s21 = sphi 0, %s19
    %s33 = sphi 0, %s35
    %s36 = sphi 0, %s33
    %s37 = sphi 0, %s36
    %s53 = sphi 0, %s37
    %s57 = sphi 0, %s57
    %s59 = sphi 0, %s57
    %s60 = sphi 0, %s59
    %s74 = sphi 0, %s60
    %s78 = sphi 0, %s78
    %s80 = sphi 0, %s78
    %s81 = sphi 0, %s80
    %s95 = sphi 0, %s81
    %s103 = sphi 0, %s105
    %s106 = sphi 0, %s103
    %s107 = sphi 0, %s106
    %s123 = sphi 0, %s107
  $region4: #{vgg16_block_forward.5} parent=0 // loop_header_branch
    %12 = sbr.rel (%p10) target = $region8
  $region5: #{vgg16_block_forward.5} parent=0 // loop_body
    %s14 = ssub.s32 %s9, 1
    %s15 = ssub.s32 %s9, 2
    %s22 = sadd.s32 1, %s17
    %p23 = scmp.ge.s32.totalorder %s22, 1
    %s24 = scalar_select %p23, 0, %s22
    %s25 = sadd.s32 1, %s16
    %s26 = scalar_select %p23, %s25, %s16
    %p27 = scmp.ge.s32.totalorder %s26, 2
    %s28 = scalar_select %p27, 0, %s26
    %s29 = ssub.s32 %s16, %s28
    %s30 = ssub.s32 %s17, %s24
    %s31 = sor.u32 %s29, %s30
    %p32 = scmp.eq.s32.totalorder %s31, 0
    %s34 = sadd.s32 %s33, 1
    %s35 = scalar_select %p32, %s33, %s34
    %p38 = pneg %p32
    %p39 = scmp.eq.s32.totalorder %s9, 1
    %p40 = por %p38, %p39
    %p41 = scmp.ne.s32.totalorder %s33, %s36
    %p42 = scmp.eq.s32.totalorder %s9, 0
    %p43 = por %p41, %p42
    %p44 = scmp.ne.s32.totalorder %s33, %s36
    %p45 = scmp.eq.s32.totalorder %s14, 1
    %p46 = por %p44, %p45
    %p47 = scmp.ne.s32.totalorder %s36, %s37
    %p48 = scmp.eq.s32.totalorder %s14, 0
    %p49 = por %p47, %p48
    %p50 = scmp.ne.s32.totalorder %s36, %s37
    %p51 = scmp.eq.s32.totalorder %s15, 1
    %p52 = por %p50, %p51
    %p54 = scmp.ne.s32.totalorder %s37, %s53
    %p55 = scmp.eq.s32.totalorder %s15, 0
    %p56 = por %p54, %p55
    %s58 = sadd.s32 %s57, 1
    %p61 = scmp.eq.s32.totalorder %s9, 1
    %p62 = scmp.ne.s32.totalorder %s57, %s59
    %p63 = scmp.eq.s32.totalorder %s9, 0
    %p64 = por %p62, %p63
    %p65 = scmp.ne.s32.totalorder %s57, %s59
    %p66 = scmp.eq.s32.totalorder %s14, 1
    %p67 = por %p65, %p66
    %p68 = scmp.ne.s32.totalorder %s59, %s60
    %p69 = scmp.eq.s32.totalorder %s14, 0
    %p70 = por %p68, %p69
    %p71 = scmp.ne.s32.totalorder %s59, %s60
    %p72 = scmp.eq.s32.totalorder %s15, 1
    %p73 = por %p71, %p72
    %p75 = scmp.ne.s32.totalorder %s60, %s74
    %p76 = scmp.eq.s32.totalorder %s15, 0
    %p77 = por %p75, %p76
    %s79 = sadd.s32 %s78, 1
    %p82 = scmp.eq.s32.totalorder %s9, 1
    %p83 = scmp.ne.s32.totalorder %s78, %s80
    %p84 = scmp.eq.s32.totalorder %s9, 0
    %p85 = por %p83, %p84
    %p86 = scmp.ne.s32.totalorder %s78, %s80
    %p87 = scmp.eq.s32.totalorder %s14, 1
    %p88 = por %p86, %p87
    %p89 = scmp.ne.s32.totalorder %s80, %s81
    %p90 = scmp.eq.s32.totalorder %s14, 0
    %p91 = por %p89, %p90
    %p92 = scmp.ne.s32.totalorder %s80, %s81
    %p93 = scmp.eq.s32.totalorder %s15, 1
    %p94 = por %p92, %p93
    %p96 = scmp.ne.s32.totalorder %s81, %s95
    %p97 = scmp.eq.s32.totalorder %s15, 0
    %p98 = por %p96, %p97
    %s99 = ssub.s32 %s16, %s28
    %s100 = ssub.s32 %s17, %s24
    %s101 = sor.u32 %s99, %s100
    %p102 = scmp.eq.s32.totalorder %s101, 0
    %s104 = sadd.s32 %s103, 1
    %s105 = scalar_select %p102, %s103, %s104
    %p108 = pneg %p102
    %p109 = scmp.eq.s32.totalorder %s9, 1
    %p110 = por %p108, %p109
    %p111 = scmp.ne.s32.totalorder %s103, %s106
    %p112 = scmp.eq.s32.totalorder %s9, 0
    %p113 = por %p111, %p112
    %p114 = scmp.ne.s32.totalorder %s103, %s106
    %p115 = scmp.eq.s32.totalorder %s14, 1
    %p116 = por %p114, %p115
    %p117 = scmp.ne.s32.totalorder %s106, %s107
    %p118 = scmp.eq.s32.totalorder %s14, 0
    %p119 = por %p117, %p118
    %p120 = scmp.ne.s32.totalorder %s106, %s107
    %p121 = scmp.eq.s32.totalorder %s15, 1
    %p122 = por %p120, %p121
    %p124 = scmp.ne.s32.totalorder %s107, %s123
    %p125 = scmp.eq.s32.totalorder %s15, 0
    %p126 = por %p124, %p125
    %p127 = scmp.le.s32.totalorder 1, %s9
    %p128 = scmp.lt.s32.totalorder %s9, 3
    %p129 = pnand %p127, %p128
    %p130 = pneg %p129
    // Predicated region
    $region9: #{vgg16_block_forward.5} parent=5 // pred_check
      _
    $region10: #{vgg16_block_forward.5} parent=5 // pred_check_branch
      %132 = sbr.rel (%p129) target = $region12
    $region11: #{vgg16_block_forward.5} parent=5 // pred_region
      %s133 = ssub.s32 %s9, 1
      // Predicated region
      $region13: #{vgg16_block_forward.5} parent=11 // pred_check
        %p134 = pneg %p70
      $region14: #{vgg16_block_forward.5} parent=11 // pred_check_branch
        %136 = sbr.rel (%p134) target = $region16
      $region15: #{vgg16_block_forward.5} parent=11 // pred_region
        _
      $region16: #{vgg16_block_forward.5} parent=11 // pred_fallthru
        _
      // Predicated region
      $region17: #{vgg16_block_forward.5} parent=11 // pred_check
        %p137 = pneg %p91
      $region18: #{vgg16_block_forward.5} parent=11 // pred_check_branch
        %139 = sbr.rel (%p137) target = $region20
      $region19: #{vgg16_block_forward.5} parent=11 // pred_region
        _
      $region20: #{vgg16_block_forward.5} parent=11 // pred_fallthru
        _
    $region12: #{vgg16_block_forward.5} parent=5 // pred_fallthru
      _
    %p140 = scmp.lt.s32.totalorder %s9, 2
    // Predicated region
    $region21: #{vgg16_block_forward.5} parent=5 // pred_check
      %p141 = pneg %p140
    $region22: #{vgg16_block_forward.5} parent=5 // pred_check_branch
      %143 = sbr.rel (%p141) target = $region24
    $region23: #{vgg16_block_forward.5} parent=5 // pred_region
      // Predicated region
      $region25: #{vgg16_block_forward.5} parent=23 // pred_check
        %p144 = pneg %p43
      $region26: #{vgg16_block_forward.5} parent=23 // pred_check_branch
        %146 = sbr.rel (%p144) target = $region28
      $region27: #{vgg16_block_forward.5} parent=23 // pred_region
        %s147 = smul.u32 32, %s17
        %p148 = scmp.lt.s32.totalorder %s16, 1
        %s149 = scalar_select %p148, %s16, 1
        %p150 = scmp.lt.s32.totalorder %s147, 31
        %s151 = scalar_select %p150, %s147, 31
        %s152 = smul.addr %s149, 32
        %s153 = sadd.s32 %s151, %s152
        %s154 = smul.addr %s153, 4
        %s155 = scalar_lea.vmem %s0, %s154
        %s156 = smul.u32 32, %s17
      $region28: #{vgg16_block_forward.5} parent=23 // pred_fallthru
        _
    $region24: #{vgg16_block_forward.5} parent=5 // pred_fallthru
      _
    %p157 = scmp.le.s32.totalorder 1, %s9
    %p158 = scmp.lt.s32.totalorder %s9, 3
    %p159 = pnand %p157, %p158
    %p160 = pneg %p159
    // Predicated region
    $region29: #{vgg16_block_forward.5} parent=5 // pred_check
      _
    $region30: #{vgg16_block_forward.5} parent=5 // pred_check_branch
      %162 = sbr.rel (%p159) target = $region32
    $region31: #{vgg16_block_forward.5} parent=5 // pred_region
      %s163 = ssub.s32 %s9, 1
      %s164 = smul.u32 32, %s19
      %p165 = scmp.lt.s32.totalorder %s18, 1
      %s166 = scalar_select %p165, %s18, 1
      %p167 = scmp.lt.s32.totalorder %s164, 31
      %s168 = scalar_select %p167, %s164, 31
      %s169 = smul.addr %s166, 32
      %s170 = sadd.s32 %s168, %s169
      %s171 = smul.addr %s170, 4
      %s172 = scalar_lea.vmem %s0, %s171
      %p173 = pneg %p49
      %p174 = pneg %p46
      %p175 = pneg %p70
      %p176 = pneg %p67
      %p177 = pneg %p91
      %p178 = pneg %p88
      %p179 = pneg %p119
      %p180 = pneg %p116
      %s181 = smul.u32 32, %s19
      %p182 = scmp.lt.s32.totalorder %s18, 1
      %s183 = scalar_select %p182, %s18, 1
      %p184 = scmp.lt.s32.totalorder %s181, 31
      %s185 = scalar_select %p184, %s181, 31
      %s186 = smul.addr %s183, 32
      %s187 = sadd.s32 %s185, %s186
      %s188 = smul.addr %s187, 4
      %s189 = scalar_lea.vmem %s3, %s188
      %s190 = smul.u32 32, %s19
      %p191 = scmp.lt.s32.totalorder %s18, 1
      %s192 = scalar_select %p191, %s18, 1
      %p193 = scmp.lt.s32.totalorder %s190, 31
      %s194 = scalar_select %p193, %s190, 31
      %s195 = smul.addr %s192, 32
      %s196 = sadd.s32 %s194, %s195
      %s197 = smul.addr %s196, 4
      %s198 = scalar_lea.vmem %s0, %s197
      %s199 = smul.u32 32, %s19
      %s200 = smul.u32 32, %s19
      %p201 = scmp.lt.s32.totalorder %s18, 1
      %s202 = scalar_select %p201, %s18, 1
      %p203 = scmp.lt.s32.totalorder %s200, 31
      %s204 = scalar_select %p203, %s200, 31
      %s205 = smul.addr %s202, 32
      %s206 = sadd.s32 %s204, %s205
      %s207 = smul.addr %s206, 4
      %s208 = scalar_lea.vmem %s3, %s207
      %s209 = smul.u32 32, %s19
      %v210 = vld [vmem:[%s198] sm:$0xf]
      %v211 = vld [vmem:[%s198 + $0x4] sm:$0xf]
      %v212 = vld [vmem:[%s198 + $0x8] sm:$0xf]
      %v213 = vld [vmem:[%s198 + $0xc] sm:$0xf]
      %v214 = vld [vmem:[%s198 + $0x10] sm:$0xf]
      %v215 = vld [vmem:[%s198 + $0x14] sm:$0xf]
      %v216 = vld [vmem:[%s198 + $0x18] sm:$0xf]
      %v217 = vld [vmem:[%s198 + $0x1c] sm:$0xf]
      %v218 = vld [vmem:[%s198 + $0x20] sm:$0xf]
      %v219 = vld [vmem:[%s198 + $0x24] sm:$0xf]
      %v220 = vld [vmem:[%s198 + $0x28] sm:$0xf]
      %v221 = vld [vmem:[%s198 + $0x2c] sm:$0xf]
      %v222 = vld [vmem:[%s198 + $0x30] sm:$0xf]
      %v223 = vld [vmem:[%s198 + $0x34] sm:$0xf]
      %v224 = vld [vmem:[%s198 + $0x38] sm:$0xf]
      %v225 = vld [vmem:[%s198 + $0x3c] sm:$0xf]
      %v226 = vld [vmem:[%s198 + $0x40] sm:$0xf]
      %v227 = vld [vmem:[%s198 + $0x44] sm:$0xf]
      %v228 = vld [vmem:[%s198 + $0x48] sm:$0xf]
      %v229 = vld [vmem:[%s198 + $0x4c] sm:$0xf]
      %v230 = vld [vmem:[%s198 + $0x50] sm:$0xf]
      %v231 = vld [vmem:[%s198 + $0x54] sm:$0xf]
      %v232 = vld [vmem:[%s198 + $0x58] sm:$0xf]
      %v233 = vld [vmem:[%s198 + $0x5c] sm:$0xf]
      %v234 = vld [vmem:[%s198 + $0x60] sm:$0xf]
      %v235 = vld [vmem:[%s198 + $0x64] sm:$0xf]
      %v236 = vld [vmem:[%s198 + $0x68] sm:$0xf]
      %v237 = vld [vmem:[%s198 + $0x6c] sm:$0xf]
      %v238 = vld [vmem:[%s198 + $0x70] sm:$0xf]
      %v239 = vld [vmem:[%s198 + $0x74] sm:$0xf]
      %v240 = vld [vmem:[%s198 + $0x78] sm:$0xf]
      %v241 = vld [vmem:[%s198 + $0x7c] sm:$0xf]
      %v242 = vunpack.c.l.bf16 %v210
      %v243 = vunpack.c.l.bf16 %v211
      %v244 = vunpack.c.l.bf16 %v212
      %v245 = vunpack.c.l.bf16 %v213
      %v246 = vunpack.c.l.bf16 %v214
      %v247 = vunpack.c.l.bf16 %v215
      %v248 = vunpack.c.l.bf16 %v216
      %v249 = vunpack.c.l.bf16 %v217
      %v250 = vunpack.c.l.bf16 %v218
      %v251 = vunpack.c.l.bf16 %v219
      %v252 = vunpack.c.l.bf16 %v220
      %v253 = vunpack.c.l.bf16 %v221
      %v254 = vunpack.c.l.bf16 %v222
      %v255 = vunpack.c.l.bf16 %v223
      %v256 = vunpack.c.l.bf16 %v224
      %v257 = vunpack.c.l.bf16 %v225
      %v258 = vunpack.c.l.bf16 %v226
      %v259 = vunpack.c.l.bf16 %v227
      %v260 = vunpack.c.l.bf16 %v228
      %v261 = vunpack.c.l.bf16 %v229
      %v262 = vunpack.c.l.bf16 %v230
      %v263 = vunpack.c.l.bf16 %v231
      %v264 = vunpack.c.l.bf16 %v232
      %v265 = vunpack.c.l.bf16 %v233
      %v266 = vunpack.c.l.bf16 %v234
      %v267 = vunpack.c.l.bf16 %v235
      %v268 = vunpack.c.l.bf16 %v236
      %v269 = vunpack.c.l.bf16 %v237
      %v270 = vunpack.c.l.bf16 %v238
      %v271 = vunpack.c.l.bf16 %v239
      %v272 = vunpack.c.l.bf16 %v240
      %v273 = vunpack.c.l.bf16 %v241
      %v274 = vld [vmem:[%s1] sm:$0x1]
      %v275 = vld [vmem:[%s2] sm:$0x1]
      %v277 = vlaneseq
      %v278 = vshrl.u32 %v277, 7
      %v279 = vsub.s32 0, %v278
      %v280 = vrot.slane %v274, %v279
      %v282 = vmul.f32 %v242, %v280
      %v283 = vmul.f32 %v243, %v280
      %v284 = vmul.f32 %v244, %v280
      %v285 = vmul.f32 %v245, %v280
      %v286 = vmul.f32 %v246, %v280
      %v287 = vmul.f32 %v247, %v280
      %v288 = vmul.f32 %v248, %v280
      %v289 = vmul.f32 %v249, %v280
      %v290 = vmul.f32 %v250, %v280
      %v291 = vmul.f32 %v251, %v280
      %v292 = vmul.f32 %v252, %v280
      %v293 = vmul.f32 %v253, %v280
      %v294 = vmul.f32 %v254, %v280
      %v295 = vmul.f32 %v255, %v280
      %v296 = vmul.f32 %v256, %v280
      %v297 = vmul.f32 %v257, %v280
      %v298 = vmul.f32 %v258, %v280
      %v299 = vmul.f32 %v259, %v280
      %v300 = vmul.f32 %v260, %v280
      %v301 = vmul.f32 %v261, %v280
      %v302 = vmul.f32 %v262, %v280
      %v303 = vmul.f32 %v263, %v280
      %v304 = vmul.f32 %v264, %v280
      %v305 = vmul.f32 %v265, %v280
      %v306 = vmul.f32 %v266, %v280
      %v307 = vmul.f32 %v267, %v280
      %v308 = vmul.f32 %v268, %v280
      %v309 = vmul.f32 %v269, %v280
      %v310 = vmul.f32 %v270, %v280
      %v311 = vmul.f32 %v271, %v280
      %v312 = vmul.f32 %v272, %v280
      %v313 = vmul.f32 %v273, %v280
      %v315 = vlaneseq
      %v316 = vshrl.u32 %v315, 7
      %v317 = vsub.s32 0, %v316
      %v318 = vrot.slane %v275, %v317
      %v320 = vadd.f32 %v282, %v318
      %v321 = vadd.f32 %v283, %v318
      %v322 = vadd.f32 %v284, %v318
      %v323 = vadd.f32 %v285, %v318
      %v324 = vadd.f32 %v286, %v318
      %v325 = vadd.f32 %v287, %v318
      %v326 = vadd.f32 %v288, %v318
      %v327 = vadd.f32 %v289, %v318
      %v328 = vadd.f32 %v290, %v318
      %v329 = vadd.f32 %v291, %v318
      %v330 = vadd.f32 %v292, %v318
      %v331 = vadd.f32 %v293, %v318
      %v332 = vadd.f32 %v294, %v318
      %v333 = vadd.f32 %v295, %v318
      %v334 = vadd.f32 %v296, %v318
      %v335 = vadd.f32 %v297, %v318
      %v336 = vadd.f32 %v298, %v318
      %v337 = vadd.f32 %v299, %v318
      %v338 = vadd.f32 %v300, %v318
      %v339 = vadd.f32 %v301, %v318
      %v340 = vadd.f32 %v302, %v318
      %v341 = vadd.f32 %v303, %v318
      %v342 = vadd.f32 %v304, %v318
      %v343 = vadd.f32 %v305, %v318
      %v344 = vadd.f32 %v306, %v318
      %v345 = vadd.f32 %v307, %v318
      %v346 = vadd.f32 %v308, %v318
      %v347 = vadd.f32 %v309, %v318
      %v348 = vadd.f32 %v310, %v318
      %v349 = vadd.f32 %v311, %v318
      %v350 = vadd.f32 %v312, %v318
      %v351 = vadd.f32 %v313, %v318
      %v352 = vmax.f32 %v320, 0.0
      %v353 = vmax.f32 %v321, 0.0
      %v354 = vmax.f32 %v322, 0.0
      %v355 = vmax.f32 %v323, 0.0
      %v356 = vmax.f32 %v324, 0.0
      %v357 = vmax.f32 %v325, 0.0
      %v358 = vmax.f32 %v326, 0.0
      %v359 = vmax.f32 %v327, 0.0
      %v360 = vmax.f32 %v328, 0.0
      %v361 = vmax.f32 %v329, 0.0
      %v362 = vmax.f32 %v330, 0.0
      %v363 = vmax.f32 %v331, 0.0
      %v364 = vmax.f32 %v332, 0.0
      %v365 = vmax.f32 %v333, 0.0
      %v366 = vmax.f32 %v334, 0.0
      %v367 = vmax.f32 %v335, 0.0
      %v368 = vmax.f32 %v336, 0.0
      %v369 = vmax.f32 %v337, 0.0
      %v370 = vmax.f32 %v338, 0.0
      %v371 = vmax.f32 %v339, 0.0
      %v372 = vmax.f32 %v340, 0.0
      %v373 = vmax.f32 %v341, 0.0
      %v374 = vmax.f32 %v342, 0.0
      %v375 = vmax.f32 %v343, 0.0
      %v376 = vmax.f32 %v344, 0.0
      %v377 = vmax.f32 %v345, 0.0
      %v378 = vmax.f32 %v346, 0.0
      %v379 = vmax.f32 %v347, 0.0
      %v380 = vmax.f32 %v348, 0.0
      %v381 = vmax.f32 %v349, 0.0
      %v382 = vmax.f32 %v350, 0.0
      %v383 = vmax.f32 %v351, 0.0
      %v384 = vpack.c.bf16 %v353, %v352
      %v385 = vpack.c.bf16 %v355, %v354
      %v386 = vpack.c.bf16 %v357, %v356
      %v387 = vpack.c.bf16 %v359, %v358
      %v388 = vpack.c.bf16 %v361, %v360
      %v389 = vpack.c.bf16 %v363, %v362
      %v390 = vpack.c.bf16 %v365, %v364
      %v391 = vpack.c.bf16 %v367, %v366
      %v392 = vpack.c.bf16 %v369, %v368
      %v393 = vpack.c.bf16 %v371, %v370
      %v394 = vpack.c.bf16 %v373, %v372
      %v395 = vpack.c.bf16 %v375, %v374
      %v396 = vpack.c.bf16 %v377, %v376
      %v397 = vpack.c.bf16 %v379, %v378
      %v398 = vpack.c.bf16 %v381, %v380
      %v399 = vpack.c.bf16 %v383, %v382
      %v416 = vunpack.c.l.b16 %v384
      %v417 = vunpack.c.h.b16 %v384
      %v418 = vunpack.c.l.b16 %v385
      %v419 = vunpack.c.h.b16 %v385
      %v420 = vunpack.c.l.b16 %v386
      %v421 = vunpack.c.h.b16 %v386
      %v422 = vunpack.c.l.b16 %v387
      %v423 = vunpack.c.h.b16 %v387
      %v424 = vunpack.c.l.b16 %v388
      %v425 = vunpack.c.h.b16 %v388
      %v426 = vunpack.c.l.b16 %v389
      %v427 = vunpack.c.h.b16 %v389
      %v428 = vunpack.c.l.b16 %v390
      %v429 = vunpack.c.h.b16 %v390
      %v430 = vunpack.c.l.b16 %v391
      %v431 = vunpack.c.h.b16 %v391
      %v432 = vunpack.c.l.b16 %v392
      %v433 = vunpack.c.h.b16 %v392
      %v434 = vunpack.c.l.b16 %v393
      %v435 = vunpack.c.h.b16 %v393
      %v436 = vunpack.c.l.b16 %v394
      %v437 = vunpack.c.h.b16 %v394
      %v438 = vunpack.c.l.b16 %v395
      %v439 = vunpack.c.h.b16 %v395
      %v440 = vunpack.c.l.b16 %v396
      %v441 = vunpack.c.h.b16 %v396
      %v442 = vunpack.c.l.b16 %v397
      %v443 = vunpack.c.h.b16 %v397
      %v444 = vunpack.c.l.b16 %v398
      %v445 = vunpack.c.h.b16 %v398
      %v446 = vunpack.c.l.b16 %v399
      %v447 = vunpack.c.h.b16 %v399
      %v448 = vpack.c.b16 %v416, %v416
      %v449 = vpack.c.b16 %v417, %v417
      %v450 = vpack.c.b16 %v418, %v418
      %v451 = vpack.c.b16 %v419, %v419
      %v452 = vpack.c.b16 %v420, %v420
      %v453 = vpack.c.b16 %v421, %v421
      %v454 = vpack.c.b16 %v422, %v422
      %v455 = vpack.c.b16 %v423, %v423
      %v456 = vpack.c.b16 %v424, %v424
      %v457 = vpack.c.b16 %v425, %v425
      %v458 = vpack.c.b16 %v426, %v426
      %v459 = vpack.c.b16 %v427, %v427
      %v460 = vpack.c.b16 %v428, %v428
      %v461 = vpack.c.b16 %v429, %v429
      %v462 = vpack.c.b16 %v430, %v430
      %v463 = vpack.c.b16 %v431, %v431
      %v464 = vpack.c.b16 %v432, %v432
      %v465 = vpack.c.b16 %v433, %v433
      %v466 = vpack.c.b16 %v434, %v434
      %v467 = vpack.c.b16 %v435, %v435
      %v468 = vpack.c.b16 %v436, %v436
      %v469 = vpack.c.b16 %v437, %v437
      %v470 = vpack.c.b16 %v438, %v438
      %v471 = vpack.c.b16 %v439, %v439
      %v472 = vpack.c.b16 %v440, %v440
      %v473 = vpack.c.b16 %v441, %v441
      %v474 = vpack.c.b16 %v442, %v442
      %v475 = vpack.c.b16 %v443, %v443
      %v476 = vpack.c.b16 %v444, %v444
      %v477 = vpack.c.b16 %v445, %v445
      %v478 = vpack.c.b16 %v446, %v446
      %v479 = vpack.c.b16 %v447, %v447
      %512 = vst [vmem:[%s208] sm:$0xf] %v448
      %513 = vst [vmem:[%s208 + $0x4] sm:$0xf] %v449
      %514 = vst [vmem:[%s208 + $0x8] sm:$0xf] %v450
      %515 = vst [vmem:[%s208 + $0xc] sm:$0xf] %v451
      %516 = vst [vmem:[%s208 + $0x10] sm:$0xf] %v452
      %517 = vst [vmem:[%s208 + $0x14] sm:$0xf] %v453
      %518 = vst [vmem:[%s208 + $0x18] sm:$0xf] %v454
      %519 = vst [vmem:[%s208 + $0x1c] sm:$0xf] %v455
      %520 = vst [vmem:[%s208 + $0x20] sm:$0xf] %v456
      %521 = vst [vmem:[%s208 + $0x24] sm:$0xf] %v457
      %522 = vst [vmem:[%s208 + $0x28] sm:$0xf] %v458
      %523 = vst [vmem:[%s208 + $0x2c] sm:$0xf] %v459
      %524 = vst [vmem:[%s208 + $0x30] sm:$0xf] %v460
      %525 = vst [vmem:[%s208 + $0x34] sm:$0xf] %v461
      %526 = vst [vmem:[%s208 + $0x38] sm:$0xf] %v462
      %527 = vst [vmem:[%s208 + $0x3c] sm:$0xf] %v463
      %528 = vst [vmem:[%s208 + $0x40] sm:$0xf] %v464
      %529 = vst [vmem:[%s208 + $0x44] sm:$0xf] %v465
      %530 = vst [vmem:[%s208 + $0x48] sm:$0xf] %v466
      %531 = vst [vmem:[%s208 + $0x4c] sm:$0xf] %v467
      %532 = vst [vmem:[%s208 + $0x50] sm:$0xf] %v468
      %533 = vst [vmem:[%s208 + $0x54] sm:$0xf] %v469
      %534 = vst [vmem:[%s208 + $0x58] sm:$0xf] %v470
      %535 = vst [vmem:[%s208 + $0x5c] sm:$0xf] %v471
      %536 = vst [vmem:[%s208 + $0x60] sm:$0xf] %v472
      %537 = vst [vmem:[%s208 + $0x64] sm:$0xf] %v473
      %538 = vst [vmem:[%s208 + $0x68] sm:$0xf] %v474
      %539 = vst [vmem:[%s208 + $0x6c] sm:$0xf] %v475
      %540 = vst [vmem:[%s208 + $0x70] sm:$0xf] %v476
      %541 = vst [vmem:[%s208 + $0x74] sm:$0xf] %v477
      %542 = vst [vmem:[%s208 + $0x78] sm:$0xf] %v478
      %543 = vst [vmem:[%s208 + $0x7c] sm:$0xf] %v479
      %s544 = smul.u32 32, %s19
      %p545 = scmp.lt.s32.totalorder %s18, 1
      %s546 = scalar_select %p545, %s18, 1
      %p547 = scmp.lt.s32.totalorder %s544, 31
      %s548 = scalar_select %p547, %s544, 31
      %s549 = smul.addr %s546, 32
      %s550 = sadd.s32 %s548, %s549
      %s551 = smul.addr %s550, 4
      %s552 = scalar_lea.vmem %s3, %s551
      // Predicated region
      $region33: #{vgg16_block_forward.5} parent=31 // pred_check
        %p553 = pneg %p116
      $region34: #{vgg16_block_forward.5} parent=31 // pred_check_branch
        %555 = sbr.rel (%p553) target = $region36
      $region35: #{vgg16_block_forward.5} parent=31 // pred_region
        %s556 = smul.u32 32, %s19
      $region36: #{vgg16_block_forward.5} parent=31 // pred_fallthru
        _
    $region32: #{vgg16_block_forward.5} parent=5 // pred_fallthru
      _
    %p557 = scmp.le.s32.totalorder 2, %s9
    // Predicated region
    $region37: #{vgg16_block_forward.5} parent=5 // pred_check
      %p558 = pneg %p557
    $region38: #{vgg16_block_forward.5} parent=5 // pred_check_branch
      %560 = sbr.rel (%p558) target = $region40
    $region39: #{vgg16_block_forward.5} parent=5 // pred_region
      %s561 = ssub.s32 %s9, 2
      // Predicated region
      $region41: #{vgg16_block_forward.5} parent=39 // pred_check
        %p562 = pneg %p122
      $region42: #{vgg16_block_forward.5} parent=39 // pred_check_branch
        %564 = sbr.rel (%p562) target = $region44
      $region43: #{vgg16_block_forward.5} parent=39 // pred_region
        %s565 = smul.u32 32, %s21
        %p566 = scmp.lt.s32.totalorder %s20, 1
        %s567 = scalar_select %p566, %s20, 1
        %p568 = scmp.lt.s32.totalorder %s565, 31
        %s569 = scalar_select %p568, %s565, 31
        %s570 = smul.addr %s567, 32
        %s571 = sadd.s32 %s569, %s570
        %s572 = smul.addr %s571, 4
        %s573 = scalar_lea.vmem %s3, %s572
      $region44: #{vgg16_block_forward.5} parent=39 // pred_fallthru
        _
    $region40: #{vgg16_block_forward.5} parent=5 // pred_fallthru
      _
  $region6: #{vgg16_block_forward.5} parent=0 // loop_footer
    %s13 = sadd.s32 1, %s9
  $region7: #{vgg16_block_forward.5} parent=0 // loop_footer_branch
    %8 = sbr.rel target = $region3
  $region8: #{vgg16_block_forward.5} parent=0 // loop_exit
    _

// kernel: vgg16_block_forward.4
$region0: #{vgg16_block_forward.4}
  #allocation0 [shape = 'u32[]', space=smem, size = 0x4, offset = 0x4, fixed_abs, tag = 'smem constant byte address 0x4 - core index']
  #allocation1 [shape = 'u32[144,128]{1,0:T(1,128)}', space=vmem, size = 0x12000, scoped, tag = 'internal scratch']
  #allocation2 [shape = 'f32[256,128]{1,0:T(8,128)}', space=vmem, size = 0x20000, scoped, tag = 'scratch operand']
  %s0 = inlined_call_operand.vmem [shape: bf16[2,18,18,4], index: 0, kind: input, shape index: {}]
  %s1 = inlined_call_operand.vmem [shape: bf16[3,12,128], index: 1, kind: input, shape index: {}]
  %s2 = inlined_call_operand.vmem [shape: f32[1,128], index: 2, kind: input, shape index: {}]
  %s3 = inlined_call_operand.vmem [shape: bf16[2,256,128], index: 3, kind: output, shape index: {0}]
  %s4 = inlined_call_operand.vmem [shape: f32[2,2,128], index: 4, kind: output, shape index: {1}]
  %5 = xla_tuple %s3, %s4
  %s6 = sld [smem:[#allocation0]]
  $region57: #{vgg16_block_forward.4} parent=0
    _
  %s8 = ssub.s32 1, %s6
  %s9 = scalar_select 0, %s8, %s6
  loop: start=0, step=1, limit=4
  $region2: #{vgg16_block_forward.4} parent=0 // loop_pre_header
    _
  $region3: #{vgg16_block_forward.4} parent=0 // loop_header
    %s11 = sphi 0, %s15
    %p12 = scmp.ge.s32.totalorder %s11, 4
    %s18 = sphi 0, %s30
    %s19 = sphi 0, %s26
    %s20 = sphi 0, %s18
    %s21 = sphi 0, %s19
    %s22 = sphi 0, %s20
    %s23 = sphi 0, %s21
    %s33 = sphi 0, %s35
    %s36 = sphi 0, %s33
    %s37 = sphi 0, %s36
    %s53 = sphi 0, %s37
    %s57 = sphi 0, %s57
    %s59 = sphi 0, %s57
    %s60 = sphi 0, %s59
    %s74 = sphi 0, %s60
    %s78 = sphi 0, %s78
    %s80 = sphi 0, %s78
    %s81 = sphi 0, %s80
    %s95 = sphi 0, %s81
    %s103 = sphi 0, %s105
    %s106 = sphi 0, %s103
    %s107 = sphi 0, %s106
    %s123 = sphi 0, %s107
    %s129 = sphi 0, %s131
    %s132 = sphi 0, %s129
    %s133 = sphi 0, %s132
    %s149 = sphi 0, %s133
  $region4: #{vgg16_block_forward.4} parent=0 // loop_header_branch
    %14 = sbr.rel (%p12) target = $region8
  $region5: #{vgg16_block_forward.4} parent=0 // loop_body
    %s16 = ssub.s32 %s11, 1
    %s17 = ssub.s32 %s11, 2
    %s24 = sadd.s32 1, %s19
    %p25 = scmp.ge.s32.totalorder %s24, 1
    %s26 = scalar_select %p25, 0, %s24
    %s27 = sadd.s32 1, %s18
    %s28 = scalar_select %p25, %s27, %s18
    %p29 = scmp.ge.s32.totalorder %s28, 2
    %s30 = scalar_select %p29, 0, %s28
    %s31 = ssub.s32 %s18, %s30
    %p32 = scmp.eq.s32.totalorder %s31, 0
    %s34 = sadd.s32 %s33, 1
    %s35 = scalar_select %p32, %s33, %s34
    %p38 = pneg %p32
    %p39 = scmp.eq.s32.totalorder %s11, 1
    %p40 = por %p38, %p39
    %p41 = scmp.ne.s32.totalorder %s33, %s36
    %p42 = scmp.eq.s32.totalorder %s11, 0
    %p43 = por %p41, %p42
    %p44 = scmp.ne.s32.totalorder %s33, %s36
    %p45 = scmp.eq.s32.totalorder %s16, 1
    %p46 = por %p44, %p45
    %p47 = scmp.ne.s32.totalorder %s36, %s37
    %p48 = scmp.eq.s32.totalorder %s16, 0
    %p49 = por %p47, %p48
    %p50 = scmp.ne.s32.totalorder %s36, %s37
    %p51 = scmp.eq.s32.totalorder %s17, 1
    %p52 = por %p50, %p51
    %p54 = scmp.ne.s32.totalorder %s37, %s53
    %p55 = scmp.eq.s32.totalorder %s17, 0
    %p56 = por %p54, %p55
    %s58 = sadd.s32 %s57, 1
    %p61 = scmp.eq.s32.totalorder %s11, 1
    %p62 = scmp.ne.s32.totalorder %s57, %s59
    %p63 = scmp.eq.s32.totalorder %s11, 0
    %p64 = por %p62, %p63
    %p65 = scmp.ne.s32.totalorder %s57, %s59
    %p66 = scmp.eq.s32.totalorder %s16, 1
    %p67 = por %p65, %p66
    %p68 = scmp.ne.s32.totalorder %s59, %s60
    %p69 = scmp.eq.s32.totalorder %s16, 0
    %p70 = por %p68, %p69
    %p71 = scmp.ne.s32.totalorder %s59, %s60
    %p72 = scmp.eq.s32.totalorder %s17, 1
    %p73 = por %p71, %p72
    %p75 = scmp.ne.s32.totalorder %s60, %s74
    %p76 = scmp.eq.s32.totalorder %s17, 0
    %p77 = por %p75, %p76
    %s79 = sadd.s32 %s78, 1
    %p82 = scmp.eq.s32.totalorder %s11, 1
    %p83 = scmp.ne.s32.totalorder %s78, %s80
    %p84 = scmp.eq.s32.totalorder %s11, 0
    %p85 = por %p83, %p84
    %p86 = scmp.ne.s32.totalorder %s78, %s80
    %p87 = scmp.eq.s32.totalorder %s16, 1
    %p88 = por %p86, %p87
    %p89 = scmp.ne.s32.totalorder %s80, %s81
    %p90 = scmp.eq.s32.totalorder %s16, 0
    %p91 = por %p89, %p90
    %p92 = scmp.ne.s32.totalorder %s80, %s81
    %p93 = scmp.eq.s32.totalorder %s17, 1
    %p94 = por %p92, %p93
    %p96 = scmp.ne.s32.totalorder %s81, %s95
    %p97 = scmp.eq.s32.totalorder %s17, 0
    %p98 = por %p96, %p97
    %s99 = ssub.s32 %s18, %s30
    %s100 = ssub.s32 %s19, %s26
    %s101 = sor.u32 %s99, %s100
    %p102 = scmp.eq.s32.totalorder %s101, 0
    %s104 = sadd.s32 %s103, 1
    %s105 = scalar_select %p102, %s103, %s104
    %p108 = pneg %p102
    %p109 = scmp.eq.s32.totalorder %s11, 1
    %p110 = por %p108, %p109
    %p111 = scmp.ne.s32.totalorder %s103, %s106
    %p112 = scmp.eq.s32.totalorder %s11, 0
    %p113 = por %p111, %p112
    %p114 = scmp.ne.s32.totalorder %s103, %s106
    %p115 = scmp.eq.s32.totalorder %s16, 1
    %p116 = por %p114, %p115
    %p117 = scmp.ne.s32.totalorder %s106, %s107
    %p118 = scmp.eq.s32.totalorder %s16, 0
    %p119 = por %p117, %p118
    %p120 = scmp.ne.s32.totalorder %s106, %s107
    %p121 = scmp.eq.s32.totalorder %s17, 1
    %p122 = por %p120, %p121
    %p124 = scmp.ne.s32.totalorder %s107, %s123
    %p125 = scmp.eq.s32.totalorder %s17, 0
    %p126 = por %p124, %p125
    %s127 = ssub.s32 %s18, %s30
    %p128 = scmp.eq.s32.totalorder %s127, 0
    %s130 = sadd.s32 %s129, 1
    %s131 = scalar_select %p128, %s129, %s130
    %p134 = pneg %p128
    %p135 = scmp.eq.s32.totalorder %s11, 1
    %p136 = por %p134, %p135
    %p137 = scmp.ne.s32.totalorder %s129, %s132
    %p138 = scmp.eq.s32.totalorder %s11, 0
    %p139 = por %p137, %p138
    %p140 = scmp.ne.s32.totalorder %s129, %s132
    %p141 = scmp.eq.s32.totalorder %s16, 1
    %p142 = por %p140, %p141
    %p143 = scmp.ne.s32.totalorder %s132, %s133
    %p144 = scmp.eq.s32.totalorder %s16, 0
    %p145 = por %p143, %p144
    %p146 = scmp.ne.s32.totalorder %s132, %s133
    %p147 = scmp.eq.s32.totalorder %s17, 1
    %p148 = por %p146, %p147
    %p150 = scmp.ne.s32.totalorder %s133, %s149
    %p151 = scmp.eq.s32.totalorder %s17, 0
    %p152 = por %p150, %p151
    %p153 = scmp.le.s32.totalorder 1, %s11
    %p154 = scmp.lt.s32.totalorder %s11, 3
    %p155 = pnand %p153, %p154
    %p156 = pneg %p155
    // Predicated region
    $region9: #{vgg16_block_forward.4} parent=5 // pred_check
      _
    $region10: #{vgg16_block_forward.4} parent=5 // pred_check_branch
      %158 = sbr.rel (%p155) target = $region12
    $region11: #{vgg16_block_forward.4} parent=5 // pred_region
      %s159 = ssub.s32 %s11, 1
      // Predicated region
      $region13: #{vgg16_block_forward.4} parent=11 // pred_check
        %p160 = pneg %p70
      $region14: #{vgg16_block_forward.4} parent=11 // pred_check_branch
        %162 = sbr.rel (%p160) target = $region16
      $region15: #{vgg16_block_forward.4} parent=11 // pred_region
        _
      $region16: #{vgg16_block_forward.4} parent=11 // pred_fallthru
        _
      // Predicated region
      $region17: #{vgg16_block_forward.4} parent=11 // pred_check
        %p163 = pneg %p91
      $region18: #{vgg16_block_forward.4} parent=11 // pred_check_branch
        %165 = sbr.rel (%p163) target = $region20
      $region19: #{vgg16_block_forward.4} parent=11 // pred_region
        _
      $region20: #{vgg16_block_forward.4} parent=11 // pred_fallthru
        _
    $region12: #{vgg16_block_forward.4} parent=5 // pred_fallthru
      _
    %p166 = scmp.lt.s32.totalorder %s11, 2
    // Predicated region
    $region21: #{vgg16_block_forward.4} parent=5 // pred_check
      %p167 = pneg %p166
    $region22: #{vgg16_block_forward.4} parent=5 // pred_check_branch
      %169 = sbr.rel (%p167) target = $region24
    $region23: #{vgg16_block_forward.4} parent=5 // pred_region
      // Predicated region
      $region25: #{vgg16_block_forward.4} parent=23 // pred_check
        %p170 = pneg %p43
      $region26: #{vgg16_block_forward.4} parent=23 // pred_check_branch
        %172 = sbr.rel (%p170) target = $region28
      $region27: #{vgg16_block_forward.4} parent=23 // pred_region
        %p173 = scmp.lt.s32.totalorder %s18, 1
        %s174 = scalar_select %p173, %s18, 1
        %s175 = smul.addr %s174, 54
        %s176 = smul.addr %s175, 4
        %s177 = scalar_lea.vmem %s0, %s176
      $region28: #{vgg16_block_forward.4} parent=23 // pred_fallthru
        _
    $region24: #{vgg16_block_forward.4} parent=5 // pred_fallthru
      _
    %p178 = scmp.le.s32.totalorder 1, %s11
    %p179 = scmp.lt.s32.totalorder %s11, 3
    %p180 = pnand %p178, %p179
    %p181 = pneg %p180
    // Predicated region
    $region29: #{vgg16_block_forward.4} parent=5 // pred_check
      _
    $region30: #{vgg16_block_forward.4} parent=5 // pred_check_branch
      %183 = sbr.rel (%p180) target = $region32
    $region31: #{vgg16_block_forward.4} parent=5 // pred_region
      %s184 = ssub.s32 %s11, 1
      %p185 = scmp.lt.s32.totalorder %s20, 1
      %s186 = scalar_select %p185, %s20, 1
      %s187 = smul.addr %s186, 54
      %s188 = smul.addr %s187, 4
      %s189 = scalar_lea.vmem %s0, %s188
      %p190 = pneg %p49
      %p191 = pneg %p46
      %p192 = pneg %p70
      %p193 = pneg %p67
      %p194 = pneg %p91
      %p195 = pneg %p88
      %p196 = pneg %p119
      %p197 = pneg %p116
      %s198 = smul.u32 32, %s21
      %p199 = scmp.lt.s32.totalorder %s20, 1
      %s200 = scalar_select %p199, %s20, 1
      %p201 = scmp.lt.s32.totalorder %s198, 31
      %s202 = scalar_select %p201, %s198, 31
      %s203 = smul.addr %s200, 32
      %s204 = sadd.s32 %s202, %s203
      %s205 = smul.addr %s204, 4
      %s206 = scalar_lea.vmem %s3, %s205
      %p207 = pneg %p145
      %p208 = pneg %p142
      %p209 = scmp.lt.s32.totalorder %s20, 1
      %s210 = scalar_select %p209, %s20, 1
      %s211 = smul.addr %s210, 2
      %s212 = scalar_lea.vmem %s4, %s211
      %p213 = scmp.lt.s32.totalorder %s20, 1
      %s214 = scalar_select %p213, %s20, 1
      %s215 = smul.addr %s214, 54
      %s216 = smul.addr %s215, 4
      %s217 = scalar_lea.vmem %s0, %s216
      %s218 = smul.u32 32, %s21
      %p219 = scmp.lt.s32.totalorder %s20, 1
      %s220 = scalar_select %p219, %s20, 1
      %p221 = scmp.lt.s32.totalorder %s218, 31
      %s222 = scalar_select %p221, %s218, 31
      %s223 = smul.addr %s220, 32
      %s224 = sadd.s32 %s222, %s223
      %s225 = smul.addr %s224, 4
      %s226 = scalar_lea.vmem %s3, %s225
      %s227 = smul.u32 32, %s21
      %p228 = scmp.lt.s32.totalorder %s20, 1
      %s229 = scalar_select %p228, %s20, 1
      %s230 = smul.addr %s229, 2
      %s231 = scalar_lea.vmem %s4, %s230
      %p233 = scmp.eq.s32.totalorder %s21, 0
      // Predicated region
      $region33: #{vgg16_block_forward.4} parent=31 // pred_check
        %p234 = pneg %p233
      $region34: #{vgg16_block_forward.4} parent=31 // pred_check_branch
        %236 = sbr.rel (%p234) target = $region36
      $region35: #{vgg16_block_forward.4} parent=31 // pred_region
        %237 = vst [vmem:[%s231] sm:$0x3] 0.0
      $region36: #{vgg16_block_forward.4} parent=31 // pred_fallthru
        _
      %v238 = vld [vmem:[%s2] sm:$0x1]
      %v240 = vlaneseq
      %v241 = vshrl.u32 %v240, 7
      %v242 = vsub.s32 0, %v241
      %v243 = vrot.slane %v238, %v242
      %245 = vst [vmem:[#allocation2] sm:$0xff] %v243
      %246 = vst [vmem:[#allocation2 + $0x8] sm:$0xff] %v243
      %247 = vst [vmem:[#allocation2 + $0x10] sm:$0xff] %v243
      %248 = vst [vmem:[#allocation2 + $0x18] sm:$0xff] %v243
      %249 = vst [vmem:[#allocation2 + $0x20] sm:$0xff] %v243
      %250 = vst [vmem:[#allocation2 + $0x28] sm:$0xff] %v243
      %251 = vst [vmem:[#allocation2 + $0x30] sm:$0xff] %v243
      %252 = vst [vmem:[#allocation2 + $0x38] sm:$0xff] %v243
      %253 = vst [vmem:[#allocation2 + $0x40] sm:$0xff] %v243
      %254 = vst [vmem:[#allocation2 + $0x48] sm:$0xff] %v243
      %255 = vst [vmem:[#allocation2 + $0x50] sm:$0xff] %v243
      %256 = vst [vmem:[#allocation2 + $0x58] sm:$0xff] %v243
      %257 = vst [vmem:[#allocation2 + $0x60] sm:$0xff] %v243
      %258 = vst [vmem:[#allocation2 + $0x68] sm:$0xff] %v243
      %259 = vst [vmem:[#allocation2 + $0x70] sm:$0xff] %v243
      %260 = vst [vmem:[#allocation2 + $0x78] sm:$0xff] %v243
      %261 = vst [vmem:[#allocation2 + $0x80] sm:$0xff] %v243
      %262 = vst [vmem:[#allocation2 + $0x88] sm:$0xff] %v243
      %263 = vst [vmem:[#allocation2 + $0x90] sm:$0xff] %v243
      %264 = vst [vmem:[#allocation2 + $0x98] sm:$0xff] %v243
      %265 = vst [vmem:[#allocation2 + $0xa0] sm:$0xff] %v243
      %266 = vst [vmem:[#allocation2 + $0xa8] sm:$0xff] %v243
      %267 = vst [vmem:[#allocation2 + $0xb0] sm:$0xff] %v243
      %268 = vst [vmem:[#allocation2 + $0xb8] sm:$0xff] %v243
      %269 = vst [vmem:[#allocation2 + $0xc0] sm:$0xff] %v243
      %270 = vst [vmem:[#allocation2 + $0xc8] sm:$0xff] %v243
      %271 = vst [vmem:[#allocation2 + $0xd0] sm:$0xff] %v243
      %272 = vst [vmem:[#allocation2 + $0xd8] sm:$0xff] %v243
      %273 = vst [vmem:[#allocation2 + $0xe0] sm:$0xff] %v243
      %274 = vst [vmem:[#allocation2 + $0xe8] sm:$0xff] %v243
      %275 = vst [vmem:[#allocation2 + $0xf0] sm:$0xff] %v243
      %276 = vst [vmem:[#allocation2 + $0xf8] sm:$0xff] %v243
      %s277 = smul.u32 %s21, 16
      %s278 = smul.u32 %s277, 3
      %s279 = smul.addr %s278, 4
      %s280 = scalar_lea.vmem %s217, %s279
      %v281 = vld [vmem:[%s280] sm:$0xf]
      %v282 = vld [vmem:[%s280 + $0x4] sm:$0xf]
      %v283 = vld [vmem:[%s280 + $0x8] sm:$0x1]
      %v284 = vld [vmem:[%s280 + $0xc] sm:$0xf]
      %v285 = vld [vmem:[%s280 + $0x10] sm:$0xf]
      %v286 = vld [vmem:[%s280 + $0x14] sm:$0x1]
      %v287 = vld [vmem:[%s280 + $0x18] sm:$0xf]
      %v288 = vld [vmem:[%s280 + $0x1c] sm:$0xf]
      %v289 = vld [vmem:[%s280 + $0x20] sm:$0x1]
      %v290 = vld [vmem:[%s280 + $0x24] sm:$0xf]
      %v291 = vld [vmem:[%s280 + $0x28] sm:$0xf]
      %v292 = vld [vmem:[%s280 + $0x2c] sm:$0x1]
      %v293 = vld [vmem:[%s280 + $0x30] sm:$0xf]
      %v294 = vld [vmem:[%s280 + $0x34] sm:$0xf]
      %v295 = vld [vmem:[%s280 + $0x38] sm:$0x1]
      %v296 = vld [vmem:[%s280 + $0x3c] sm:$0xf]
      %v297 = vld [vmem:[%s280 + $0x40] sm:$0xf]
      %v298 = vld [vmem:[%s280 + $0x44] sm:$0x1]
      %v299 = vld [vmem:[%s280 + $0x48] sm:$0xf]
      %v300 = vld [vmem:[%s280 + $0x4c] sm:$0xf]
      %v301 = vld [vmem:[%s280 + $0x50] sm:$0x1]
      %v302 = vld [vmem:[%s280 + $0x54] sm:$0xf]
      %v303 = vld [vmem:[%s280 + $0x58] sm:$0xf]
      %v304 = vld [vmem:[%s280 + $0x5c] sm:$0x1]
      %v305 = vld [vmem:[%s280 + $0x60] sm:$0xf]
      %v306 = vld [vmem:[%s280 + $0x64] sm:$0xf]
      %v307 = vld [vmem:[%s280 + $0x68] sm:$0x1]
      %v308 = vld [vmem:[%s280 + $0x6c] sm:$0xf]
      %v309 = vld [vmem:[%s280 + $0x70] sm:$0xf]
      %v310 = vld [vmem:[%s280 + $0x74] sm:$0x1]
      %v311 = vld [vmem:[%s280 + $0x78] sm:$0xf]
      %v312 = vld [vmem:[%s280 + $0x7c] sm:$0xf]
      %v313 = vld [vmem:[%s280 + $0x80] sm:$0x1]
      %v314 = vld [vmem:[%s280 + $0x84] sm:$0xf]
      %v315 = vld [vmem:[%s280 + $0x88] sm:$0xf]
      %v316 = vld [vmem:[%s280 + $0x8c] sm:$0x1]
      %v317 = vld [vmem:[%s280 + $0x90] sm:$0xf]
      %v318 = vld [vmem:[%s280 + $0x94] sm:$0xf]
      %v319 = vld [vmem:[%s280 + $0x98] sm:$0x1]
      %v320 = vld [vmem:[%s280 + $0x9c] sm:$0xf]
      %v321 = vld [vmem:[%s280 + $0xa0] sm:$0xf]
      %v322 = vld [vmem:[%s280 + $0xa4] sm:$0x1]
      %v323 = vld [vmem:[%s280 + $0xa8] sm:$0xf]
      %v324 = vld [vmem:[%s280 + $0xac] sm:$0xf]
      %v325 = vld [vmem:[%s280 + $0xb0] sm:$0x1]
      %v326 = vld [vmem:[%s280 + $0xb4] sm:$0xf]
      %v327 = vld [vmem:[%s280 + $0xb8] sm:$0xf]
      %v328 = vld [vmem:[%s280 + $0xbc] sm:$0x1]
      %v361 = vunpack.c.l.b16 %v281
      %v362 = vunpack.c.l.b16 %v282
      %v363 = vunpack.c.l.b16 %v284
      %v364 = vunpack.c.l.b16 %v285
      %v365 = vunpack.c.l.b16 %v287
      %v366 = vunpack.c.l.b16 %v288
      %v367 = vunpack.c.l.b16 %v290
      %v368 = vunpack.c.l.b16 %v291
      %v369 = vunpack.c.l.b16 %v293
      %v370 = vunpack.c.l.b16 %v294
      %v371 = vunpack.c.l.b16 %v296
      %v372 = vunpack.c.l.b16 %v297
      %v373 = vunpack.c.l.b16 %v299
      %v374 = vunpack.c.l.b16 %v300
      %v375 = vunpack.c.l.b16 %v302
      %v376 = vunpack.c.l.b16 %v303
      %v377 = vunpack.c.l.b16 %v305
      %v378 = vunpack.c.l.b16 %v306
      %v379 = vunpack.c.l.b16 %v308
      %v380 = vunpack.c.l.b16 %v309
      %v381 = vunpack.c.l.b16 %v311
      %v382 = vunpack.c.l.b16 %v312
      %v383 = vunpack.c.l.b16 %v314
      %v384 = vunpack.c.l.b16 %v315
      %v385 = vunpack.c.l.b16 %v317
      %v386 = vunpack.c.l.b16 %v318
      %v387 = vunpack.c.l.b16 %v320
      %v388 = vunpack.c.l.b16 %v321
      %v389 = vunpack.c.l.b16 %v323
      %v390 = vunpack.c.l.b16 %v324
      %v391 = vunpack.c.l.b16 %v326
      %v392 = vunpack.c.l.b16 %v327
      %v393 = vpack.c.b16 %v362, %v361
      %v394 = vpack.c.b16 %v364, %v363
      %v395 = vpack.c.b16 %v366, %v365
      %v396 = vpack.c.b16 %v368, %v367
      %v397 = vpack.c.b16 %v370, %v369
      %v398 = vpack.c.b16 %v372, %v371
      %v399 = vpack.c.b16 %v374, %v373
      %v400 = vpack.c.b16 %v376, %v375
      %v401 = vpack.c.b16 %v378, %v377
      %v402 = vpack.c.b16 %v380, %v379
      %v403 = vpack.c.b16 %v382, %v381
      %v404 = vpack.c.b16 %v384, %v383
      %v405 = vpack.c.b16 %v386, %v385
      %v406 = vpack.c.b16 %v388, %v387
      %v407 = vpack.c.b16 %v390, %v389
      %v408 = vpack.c.b16 %v392, %v391
      %v425 = vunpack.c.l.b16 %v283
      %v426 = vunpack.c.l.b16 %v286
      %v427 = vunpack.c.l.b16 %v289
      %v428 = vunpack.c.l.b16 %v292
      %v429 = vunpack.c.l.b16 %v295
      %v430 = vunpack.c.l.b16 %v298
      %v431 = vunpack.c.l.b16 %v301
      %v432 = vunpack.c.l.b16 %v304
      %v433 = vunpack.c.l.b16 %v307
      %v434 = vunpack.c.l.b16 %v310
      %v435 = vunpack.c.l.b16 %v313
      %v436 = vunpack.c.l.b16 %v316
      %v437 = vunpack.c.l.b16 %v319
      %v438 = vunpack.c.l.b16 %v322
      %v439 = vunpack.c.l.b16 %v325
      %v440 = vunpack.c.l.b16 %v328
      %v441 = vpack.c.b16 %v425, %v425
      %v442 = vpack.c.b16 %v426, %v426
      %v443 = vpack.c.b16 %v427, %v427
      %v444 = vpack.c.b16 %v428, %v428
      %v445 = vpack.c.b16 %v429, %v429
      %v446 = vpack.c.b16 %v430, %v430
      %v447 = vpack.c.b16 %v431, %v431
      %v448 = vpack.c.b16 %v432, %v432
      %v449 = vpack.c.b16 %v433, %v433
      %v450 = vpack.c.b16 %v434, %v434
      %v451 = vpack.c.b16 %v435, %v435
      %v452 = vpack.c.b16 %v436, %v436
      %v453 = vpack.c.b16 %v437, %v437
      %v454 = vpack.c.b16 %v438, %v438
      %v455 = vpack.c.b16 %v439, %v439
      %v456 = vpack.c.b16 %v440, %v440
      %vm457 = vsmask.f32 7424
      %v459 = vshrl.u32 %v393, 16
      %v461 = vshll.u32 %v393, 16
      %v463 = vrot.slane %v461, 1
      %v464 = vor.u32 %v459, %v463
      %v466 = vshll.u32 %v441, 16
      %v468 = vrot.slane %v466, 1
      %v469 = vsel %vm457, %v464, %v468
      %v471 = vshrl.u32 %v394, 16
      %v473 = vshll.u32 %v394, 16
      %v475 = vrot.slane %v473, 1
      %v476 = vor.u32 %v471, %v475
      %v478 = vshll.u32 %v442, 16
      %v480 = vrot.slane %v478, 1
      %v481 = vsel %vm457, %v476, %v480
      %v483 = vshrl.u32 %v395, 16
      %v485 = vshll.u32 %v395, 16
      %v487 = vrot.slane %v485, 1
      %v488 = vor.u32 %v483, %v487
      %v490 = vshll.u32 %v443, 16
      %v492 = vrot.slane %v490, 1
      %v493 = vsel %vm457, %v488, %v492
      %v495 = vshrl.u32 %v396, 16
      %v497 = vshll.u32 %v396, 16
      %v499 = vrot.slane %v497, 1
      %v500 = vor.u32 %v495, %v499
      %v502 = vshll.u32 %v444, 16
      %v504 = vrot.slane %v502, 1
      %v505 = vsel %vm457, %v500, %v504
      %v507 = vshrl.u32 %v397, 16
      %v509 = vshll.u32 %v397, 16
      %v511 = vrot.slane %v509, 1
      %v512 = vor.u32 %v507, %v511
      %v514 = vshll.u32 %v445, 16
      %v516 = vrot.slane %v514, 1
      %v517 = vsel %vm457, %v512, %v516
      %v519 = vshrl.u32 %v398, 16
      %v521 = vshll.u32 %v398, 16
      %v523 = vrot.slane %v521, 1
      %v524 = vor.u32 %v519, %v523
      %v526 = vshll.u32 %v446, 16
      %v528 = vrot.slane %v526, 1
      %v529 = vsel %vm457, %v524, %v528
      %v531 = vshrl.u32 %v399, 16
      %v533 = vshll.u32 %v399, 16
      %v535 = vrot.slane %v533, 1
      %v536 = vor.u32 %v531, %v535
      %v538 = vshll.u32 %v447, 16
      %v540 = vrot.slane %v538, 1
      %v541 = vsel %vm457, %v536, %v540
      %v543 = vshrl.u32 %v400, 16
      %v545 = vshll.u32 %v400, 16
      %v547 = vrot.slane %v545, 1
      %v548 = vor.u32 %v543, %v547
      %v550 = vshll.u32 %v448, 16
      %v552 = vrot.slane %v550, 1
      %v553 = vsel %vm457, %v548, %v552
      %v555 = vshrl.u32 %v401, 16
      %v557 = vshll.u32 %v401, 16
      %v559 = vrot.slane %v557, 1
      %v560 = vor.u32 %v555, %v559
      %v562 = vshll.u32 %v449, 16
      %v564 = vrot.slane %v562, 1
      %v565 = vsel %vm457, %v560, %v564
      %v567 = vshrl.u32 %v402, 16
      %v569 = vshll.u32 %v402, 16
      %v571 = vrot.slane %v569, 1
      %v572 = vor.u32 %v567, %v571
      %v574 = vshll.u32 %v450, 16
      %v576 = vrot.slane %v574, 1
      %v577 = vsel %vm457, %v572, %v576
      %v579 = vshrl.u32 %v403, 16
      %v581 = vshll.u32 %v403, 16
      %v583 = vrot.slane %v581, 1
      %v584 = vor.u32 %v579, %v583
      %v586 = vshll.u32 %v451, 16
      %v588 = vrot.slane %v586, 1
      %v589 = vsel %vm457, %v584, %v588
      %v591 = vshrl.u32 %v404, 16
      %v593 = vshll.u32 %v404, 16
      %v595 = vrot.slane %v593, 1
      %v596 = vor.u32 %v591, %v595
      %v598 = vshll.u32 %v452, 16
      %v600 = vrot.slane %v598, 1
      %v601 = vsel %vm457, %v596, %v600
      %v603 = vshrl.u32 %v405, 16
      %v605 = vshll.u32 %v405, 16
      %v607 = vrot.slane %v605, 1
      %v608 = vor.u32 %v603, %v607
      %v610 = vshll.u32 %v453, 16
      %v612 = vrot.slane %v610, 1
      %v613 = vsel %vm457, %v608, %v612
      %v615 = vshrl.u32 %v406, 16
      %v617 = vshll.u32 %v406, 16
      %v619 = vrot.slane %v617, 1
      %v620 = vor.u32 %v615, %v619
      %v622 = vshll.u32 %v454, 16
      %v624 = vrot.slane %v622, 1
      %v625 = vsel %vm457, %v620, %v624
      %v627 = vshrl.u32 %v407, 16
      %v629 = vshll.u32 %v407, 16
      %v631 = vrot.slane %v629, 1
      %v632 = vor.u32 %v627, %v631
      %v634 = vshll.u32 %v455, 16
      %v636 = vrot.slane %v634, 1
      %v637 = vsel %vm457, %v632, %v636
      %v639 = vshrl.u32 %v408, 16
      %v641 = vshll.u32 %v408, 16
      %v643 = vrot.slane %v641, 1
      %v644 = vor.u32 %v639, %v643
      %v646 = vshll.u32 %v456, 16
      %v648 = vrot.slane %v646, 1
      %v649 = vsel %vm457, %v644, %v648
      %650 = vrot.lane.b32.xlu0 %v469, 4
      %v651 = vpop.permute.xlu0 %650
      %652 = vrot.lane.b32.xlu0 %v481, 4
      %v653 = vpop.permute.xlu0 %652
      %654 = vrot.lane.b32.xlu0 %v493, 4
      %v655 = vpop.permute.xlu0 %654
      %656 = vrot.lane.b32.xlu0 %v505, 4
      %v657 = vpop.permute.xlu0 %656
      %658 = vrot.lane.b32.xlu0 %v517, 4
      %v659 = vpop.permute.xlu0 %658
      %660 = vrot.lane.b32.xlu0 %v529, 4
      %v661 = vpop.permute.xlu0 %660
      %662 = vrot.lane.b32.xlu0 %v541, 4
      %v663 = vpop.permute.xlu0 %662
      %664 = vrot.lane.b32.xlu0 %v553, 4
      %v665 = vpop.permute.xlu0 %664
      %666 = vrot.lane.b32.xlu0 %v565, 4
      %v667 = vpop.permute.xlu0 %666
      %668 = vrot.lane.b32.xlu0 %v577, 4
      %v669 = vpop.permute.xlu0 %668
      %670 = vrot.lane.b32.xlu0 %v589, 4
      %v671 = vpop.permute.xlu0 %670
      %672 = vrot.lane.b32.xlu0 %v601, 4
      %v673 = vpop.permute.xlu0 %672
      %674 = vrot.lane.b32.xlu0 %v613, 4
      %v675 = vpop.permute.xlu0 %674
      %676 = vrot.lane.b32.xlu0 %v625, 4
      %v677 = vpop.permute.xlu0 %676
      %678 = vrot.lane.b32.xlu0 %v637, 4
      %v679 = vpop.permute.xlu0 %678
      %680 = vrot.lane.b32.xlu0 %v649, 4
      %v681 = vpop.permute.xlu0 %680
      %vm682 = vcmask 1046528
      %v683 = vrot.slane %v393, 1
      %v684 = vrot.slane %v441, 1
      %v685 = vsel %vm682, %v683, %v684
      %v686 = vrot.slane %v394, 1
      %v687 = vrot.slane %v442, 1
      %v688 = vsel %vm682, %v686, %v687
      %v689 = vrot.slane %v395, 1
      %v690 = vrot.slane %v443, 1
      %v691 = vsel %vm682, %v689, %v690
      %v692 = vrot.slane %v396, 1
      %v693 = vrot.slane %v444, 1
      %v694 = vsel %vm682, %v692, %v693
      %v695 = vrot.slane %v397, 1
      %v696 = vrot.slane %v445, 1
      %v697 = vsel %vm682, %v695, %v696
      %v698 = vrot.slane %v398, 1
      %v699 = vrot.slane %v446, 1
      %v700 = vsel %vm682, %v698, %v699
      %v701 = vrot.slane %v399, 1
      %v702 = vrot.slane %v447, 1
      %v703 = vsel %vm682, %v701, %v702
      %v704 = vrot.slane %v400, 1
      %v705 = vrot.slane %v448, 1
      %v706 = vsel %vm682, %v704, %v705
      %v707 = vrot.slane %v401, 1
      %v708 = vrot.slane %v449, 1
      %v709 = vsel %vm682, %v707, %v708
      %v710 = vrot.slane %v402, 1
      %v711 = vrot.slane %v450, 1
      %v712 = vsel %vm682, %v710, %v711
      %v713 = vrot.slane %v403, 1
      %v714 = vrot.slane %v451, 1
      %v715 = vsel %vm682, %v713, %v714
      %v716 = vrot.slane %v404, 1
      %v717 = vrot.slane %v452, 1
      %v718 = vsel %vm682, %v716, %v717
      %v719 = vrot.slane %v405, 1
      %v720 = vrot.slane %v453, 1
      %v721 = vsel %vm682, %v719, %v720
      %v722 = vrot.slane %v406, 1
      %v723 = vrot.slane %v454, 1
      %v724 = vsel %vm682, %v722, %v723
      %v725 = vrot.slane %v407, 1
      %v726 = vrot.slane %v455, 1
      %v727 = vsel %vm682, %v725, %v726
      %v728 = vrot.slane %v408, 1
      %v729 = vrot.slane %v456, 1
      %v730 = vsel %vm682, %v728, %v729
      %731 = vrot.lane.b32.xlu0 %v685, 8
      %v732 = vpop.permute.xlu0 %731
      %733 = vrot.lane.b32.xlu0 %v688, 8
      %v734 = vpop.permute.xlu0 %733
      %735 = vrot.lane.b32.xlu0 %v691, 8
      %v736 = vpop.permute.xlu0 %735
      %737 = vrot.lane.b32.xlu0 %v694, 8
      %v738 = vpop.permute.xlu0 %737
      %739 = vrot.lane.b32.xlu0 %v697, 8
      %v740 = vpop.permute.xlu0 %739
      %741 = vrot.lane.b32.xlu0 %v700, 8
      %v742 = vpop.permute.xlu0 %741
      %743 = vrot.lane.b32.xlu0 %v703, 8
      %v744 = vpop.permute.xlu0 %743
      %745 = vrot.lane.b32.xlu0 %v706, 8
      %v746 = vpop.permute.xlu0 %745
      %747 = vrot.lane.b32.xlu0 %v709, 8
      %v748 = vpop.permute.xlu0 %747
      %749 = vrot.lane.b32.xlu0 %v712, 8
      %v750 = vpop.permute.xlu0 %749
      %751 = vrot.lane.b32.xlu0 %v715, 8
      %v752 = vpop.permute.xlu0 %751
      %753 = vrot.lane.b32.xlu0 %v718, 8
      %v754 = vpop.permute.xlu0 %753
      %755 = vrot.lane.b32.xlu0 %v721, 8
      %v756 = vpop.permute.xlu0 %755
      %757 = vrot.lane.b32.xlu0 %v724, 8
      %v758 = vpop.permute.xlu0 %757
      %759 = vrot.lane.b32.xlu0 %v727, 8
      %v760 = vpop.permute.xlu0 %759
      %761 = vrot.lane.b32.xlu0 %v730, 8
      %v762 = vpop.permute.xlu0 %761
      %vm763 = vcmask 31744
      %v765 = vsel %vm763, %v393, %v651
      %v767 = vsel %vm763, %v394, %v653
      %v769 = vsel %vm763, %v395, %v655
      %v771 = vsel %vm763, %v396, %v657
      %v773 = vsel %vm763, %v397, %v659
      %v775 = vsel %vm763, %v398, %v661
      %v777 = vsel %vm763, %v399, %v663
      %v779 = vsel %vm763, %v400, %v665
      %v781 = vsel %vm763, %v401, %v667
      %v783 = vsel %vm763, %v402, %v669
      %v785 = vsel %vm763, %v403, %v671
      %v787 = vsel %vm763, %v404, %v673
      %v789 = vsel %vm763, %v405, %v675
      %v791 = vsel %vm763, %v406, %v677
      %v793 = vsel %vm763, %v407, %v679
      %v795 = vsel %vm763, %v408, %v681
      %vm796 = vcmask 64512
      %v798 = vsel %vm796, %v765, %v732
      %v800 = vsel %vm796, %v767, %v734
      %v802 = vsel %vm796, %v769, %v736
      %v804 = vsel %vm796, %v771, %v738
      %v806 = vsel %vm796, %v773, %v740
      %v808 = vsel %vm796, %v775, %v742
      %v810 = vsel %vm796, %v777, %v744
      %v812 = vsel %vm796, %v779, %v746
      %v814 = vsel %vm796, %v781, %v748
      %v816 = vsel %vm796, %v783, %v750
      %v818 = vsel %vm796, %v785, %v752
      %v820 = vsel %vm796, %v787, %v754
      %v822 = vsel %vm796, %v789, %v756
      %v824 = vsel %vm796, %v791, %v758
      %v826 = vsel %vm796, %v793, %v760
      %v828 = vsel %vm796, %v795, %v762
      %v829 = vld [vmem:[#allocation2] sm:$0xff]
      %v830 = vld [vmem:[#allocation2 + $0x8] sm:$0xff]
      %v831 = vld [vmem:[#allocation2 + $0x10] sm:$0xff]
      %v832 = vld [vmem:[#allocation2 + $0x18] sm:$0xff]
      %v833 = vld [vmem:[#allocation2 + $0x20] sm:$0xff]
      %v834 = vld [vmem:[#allocation2 + $0x28] sm:$0xff]
      %v835 = vld [vmem:[#allocation2 + $0x30] sm:$0xff]
      %v836 = vld [vmem:[#allocation2 + $0x38] sm:$0xff]
      %v837 = vld [vmem:[#allocation2 + $0x40] sm:$0xff]
      %v838 = vld [vmem:[#allocation2 + $0x48] sm:$0xff]
      %v839 = vld [vmem:[#allocation2 + $0x50] sm:$0xff]
      %v840 = vld [vmem:[#allocation2 + $0x58] sm:$0xff]
      %v841 = vld [vmem:[#allocation2 + $0x60] sm:$0xff]
      %v842 = vld [vmem:[#allocation2 + $0x68] sm:$0xff]
      %v843 = vld [vmem:[#allocation2 + $0x70] sm:$0xff]
      %v844 = vld [vmem:[#allocation2 + $0x78] sm:$0xff]
      %v845 = vld [vmem:[#allocation2 + $0x80] sm:$0xff]
      %v846 = vld [vmem:[#allocation2 + $0x88] sm:$0xff]
      %v847 = vld [vmem:[#allocation2 + $0x90] sm:$0xff]
      %v848 = vld [vmem:[#allocation2 + $0x98] sm:$0xff]
      %v849 = vld [vmem:[#allocation2 + $0xa0] sm:$0xff]
      %v850 = vld [vmem:[#allocation2 + $0xa8] sm:$0xff]
      %v851 = vld [vmem:[#allocation2 + $0xb0] sm:$0xff]
      %v852 = vld [vmem:[#allocation2 + $0xb8] sm:$0xff]
      %v853 = vld [vmem:[#allocation2 + $0xc0] sm:$0xff]
      %v854 = vld [vmem:[#allocation2 + $0xc8] sm:$0xff]
      %v855 = vld [vmem:[#allocation2 + $0xd0] sm:$0xff]
      %v856 = vld [vmem:[#allocation2 + $0xd8] sm:$0xff]
      %v857 = vld [vmem:[#allocation2 + $0xe0] sm:$0xff]
      %v858 = vld [vmem:[#allocation2 + $0xe8] sm:$0xff]
      %v859 = vld [vmem:[#allocation2 + $0xf0] sm:$0xff]
      %v860 = vld [vmem:[#allocation2 + $0xf8] sm:$0xff]
      %v861 = vld [vmem:[%s1] sm:$0xf]
      %v862 = vld [vmem:[%s1 + $0x4] sm:$0x3]
      %v865 = vunpack.c.l.b16 %v861
      %v866 = vunpack.c.l.b16 %v862
      %v867 = vpack.c.b16 %v866, %v865
      %vm868 = vcmask 97280
      %v869 = vsel %vm868, %v798, 0
      %v871 = vsel %vm868, %v800, 0
      %v873 = vsel %vm868, %v802, 0
      %v875 = vsel %vm868, %v804, 0
      %v877 = vsel %vm868, %v806, 0
      %v879 = vsel %vm868, %v808, 0
      %v881 = vsel %vm868, %v810, 0
      %v883 = vsel %vm868, %v812, 0
      %v885 = vsel %vm868, %v814, 0
      %v887 = vsel %vm868, %v816, 0
      %v889 = vsel %vm868, %v818, 0
      %v891 = vsel %vm868, %v820, 0
      %v893 = vsel %vm868, %v822, 0
      %v895 = vsel %vm868, %v824, 0
      %v897 = vsel %vm868, %v826, 0
      %v899 = vsel %vm868, %v828, 0
      %vm901 = vcmask 1045504
      %v903 = vsel %vm901, %v867, 0
      %905 = vmatprep.subr.bf16.mxu0 0
      %906 = vmatpush1.bf16.msra.mxu0 0
      %907 = vmatprep.subr.bf16.mxu0 0
      %908 = vmatpush1.bf16.msra.mxu0 0
      %909 = vmatprep.subr.bf16.mxu0 0
      %910 = vmatpush1.bf16.msra.mxu0 0
      %911 = vmatprep.subr.bf16.mxu0 0
      %912 = vmatpush1.bf16.msra.mxu0 0
      %913 = vmatprep.subr.bf16.mxu0 0
      %914 = vmatpush1.bf16.msra.mxu0 0
      %915 = vmatprep.subr.bf16.mxu0 0
      %916 = vmatpush1.bf16.msra.mxu0 0
      %917 = vmatprep.subr.bf16.mxu0 0
      %918 = vmatpush1.bf16.msra.mxu0 0
      %919 = vmatprep.subr.bf16.mxu0 0
      %920 = vmatpush1.bf16.msra.mxu0 %v903
      %921 = vmatprep.subr.bf16.mxu0 0
      %922 = vmatpush2.bf16.msra.mxu0 0
      %923 = vmatprep.subr.bf16.mxu0 0
      %924 = vmatpush2.bf16.msra.mxu0 0
      %925 = vmatprep.subr.bf16.mxu0 0
      %926 = vmatpush2.bf16.msra.mxu0 0
      %927 = vmatprep.subr.bf16.mxu0 0
      %928 = vmatpush2.bf16.msra.mxu0 0
      %929 = vmatprep.subr.bf16.mxu0 0
      %930 = vmatpush2.bf16.msra.mxu0 0
      %931 = vmatprep.subr.bf16.mxu0 0
      %932 = vmatpush2.bf16.msra.mxu0 0
      %933 = vmatprep.subr.bf16.mxu0 0
      %934 = vmatpush2.bf16.msra.mxu0 0
      %935 = vmatprep.subr.bf16.mxu0 0
      %936 = vmatpush2.bf16.msra.mxu0 0
      %937 = vmatprep.mubr.bf16.mxu0 0
      %938 = vmatmul.mubr.bf16.gmra.mxu0 %v869
      %v939 = vpop.f32.mrf.mxu0
      %v940 = vadd.f32 0.0, %v939
      %v941 = vpop.f32.mrf.mxu0
      %v942 = vpop.f32.mrf.mxu0
      %v943 = vadd.f32 0.0, %v942
      %v944 = vpop.f32.mrf.mxu0
      %945 = vmatprep.mubr.bf16.mxu0 0
      %946 = vmatmul.mubr.bf16.gmra.mxu0 %v871
      %v947 = vpop.f32.mrf.mxu0
      %v948 = vadd.f32 0.0, %v947
      %v949 = vpop.f32.mrf.mxu0
      %v950 = vpop.f32.mrf.mxu0
      %v951 = vadd.f32 0.0, %v950
      %v952 = vpop.f32.mrf.mxu0
      %953 = vmatprep.mubr.bf16.mxu0 0
      %954 = vmatmul.mubr.bf16.gmra.mxu0 %v873
      %v955 = vpop.f32.mrf.mxu0
      %v956 = vadd.f32 0.0, %v955
      %v957 = vpop.f32.mrf.mxu0
      %v958 = vpop.f32.mrf.mxu0
      %v959 = vadd.f32 0.0, %v958
      %v960 = vpop.f32.mrf.mxu0
      %961 = vmatprep.mubr.bf16.mxu0 0
      %962 = vmatmul.mubr.bf16.gmra.mxu0 %v875
      %v963 = vpop.f32.mrf.mxu0
      %v964 = vadd.f32 0.0, %v963
      %v965 = vpop.f32.mrf.mxu0
      %v966 = vpop.f32.mrf.mxu0
      %v967 = vadd.f32 0.0, %v966
      %v968 = vpop.f32.mrf.mxu0
      %969 = vmatprep.mubr.bf16.mxu0 0
      %970 = vmatmul.mubr.bf16.gmra.mxu0 %v877
      %v971 = vpop.f32.mrf.mxu0
      %v972 = vadd.f32 0.0, %v971
      %v973 = vpop.f32.mrf.mxu0
      %v974 = vpop.f32.mrf.mxu0
      %v975 = vadd.f32 0.0, %v974
      %v976 = vpop.f32.mrf.mxu0
      %977 = vmatprep.mubr.bf16.mxu0 0
      %978 = vmatmul.mubr.bf16.gmra.mxu0 %v879
      %v979 = vpop.f32.mrf.mxu0
      %v980 = vadd.f32 0.0, %v979
      %v981 = vpop.f32.mrf.mxu0
      %v982 = vpop.f32.mrf.mxu0
      %v983 = vadd.f32 0.0, %v982
      %v984 = vpop.f32.mrf.mxu0
      %985 = vmatprep.mubr.bf16.mxu0 0
      %986 = vmatmul.mubr.bf16.gmra.mxu0 %v881
      %v987 = vpop.f32.mrf.mxu0
      %v988 = vadd.f32 0.0, %v987
      %v989 = vpop.f32.mrf.mxu0
      %v990 = vpop.f32.mrf.mxu0
      %v991 = vadd.f32 0.0, %v990
      %v992 = vpop.f32.mrf.mxu0
      %993 = vmatprep.mubr.bf16.mxu0 0
      %994 = vmatmul.mubr.bf16.gmra.mxu0 %v883
      %v995 = vpop.f32.mrf.mxu0
      %v996 = vadd.f32 0.0, %v995
      %v997 = vpop.f32.mrf.mxu0
      %v998 = vpop.f32.mrf.mxu0
      %v999 = vadd.f32 0.0, %v998
      %v1000 = vpop.f32.mrf.mxu0
      %1001 = vmatprep.mubr.bf16.mxu0 0
      %1002 = vmatmul.mubr.bf16.gmra.mxu0 %v885
      %v1003 = vpop.f32.mrf.mxu0
      %v1004 = vadd.f32 0.0, %v1003
      %v1005 = vpop.f32.mrf.mxu0
      %v1006 = vpop.f32.mrf.mxu0
      %v1007 = vadd.f32 0.0, %v1006
      %v1008 = vpop.f32.mrf.mxu0
      %1009 = vmatprep.mubr.bf16.mxu0 0
      %1010 = vmatmul.mubr.bf16.gmra.mxu0 %v887
      %v1011 = vpop.f32.mrf.mxu0
      %v1012 = vadd.f32 0.0, %v1011
      %v1013 = vpop.f32.mrf.mxu0
      %v1014 = vpop.f32.mrf.mxu0
      %v1015 = vadd.f32 0.0, %v1014
      %v1016 = vpop.f32.mrf.mxu0
      %1017 = vmatprep.mubr.bf16.mxu0 0
      %1018 = vmatmul.mubr.bf16.gmra.mxu0 %v889
      %v1019 = vpop.f32.mrf.mxu0
      %v1020 = vadd.f32 0.0, %v1019
      %v1021 = vpop.f32.mrf.mxu0
      %v1022 = vpop.f32.mrf.mxu0
      %v1023 = vadd.f32 0.0, %v1022
      %v1024 = vpop.f32.mrf.mxu0
      %1025 = vmatprep.mubr.bf16.mxu0 0
      %1026 = vmatmul.mubr.bf16.gmra.mxu0 %v891
      %v1027 = vpop.f32.mrf.mxu0
      %v1028 = vadd.f32 0.0, %v1027
      %v1029 = vpop.f32.mrf.mxu0
      %v1030 = vpop.f32.mrf.mxu0
      %v1031 = vadd.f32 0.0, %v1030
      %v1032 = vpop.f32.mrf.mxu0
      %1033 = vmatprep.mubr.bf16.mxu0 0
      %1034 = vmatmul.mubr.bf16.gmra.mxu0 %v893
      %v1035 = vpop.f32.mrf.mxu0
      %v1036 = vadd.f32 0.0, %v1035
      %v1037 = vpop.f32.mrf.mxu0
      %v1038 = vpop.f32.mrf.mxu0
      %v1039 = vadd.f32 0.0, %v1038
      %v1040 = vpop.f32.mrf.mxu0
      %1041 = vmatprep.mubr.bf16.mxu0 0
      %1042 = vmatmul.mubr.bf16.gmra.mxu0 %v895
      %v1043 = vpop.f32.mrf.mxu0
      %v1044 = vadd.f32 0.0, %v1043
      %v1045 = vpop.f32.mrf.mxu0
      %v1046 = vpop.f32.mrf.mxu0
      %v1047 = vadd.f32 0.0, %v1046
      %v1048 = vpop.f32.mrf.mxu0
      %1049 = vmatprep.mubr.bf16.mxu0 0
      %1050 = vmatmul.mubr.bf16.gmra.mxu0 %v897
      %v1051 = vpop.f32.mrf.mxu0
      %v1052 = vadd.f32 0.0, %v1051
      %v1053 = vpop.f32.mrf.mxu0
      %v1054 = vpop.f32.mrf.mxu0
      %v1055 = vadd.f32 0.0, %v1054
      %v1056 = vpop.f32.mrf.mxu0
      %1057 = vmatprep.mubr.bf16.mxu0 0
      %1058 = vmatmul.mubr.bf16.gmra.mxu0 %v899
      %v1059 = vpop.f32.mrf.mxu0
      %v1060 = vadd.f32 0.0, %v1059
      %v1061 = vpop.f32.mrf.mxu0
      %v1062 = vpop.f32.mrf.mxu0
      %v1063 = vadd.f32 0.0, %v1062
      %v1064 = vpop.f32.mrf.mxu0
      %1065 = vdwg.mxu0
      %v1066 = vadd.f32 %v829, %v940
      %v1067 = vadd.f32 %v830, %v943
      %v1068 = vadd.f32 %v831, %v948
      %v1069 = vadd.f32 %v832, %v951
      %v1070 = vadd.f32 %v833, %v956
      %v1071 = vadd.f32 %v834, %v959
      %v1072 = vadd.f32 %v835, %v964
      %v1073 = vadd.f32 %v836, %v967
      %v1074 = vadd.f32 %v837, %v972
      %v1075 = vadd.f32 %v838, %v975
      %v1076 = vadd.f32 %v839, %v980
      %v1077 = vadd.f32 %v840, %v983
      %v1078 = vadd.f32 %v841, %v988
      %v1079 = vadd.f32 %v842, %v991
      %v1080 = vadd.f32 %v843, %v996
      %v1081 = vadd.f32 %v844, %v999
      %v1082 = vadd.f32 %v845, %v1004
      %v1083 = vadd.f32 %v846, %v1007
      %v1084 = vadd.f32 %v847, %v1012
      %v1085 = vadd.f32 %v848, %v1015
      %v1086 = vadd.f32 %v849, %v1020
      %v1087 = vadd.f32 %v850, %v1023
      %v1088 = vadd.f32 %v851, %v1028
      %v1089 = vadd.f32 %v852, %v1031
      %v1090 = vadd.f32 %v853, %v1036
      %v1091 = vadd.f32 %v854, %v1039
      %v1092 = vadd.f32 %v855, %v1044
      %v1093 = vadd.f32 %v856, %v1047
      %v1094 = vadd.f32 %v857, %v1052
      %v1095 = vadd.f32 %v858, %v1055
      %v1096 = vadd.f32 %v859, %v1060
      %v1097 = vadd.f32 %v860, %v1063
      %1098 = vst [vmem:[#allocation2] sm:$0xff] %v1066
      %1099 = vst [vmem:[#allocation2 + $0x8] sm:$0xff] %v1067
      %1100 = vst [vmem:[#allocation2 + $0x10] sm:$0xff] %v1068
      %1101 = vst [vmem:[#allocation2 + $0x18] sm:$0xff] %v1069
      %1102 = vst [vmem:[#allocation2 + $0x20] sm:$0xff] %v1070
      %1103 = vst [vmem:[#allocation2 + $0x28] sm:$0xff] %v1071
      %1104 = vst [vmem:[#allocation2 + $0x30] sm:$0xff] %v1072
      %1105 = vst [vmem:[#allocation2 + $0x38] sm:$0xff] %v1073
      %1106 = vst [vmem:[#allocation2 + $0x40] sm:$0xff] %v1074
      %1107 = vst [vmem:[#allocation2 + $0x48] sm:$0xff] %v1075
      %1108 = vst [vmem:[#allocation2 + $0x50] sm:$0xff] %v1076
      %1109 = vst [vmem:[#allocation2 + $0x58] sm:$0xff] %v1077
      %1110 = vst [vmem:[#allocation2 + $0x60] sm:$0xff] %v1078
      %1111 = vst [vmem:[#allocation2 + $0x68] sm:$0xff] %v1079
      %1112 = vst [vmem:[#allocation2 + $0x70] sm:$0xff] %v1080
      %1113 = vst [vmem:[#allocation2 + $0x78] sm:$0xff] %v1081
      %1114 = vst [vmem:[#allocation2 + $0x80] sm:$0xff] %v1082
      %1115 = vst [vmem:[#allocation2 + $0x88] sm:$0xff] %v1083
      %1116 = vst [vmem:[#allocation2 + $0x90] sm:$0xff] %v1084
      %1117 = vst [vmem:[#allocation2 + $0x98] sm:$0xff] %v1085
      %1118 = vst [vmem:[#allocation2 + $0xa0] sm:$0xff] %v1086
      %1119 = vst [vmem:[#allocation2 + $0xa8] sm:$0xff] %v1087
      %1120 = vst [vmem:[#allocation2 + $0xb0] sm:$0xff] %v1088
      %1121 = vst [vmem:[#allocation2 + $0xb8] sm:$0xff] %v1089
      %1122 = vst [vmem:[#allocation2 + $0xc0] sm:$0xff] %v1090
      %1123 = vst [vmem:[#allocation2 + $0xc8] sm:$0xff] %v1091
      %1124 = vst [vmem:[#allocation2 + $0xd0] sm:$0xff] %v1092
      %1125 = vst [vmem:[#allocation2 + $0xd8] sm:$0xff] %v1093
      %1126 = vst [vmem:[#allocation2 + $0xe0] sm:$0xff] %v1094
      %1127 = vst [vmem:[#allocation2 + $0xe8] sm:$0xff] %v1095
      %1128 = vst [vmem:[#allocation2 + $0xf0] sm:$0xff] %v1096
      %1129 = vst [vmem:[#allocation2 + $0xf8] sm:$0xff] %v1097
      %s1130 = sadd.s32 %s277, 1
      %s1131 = smul.u32 %s1130, 3
      %s1132 = smul.addr %s1131, 4
      %s1133 = scalar_lea.vmem %s217, %s1132
      %v1134 = vld [vmem:[%s1133] sm:$0xf]
      %v1135 = vld [vmem:[%s1133 + $0x4] sm:$0xf]
      %v1136 = vld [vmem:[%s1133 + $0x8] sm:$0x1]
      %v1137 = vld [vmem:[%s1133 + $0xc] sm:$0xf]
      %v1138 = vld [vmem:[%s1133 + $0x10] sm:$0xf]
      %v1139 = vld [vmem:[%s1133 + $0x14] sm:$0x1]
      %v1140 = vld [vmem:[%s1133 + $0x18] sm:$0xf]
      %v1141 = vld [vmem:[%s1133 + $0x1c] sm:$0xf]
      %v1142 = vld [vmem:[%s1133 + $0x20] sm:$0x1]
      %v1143 = vld [vmem:[%s1133 + $0x24] sm:$0xf]
      %v1144 = vld [vmem:[%s1133 + $0x28] sm:$0xf]
      %v1145 = vld [vmem:[%s1133 + $0x2c] sm:$0x1]
      %v1146 = vld [vmem:[%s1133 + $0x30] sm:$0xf]
      %v1147 = vld [vmem:[%s1133 + $0x34] sm:$0xf]
      %v1148 = vld [vmem:[%s1133 + $0x38] sm:$0x1]
      %v1149 = vld [vmem:[%s1133 + $0x3c] sm:$0xf]
      %v1150 = vld [vmem:[%s1133 + $0x40] sm:$0xf]
      %v1151 = vld [vmem:[%s1133 + $0x44] sm:$0x1]
      %v1152 = vld [vmem:[%s1133 + $0x48] sm:$0xf]
      %v1153 = vld [vmem:[%s1133 + $0x4c] sm:$0xf]
      %v1154 = vld [vmem:[%s1133 + $0x50] sm:$0x1]
      %v1155 = vld [vmem:[%s1133 + $0x54] sm:$0xf]
      %v1156 = vld [vmem:[%s1133 + $0x58] sm:$0xf]
      %v1157 = vld [vmem:[%s1133 + $0x5c] sm:$0x1]
      %v1158 = vld [vmem:[%s1133 + $0x60] sm:$0xf]
      %v1159 = vld [vmem:[%s1133 + $0x64] sm:$0xf]
      %v1160 = vld [vmem:[%s1133 + $0x68] sm:$0x1]
      %v1161 = vld [vmem:[%s1133 + $0x6c] sm:$0xf]
      %v1162 = vld [vmem:[%s1133 + $0x70] sm:$0xf]
      %v1163 = vld [vmem:[%s1133 + $0x74] sm:$0x1]
      %v1164 = vld [vmem:[%s1133 + $0x78] sm:$0xf]
      %v1165 = vld [vmem:[%s1133 + $0x7c] sm:$0xf]
      %v1166 = vld [vmem:[%s1133 + $0x80] sm:$0x1]
      %v1167 = vld [vmem:[%s1133 + $0x84] sm:$0xf]
      %v1168 = vld [vmem:[%s1133 + $0x88] sm:$0xf]
      %v1169 = vld [vmem:[%s1133 + $0x8c] sm:$0x1]
      %v1170 = vld [vmem:[%s1133 + $0x90] sm:$0xf]
      %v1171 = vld [vmem:[%s1133 + $0x94] sm:$0xf]
      %v1172 = vld [vmem:[%s1133 + $0x98] sm:$0x1]
      %v1173 = vld [vmem:[%s1133 + $0x9c] sm:$0xf]
      %v1174 = vld [vmem:[%s1133 + $0xa0] sm:$0xf]
      %v1175 = vld [vmem:[%s1133 + $0xa4] sm:$0x1]
      %v1176 = vld [vmem:[%s1133 + $0xa8] sm:$0xf]
      %v1177 = vld [vmem:[%s1133 + $0xac] sm:$0xf]
      %v1178 = vld [vmem:[%s1133 + $0xb0] sm:$0x1]
      %v1179 = vld [vmem:[%s1133 + $0xb4] sm:$0xf]
      %v1180 = vld [vmem:[%s1133 + $0xb8] sm:$0xf]
      %v1181 = vld [vmem:[%s1133 + $0xbc] sm:$0x1]
      %v1214 = vunpack.c.l.b16 %v1134
      %v1215 = vunpack.c.l.b16 %v1135
      %v1216 = vunpack.c.l.b16 %v1137
      %v1217 = vunpack.c.l.b16 %v1138
      %v1218 = vunpack.c.l.b16 %v1140
      %v1219 = vunpack.c.l.b16 %v1141
      %v1220 = vunpack.c.l.b16 %v1143
      %v1221 = vunpack.c.l.b16 %v1144
      %v1222 = vunpack.c.l.b16 %v1146
      %v1223 = vunpack.c.l.b16 %v1147
      %v1224 = vunpack.c.l.b16 %v1149
      %v1225 = vunpack.c.l.b16 %v1150
      %v1226 = vunpack.c.l.b16 %v1152
      %v1227 = vunpack.c.l.b16 %v1153
      %v1228 = vunpack.c.l.b16 %v1155
      %v1229 = vunpack.c.l.b16 %v1156
      %v1230 = vunpack.c.l.b16 %v1158
      %v1231 = vunpack.c.l.b16 %v1159
      %v1232 = vunpack.c.l.b16 %v1161
      %v1233 = vunpack.c.l.b16 %v1162
      %v1234 = vunpack.c.l.b16 %v1164
      %v1235 = vunpack.c.l.b16 %v1165
      %v1236 = vunpack.c.l.b16 %v1167
      %v1237 = vunpack.c.l.b16 %v1168
      %v1238 = vunpack.c.l.b16 %v1170
      %v1239 = vunpack.c.l.b16 %v1171
      %v1240 = vunpack.c.l.b16 %v1173
      %v1241 = vunpack.c.l.b16 %v1174
      %v1242 = vunpack.c.l.b16 %v1176
      %v1243 = vunpack.c.l.b16 %v1177
      %v1244 = vunpack.c.l.b16 %v1179
      %v1245 = vunpack.c.l.b16 %v1180
      %v1246 = vpack.c.b16 %v1215, %v1214
      %v1247 = vpack.c.b16 %v1217, %v1216
      %v1248 = vpack.c.b16 %v1219, %v1218
      %v1249 = vpack.c.b16 %v1221, %v1220
      %v1250 = vpack.c.b16 %v1223, %v1222
      %v1251 = vpack.c.b16 %v1225, %v1224
      %v1252 = vpack.c.b16 %v1227, %v1226
      %v1253 = vpack.c.b16 %v1229, %v1228
      %v1254 = vpack.c.b16 %v1231, %v1230
      %v1255 = vpack.c.b16 %v1233, %v1232
      %v1256 = vpack.c.b16 %v1235, %v1234
      %v1257 = vpack.c.b16 %v1237, %v1236
      %v1258 = vpack.c.b16 %v1239, %v1238
      %v1259 = vpack.c.b16 %v1241, %v1240
      %v1260 = vpack.c.b16 %v1243, %v1242
      %v1261 = vpack.c.b16 %v1245, %v1244
      %v1278 = vunpack.c.l.b16 %v1136
      %v1279 = vunpack.c.l.b16 %v1139
      %v1280 = vunpack.c.l.b16 %v1142
      %v1281 = vunpack.c.l.b16 %v1145
      %v1282 = vunpack.c.l.b16 %v1148
      %v1283 = vunpack.c.l.b16 %v1151
      %v1284 = vunpack.c.l.b16 %v1154
      %v1285 = vunpack.c.l.b16 %v1157
      %v1286 = vunpack.c.l.b16 %v1160
      %v1287 = vunpack.c.l.b16 %v1163
      %v1288 = vunpack.c.l.b16 %v1166
      %v1289 = vunpack.c.l.b16 %v1169
      %v1290 = vunpack.c.l.b16 %v1172
      %v1291 = vunpack.c.l.b16 %v1175
      %v1292 = vunpack.c.l.b16 %v1178
      %v1293 = vunpack.c.l.b16 %v1181
      %v1294 = vpack.c.b16 %v1278, %v1278
      %v1295 = vpack.c.b16 %v1279, %v1279
      %v1296 = vpack.c.b16 %v1280, %v1280
      %v1297 = vpack.c.b16 %v1281, %v1281
      %v1298 = vpack.c.b16 %v1282, %v1282
      %v1299 = vpack.c.b16 %v1283, %v1283
      %v1300 = vpack.c.b16 %v1284, %v1284
      %v1301 = vpack.c.b16 %v1285, %v1285
      %v1302 = vpack.c.b16 %v1286, %v1286
      %v1303 = vpack.c.b16 %v1287, %v1287
      %v1304 = vpack.c.b16 %v1288, %v1288
      %v1305 = vpack.c.b16 %v1289, %v1289
      %v1306 = vpack.c.b16 %v1290, %v1290
      %v1307 = vpack.c.b16 %v1291, %v1291
      %v1308 = vpack.c.b16 %v1292, %v1292
      %v1309 = vpack.c.b16 %v1293, %v1293
      %v1311 = vshrl.u32 %v1246, 16
      %v1313 = vshll.u32 %v1246, 16
      %v1315 = vrot.slane %v1313, 1
      %v1316 = vor.u32 %v1311, %v1315
      %v1318 = vshll.u32 %v1294, 16
      %v1320 = vrot.slane %v1318, 1
      %v1321 = vsel %vm457, %v1316, %v1320
      %v1323 = vshrl.u32 %v1247, 16
      %v1325 = vshll.u32 %v1247, 16
      %v1327 = vrot.slane %v1325, 1
      %v1328 = vor.u32 %v1323, %v1327
      %v1330 = vshll.u32 %v1295, 16
      %v1332 = vrot.slane %v1330, 1
      %v1333 = vsel %vm457, %v1328, %v1332
      %v1335 = vshrl.u32 %v1248, 16
      %v1337 = vshll.u32 %v1248, 16
      %v1339 = vrot.slane %v1337, 1
      %v1340 = vor.u32 %v1335, %v1339
      %v1342 = vshll.u32 %v1296, 16
      %v1344 = vrot.slane %v1342, 1
      %v1345 = vsel %vm457, %v1340, %v1344
      %v1347 = vshrl.u32 %v1249, 16
      %v1349 = vshll.u32 %v1249, 16
      %v1351 = vrot.slane %v1349, 1
      %v1352 = vor.u32 %v1347, %v1351
      %v1354 = vshll.u32 %v1297, 16
      %v1356 = vrot.slane %v1354, 1
      %v1357 = vsel %vm457, %v1352, %v1356
      %v1359 = vshrl.u32 %v1250, 16
      %v1361 = vshll.u32 %v1250, 16
      %v1363 = vrot.slane %v1361, 1
      %v1364 = vor.u32 %v1359, %v1363
      %v1366 = vshll.u32 %v1298, 16
      %v1368 = vrot.slane %v1366, 1
      %v1369 = vsel %vm457, %v1364, %v1368
      %v1371 = vshrl.u32 %v1251, 16
      %v1373 = vshll.u32 %v1251, 16
      %v1375 = vrot.slane %v1373, 1
      %v1376 = vor.u32 %v1371, %v1375
      %v1378 = vshll.u32 %v1299, 16
      %v1380 = vrot.slane %v1378, 1
      %v1381 = vsel %vm457, %v1376, %v1380
      %v1383 = vshrl.u32 %v1252, 16
      %v1385 = vshll.u32 %v1252, 16
      %v1387 = vrot.slane %v1385, 1
      %v1388 = vor.u32 %v1383, %v1387
      %v1390 = vshll.u32 %v1300, 16
      %v1392 = vrot.slane %v1390, 1
      %v1393 = vsel %vm457, %v1388, %v1392
      %v1395 = vshrl.u32 %v1253, 16
      %v1397 = vshll.u32 %v1253, 16
      %v1399 = vrot.slane %v1397, 1
      %v1400 = vor.u32 %v1395, %v1399
      %v1402 = vshll.u32 %v1301, 16
      %v1404 = vrot.slane %v1402, 1
      %v1405 = vsel %vm457, %v1400, %v1404
      %v1407 = vshrl.u32 %v1254, 16
      %v1409 = vshll.u32 %v1254, 16
      %v1411 = vrot.slane %v1409, 1
      %v1412 = vor.u32 %v1407, %v1411
      %v1414 = vshll.u32 %v1302, 16
      %v1416 = vrot.slane %v1414, 1
      %v1417 = vsel %vm457, %v1412, %v1416
      %v1419 = vshrl.u32 %v1255, 16
      %v1421 = vshll.u32 %v1255, 16
      %v1423 = vrot.slane %v1421, 1
      %v1424 = vor.u32 %v1419, %v1423
      %v1426 = vshll.u32 %v1303, 16
      %v1428 = vrot.slane %v1426, 1
      %v1429 = vsel %vm457, %v1424, %v1428
      %v1431 = vshrl.u32 %v1256, 16
      %v1433 = vshll.u32 %v1256, 16
      %v1435 = vrot.slane %v1433, 1
      %v1436 = vor.u32 %v1431, %v1435
      %v1438 = vshll.u32 %v1304, 16
      %v1440 = vrot.slane %v1438, 1
      %v1441 = vsel %vm457, %v1436, %v1440
      %v1443 = vshrl.u32 %v1257, 16
      %v1445 = vshll.u32 %v1257, 16
      %v1447 = vrot.slane %v1445, 1
      %v1448 = vor.u32 %v1443, %v1447
      %v1450 = vshll.u32 %v1305, 16
      %v1452 = vrot.slane %v1450, 1
      %v1453 = vsel %vm457, %v1448, %v1452
      %v1455 = vshrl.u32 %v1258, 16
      %v1457 = vshll.u32 %v1258, 16
      %v1459 = vrot.slane %v1457, 1
      %v1460 = vor.u32 %v1455, %v1459
      %v1462 = vshll.u32 %v1306, 16
      %v1464 = vrot.slane %v1462, 1
      %v1465 = vsel %vm457, %v1460, %v1464
      %v1467 = vshrl.u32 %v1259, 16
      %v1469 = vshll.u32 %v1259, 16
      %v1471 = vrot.slane %v1469, 1
      %v1472 = vor.u32 %v1467, %v1471
      %v1474 = vshll.u32 %v1307, 16
      %v1476 = vrot.slane %v1474, 1
      %v1477 = vsel %vm457, %v1472, %v1476
      %v1479 = vshrl.u32 %v1260, 16
      %v1481 = vshll.u32 %v1260, 16
      %v1483 = vrot.slane %v1481, 1
      %v1484 = vor.u32 %v1479, %v1483
      %v1486 = vshll.u32 %v1308, 16
      %v1488 = vrot.slane %v1486, 1
      %v1489 = vsel %vm457, %v1484, %v1488
      %v1491 = vshrl.u32 %v1261, 16
      %v1493 = vshll.u32 %v1261, 16
      %v1495 = vrot.slane %v1493, 1
      %v1496 = vor.u32 %v1491, %v1495
      %v1498 = vshll.u32 %v1309, 16
      %v1500 = vrot.slane %v1498, 1
      %v1501 = vsel %vm457, %v1496, %v1500
      %1502 = vrot.lane.b32.xlu0 %v1321, 4
      %v1503 = vpop.permute.xlu0 %1502
      %1504 = vrot.lane.b32.xlu0 %v1333, 4
      %v1505 = vpop.permute.xlu0 %1504
      %1506 = vrot.lane.b32.xlu0 %v1345, 4
      %v1507 = vpop.permute.xlu0 %1506
      %1508 = vrot.lane.b32.xlu0 %v1357, 4
      %v1509 = vpop.permute.xlu0 %1508
      %1510 = vrot.lane.b32.xlu0 %v1369, 4
      %v1511 = vpop.permute.xlu0 %1510
      %1512 = vrot.lane.b32.xlu0 %v1381, 4
      %v1513 = vpop.permute.xlu0 %1512
      %1514 = vrot.lane.b32.xlu0 %v1393, 4
      %v1515 = vpop.permute.xlu0 %1514
      %1516 = vrot.lane.b32.xlu0 %v1405, 4
      %v1517 = vpop.permute.xlu0 %1516
      %1518 = vrot.lane.b32.xlu0 %v1417, 4
      %v1519 = vpop.permute.xlu0 %1518
      %1520 = vrot.lane.b32.xlu0 %v1429, 4
      %v1521 = vpop.permute.xlu0 %1520
      %1522 = vrot.lane.b32.xlu0 %v1441, 4
      %v1523 = vpop.permute.xlu0 %1522
      %1524 = vrot.lane.b32.xlu0 %v1453, 4
      %v1525 = vpop.permute.xlu0 %1524
      %1526 = vrot.lane.b32.xlu0 %v1465, 4
      %v1527 = vpop.permute.xlu0 %1526
      %1528 = vrot.lane.b32.xlu0 %v1477, 4
      %v1529 = vpop.permute.xlu0 %1528
      %1530 = vrot.lane.b32.xlu0 %v1489, 4
      %v1531 = vpop.permute.xlu0 %1530
      %1532 = vrot.lane.b32.xlu0 %v1501, 4
      %v1533 = vpop.permute.xlu0 %1532
      %v1534 = vrot.slane %v1246, 1
      %v1535 = vrot.slane %v1294, 1
      %v1536 = vsel %vm682, %v1534, %v1535
      %v1537 = vrot.slane %v1247, 1
      %v1538 = vrot.slane %v1295, 1
      %v1539 = vsel %vm682, %v1537, %v1538
      %v1540 = vrot.slane %v1248, 1
      %v1541 = vrot.slane %v1296, 1
      %v1542 = vsel %vm682, %v1540, %v1541
      %v1543 = vrot.slane %v1249, 1
      %v1544 = vrot.slane %v1297, 1
      %v1545 = vsel %vm682, %v1543, %v1544
      %v1546 = vrot.slane %v1250, 1
      %v1547 = vrot.slane %v1298, 1
      %v1548 = vsel %vm682, %v1546, %v1547
      %v1549 = vrot.slane %v1251, 1
      %v1550 = vrot.slane %v1299, 1
      %v1551 = vsel %vm682, %v1549, %v1550
      %v1552 = vrot.slane %v1252, 1
      %v1553 = vrot.slane %v1300, 1
      %v1554 = vsel %vm682, %v1552, %v1553
      %v1555 = vrot.slane %v1253, 1
      %v1556 = vrot.slane %v1301, 1
      %v1557 = vsel %vm682, %v1555, %v1556
      %v1558 = vrot.slane %v1254, 1
      %v1559 = vrot.slane %v1302, 1
      %v1560 = vsel %vm682, %v1558, %v1559
      %v1561 = vrot.slane %v1255, 1
      %v1562 = vrot.slane %v1303, 1
      %v1563 = vsel %vm682, %v1561, %v1562
      %v1564 = vrot.slane %v1256, 1
      %v1565 = vrot.slane %v1304, 1
      %v1566 = vsel %vm682, %v1564, %v1565
      %v1567 = vrot.slane %v1257, 1
      %v1568 = vrot.slane %v1305, 1
      %v1569 = vsel %vm682, %v1567, %v1568
      %v1570 = vrot.slane %v1258, 1
      %v1571 = vrot.slane %v1306, 1
      %v1572 = vsel %vm682, %v1570, %v1571
      %v1573 = vrot.slane %v1259, 1
      %v1574 = vrot.slane %v1307, 1
      %v1575 = vsel %vm682, %v1573, %v1574
      %v1576 = vrot.slane %v1260, 1
      %v1577 = vrot.slane %v1308, 1
      %v1578 = vsel %vm682, %v1576, %v1577
      %v1579 = vrot.slane %v1261, 1
      %v1580 = vrot.slane %v1309, 1
      %v1581 = vsel %vm682, %v1579, %v1580
      %1582 = vrot.lane.b32.xlu0 %v1536, 8
      %v1583 = vpop.permute.xlu0 %1582
      %1584 = vrot.lane.b32.xlu0 %v1539, 8
      %v1585 = vpop.permute.xlu0 %1584
      %1586 = vrot.lane.b32.xlu0 %v1542, 8
      %v1587 = vpop.permute.xlu0 %1586
      %1588 = vrot.lane.b32.xlu0 %v1545, 8
      %v1589 = vpop.permute.xlu0 %1588
      %1590 = vrot.lane.b32.xlu0 %v1548, 8
      %v1591 = vpop.permute.xlu0 %1590
      %1592 = vrot.lane.b32.xlu0 %v1551, 8
      %v1593 = vpop.permute.xlu0 %1592
      %1594 = vrot.lane.b32.xlu0 %v1554, 8
      %v1595 = vpop.permute.xlu0 %1594
      %1596 = vrot.lane.b32.xlu0 %v1557, 8
      %v1597 = vpop.permute.xlu0 %1596
      %1598 = vrot.lane.b32.xlu0 %v1560, 8
      %v1599 = vpop.permute.xlu0 %1598
      %1600 = vrot.lane.b32.xlu0 %v1563, 8
      %v1601 = vpop.permute.xlu0 %1600
      %1602 = vrot.lane.b32.xlu0 %v1566, 8
      %v1603 = vpop.permute.xlu0 %1602
      %1604 = vrot.lane.b32.xlu0 %v1569, 8
      %v1605 = vpop.permute.xlu0 %1604
      %1606 = vrot.lane.b32.xlu0 %v1572, 8
      %v1607 = vpop.permute.xlu0 %1606
      %1608 = vrot.lane.b32.xlu0 %v1575, 8
      %v1609 = vpop.permute.xlu0 %1608
      %1610 = vrot.lane.b32.xlu0 %v1578, 8
      %v1611 = vpop.permute.xlu0 %1610
      %1612 = vrot.lane.b32.xlu0 %v1581, 8
      %v1613 = vpop.permute.xlu0 %1612
      %v1615 = vsel %vm763, %v1246, %v1503
      %v1617 = vsel %vm763, %v1247, %v1505
      %v1619 = vsel %vm763, %v1248, %v1507
      %v1621 = vsel %vm763, %v1249, %v1509
      %v1623 = vsel %vm763, %v1250, %v1511
      %v1625 = vsel %vm763, %v1251, %v1513
      %v1627 = vsel %vm763, %v1252, %v1515
      %v1629 = vsel %vm763, %v1253, %v1517
      %v1631 = vsel %vm763, %v1254, %v1519
      %v1633 = vsel %vm763, %v1255, %v1521
      %v1635 = vsel %vm763, %v1256, %v1523
      %v1637 = vsel %vm763, %v1257, %v1525
      %v1639 = vsel %vm763, %v1258, %v1527
      %v1641 = vsel %vm763, %v1259, %v1529
      %v1643 = vsel %vm763, %v1260, %v1531
      %v1645 = vsel %vm763, %v1261, %v1533
      %v1647 = vsel %vm796, %v1615, %v1583
      %v1649 = vsel %vm796, %v1617, %v1585
      %v1651 = vsel %vm796, %v1619, %v1587
      %v1653 = vsel %vm796, %v1621, %v1589
      %v1655 = vsel %vm796, %v1623, %v1591
      %v1657 = vsel %vm796, %v1625, %v1593
      %v1659 = vsel %vm796, %v1627, %v1595
      %v1661 = vsel %vm796, %v1629, %v1597
      %v1663 = vsel %vm796, %v1631, %v1599
      %v1665 = vsel %vm796, %v1633, %v1601
      %v1667 = vsel %vm796, %v1635, %v1603
      %v1669 = vsel %vm796, %v1637, %v1605
      %v1671 = vsel %vm796, %v1639, %v1607
      %v1673 = vsel %vm796, %v1641, %v1609
      %v1675 = vsel %vm796, %v1643, %v1611
      %v1677 = vsel %vm796, %v1645, %v1613
      %v1678 = vld [vmem:[#allocation2] sm:$0xff]
      %v1679 = vld [vmem:[#allocation2 + $0x8] sm:$0xff]
      %v1680 = vld [vmem:[#allocation2 + $0x10] sm:$0xff]
      %v1681 = vld [vmem:[#allocation2 + $0x18] sm:$0xff]
      %v1682 = vld [vmem:[#allocation2 + $0x20] sm:$0xff]
      %v1683 = vld [vmem:[#allocation2 + $0x28] sm:$0xff]
      %v1684 = vld [vmem:[#allocation2 + $0x30] sm:$0xff]
      %v1685 = vld [vmem:[#allocation2 + $0x38] sm:$0xff]
      %v1686 = vld [vmem:[#allocation2 + $0x40] sm:$0xff]
      %v1687 = vld [vmem:[#allocation2 + $0x48] sm:$0xff]
      %v1688 = vld [vmem:[#allocation2 + $0x50] sm:$0xff]
      %v1689 = vld [vmem:[#allocation2 + $0x58] sm:$0xff]
      %v1690 = vld [vmem:[#allocation2 + $0x60] sm:$0xff]
      %v1691 = vld [vmem:[#allocation2 + $0x68] sm:$0xff]
      %v1692 = vld [vmem:[#allocation2 + $0x70] sm:$0xff]
      %v1693 = vld [vmem:[#allocation2 + $0x78] sm:$0xff]
      %v1694 = vld [vmem:[#allocation2 + $0x80] sm:$0xff]
      %v1695 = vld [vmem:[#allocation2 + $0x88] sm:$0xff]
      %v1696 = vld [vmem:[#allocation2 + $0x90] sm:$0xff]
      %v1697 = vld [vmem:[#allocation2 + $0x98] sm:$0xff]
      %v1698 = vld [vmem:[#allocation2 + $0xa0] sm:$0xff]
      %v1699 = vld [vmem:[#allocation2 + $0xa8] sm:$0xff]
      %v1700 = vld [vmem:[#allocation2 + $0xb0] sm:$0xff]
      %v1701 = vld [vmem:[#allocation2 + $0xb8] sm:$0xff]
      %v1702 = vld [vmem:[#allocation2 + $0xc0] sm:$0xff]
      %v1703 = vld [vmem:[#allocation2 + $0xc8] sm:$0xff]
      %v1704 = vld [vmem:[#allocation2 + $0xd0] sm:$0xff]
      %v1705 = vld [vmem:[#allocation2 + $0xd8] sm:$0xff]
      %v1706 = vld [vmem:[#allocation2 + $0xe0] sm:$0xff]
      %v1707 = vld [vmem:[#allocation2 + $0xe8] sm:$0xff]
      %v1708 = vld [vmem:[#allocation2 + $0xf0] sm:$0xff]
      %v1709 = vld [vmem:[#allocation2 + $0xf8] sm:$0xff]
      %s1710 = scalar_lea.vmem %s1, 8
      %v1711 = vld [vmem:[%s1710] sm:$0xf]
      %v1712 = vld [vmem:[%s1710 + $0x4] sm:$0x3]
      %v1715 = vunpack.c.l.b16 %v1711
      %v1716 = vunpack.c.l.b16 %v1712
      %v1717 = vpack.c.b16 %v1716, %v1715
      %v1718 = vsel %vm868, %v1647, 0
      %v1720 = vsel %vm868, %v1649, 0
      %v1722 = vsel %vm868, %v1651, 0
      %v1724 = vsel %vm868, %v1653, 0
      %v1726 = vsel %vm868, %v1655, 0
      %v1728 = vsel %vm868, %v1657, 0
      %v1730 = vsel %vm868, %v1659, 0
      %v1732 = vsel %vm868, %v1661, 0
      %v1734 = vsel %vm868, %v1663, 0
      %v1736 = vsel %vm868, %v1665, 0
      %v1738 = vsel %vm868, %v1667, 0
      %v1740 = vsel %vm868, %v1669, 0
      %v1742 = vsel %vm868, %v1671, 0
      %v1744 = vsel %vm868, %v1673, 0
      %v1746 = vsel %vm868, %v1675, 0
      %v1748 = vsel %vm868, %v1677, 0
      %v1751 = vsel %vm901, %v1717, 0
      %1753 = vmatprep.subr.bf16.mxu0 0
      %1754 = vmatpush1.bf16.msra.mxu0 0
      %1755 = vmatprep.subr.bf16.mxu0 0
      %1756 = vmatpush1.bf16.msra.mxu0 0
      %1757 = vmatprep.subr.bf16.mxu0 0
      %1758 = vmatpush1.bf16.msra.mxu0 0
      %1759 = vmatprep.subr.bf16.mxu0 0
      %1760 = vmatpush1.bf16.msra.mxu0 0
      %1761 = vmatprep.subr.bf16.mxu0 0
      %1762 = vmatpush1.bf16.msra.mxu0 0
      %1763 = vmatprep.subr.bf16.mxu0 0
      %1764 = vmatpush1.bf16.msra.mxu0 0
      %1765 = vmatprep.subr.bf16.mxu0 0
      %1766 = vmatpush1.bf16.msra.mxu0 0
      %1767 = vmatprep.subr.bf16.mxu0 0
      %1768 = vmatpush1.bf16.msra.mxu0 %v1751
      %1769 = vmatprep.subr.bf16.mxu0 0
      %1770 = vmatpush2.bf16.msra.mxu0 0
      %1771 = vmatprep.subr.bf16.mxu0 0
      %1772 = vmatpush2.bf16.msra.mxu0 0
      %1773 = vmatprep.subr.bf16.mxu0 0
      %1774 = vmatpush2.bf16.msra.mxu0 0
      %1775 = vmatprep.subr.bf16.mxu0 0
      %1776 = vmatpush2.bf16.msra.mxu0 0
      %1777 = vmatprep.subr.bf16.mxu0 0
      %1778 = vmatpush2.bf16.msra.mxu0 0
      %1779 = vmatprep.subr.bf16.mxu0 0
      %1780 = vmatpush2.bf16.msra.mxu0 0
      %1781 = vmatprep.subr.bf16.mxu0 0
      %1782 = vmatpush2.bf16.msra.mxu0 0
      %1783 = vmatprep.subr.bf16.mxu0 0
      %1784 = vmatpush2.bf16.msra.mxu0 0
      %1785 = vmatprep.mubr.bf16.mxu0 0
      %1786 = vmatmul.mubr.bf16.gmra.mxu0 %v1718
      %v1787 = vpop.f32.mrf.mxu0
      %v1788 = vadd.f32 0.0, %v1787
      %v1789 = vpop.f32.mrf.mxu0
      %v1790 = vpop.f32.mrf.mxu0
      %v1791 = vadd.f32 0.0, %v1790
      %v1792 = vpop.f32.mrf.mxu0
      %1793 = vmatprep.mubr.bf16.mxu0 0
      %1794 = vmatmul.mubr.bf16.gmra.mxu0 %v1720
      %v1795 = vpop.f32.mrf.mxu0
      %v1796 = vadd.f32 0.0, %v1795
      %v1797 = vpop.f32.mrf.mxu0
      %v1798 = vpop.f32.mrf.mxu0
      %v1799 = vadd.f32 0.0, %v1798
      %v1800 = vpop.f32.mrf.mxu0
      %1801 = vmatprep.mubr.bf16.mxu0 0
      %1802 = vmatmul.mubr.bf16.gmra.mxu0 %v1722
      %v1803 = vpop.f32.mrf.mxu0
      %v1804 = vadd.f32 0.0, %v1803
      %v1805 = vpop.f32.mrf.mxu0
      %v1806 = vpop.f32.mrf.mxu0
      %v1807 = vadd.f32 0.0, %v1806
      %v1808 = vpop.f32.mrf.mxu0
      %1809 = vmatprep.mubr.bf16.mxu0 0
      %1810 = vmatmul.mubr.bf16.gmra.mxu0 %v1724
      %v1811 = vpop.f32.mrf.mxu0
      %v1812 = vadd.f32 0.0, %v1811
      %v1813 = vpop.f32.mrf.mxu0
      %v1814 = vpop.f32.mrf.mxu0
      %v1815 = vadd.f32 0.0, %v1814
      %v1816 = vpop.f32.mrf.mxu0
      %1817 = vmatprep.mubr.bf16.mxu0 0
      %1818 = vmatmul.mubr.bf16.gmra.mxu0 %v1726
      %v1819 = vpop.f32.mrf.mxu0
      %v1820 = vadd.f32 0.0, %v1819
      %v1821 = vpop.f32.mrf.mxu0
      %v1822 = vpop.f32.mrf.mxu0
      %v1823 = vadd.f32 0.0, %v1822
      %v1824 = vpop.f32.mrf.mxu0
      %1825 = vmatprep.mubr.bf16.mxu0 0
      %1826 = vmatmul.mubr.bf16.gmra.mxu0 %v1728
      %v1827 = vpop.f32.mrf.mxu0
      %v1828 = vadd.f32 0.0, %v1827
      %v1829 = vpop.f32.mrf.mxu0
      %v1830 = vpop.f32.mrf.mxu0
      %v1831 = vadd.f32 0.0, %v1830
      %v1832 = vpop.f32.mrf.mxu0
      %1833 = vmatprep.mubr.bf16.mxu0 0
      %1834 = vmatmul.mubr.bf16.gmra.mxu0 %v1730
      %v1835 = vpop.f32.mrf.mxu0
      %v1836 = vadd.f32 0.0, %v1835
      %v1837 = vpop.f32.mrf.mxu0
      %v1838 = vpop.f32.mrf.mxu0
      %v1839 = vadd.f32 0.0, %v1838
      %v1840 = vpop.f32.mrf.mxu0
      %1841 = vmatprep.mubr.bf16.mxu0 0
      %1842 = vmatmul.mubr.bf16.gmra.mxu0 %v1732
      %v1843 = vpop.f32.mrf.mxu0
      %v1844 = vadd.f32 0.0, %v1843
      %v1845 = vpop.f32.mrf.mxu0
      %v1846 = vpop.f32.mrf.mxu0
      %v1847 = vadd.f32 0.0, %v1846
      %v1848 = vpop.f32.mrf.mxu0
      %1849 = vmatprep.mubr.bf16.mxu0 0
      %1850 = vmatmul.mubr.bf16.gmra.mxu0 %v1734
      %v1851 = vpop.f32.mrf.mxu0
      %v1852 = vadd.f32 0.0, %v1851
      %v1853 = vpop.f32.mrf.mxu0
      %v1854 = vpop.f32.mrf.mxu0
      %v1855 = vadd.f32 0.0, %v1854
      %v1856 = vpop.f32.mrf.mxu0
      %1857 = vmatprep.mubr.bf16.mxu0 0
      %1858 = vmatmul.mubr.bf16.gmra.mxu0 %v1736
      %v1859 = vpop.f32.mrf.mxu0
      %v1860 = vadd.f32 0.0, %v1859
      %v1861 = vpop.f32.mrf.mxu0
      %v1862 = vpop.f32.mrf.mxu0
      %v1863 = vadd.f32 0.0, %v1862
      %v1864 = vpop.f32.mrf.mxu0
      %1865 = vmatprep.mubr.bf16.mxu0 0
      %1866 = vmatmul.mubr.bf16.gmra.mxu0 %v1738
      %v1867 = vpop.f32.mrf.mxu0
      %v1868 = vadd.f32 0.0, %v1867
      %v1869 = vpop.f32.mrf.mxu0
      %v1870 = vpop.f32.mrf.mxu0
      %v1871 = vadd.f32 0.0, %v1870
      %v1872 = vpop.f32.mrf.mxu0
      %1873 = vmatprep.mubr.bf16.mxu0 0
      %1874 = vmatmul.mubr.bf16.gmra.mxu0 %v1740
      %v1875 = vpop.f32.mrf.mxu0
      %v1876 = vadd.f32 0.0, %v1875
      %v1877 = vpop.f32.mrf.mxu0
      %v1878 = vpop.f32.mrf.mxu0
      %v1879 = vadd.f32 0.0, %v1878
      %v1880 = vpop.f32.mrf.mxu0
      %1881 = vmatprep.mubr.bf16.mxu0 0
      %1882 = vmatmul.mubr.bf16.gmra.mxu0 %v1742
      %v1883 = vpop.f32.mrf.mxu0
      %v1884 = vadd.f32 0.0, %v1883
      %v1885 = vpop.f32.mrf.mxu0
      %v1886 = vpop.f32.mrf.mxu0
      %v1887 = vadd.f32 0.0, %v1886
      %v1888 = vpop.f32.mrf.mxu0
      %1889 = vmatprep.mubr.bf16.mxu0 0
      %1890 = vmatmul.mubr.bf16.gmra.mxu0 %v1744
      %v1891 = vpop.f32.mrf.mxu0
      %v1892 = vadd.f32 0.0, %v1891
      %v1893 = vpop.f32.mrf.mxu0
      %v1894 = vpop.f32.mrf.mxu0
      %v1895 = vadd.f32 0.0, %v1894
      %v1896 = vpop.f32.mrf.mxu0
      %1897 = vmatprep.mubr.bf16.mxu0 0
      %1898 = vmatmul.mubr.bf16.gmra.mxu0 %v1746
      %v1899 = vpop.f32.mrf.mxu0
      %v1900 = vadd.f32 0.0, %v1899
      %v1901 = vpop.f32.mrf.mxu0
      %v1902 = vpop.f32.mrf.mxu0
      %v1903 = vadd.f32 0.0, %v1902
      %v1904 = vpop.f32.mrf.mxu0
      %1905 = vmatprep.mubr.bf16.mxu0 0
      %1906 = vmatmul.mubr.bf16.gmra.mxu0 %v1748
      %v1907 = vpop.f32.mrf.mxu0
      %v1908 = vadd.f32 0.0, %v1907
      %v1909 = vpop.f32.mrf.mxu0
      %v1910 = vpop.f32.mrf.mxu0
      %v1911 = vadd.f32 0.0, %v1910
      %v1912 = vpop.f32.mrf.mxu0
      %1913 = vdwg.mxu0
      %v1914 = vadd.f32 %v1678, %v1788
      %v1915 = vadd.f32 %v1679, %v1791
      %v1916 = vadd.f32 %v1680, %v1796
      %v1917 = vadd.f32 %v1681, %v1799
      %v1918 = vadd.f32 %v1682, %v1804
      %v1919 = vadd.f32 %v1683, %v1807
      %v1920 = vadd.f32 %v1684, %v1812
      %v1921 = vadd.f32 %v1685, %v1815
      %v1922 = vadd.f32 %v1686, %v1820
      %v1923 = vadd.f32 %v1687, %v1823
      %v1924 = vadd.f32 %v1688, %v1828
      %v1925 = vadd.f32 %v1689, %v1831
      %v1926 = vadd.f32 %v1690, %v1836
      %v1927 = vadd.f32 %v1691, %v1839
      %v1928 = vadd.f32 %v1692, %v1844
      %v1929 = vadd.f32 %v1693, %v1847
      %v1930 = vadd.f32 %v1694, %v1852
      %v1931 = vadd.f32 %v1695, %v1855
      %v1932 = vadd.f32 %v1696, %v1860
      %v1933 = vadd.f32 %v1697, %v1863
      %v1934 = vadd.f32 %v1698, %v1868
      %v1935 = vadd.f32 %v1699, %v1871
      %v1936 = vadd.f32 %v1700, %v1876
      %v1937 = vadd.f32 %v1701, %v1879
      %v1938 = vadd.f32 %v1702, %v1884
      %v1939 = vadd.f32 %v1703, %v1887
      %v1940 = vadd.f32 %v1704, %v1892
      %v1941 = vadd.f32 %v1705, %v1895
      %v1942 = vadd.f32 %v1706, %v1900
      %v1943 = vadd.f32 %v1707, %v1903
      %v1944 = vadd.f32 %v1708, %v1908
      %v1945 = vadd.f32 %v1709, %v1911
      %1946 = vst [vmem:[#allocation2] sm:$0xff] %v1914
      %1947 = vst [vmem:[#allocation2 + $0x8] sm:$0xff] %v1915
      %1948 = vst [vmem:[#allocation2 + $0x10] sm:$0xff] %v1916
      %1949 = vst [vmem:[#allocation2 + $0x18] sm:$0xff] %v1917
      %1950 = vst [vmem:[#allocation2 + $0x20] sm:$0xff] %v1918
      %1951 = vst [vmem:[#allocation2 + $0x28] sm:$0xff] %v1919
      %1952 = vst [vmem:[#allocation2 + $0x30] sm:$0xff] %v1920
      %1953 = vst [vmem:[#allocation2 + $0x38] sm:$0xff] %v1921
      %1954 = vst [vmem:[#allocation2 + $0x40] sm:$0xff] %v1922
      %1955 = vst [vmem:[#allocation2 + $0x48] sm:$0xff] %v1923
      %1956 = vst [vmem:[#allocation2 + $0x50] sm:$0xff] %v1924
      %1957 = vst [vmem:[#allocation2 + $0x58] sm:$0xff] %v1925
      %1958 = vst [vmem:[#allocation2 + $0x60] sm:$0xff] %v1926
      %1959 = vst [vmem:[#allocation2 + $0x68] sm:$0xff] %v1927
      %1960 = vst [vmem:[#allocation2 + $0x70] sm:$0xff] %v1928
      %1961 = vst [vmem:[#allocation2 + $0x78] sm:$0xff] %v1929
      %1962 = vst [vmem:[#allocation2 + $0x80] sm:$0xff] %v1930
      %1963 = vst [vmem:[#allocation2 + $0x88] sm:$0xff] %v1931
      %1964 = vst [vmem:[#allocation2 + $0x90] sm:$0xff] %v1932
      %1965 = vst [vmem:[#allocation2 + $0x98] sm:$0xff] %v1933
      %1966 = vst [vmem:[#allocation2 + $0xa0] sm:$0xff] %v1934
      %1967 = vst [vmem:[#allocation2 + $0xa8] sm:$0xff] %v1935
      %1968 = vst [vmem:[#allocation2 + $0xb0] sm:$0xff] %v1936
      %1969 = vst [vmem:[#allocation2 + $0xb8] sm:$0xff] %v1937
      %1970 = vst [vmem:[#allocation2 + $0xc0] sm:$0xff] %v1938
      %1971 = vst [vmem:[#allocation2 + $0xc8] sm:$0xff] %v1939
      %1972 = vst [vmem:[#allocation2 + $0xd0] sm:$0xff] %v1940
      %1973 = vst [vmem:[#allocation2 + $0xd8] sm:$0xff] %v1941
      %1974 = vst [vmem:[#allocation2 + $0xe0] sm:$0xff] %v1942
      %1975 = vst [vmem:[#allocation2 + $0xe8] sm:$0xff] %v1943
      %1976 = vst [vmem:[#allocation2 + $0xf0] sm:$0xff] %v1944
      %1977 = vst [vmem:[#allocation2 + $0xf8] sm:$0xff] %v1945
      %s1978 = sadd.s32 %s277, 2
      %s1979 = smul.u32 %s1978, 3
      %s1980 = smul.addr %s1979, 4
      %s1981 = scalar_lea.vmem %s217, %s1980
      %v1982 = vld [vmem:[%s1981] sm:$0xf]
      %v1983 = vld [vmem:[%s1981 + $0x4] sm:$0xf]
      %v1984 = vld [vmem:[%s1981 + $0x8] sm:$0x1]
      %v1985 = vld [vmem:[%s1981 + $0xc] sm:$0xf]
      %v1986 = vld [vmem:[%s1981 + $0x10] sm:$0xf]
      %v1987 = vld [vmem:[%s1981 + $0x14] sm:$0x1]
      %v1988 = vld [vmem:[%s1981 + $0x18] sm:$0xf]
      %v1989 = vld [vmem:[%s1981 + $0x1c] sm:$0xf]
      %v1990 = vld [vmem:[%s1981 + $0x20] sm:$0x1]
      %v1991 = vld [vmem:[%s1981 + $0x24] sm:$0xf]
      %v1992 = vld [vmem:[%s1981 + $0x28] sm:$0xf]
      %v1993 = vld [vmem:[%s1981 + $0x2c] sm:$0x1]
      %v1994 = vld [vmem:[%s1981 + $0x30] sm:$0xf]
      %v1995 = vld [vmem:[%s1981 + $0x34] sm:$0xf]
      %v1996 = vld [vmem:[%s1981 + $0x38] sm:$0x1]
      %v1997 = vld [vmem:[%s1981 + $0x3c] sm:$0xf]
      %v1998 = vld [vmem:[%s1981 + $0x40] sm:$0xf]
      %v1999 = vld [vmem:[%s1981 + $0x44] sm:$0x1]
      %v2000 = vld [vmem:[%s1981 + $0x48] sm:$0xf]
      %v2001 = vld [vmem:[%s1981 + $0x4c] sm:$0xf]
      %v2002 = vld [vmem:[%s1981 + $0x50] sm:$0x1]
      %v2003 = vld [vmem:[%s1981 + $0x54] sm:$0xf]
      %v2004 = vld [vmem:[%s1981 + $0x58] sm:$0xf]
      %v2005 = vld [vmem:[%s1981 + $0x5c] sm:$0x1]
      %v2006 = vld [vmem:[%s1981 + $0x60] sm:$0xf]
      %v2007 = vld [vmem:[%s1981 + $0x64] sm:$0xf]
      %v2008 = vld [vmem:[%s1981 + $0x68] sm:$0x1]
      %v2009 = vld [vmem:[%s1981 + $0x6c] sm:$0xf]
      %v2010 = vld [vmem:[%s1981 + $0x70] sm:$0xf]
      %v2011 = vld [vmem:[%s1981 + $0x74] sm:$0x1]
      %v2012 = vld [vmem:[%s1981 + $0x78] sm:$0xf]
      %v2013 = vld [vmem:[%s1981 + $0x7c] sm:$0xf]
      %v2014 = vld [vmem:[%s1981 + $0x80] sm:$0x1]
      %v2015 = vld [vmem:[%s1981 + $0x84] sm:$0xf]
      %v2016 = vld [vmem:[%s1981 + $0x88] sm:$0xf]
      %v2017 = vld [vmem:[%s1981 + $0x8c] sm:$0x1]
      %v2018 = vld [vmem:[%s1981 + $0x90] sm:$0xf]
      %v2019 = vld [vmem:[%s1981 + $0x94] sm:$0xf]
      %v2020 = vld [vmem:[%s1981 + $0x98] sm:$0x1]
      %v2021 = vld [vmem:[%s1981 + $0x9c] sm:$0xf]
      %v2022 = vld [vmem:[%s1981 + $0xa0] sm:$0xf]
      %v2023 = vld [vmem:[%s1981 + $0xa4] sm:$0x1]
      %v2024 = vld [vmem:[%s1981 + $0xa8] sm:$0xf]
      %v2025 = vld [vmem:[%s1981 + $0xac] sm:$0xf]
      %v2026 = vld [vmem:[%s1981 + $0xb0] sm:$0x1]
      %v2027 = vld [vmem:[%s1981 + $0xb4] sm:$0xf]
      %v2028 = vld [vmem:[%s1981 + $0xb8] sm:$0xf]
      %v2029 = vld [vmem:[%s1981 + $0xbc] sm:$0x1]
      %v2062 = vunpack.c.l.b16 %v1982
      %v2063 = vunpack.c.l.b16 %v1983
      %v2064 = vunpack.c.l.b16 %v1985
      %v2065 = vunpack.c.l.b16 %v1986
      %v2066 = vunpack.c.l.b16 %v1988
      %v2067 = vunpack.c.l.b16 %v1989
      %v2068 = vunpack.c.l.b16 %v1991
      %v2069 = vunpack.c.l.b16 %v1992
      %v2070 = vunpack.c.l.b16 %v1994
      %v2071 = vunpack.c.l.b16 %v1995
      %v2072 = vunpack.c.l.b16 %v1997
      %v2073 = vunpack.c.l.b16 %v1998
      %v2074 = vunpack.c.l.b16 %v2000
      %v2075 = vunpack.c.l.b16 %v2001
      %v2076 = vunpack.c.l.b16 %v2003
      %v2077 = vunpack.c.l.b16 %v2004
      %v2078 = vunpack.c.l.b16 %v2006
      %v2079 = vunpack.c.l.b16 %v2007
      %v2080 = vunpack.c.l.b16 %v2009
      %v2081 = vunpack.c.l.b16 %v2010
      %v2082 = vunpack.c.l.b16 %v2012
      %v2083 = vunpack.c.l.b16 %v2013
      %v2084 = vunpack.c.l.b16 %v2015
      %v2085 = vunpack.c.l.b16 %v2016
      %v2086 = vunpack.c.l.b16 %v2018
      %v2087 = vunpack.c.l.b16 %v2019
      %v2088 = vunpack.c.l.b16 %v2021
      %v2089 = vunpack.c.l.b16 %v2022
      %v2090 = vunpack.c.l.b16 %v2024
      %v2091 = vunpack.c.l.b16 %v2025
      %v2092 = vunpack.c.l.b16 %v2027
      %v2093 = vunpack.c.l.b16 %v2028
      %v2094 = vpack.c.b16 %v2063, %v2062
      %v2095 = vpack.c.b16 %v2065, %v2064
      %v2096 = vpack.c.b16 %v2067, %v2066
      %v2097 = vpack.c.b16 %v2069, %v2068
      %v2098 = vpack.c.b16 %v2071, %v2070
      %v2099 = vpack.c.b16 %v2073, %v2072
      %v2100 = vpack.c.b16 %v2075, %v2074
      %v2101 = vpack.c.b16 %v2077, %v2076
      %v2102 = vpack.c.b16 %v2079, %v2078
      %v2103 = vpack.c.b16 %v2081, %v2080
      %v2104 = vpack.c.b16 %v2083, %v2082
      %v2105 = vpack.c.b16 %v2085, %v2084
      %v2106 = vpack.c.b16 %v2087, %v2086
      %v2107 = vpack.c.b16 %v2089, %v2088
      %v2108 = vpack.c.b16 %v2091, %v2090
      %v2109 = vpack.c.b16 %v2093, %v2092
      %v2126 = vunpack.c.l.b16 %v1984
      %v2127 = vunpack.c.l.b16 %v1987
      %v2128 = vunpack.c.l.b16 %v1990
      %v2129 = vunpack.c.l.b16 %v1993
      %v2130 = vunpack.c.l.b16 %v1996
      %v2131 = vunpack.c.l.b16 %v1999
      %v2132 = vunpack.c.l.b16 %v2002
      %v2133 = vunpack.c.l.b16 %v2005
      %v2134 = vunpack.c.l.b16 %v2008
      %v2135 = vunpack.c.l.b16 %v2011
      %v2136 = vunpack.c.l.b16 %v2014
      %v2137 = vunpack.c.l.b16 %v2017
      %v2138 = vunpack.c.l.b16 %v2020
      %v2139 = vunpack.c.l.b16 %v2023
      %v2140 = vunpack.c.l.b16 %v2026
      %v2141 = vunpack.c.l.b16 %v2029
      %v2142 = vpack.c.b16 %v2126, %v2126
      %v2143 = vpack.c.b16 %v2127, %v2127
      %v2144 = vpack.c.b16 %v2128, %v2128
      %v2145 = vpack.c.b16 %v2129, %v2129
      %v2146 = vpack.c.b16 %v2130, %v2130
      %v2147 = vpack.c.b16 %v2131, %v2131
      %v2148 = vpack.c.b16 %v2132, %v2132
      %v2149 = vpack.c.b16 %v2133, %v2133
      %v2150 = vpack.c.b16 %v2134, %v2134
      %v2151 = vpack.c.b16 %v2135, %v2135
      %v2152 = vpack.c.b16 %v2136, %v2136
      %v2153 = vpack.c.b16 %v2137, %v2137
      %v2154 = vpack.c.b16 %v2138, %v2138
      %v2155 = vpack.c.b16 %v2139, %v2139
      %v2156 = vpack.c.b16 %v2140, %v2140
      %v2157 = vpack.c.b16 %v2141, %v2141
      %v2159 = vshrl.u32 %v2094, 16
      %v2161 = vshll.u32 %v2094, 16
      %v2163 = vrot.slane %v2161, 1
      %v2164 = vor.u32 %v2159, %v2163
      %v2166 = vshll.u32 %v2142, 16
      %v2168 = vrot.slane %v2166, 1
      %v2169 = vsel %vm457, %v2164, %v2168
      %v2171 = vshrl.u32 %v2095, 16
      %v2173 = vshll.u32 %v2095, 16
      %v2175 = vrot.slane %v2173, 1
      %v2176 = vor.u32 %v2171, %v2175
      %v2178 = vshll.u32 %v2143, 16
      %v2180 = vrot.slane %v2178, 1
      %v2181 = vsel %vm457, %v2176, %v2180
      %v2183 = vshrl.u32 %v2096, 16
      %v2185 = vshll.u32 %v2096, 16
      %v2187 = vrot.slane %v2185, 1
      %v2188 = vor.u32 %v2183, %v2187
      %v2190 = vshll.u32 %v2144, 16
      %v2192 = vrot.slane %v2190, 1
      %v2193 = vsel %vm457, %v2188, %v2192
      %v2195 = vshrl.u32 %v2097, 16
      %v2197 = vshll.u32 %v2097, 16
      %v2199 = vrot.slane %v2197, 1
      %v2200 = vor.u32 %v2195, %v2199
      %v2202 = vshll.u32 %v2145, 16
      %v2204 = vrot.slane %v2202, 1
      %v2205 = vsel %vm457, %v2200, %v2204
      %v2207 = vshrl.u32 %v2098, 16
      %v2209 = vshll.u32 %v2098, 16
      %v2211 = vrot.slane %v2209, 1
      %v2212 = vor.u32 %v2207, %v2211
      %v2214 = vshll.u32 %v2146, 16
      %v2216 = vrot.slane %v2214, 1
      %v2217 = vsel %vm457, %v2212, %v2216
      %v2219 = vshrl.u32 %v2099, 16
      %v2221 = vshll.u32 %v2099, 16
      %v2223 = vrot.slane %v2221, 1
      %v2224 = vor.u32 %v2219, %v2223
      %v2226 = vshll.u32 %v2147, 16
      %v2228 = vrot.slane %v2226, 1
      %v2229 = vsel %vm457, %v2224, %v2228
      %v2231 = vshrl.u32 %v2100, 16
      %v2233 = vshll.u32 %v2100, 16
      %v2235 = vrot.slane %v2233, 1
      %v2236 = vor.u32 %v2231, %v2235
      %v2238 = vshll.u32 %v2148, 16
      %v2240 = vrot.slane %v2238, 1
      %v2241 = vsel %vm457, %v2236, %v2240
      %v2243 = vshrl.u32 %v2101, 16
      %v2245 = vshll.u32 %v2101, 16
      %v2247 = vrot.slane %v2245, 1
      %v2248 = vor.u32 %v2243, %v2247
      %v2250 = vshll.u32 %v2149, 16
      %v2252 = vrot.slane %v2250, 1
      %v2253 = vsel %vm457, %v2248, %v2252
      %v2255 = vshrl.u32 %v2102, 16
      %v2257 = vshll.u32 %v2102, 16
      %v2259 = vrot.slane %v2257, 1
      %v2260 = vor.u32 %v2255, %v2259
      %v2262 = vshll.u32 %v2150, 16
      %v2264 = vrot.slane %v2262, 1
      %v2265 = vsel %vm457, %v2260, %v2264
      %v2267 = vshrl.u32 %v2103, 16
      %v2269 = vshll.u32 %v2103, 16
      %v2271 = vrot.slane %v2269, 1
      %v2272 = vor.u32 %v2267, %v2271
      %v2274 = vshll.u32 %v2151, 16
      %v2276 = vrot.slane %v2274, 1
      %v2277 = vsel %vm457, %v2272, %v2276
      %v2279 = vshrl.u32 %v2104, 16
      %v2281 = vshll.u32 %v2104, 16
      %v2283 = vrot.slane %v2281, 1
      %v2284 = vor.u32 %v2279, %v2283
      %v2286 = vshll.u32 %v2152, 16
      %v2288 = vrot.slane %v2286, 1
      %v2289 = vsel %vm457, %v2284, %v2288
      %v2291 = vshrl.u32 %v2105, 16
      %v2293 = vshll.u32 %v2105, 16
      %v2295 = vrot.slane %v2293, 1
      %v2296 = vor.u32 %v2291, %v2295
      %v2298 = vshll.u32 %v2153, 16
      %v2300 = vrot.slane %v2298, 1
      %v2301 = vsel %vm457, %v2296, %v2300
      %v2303 = vshrl.u32 %v2106, 16
      %v2305 = vshll.u32 %v2106, 16
      %v2307 = vrot.slane %v2305, 1
      %v2308 = vor.u32 %v2303, %v2307
      %v2310 = vshll.u32 %v2154, 16
      %v2312 = vrot.slane %v2310, 1
      %v2313 = vsel %vm457, %v2308, %v2312
      %v2315 = vshrl.u32 %v2107, 16
      %v2317 = vshll.u32 %v2107, 16
      %v2319 = vrot.slane %v2317, 1
      %v2320 = vor.u32 %v2315, %v2319
      %v2322 = vshll.u32 %v2155, 16
      %v2324 = vrot.slane %v2322, 1
      %v2325 = vsel %vm457, %v2320, %v2324
      %v2327 = vshrl.u32 %v2108, 16
      %v2329 = vshll.u32 %v2108, 16
      %v2331 = vrot.slane %v2329, 1
      %v2332 = vor.u32 %v2327, %v2331
      %v2334 = vshll.u32 %v2156, 16
      %v2336 = vrot.slane %v2334, 1
      %v2337 = vsel %vm457, %v2332, %v2336
      %v2339 = vshrl.u32 %v2109, 16
      %v2341 = vshll.u32 %v2109, 16
      %v2343 = vrot.slane %v2341, 1
      %v2344 = vor.u32 %v2339, %v2343
      %v2346 = vshll.u32 %v2157, 16
      %v2348 = vrot.slane %v2346, 1
      %v2349 = vsel %vm457, %v2344, %v2348
      %2350 = vrot.lane.b32.xlu0 %v2169, 4
      %v2351 = vpop.permute.xlu0 %2350
      %2352 = vrot.lane.b32.xlu0 %v2181, 4
      %v2353 = vpop.permute.xlu0 %2352
      %2354 = vrot.lane.b32.xlu0 %v2193, 4
      %v2355 = vpop.permute.xlu0 %2354
      %2356 = vrot.lane.b32.xlu0 %v2205, 4
      %v2357 = vpop.permute.xlu0 %2356
      %2358 = vrot.lane.b32.xlu0 %v2217, 4
      %v2359 = vpop.permute.xlu0 %2358
      %2360 = vrot.lane.b32.xlu0 %v2229, 4
      %v2361 = vpop.permute.xlu0 %2360
      %2362 = vrot.lane.b32.xlu0 %v2241, 4
      %v2363 = vpop.permute.xlu0 %2362
      %2364 = vrot.lane.b32.xlu0 %v2253, 4
      %v2365 = vpop.permute.xlu0 %2364
      %2366 = vrot.lane.b32.xlu0 %v2265, 4
      %v2367 = vpop.permute.xlu0 %2366
      %2368 = vrot.lane.b32.xlu0 %v2277, 4
      %v2369 = vpop.permute.xlu0 %2368
      %2370 = vrot.lane.b32.xlu0 %v2289, 4
      %v2371 = vpop.permute.xlu0 %2370
      %2372 = vrot.lane.b32.xlu0 %v2301, 4
      %v2373 = vpop.permute.xlu0 %2372
      %2374 = vrot.lane.b32.xlu0 %v2313, 4
      %v2375 = vpop.permute.xlu0 %2374
      %2376 = vrot.lane.b32.xlu0 %v2325, 4
      %v2377 = vpop.permute.xlu0 %2376
      %2378 = vrot.lane.b32.xlu0 %v2337, 4
      %v2379 = vpop.permute.xlu0 %2378
      %2380 = vrot.lane.b32.xlu0 %v2349, 4
      %v2381 = vpop.permute.xlu0 %2380
      %v2382 = vrot.slane %v2094, 1
      %v2383 = vrot.slane %v2142, 1
      %v2384 = vsel %vm682, %v2382, %v2383
      %v2385 = vrot.slane %v2095, 1
      %v2386 = vrot.slane %v2143, 1
      %v2387 = vsel %vm682, %v2385, %v2386
      %v2388 = vrot.slane %v2096, 1
      %v2389 = vrot.slane %v2144, 1
      %v2390 = vsel %vm682, %v2388, %v2389
      %v2391 = vrot.slane %v2097, 1
      %v2392 = vrot.slane %v2145, 1
      %v2393 = vsel %vm682, %v2391, %v2392
      %v2394 = vrot.slane %v2098, 1
      %v2395 = vrot.slane %v2146, 1
      %v2396 = vsel %vm682, %v2394, %v2395
      %v2397 = vrot.slane %v2099, 1
      %v2398 = vrot.slane %v2147, 1
      %v2399 = vsel %vm682, %v2397, %v2398
      %v2400 = vrot.slane %v2100, 1
      %v2401 = vrot.slane %v2148, 1
      %v2402 = vsel %vm682, %v2400, %v2401
      %v2403 = vrot.slane %v2101, 1
      %v2404 = vrot.slane %v2149, 1
      %v2405 = vsel %vm682, %v2403, %v2404
      %v2406 = vrot.slane %v2102, 1
      %v2407 = vrot.slane %v2150, 1
      %v2408 = vsel %vm682, %v2406, %v2407
      %v2409 = vrot.slane %v2103, 1
      %v2410 = vrot.slane %v2151, 1
      %v2411 = vsel %vm682, %v2409, %v2410
      %v2412 = vrot.slane %v2104, 1
      %v2413 = vrot.slane %v2152, 1
      %v2414 = vsel %vm682, %v2412, %v2413
      %v2415 = vrot.slane %v2105, 1
      %v2416 = vrot.slane %v2153, 1
      %v2417 = vsel %vm682, %v2415, %v2416
      %v2418 = vrot.slane %v2106, 1
      %v2419 = vrot.slane %v2154, 1
      %v2420 = vsel %vm682, %v2418, %v2419
      %v2421 = vrot.slane %v2107, 1
      %v2422 = vrot.slane %v2155, 1
      %v2423 = vsel %vm682, %v2421, %v2422
      %v2424 = vrot.slane %v2108, 1
      %v2425 = vrot.slane %v2156, 1
      %v2426 = vsel %vm682, %v2424, %v2425
      %v2427 = vrot.slane %v2109, 1
      %v2428 = vrot.slane %v2157, 1
      %v2429 = vsel %vm682, %v2427, %v2428
      %2430 = vrot.lane.b32.xlu0 %v2384, 8
      %v2431 = vpop.permute.xlu0 %2430
      %2432 = vrot.lane.b32.xlu0 %v2387, 8
      %v2433 = vpop.permute.xlu0 %2432
      %2434 = vrot.lane.b32.xlu0 %v2390, 8
      %v2435 = vpop.permute.xlu0 %2434
      %2436 = vrot.lane.b32.xlu0 %v2393, 8
      %v2437 = vpop.permute.xlu0 %2436
      %2438 = vrot.lane.b32.xlu0 %v2396, 8
      %v2439 = vpop.permute.xlu0 %2438
      %2440 = vrot.lane.b32.xlu0 %v2399, 8
      %v2441 = vpop.permute.xlu0 %2440
      %2442 = vrot.lane.b32.xlu0 %v2402, 8
      %v2443 = vpop.permute.xlu0 %2442
      %2444 = vrot.lane.b32.xlu0 %v2405, 8
      %v2445 = vpop.permute.xlu0 %2444
      %2446 = vrot.lane.b32.xlu0 %v2408, 8
      %v2447 = vpop.permute.xlu0 %2446
      %2448 = vrot.lane.b32.xlu0 %v2411, 8
      %v2449 = vpop.permute.xlu0 %2448
      %2450 = vrot.lane.b32.xlu0 %v2414, 8
      %v2451 = vpop.permute.xlu0 %2450
      %2452 = vrot.lane.b32.xlu0 %v2417, 8
      %v2453 = vpop.permute.xlu0 %2452
      %2454 = vrot.lane.b32.xlu0 %v2420, 8
      %v2455 = vpop.permute.xlu0 %2454
      %2456 = vrot.lane.b32.xlu0 %v2423, 8
      %v2457 = vpop.permute.xlu0 %2456
      %2458 = vrot.lane.b32.xlu0 %v2426, 8
      %v2459 = vpop.permute.xlu0 %2458
      %2460 = vrot.lane.b32.xlu0 %v2429, 8
      %v2461 = vpop.permute.xlu0 %2460
      %v2463 = vsel %vm763, %v2094, %v2351
      %v2465 = vsel %vm763, %v2095, %v2353
      %v2467 = vsel %vm763, %v2096, %v2355
      %v2469 = vsel %vm763, %v2097, %v2357
      %v2471 = vsel %vm763, %v2098, %v2359
      %v2473 = vsel %vm763, %v2099, %v2361
      %v2475 = vsel %vm763, %v2100, %v2363
      %v2477 = vsel %vm763, %v2101, %v2365
      %v2479 = vsel %vm763, %v2102, %v2367
      %v2481 = vsel %vm763, %v2103, %v2369
      %v2483 = vsel %vm763, %v2104, %v2371
      %v2485 = vsel %vm763, %v2105, %v2373
      %v2487 = vsel %vm763, %v2106, %v2375
      %v2489 = vsel %vm763, %v2107, %v2377
      %v2491 = vsel %vm763, %v2108, %v2379
      %v2493 = vsel %vm763, %v2109, %v2381
      %v2495 = vsel %vm796, %v2463, %v2431
      %v2497 = vsel %vm796, %v2465, %v2433
      %v2499 = vsel %vm796, %v2467, %v2435
      %v2501 = vsel %vm796, %v2469, %v2437
      %v2503 = vsel %vm796, %v2471, %v2439
      %v2505 = vsel %vm796, %v2473, %v2441
      %v2507 = vsel %vm796, %v2475, %v2443
      %v2509 = vsel %vm796, %v2477, %v2445
      %v2511 = vsel %vm796, %v2479, %v2447
      %v2513 = vsel %vm796, %v2481, %v2449
      %v2515 = vsel %vm796, %v2483, %v2451
      %v2517 = vsel %vm796, %v2485, %v2453
      %v2519 = vsel %vm796, %v2487, %v2455
      %v2521 = vsel %vm796, %v2489, %v2457
      %v2523 = vsel %vm796, %v2491, %v2459
      %v2525 = vsel %vm796, %v2493, %v2461
      %v2526 = vld [vmem:[#allocation2] sm:$0xff]
      %v2527 = vld [vmem:[#allocation2 + $0x8] sm:$0xff]
      %v2528 = vld [vmem:[#allocation2 + $0x10] sm:$0xff]
      %v2529 = vld [vmem:[#allocation2 + $0x18] sm:$0xff]
      %v2530 = vld [vmem:[#allocation2 + $0x20] sm:$0xff]
      %v2531 = vld [vmem:[#allocation2 + $0x28] sm:$0xff]
      %v2532 = vld [vmem:[#allocation2 + $0x30] sm:$0xff]
      %v2533 = vld [vmem:[#allocation2 + $0x38] sm:$0xff]
      %v2534 = vld [vmem:[#allocation2 + $0x40] sm:$0xff]
      %v2535 = vld [vmem:[#allocation2 + $0x48] sm:$0xff]
      %v2536 = vld [vmem:[#allocation2 + $0x50] sm:$0xff]
      %v2537 = vld [vmem:[#allocation2 + $0x58] sm:$0xff]
      %v2538 = vld [vmem:[#allocation2 + $0x60] sm:$0xff]
      %v2539 = vld [vmem:[#allocation2 + $0x68] sm:$0xff]
      %v2540 = vld [vmem:[#allocation2 + $0x70] sm:$0xff]
      %v2541 = vld [vmem:[#allocation2 + $0x78] sm:$0xff]
      %v2542 = vld [vmem:[#allocation2 + $0x80] sm:$0xff]
      %v2543 = vld [vmem:[#allocation2 + $0x88] sm:$0xff]
      %v2544 = vld [vmem:[#allocation2 + $0x90] sm:$0xff]
      %v2545 = vld [vmem:[#allocation2 + $0x98] sm:$0xff]
      %v2546 = vld [vmem:[#allocation2 + $0xa0] sm:$0xff]
      %v2547 = vld [vmem:[#allocation2 + $0xa8] sm:$0xff]
      %v2548 = vld [vmem:[#allocation2 + $0xb0] sm:$0xff]
      %v2549 = vld [vmem:[#allocation2 + $0xb8] sm:$0xff]
      %v2550 = vld [vmem:[#allocation2 + $0xc0] sm:$0xff]
      %v2551 = vld [vmem:[#allocation2 + $0xc8] sm:$0xff]
      %v2552 = vld [vmem:[#allocation2 + $0xd0] sm:$0xff]
      %v2553 = vld [vmem:[#allocation2 + $0xd8] sm:$0xff]
      %v2554 = vld [vmem:[#allocation2 + $0xe0] sm:$0xff]
      %v2555 = vld [vmem:[#allocation2 + $0xe8] sm:$0xff]
      %v2556 = vld [vmem:[#allocation2 + $0xf0] sm:$0xff]
      %v2557 = vld [vmem:[#allocation2 + $0xf8] sm:$0xff]
      %s2558 = scalar_lea.vmem %s1, 16
      %v2559 = vld [vmem:[%s2558] sm:$0xf]
      %v2560 = vld [vmem:[%s2558 + $0x4] sm:$0x3]
      %v2563 = vunpack.c.l.b16 %v2559
      %v2564 = vunpack.c.l.b16 %v2560
      %v2565 = vpack.c.b16 %v2564, %v2563
      %v2566 = vsel %vm868, %v2495, 0
      %v2568 = vsel %vm868, %v2497, 0
      %v2570 = vsel %vm868, %v2499, 0
      %v2572 = vsel %vm868, %v2501, 0
      %v2574 = vsel %vm868, %v2503, 0
      %v2576 = vsel %vm868, %v2505, 0
      %v2578 = vsel %vm868, %v2507, 0
      %v2580 = vsel %vm868, %v2509, 0
      %v2582 = vsel %vm868, %v2511, 0
      %v2584 = vsel %vm868, %v2513, 0
      %v2586 = vsel %vm868, %v2515, 0
      %v2588 = vsel %vm868, %v2517, 0
      %v2590 = vsel %vm868, %v2519, 0
      %v2592 = vsel %vm868, %v2521, 0
      %v2594 = vsel %vm868, %v2523, 0
      %v2596 = vsel %vm868, %v2525, 0
      %v2599 = vsel %vm901, %v2565, 0
      %2601 = vmatprep.subr.bf16.mxu0 0
      %2602 = vmatpush1.bf16.msra.mxu0 0
      %2603 = vmatprep.subr.bf16.mxu0 0
      %2604 = vmatpush1.bf16.msra.mxu0 0
      %2605 = vmatprep.subr.bf16.mxu0 0
      %2606 = vmatpush1.bf16.msra.mxu0 0
      %2607 = vmatprep.subr.bf16.mxu0 0
      %2608 = vmatpush1.bf16.msra.mxu0 0
      %2609 = vmatprep.subr.bf16.mxu0 0
      %2610 = vmatpush1.bf16.msra.mxu0 0
      %2611 = vmatprep.subr.bf16.mxu0 0
      %2612 = vmatpush1.bf16.msra.mxu0 0
      %2613 = vmatprep.subr.bf16.mxu0 0
      %2614 = vmatpush1.bf16.msra.mxu0 0
      %2615 = vmatprep.subr.bf16.mxu0 0
      %2616 = vmatpush1.bf16.msra.mxu0 %v2599
      %2617 = vmatprep.subr.bf16.mxu0 0
      %2618 = vmatpush2.bf16.msra.mxu0 0
      %2619 = vmatprep.subr.bf16.mxu0 0
      %2620 = vmatpush2.bf16.msra.mxu0 0
      %2621 = vmatprep.subr.bf16.mxu0 0
      %2622 = vmatpush2.bf16.msra.mxu0 0
      %2623 = vmatprep.subr.bf16.mxu0 0
      %2624 = vmatpush2.bf16.msra.mxu0 0
      %2625 = vmatprep.subr.bf16.mxu0 0
      %2626 = vmatpush2.bf16.msra.mxu0 0
      %2627 = vmatprep.subr.bf16.mxu0 0
      %2628 = vmatpush2.bf16.msra.mxu0 0
      %2629 = vmatprep.subr.bf16.mxu0 0
      %2630 = vmatpush2.bf16.msra.mxu0 0
      %2631 = vmatprep.subr.bf16.mxu0 0
      %2632 = vmatpush2.bf16.msra.mxu0 0
      %2633 = vmatprep.mubr.bf16.mxu0 0
      %2634 = vmatmul.mubr.bf16.gmra.mxu0 %v2566
      %v2635 = vpop.f32.mrf.mxu0
      %v2636 = vadd.f32 0.0, %v2635
      %v2637 = vpop.f32.mrf.mxu0
      %v2638 = vpop.f32.mrf.mxu0
      %v2639 = vadd.f32 0.0, %v2638
      %v2640 = vpop.f32.mrf.mxu0
      %2641 = vmatprep.mubr.bf16.mxu0 0
      %2642 = vmatmul.mubr.bf16.gmra.mxu0 %v2568
      %v2643 = vpop.f32.mrf.mxu0
      %v2644 = vadd.f32 0.0, %v2643
      %v2645 = vpop.f32.mrf.mxu0
      %v2646 = vpop.f32.mrf.mxu0
      %v2647 = vadd.f32 0.0, %v2646
      %v2648 = vpop.f32.mrf.mxu0
      %2649 = vmatprep.mubr.bf16.mxu0 0
      %2650 = vmatmul.mubr.bf16.gmra.mxu0 %v2570
      %v2651 = vpop.f32.mrf.mxu0
      %v2652 = vadd.f32 0.0, %v2651
      %v2653 = vpop.f32.mrf.mxu0
      %v2654 = vpop.f32.mrf.mxu0
      %v2655 = vadd.f32 0.0, %v2654
      %v2656 = vpop.f32.mrf.mxu0
      %2657 = vmatprep.mubr.bf16.mxu0 0
      %2658 = vmatmul.mubr.bf16.gmra.mxu0 %v2572
      %v2659 = vpop.f32.mrf.mxu0
      %v2660 = vadd.f32 0.0, %v2659
      %v2661 = vpop.f32.mrf.mxu0
      %v2662 = vpop.f32.mrf.mxu0
      %v2663 = vadd.f32 0.0, %v2662
      %v2664 = vpop.f32.mrf.mxu0
      %2665 = vmatprep.mubr.bf16.mxu0 0
      %2666 = vmatmul.mubr.bf16.gmra.mxu0 %v2574
      %v2667 = vpop.f32.mrf.mxu0
      %v2668 = vadd.f32 0.0, %v2667
      %v2669 = vpop.f32.mrf.mxu0
      %v2670 = vpop.f32.mrf.mxu0
      %v2671 = vadd.f32 0.0, %v2670
      %v2672 = vpop.f32.mrf.mxu0
      %2673 = vmatprep.mubr.bf16.mxu0 0
      %2674 = vmatmul.mubr.bf16.gmra.mxu0 %v2576
      %v2675 = vpop.f32.mrf.mxu0
      %v2676 = vadd.f32 0.0, %v2675
      %v2677 = vpop.f32.mrf.mxu0
      %v2678 = vpop.f32.mrf.mxu0
      %v2679 = vadd.f32 0.0, %v2678
      %v2680 = vpop.f32.mrf.mxu0
      %2681 = vmatprep.mubr.bf16.mxu0 0
      %2682 = vmatmul.mubr.bf16.gmra.mxu0 %v2578
      %v2683 = vpop.f32.mrf.mxu0
      %v2684 = vadd.f32 0.0, %v2683
      %v2685 = vpop.f32.mrf.mxu0
      %v2686 = vpop.f32.mrf.mxu0
      %v2687 = vadd.f32 0.0, %v2686
      %v2688 = vpop.f32.mrf.mxu0
      %2689 = vmatprep.mubr.bf16.mxu0 0
      %2690 = vmatmul.mubr.bf16.gmra.mxu0 %v2580
      %v2691 = vpop.f32.mrf.mxu0
      %v2692 = vadd.f32 0.0, %v2691
      %v2693 = vpop.f32.mrf.mxu0
      %v2694 = vpop.f32.mrf.mxu0
      %v2695 = vadd.f32 0.0, %v2694
      %v2696 = vpop.f32.mrf.mxu0
      %2697 = vmatprep.mubr.bf16.mxu0 0
      %2698 = vmatmul.mubr.bf16.gmra.mxu0 %v2582
      %v2699 = vpop.f32.mrf.mxu0
      %v2700 = vadd.f32 0.0, %v2699
      %v2701 = vpop.f32.mrf.mxu0
      %v2702 = vpop.f32.mrf.mxu0
      %v2703 = vadd.f32 0.0, %v2702
      %v2704 = vpop.f32.mrf.mxu0
      %2705 = vmatprep.mubr.bf16.mxu0 0
      %2706 = vmatmul.mubr.bf16.gmra.mxu0 %v2584
      %v2707 = vpop.f32.mrf.mxu0
      %v2708 = vadd.f32 0.0, %v2707
      %v2709 = vpop.f32.mrf.mxu0
      %v2710 = vpop.f32.mrf.mxu0
      %v2711 = vadd.f32 0.0, %v2710
      %v2712 = vpop.f32.mrf.mxu0
      %2713 = vmatprep.mubr.bf16.mxu0 0
      %2714 = vmatmul.mubr.bf16.gmra.mxu0 %v2586
      %v2715 = vpop.f32.mrf.mxu0
      %v2716 = vadd.f32 0.0, %v2715
      %v2717 = vpop.f32.mrf.mxu0
      %v2718 = vpop.f32.mrf.mxu0
      %v2719 = vadd.f32 0.0, %v2718
      %v2720 = vpop.f32.mrf.mxu0
      %2721 = vmatprep.mubr.bf16.mxu0 0
      %2722 = vmatmul.mubr.bf16.gmra.mxu0 %v2588
      %v2723 = vpop.f32.mrf.mxu0
      %v2724 = vadd.f32 0.0, %v2723
      %v2725 = vpop.f32.mrf.mxu0
      %v2726 = vpop.f32.mrf.mxu0
      %v2727 = vadd.f32 0.0, %v2726
      %v2728 = vpop.f32.mrf.mxu0
      %2729 = vmatprep.mubr.bf16.mxu0 0
      %2730 = vmatmul.mubr.bf16.gmra.mxu0 %v2590
      %v2731 = vpop.f32.mrf.mxu0
      %v2732 = vadd.f32 0.0, %v2731
      %v2733 = vpop.f32.mrf.mxu0
      %v2734 = vpop.f32.mrf.mxu0
      %v2735 = vadd.f32 0.0, %v2734
      %v2736 = vpop.f32.mrf.mxu0
      %2737 = vmatprep.mubr.bf16.mxu0 0
      %2738 = vmatmul.mubr.bf16.gmra.mxu0 %v2592
      %v2739 = vpop.f32.mrf.mxu0
      %v2740 = vadd.f32 0.0, %v2739
      %v2741 = vpop.f32.mrf.mxu0
      %v2742 = vpop.f32.mrf.mxu0
      %v2743 = vadd.f32 0.0, %v2742
      %v2744 = vpop.f32.mrf.mxu0
      %2745 = vmatprep.mubr.bf16.mxu0 0
      %2746 = vmatmul.mubr.bf16.gmra.mxu0 %v2594
      %v2747 = vpop.f32.mrf.mxu0
      %v2748 = vadd.f32 0.0, %v2747
      %v2749 = vpop.f32.mrf.mxu0
      %v2750 = vpop.f32.mrf.mxu0
      %v2751 = vadd.f32 0.0, %v2750
      %v2752 = vpop.f32.mrf.mxu0
      %2753 = vmatprep.mubr.bf16.mxu0 0
      %2754 = vmatmul.mubr.bf16.gmra.mxu0 %v2596
      %v2755 = vpop.f32.mrf.mxu0
      %v2756 = vadd.f32 0.0, %v2755
      %v2757 = vpop.f32.mrf.mxu0
      %v2758 = vpop.f32.mrf.mxu0
      %v2759 = vadd.f32 0.0, %v2758
      %v2760 = vpop.f32.mrf.mxu0
      %2761 = vdwg.mxu0
      %v2762 = vadd.f32 %v2526, %v2636
      %v2763 = vadd.f32 %v2527, %v2639
      %v2764 = vadd.f32 %v2528, %v2644
      %v2765 = vadd.f32 %v2529, %v2647
      %v2766 = vadd.f32 %v2530, %v2652
      %v2767 = vadd.f32 %v2531, %v2655
      %v2768 = vadd.f32 %v2532, %v2660
      %v2769 = vadd.f32 %v2533, %v2663
      %v2770 = vadd.f32 %v2534, %v2668
      %v2771 = vadd.f32 %v2535, %v2671
      %v2772 = vadd.f32 %v2536, %v2676
      %v2773 = vadd.f32 %v2537, %v2679
      %v2774 = vadd.f32 %v2538, %v2684
      %v2775 = vadd.f32 %v2539, %v2687
      %v2776 = vadd.f32 %v2540, %v2692
      %v2777 = vadd.f32 %v2541, %v2695
      %v2778 = vadd.f32 %v2542, %v2700
      %v2779 = vadd.f32 %v2543, %v2703
      %v2780 = vadd.f32 %v2544, %v2708
      %v2781 = vadd.f32 %v2545, %v2711
      %v2782 = vadd.f32 %v2546, %v2716
      %v2783 = vadd.f32 %v2547, %v2719
      %v2784 = vadd.f32 %v2548, %v2724
      %v2785 = vadd.f32 %v2549, %v2727
      %v2786 = vadd.f32 %v2550, %v2732
      %v2787 = vadd.f32 %v2551, %v2735
      %v2788 = vadd.f32 %v2552, %v2740
      %v2789 = vadd.f32 %v2553, %v2743
      %v2790 = vadd.f32 %v2554, %v2748
      %v2791 = vadd.f32 %v2555, %v2751
      %v2792 = vadd.f32 %v2556, %v2756
      %v2793 = vadd.f32 %v2557, %v2759
      %2794 = vst [vmem:[#allocation2] sm:$0xff] %v2762
      %2795 = vst [vmem:[#allocation2 + $0x8] sm:$0xff] %v2763
      %2796 = vst [vmem:[#allocation2 + $0x10] sm:$0xff] %v2764
      %2797 = vst [vmem:[#allocation2 + $0x18] sm:$0xff] %v2765
      %2798 = vst [vmem:[#allocation2 + $0x20] sm:$0xff] %v2766
      %2799 = vst [vmem:[#allocation2 + $0x28] sm:$0xff] %v2767
      %2800 = vst [vmem:[#allocation2 + $0x30] sm:$0xff] %v2768
      %2801 = vst [vmem:[#allocation2 + $0x38] sm:$0xff] %v2769
      %2802 = vst [vmem:[#allocation2 + $0x40] sm:$0xff] %v2770
      %2803 = vst [vmem:[#allocation2 + $0x48] sm:$0xff] %v2771
      %2804 = vst [vmem:[#allocation2 + $0x50] sm:$0xff] %v2772
      %2805 = vst [vmem:[#allocation2 + $0x58] sm:$0xff] %v2773
      %2806 = vst [vmem:[#allocation2 + $0x60] sm:$0xff] %v2774
      %2807 = vst [vmem:[#allocation2 + $0x68] sm:$0xff] %v2775
      %2808 = vst [vmem:[#allocation2 + $0x70] sm:$0xff] %v2776
      %2809 = vst [vmem:[#allocation2 + $0x78] sm:$0xff] %v2777
      %2810 = vst [vmem:[#allocation2 + $0x80] sm:$0xff] %v2778
      %2811 = vst [vmem:[#allocation2 + $0x88] sm:$0xff] %v2779
      %2812 = vst [vmem:[#allocation2 + $0x90] sm:$0xff] %v2780
      %2813 = vst [vmem:[#allocation2 + $0x98] sm:$0xff] %v2781
      %2814 = vst [vmem:[#allocation2 + $0xa0] sm:$0xff] %v2782
      %2815 = vst [vmem:[#allocation2 + $0xa8] sm:$0xff] %v2783
      %2816 = vst [vmem:[#allocation2 + $0xb0] sm:$0xff] %v2784
      %2817 = vst [vmem:[#allocation2 + $0xb8] sm:$0xff] %v2785
      %2818 = vst [vmem:[#allocation2 + $0xc0] sm:$0xff] %v2786
      %2819 = vst [vmem:[#allocation2 + $0xc8] sm:$0xff] %v2787
      %2820 = vst [vmem:[#allocation2 + $0xd0] sm:$0xff] %v2788
      %2821 = vst [vmem:[#allocation2 + $0xd8] sm:$0xff] %v2789
      %2822 = vst [vmem:[#allocation2 + $0xe0] sm:$0xff] %v2790
      %2823 = vst [vmem:[#allocation2 + $0xe8] sm:$0xff] %v2791
      %2824 = vst [vmem:[#allocation2 + $0xf0] sm:$0xff] %v2792
      %2825 = vst [vmem:[#allocation2 + $0xf8] sm:$0xff] %v2793
      %v2826 = vld [vmem:[#allocation2] sm:$0xff]
      %v2827 = vld [vmem:[#allocation2 + $0x8] sm:$0xff]
      %v2828 = vld [vmem:[#allocation2 + $0x10] sm:$0xff]
      %v2829 = vld [vmem:[#allocation2 + $0x18] sm:$0xff]
      %v2830 = vld [vmem:[#allocation2 + $0x20] sm:$0xff]
      %v2831 = vld [vmem:[#allocation2 + $0x28] sm:$0xff]
      %v2832 = vld [vmem:[#allocation2 + $0x30] sm:$0xff]
      %v2833 = vld [vmem:[#allocation2 + $0x38] sm:$0xff]
      %v2834 = vld [vmem:[#allocation2 + $0x40] sm:$0xff]
      %v2835 = vld [vmem:[#allocation2 + $0x48] sm:$0xff]
      %v2836 = vld [vmem:[#allocation2 + $0x50] sm:$0xff]
      %v2837 = vld [vmem:[#allocation2 + $0x58] sm:$0xff]
      %v2838 = vld [vmem:[#allocation2 + $0x60] sm:$0xff]
      %v2839 = vld [vmem:[#allocation2 + $0x68] sm:$0xff]
      %v2840 = vld [vmem:[#allocation2 + $0x70] sm:$0xff]
      %v2841 = vld [vmem:[#allocation2 + $0x78] sm:$0xff]
      %v2842 = vld [vmem:[#allocation2 + $0x80] sm:$0xff]
      %v2843 = vld [vmem:[#allocation2 + $0x88] sm:$0xff]
      %v2844 = vld [vmem:[#allocation2 + $0x90] sm:$0xff]
      %v2845 = vld [vmem:[#allocation2 + $0x98] sm:$0xff]
      %v2846 = vld [vmem:[#allocation2 + $0xa0] sm:$0xff]
      %v2847 = vld [vmem:[#allocation2 + $0xa8] sm:$0xff]
      %v2848 = vld [vmem:[#allocation2 + $0xb0] sm:$0xff]
      %v2849 = vld [vmem:[#allocation2 + $0xb8] sm:$0xff]
      %v2850 = vld [vmem:[#allocation2 + $0xc0] sm:$0xff]
      %v2851 = vld [vmem:[#allocation2 + $0xc8] sm:$0xff]
      %v2852 = vld [vmem:[#allocation2 + $0xd0] sm:$0xff]
      %v2853 = vld [vmem:[#allocation2 + $0xd8] sm:$0xff]
      %v2854 = vld [vmem:[#allocation2 + $0xe0] sm:$0xff]
      %v2855 = vld [vmem:[#allocation2 + $0xe8] sm:$0xff]
      %v2856 = vld [vmem:[#allocation2 + $0xf0] sm:$0xff]
      %v2857 = vld [vmem:[#allocation2 + $0xf8] sm:$0xff]
      %v2858 = vpack.c.bf16 %v2827, %v2826
      %v2859 = vpack.c.bf16 %v2829, %v2828
      %v2860 = vpack.c.bf16 %v2831, %v2830
      %v2861 = vpack.c.bf16 %v2833, %v2832
      %v2862 = vpack.c.bf16 %v2835, %v2834
      %v2863 = vpack.c.bf16 %v2837, %v2836
      %v2864 = vpack.c.bf16 %v2839, %v2838
      %v2865 = vpack.c.bf16 %v2841, %v2840
      %v2866 = vpack.c.bf16 %v2843, %v2842
      %v2867 = vpack.c.bf16 %v2845, %v2844
      %v2868 = vpack.c.bf16 %v2847, %v2846
      %v2869 = vpack.c.bf16 %v2849, %v2848
      %v2870 = vpack.c.bf16 %v2851, %v2850
      %v2871 = vpack.c.bf16 %v2853, %v2852
      %v2872 = vpack.c.bf16 %v2855, %v2854
      %v2873 = vpack.c.bf16 %v2857, %v2856
      %v2890 = vunpack.c.l.b16 %v2858
      %v2891 = vunpack.c.h.b16 %v2858
      %v2892 = vunpack.c.l.b16 %v2859
      %v2893 = vunpack.c.h.b16 %v2859
      %v2894 = vunpack.c.l.b16 %v2860
      %v2895 = vunpack.c.h.b16 %v2860
      %v2896 = vunpack.c.l.b16 %v2861
      %v2897 = vunpack.c.h.b16 %v2861
      %v2898 = vunpack.c.l.b16 %v2862
      %v2899 = vunpack.c.h.b16 %v2862
      %v2900 = vunpack.c.l.b16 %v2863
      %v2901 = vunpack.c.h.b16 %v2863
      %v2902 = vunpack.c.l.b16 %v2864
      %v2903 = vunpack.c.h.b16 %v2864
      %v2904 = vunpack.c.l.b16 %v2865
      %v2905 = vunpack.c.h.b16 %v2865
      %v2906 = vunpack.c.l.b16 %v2866
      %v2907 = vunpack.c.h.b16 %v2866
      %v2908 = vunpack.c.l.b16 %v2867
      %v2909 = vunpack.c.h.b16 %v2867
      %v2910 = vunpack.c.l.b16 %v2868
      %v2911 = vunpack.c.h.b16 %v2868
      %v2912 = vunpack.c.l.b16 %v2869
      %v2913 = vunpack.c.h.b16 %v2869
      %v2914 = vunpack.c.l.b16 %v2870
      %v2915 = vunpack.c.h.b16 %v2870
      %v2916 = vunpack.c.l.b16 %v2871
      %v2917 = vunpack.c.h.b16 %v2871
      %v2918 = vunpack.c.l.b16 %v2872
      %v2919 = vunpack.c.h.b16 %v2872
      %v2920 = vunpack.c.l.b16 %v2873
      %v2921 = vunpack.c.h.b16 %v2873
      %v2922 = vpack.c.b16 %v2890, %v2890
      %v2923 = vpack.c.b16 %v2891, %v2891
      %v2924 = vpack.c.b16 %v2892, %v2892
      %v2925 = vpack.c.b16 %v2893, %v2893
      %v2926 = vpack.c.b16 %v2894, %v2894
      %v2927 = vpack.c.b16 %v2895, %v2895
      %v2928 = vpack.c.b16 %v2896, %v2896
      %v2929 = vpack.c.b16 %v2897, %v2897
      %v2930 = vpack.c.b16 %v2898, %v2898
      %v2931 = vpack.c.b16 %v2899, %v2899
      %v2932 = vpack.c.b16 %v2900, %v2900
      %v2933 = vpack.c.b16 %v2901, %v2901
      %v2934 = vpack.c.b16 %v2902, %v2902
      %v2935 = vpack.c.b16 %v2903, %v2903
      %v2936 = vpack.c.b16 %v2904, %v2904
      %v2937 = vpack.c.b16 %v2905, %v2905
      %v2938 = vpack.c.b16 %v2906, %v2906
      %v2939 = vpack.c.b16 %v2907, %v2907
      %v2940 = vpack.c.b16 %v2908, %v2908
      %v2941 = vpack.c.b16 %v2909, %v2909
      %v2942 = vpack.c.b16 %v2910, %v2910
      %v2943 = vpack.c.b16 %v2911, %v2911
      %v2944 = vpack.c.b16 %v2912, %v2912
      %v2945 = vpack.c.b16 %v2913, %v2913
      %v2946 = vpack.c.b16 %v2914, %v2914
      %v2947 = vpack.c.b16 %v2915, %v2915
      %v2948 = vpack.c.b16 %v2916, %v2916
      %v2949 = vpack.c.b16 %v2917, %v2917
      %v2950 = vpack.c.b16 %v2918, %v2918
      %v2951 = vpack.c.b16 %v2919, %v2919
      %v2952 = vpack.c.b16 %v2920, %v2920
      %v2953 = vpack.c.b16 %v2921, %v2921
      %2986 = vst [vmem:[%s226] sm:$0xf] %v2922
      %2987 = vst [vmem:[%s226 + $0x4] sm:$0xf] %v2923
      %2988 = vst [vmem:[%s226 + $0x8] sm:$0xf] %v2924
      %2989 = vst [vmem:[%s226 + $0xc] sm:$0xf] %v2925
      %2990 = vst [vmem:[%s226 + $0x10] sm:$0xf] %v2926
      %2991 = vst [vmem:[%s226 + $0x14] sm:$0xf] %v2927
      %2992 = vst [vmem:[%s226 + $0x18] sm:$0xf] %v2928
      %2993 = vst [vmem:[%s226 + $0x1c] sm:$0xf] %v2929
      %2994 = vst [vmem:[%s226 + $0x20] sm:$0xf] %v2930
      %2995 = vst [vmem:[%s226 + $0x24] sm:$0xf] %v2931
      %2996 = vst [vmem:[%s226 + $0x28] sm:$0xf] %v2932
      %2997 = vst [vmem:[%s226 + $0x2c] sm:$0xf] %v2933
      %2998 = vst [vmem:[%s226 + $0x30] sm:$0xf] %v2934
      %2999 = vst [vmem:[%s226 + $0x34] sm:$0xf] %v2935
      %3000 = vst [vmem:[%s226 + $0x38] sm:$0xf] %v2936
      %3001 = vst [vmem:[%s226 + $0x3c] sm:$0xf] %v2937
      %3002 = vst [vmem:[%s226 + $0x40] sm:$0xf] %v2938
      %3003 = vst [vmem:[%s226 + $0x44] sm:$0xf] %v2939
      %3004 = vst [vmem:[%s226 + $0x48] sm:$0xf] %v2940
      %3005 = vst [vmem:[%s226 + $0x4c] sm:$0xf] %v2941
      %3006 = vst [vmem:[%s226 + $0x50] sm:$0xf] %v2942
      %3007 = vst [vmem:[%s226 + $0x54] sm:$0xf] %v2943
      %3008 = vst [vmem:[%s226 + $0x58] sm:$0xf] %v2944
      %3009 = vst [vmem:[%s226 + $0x5c] sm:$0xf] %v2945
      %3010 = vst [vmem:[%s226 + $0x60] sm:$0xf] %v2946
      %3011 = vst [vmem:[%s226 + $0x64] sm:$0xf] %v2947
      %3012 = vst [vmem:[%s226 + $0x68] sm:$0xf] %v2948
      %3013 = vst [vmem:[%s226 + $0x6c] sm:$0xf] %v2949
      %3014 = vst [vmem:[%s226 + $0x70] sm:$0xf] %v2950
      %3015 = vst [vmem:[%s226 + $0x74] sm:$0xf] %v2951
      %3016 = vst [vmem:[%s226 + $0x78] sm:$0xf] %v2952
      %3017 = vst [vmem:[%s226 + $0x7c] sm:$0xf] %v2953
      %v3018 = vld [vmem:[#allocation2] sm:$0xff]
      %v3019 = vld [vmem:[#allocation2 + $0x8] sm:$0xff]
      %v3020 = vld [vmem:[#allocation2 + $0x10] sm:$0xff]
      %v3021 = vld [vmem:[#allocation2 + $0x18] sm:$0xff]
      %v3022 = vld [vmem:[#allocation2 + $0x20] sm:$0xff]
      %v3023 = vld [vmem:[#allocation2 + $0x28] sm:$0xff]
      %v3024 = vld [vmem:[#allocation2 + $0x30] sm:$0xff]
      %v3025 = vld [vmem:[#allocation2 + $0x38] sm:$0xff]
      %v3026 = vld [vmem:[#allocation2 + $0x40] sm:$0xff]
      %v3027 = vld [vmem:[#allocation2 + $0x48] sm:$0xff]
      %v3028 = vld [vmem:[#allocation2 + $0x50] sm:$0xff]
      %v3029 = vld [vmem:[#allocation2 + $0x58] sm:$0xff]
      %v3030 = vld [vmem:[#allocation2 + $0x60] sm:$0xff]
      %v3031 = vld [vmem:[#allocation2 + $0x68] sm:$0xff]
      %v3032 = vld [vmem:[#allocation2 + $0x70] sm:$0xff]
      %v3033 = vld [vmem:[#allocation2 + $0x78] sm:$0xff]
      %v3034 = vld [vmem:[#allocation2 + $0x80] sm:$0xff]
      %v3035 = vld [vmem:[#allocation2 + $0x88] sm:$0xff]
      %v3036 = vld [vmem:[#allocation2 + $0x90] sm:$0xff]
      %v3037 = vld [vmem:[#allocation2 + $0x98] sm:$0xff]
      %v3038 = vld [vmem:[#allocation2 + $0xa0] sm:$0xff]
      %v3039 = vld [vmem:[#allocation2 + $0xa8] sm:$0xff]
      %v3040 = vld [vmem:[#allocation2 + $0xb0] sm:$0xff]
      %v3041 = vld [vmem:[#allocation2 + $0xb8] sm:$0xff]
      %v3042 = vld [vmem:[#allocation2 + $0xc0] sm:$0xff]
      %v3043 = vld [vmem:[#allocation2 + $0xc8] sm:$0xff]
      %v3044 = vld [vmem:[#allocation2 + $0xd0] sm:$0xff]
      %v3045 = vld [vmem:[#allocation2 + $0xd8] sm:$0xff]
      %v3046 = vld [vmem:[#allocation2 + $0xe0] sm:$0xff]
      %v3047 = vld [vmem:[#allocation2 + $0xe8] sm:$0xff]
      %v3048 = vld [vmem:[#allocation2 + $0xf0] sm:$0xff]
      %v3049 = vld [vmem:[#allocation2 + $0xf8] sm:$0xff]
      %v3050 = vadd.f32 %v3018, %v3019
      %v3051 = vadd.f32 %v3050, %v3020
      %v3052 = vadd.f32 %v3051, %v3021
      %v3053 = vadd.f32 %v3052, %v3022
      %v3054 = vadd.f32 %v3053, %v3023
      %v3055 = vadd.f32 %v3054, %v3024
      %v3056 = vadd.f32 %v3055, %v3025
      %v3057 = vadd.f32 %v3056, %v3026
      %v3058 = vadd.f32 %v3057, %v3027
      %v3059 = vadd.f32 %v3058, %v3028
      %v3060 = vadd.f32 %v3059, %v3029
      %v3061 = vadd.f32 %v3060, %v3030
      %v3062 = vadd.f32 %v3061, %v3031
      %v3063 = vadd.f32 %v3062, %v3032
      %v3064 = vadd.f32 %v3063, %v3033
      %v3065 = vadd.f32 %v3064, %v3034
      %v3066 = vadd.f32 %v3065, %v3035
      %v3067 = vadd.f32 %v3066, %v3036
      %v3068 = vadd.f32 %v3067, %v3037
      %v3069 = vadd.f32 %v3068, %v3038
      %v3070 = vadd.f32 %v3069, %v3039
      %v3071 = vadd.f32 %v3070, %v3040
      %v3072 = vadd.f32 %v3071, %v3041
      %v3073 = vadd.f32 %v3072, %v3042
      %v3074 = vadd.f32 %v3073, %v3043
      %v3075 = vadd.f32 %v3074, %v3044
      %v3076 = vadd.f32 %v3075, %v3045
      %v3077 = vadd.f32 %v3076, %v3046
      %v3078 = vadd.f32 %v3077, %v3047
      %v3079 = vadd.f32 %v3078, %v3048
      %v3080 = vadd.f32 %v3079, %v3049
      %v3081 = vrot.slane %v3080, 4
      %v3082 = vadd.f32 %v3080, %v3081
      %v3083 = vrot.slane %v3082, 2
      %v3084 = vadd.f32 %v3082, %v3083
      %v3085 = vrot.slane %v3084, 1
      %v3086 = vadd.f32 %v3084, %v3085
      %v3087 = vmul.f32 %v3018, %v3018
      %v3088 = vmul.f32 %v3019, %v3019
      %v3089 = vmul.f32 %v3020, %v3020
      %v3090 = vmul.f32 %v3021, %v3021
      %v3091 = vmul.f32 %v3022, %v3022
      %v3092 = vmul.f32 %v3023, %v3023
      %v3093 = vmul.f32 %v3024, %v3024
      %v3094 = vmul.f32 %v3025, %v3025
      %v3095 = vmul.f32 %v3026, %v3026
      %v3096 = vmul.f32 %v3027, %v3027
      %v3097 = vmul.f32 %v3028, %v3028
      %v3098 = vmul.f32 %v3029, %v3029
      %v3099 = vmul.f32 %v3030, %v3030
      %v3100 = vmul.f32 %v3031, %v3031
      %v3101 = vmul.f32 %v3032, %v3032
      %v3102 = vmul.f32 %v3033, %v3033
      %v3103 = vmul.f32 %v3034, %v3034
      %v3104 = vmul.f32 %v3035, %v3035
      %v3105 = vmul.f32 %v3036, %v3036
      %v3106 = vmul.f32 %v3037, %v3037
      %v3107 = vmul.f32 %v3038, %v3038
      %v3108 = vmul.f32 %v3039, %v3039
      %v3109 = vmul.f32 %v3040, %v3040
      %v3110 = vmul.f32 %v3041, %v3041
      %v3111 = vmul.f32 %v3042, %v3042
      %v3112 = vmul.f32 %v3043, %v3043
      %v3113 = vmul.f32 %v3044, %v3044
      %v3114 = vmul.f32 %v3045, %v3045
      %v3115 = vmul.f32 %v3046, %v3046
      %v3116 = vmul.f32 %v3047, %v3047
      %v3117 = vmul.f32 %v3048, %v3048
      %v3118 = vmul.f32 %v3049, %v3049
      %v3119 = vadd.f32 %v3087, %v3088
      %v3120 = vadd.f32 %v3119, %v3089
      %v3121 = vadd.f32 %v3120, %v3090
      %v3122 = vadd.f32 %v3121, %v3091
      %v3123 = vadd.f32 %v3122, %v3092
      %v3124 = vadd.f32 %v3123, %v3093
      %v3125 = vadd.f32 %v3124, %v3094
      %v3126 = vadd.f32 %v3125, %v3095
      %v3127 = vadd.f32 %v3126, %v3096
      %v3128 = vadd.f32 %v3127, %v3097
      %v3129 = vadd.f32 %v3128, %v3098
      %v3130 = vadd.f32 %v3129, %v3099
      %v3131 = vadd.f32 %v3130, %v3100
      %v3132 = vadd.f32 %v3131, %v3101
      %v3133 = vadd.f32 %v3132, %v3102
      %v3134 = vadd.f32 %v3133, %v3103
      %v3135 = vadd.f32 %v3134, %v3104
      %v3136 = vadd.f32 %v3135, %v3105
      %v3137 = vadd.f32 %v3136, %v3106
      %v3138 = vadd.f32 %v3137, %v3107
      %v3139 = vadd.f32 %v3138, %v3108
      %v3140 = vadd.f32 %v3139, %v3109
      %v3141 = vadd.f32 %v3140, %v3110
      %v3142 = vadd.f32 %v3141, %v3111
      %v3143 = vadd.f32 %v3142, %v3112
      %v3144 = vadd.f32 %v3143, %v3113
      %v3145 = vadd.f32 %v3144, %v3114
      %v3146 = vadd.f32 %v3145, %v3115
      %v3147 = vadd.f32 %v3146, %v3116
      %v3148 = vadd.f32 %v3147, %v3117
      %v3149 = vadd.f32 %v3148, %v3118
      %v3150 = vrot.slane %v3149, 4
      %v3151 = vadd.f32 %v3149, %v3150
      %v3152 = vrot.slane %v3151, 2
      %v3153 = vadd.f32 %v3151, %v3152
      %v3154 = vrot.slane %v3153, 1
      %v3155 = vadd.f32 %v3153, %v3154
      %v3156 = vld [vmem:[%s231] sm:$0x3]
      %vm3157 = vcmask 1040384
      %v3158 = vsel %vm3157, %v3086, %v3155
      %v3159 = vadd.f32 %v3156, %v3158
      %3160 = vst [vmem:[%s231] sm:$0x3] %v3159
      %s3161 = smul.u32 32, %s21
      %p3162 = scmp.lt.s32.totalorder %s20, 1
      %s3163 = scalar_select %p3162, %s20, 1
      %p3164 = scmp.lt.s32.totalorder %s3161, 31
      %s3165 = scalar_select %p3164, %s3161, 31
      %s3166 = smul.addr %s3163, 32
      %s3167 = sadd.s32 %s3165, %s3166
      %s3168 = smul.addr %s3167, 4
      %s3169 = scalar_lea.vmem %s3, %s3168
      %p3170 = scmp.lt.s32.totalorder %s20, 1
      %s3171 = scalar_select %p3170, %s20, 1
      %s3172 = smul.addr %s3171, 2
      %s3173 = scalar_lea.vmem %s4, %s3172
      // Predicated region
      $region37: #{vgg16_block_forward.4} parent=31 // pred_check
        %p3174 = pneg %p116
      $region38: #{vgg16_block_forward.4} parent=31 // pred_check_branch
        %3176 = sbr.rel (%p3174) target = $region40
      $region39: #{vgg16_block_forward.4} parent=31 // pred_region
        %s3177 = smul.u32 32, %s21
      $region40: #{vgg16_block_forward.4} parent=31 // pred_fallthru
        _
      // Predicated region
      $region41: #{vgg16_block_forward.4} parent=31 // pred_check
        %p3178 = pneg %p142
      $region42: #{vgg16_block_forward.4} parent=31 // pred_check_branch
        %3180 = sbr.rel (%p3178) target = $region44
      $region43: #{vgg16_block_forward.4} parent=31 // pred_region
        _
      $region44: #{vgg16_block_forward.4} parent=31 // pred_fallthru
        _
    $region32: #{vgg16_block_forward.4} parent=5 // pred_fallthru
      _
    %p3181 = scmp.le.s32.totalorder 2, %s11
    // Predicated region
    $region45: #{vgg16_block_forward.4} parent=5 // pred_check
      %p3182 = pneg %p3181
    $region46: #{vgg16_block_forward.4} parent=5 // pred_check_branch
      %3184 = sbr.rel (%p3182) target = $region48
    $region47: #{vgg16_block_forward.4} parent=5 // pred_region
      %s3185 = ssub.s32 %s11, 2
      // Predicated region
      $region49: #{vgg16_block_forward.4} parent=47 // pred_check
        %p3186 = pneg %p122
      $region50: #{vgg16_block_forward.4} parent=47 // pred_check_branch
        %3188 = sbr.rel (%p3186) target = $region52
      $region51: #{vgg16_block_forward.4} parent=47 // pred_region
        %s3189 = smul.u32 32, %s23
        %p3190 = scmp.lt.s32.totalorder %s22, 1
        %s3191 = scalar_select %p3190, %s22, 1
        %p3192 = scmp.lt.s32.totalorder %s3189, 31
        %s3193 = scalar_select %p3192, %s3189, 31
        %s3194 = smul.addr %s3191, 32
        %s3195 = sadd.s32 %s3193, %s3194
        %s3196 = smul.addr %s3195, 4
        %s3197 = scalar_lea.vmem %s3, %s3196
      $region52: #{vgg16_block_forward.4} parent=47 // pred_fallthru
        _
      // Predicated region
      $region53: #{vgg16_block_forward.4} parent=47 // pred_check
        %p3198 = pneg %p148
      $region54: #{vgg16_block_forward.4} parent=47 // pred_check_branch
        %3200 = sbr.rel (%p3198) target = $region56
      $region55: #{vgg16_block_forward.4} parent=47 // pred_region
        %p3201 = scmp.lt.s32.totalorder %s22, 1
        %s3202 = scalar_select %p3201, %s22, 1
        %s3203 = smul.addr %s3202, 2
        %s3204 = scalar_lea.vmem %s4, %s3203
      $region56: #{vgg16_block_forward.4} parent=47 // pred_fallthru
        _
    $region48: #{vgg16_block_forward.4} parent=5 // pred_fallthru
      _
  $region6: #{vgg16_block_forward.4} parent=0 // loop_footer
    %s15 = sadd.s32 1, %s11
  $region7: #{vgg16_block_forward.4} parent=0 // loop_footer_branch
    %10 = sbr.rel target = $region3
  $region8: #{vgg16_block_forward.4} parent=0 // loop_exit
    _

// kernel: vgg16_block_forward.6
$region0: #{vgg16_block_forward.6}
  #allocation0 [shape = 'u32[]', space=smem, size = 0x4, offset = 0x4, fixed_abs, tag = 'smem constant byte address 0x4 - core index']
  #allocation1 [shape = 'u32[144,128]{1,0:T(1,128)}', space=vmem, size = 0x12000, scoped, tag = 'internal scratch']
  #allocation2 [shape = 'f32[256,128]{1,0:T(8,128)}', space=vmem, size = 0x20000, scoped, tag = 'scratch operand']
  %s0 = inlined_call_operand.vmem [shape: bf16[2,18,18,128], index: 0, kind: input, shape index: {}]
  %s1 = inlined_call_operand.vmem [shape: bf16[3,384,128], index: 1, kind: input, shape index: {}]
  %s2 = inlined_call_operand.vmem [shape: f32[1,128], index: 2, kind: input, shape index: {}]
  %s3 = inlined_call_operand.vmem [shape: bf16[2,256,128], index: 3, kind: output, shape index: {0}]
  %s4 = inlined_call_operand.vmem [shape: f32[2,2,128], index: 4, kind: output, shape index: {1}]
  %5 = xla_tuple %s3, %s4
  %s6 = sld [smem:[#allocation0]]
  $region57: #{vgg16_block_forward.6} parent=0
    _
  %s8 = ssub.s32 1, %s6
  %s9 = scalar_select 0, %s8, %s6
  loop: start=0, step=1, limit=4
  $region2: #{vgg16_block_forward.6} parent=0 // loop_pre_header
    _
  $region3: #{vgg16_block_forward.6} parent=0 // loop_header
    %s11 = sphi 0, %s15
    %p12 = scmp.ge.s32.totalorder %s11, 4
    %s18 = sphi 0, %s30
    %s19 = sphi 0, %s26
    %s20 = sphi 0, %s18
    %s21 = sphi 0, %s19
    %s22 = sphi 0, %s20
    %s23 = sphi 0, %s21
    %s33 = sphi 0, %s35
    %s36 = sphi 0, %s33
    %s37 = sphi 0, %s36
    %s53 = sphi 0, %s37
    %s57 = sphi 0, %s57
    %s59 = sphi 0, %s57
    %s60 = sphi 0, %s59
    %s74 = sphi 0, %s60
    %s78 = sphi 0, %s78
    %s80 = sphi 0, %s78
    %s81 = sphi 0, %s80
    %s95 = sphi 0, %s81
    %s103 = sphi 0, %s105
    %s106 = sphi 0, %s103
    %s107 = sphi 0, %s106
    %s123 = sphi 0, %s107
    %s129 = sphi 0, %s131
    %s132 = sphi 0, %s129
    %s133 = sphi 0, %s132
    %s149 = sphi 0, %s133
  $region4: #{vgg16_block_forward.6} parent=0 // loop_header_branch
    %14 = sbr.rel (%p12) target = $region8
  $region5: #{vgg16_block_forward.6} parent=0 // loop_body
    %s16 = ssub.s32 %s11, 1
    %s17 = ssub.s32 %s11, 2
    %s24 = sadd.s32 1, %s19
    %p25 = scmp.ge.s32.totalorder %s24, 1
    %s26 = scalar_select %p25, 0, %s24
    %s27 = sadd.s32 1, %s18
    %s28 = scalar_select %p25, %s27, %s18
    %p29 = scmp.ge.s32.totalorder %s28, 2
    %s30 = scalar_select %p29, 0, %s28
    %s31 = ssub.s32 %s18, %s30
    %p32 = scmp.eq.s32.totalorder %s31, 0
    %s34 = sadd.s32 %s33, 1
    %s35 = scalar_select %p32, %s33, %s34
    %p38 = pneg %p32
    %p39 = scmp.eq.s32.totalorder %s11, 1
    %p40 = por %p38, %p39
    %p41 = scmp.ne.s32.totalorder %s33, %s36
    %p42 = scmp.eq.s32.totalorder %s11, 0
    %p43 = por %p41, %p42
    %p44 = scmp.ne.s32.totalorder %s33, %s36
    %p45 = scmp.eq.s32.totalorder %s16, 1
    %p46 = por %p44, %p45
    %p47 = scmp.ne.s32.totalorder %s36, %s37
    %p48 = scmp.eq.s32.totalorder %s16, 0
    %p49 = por %p47, %p48
    %p50 = scmp.ne.s32.totalorder %s36, %s37
    %p51 = scmp.eq.s32.totalorder %s17, 1
    %p52 = por %p50, %p51
    %p54 = scmp.ne.s32.totalorder %s37, %s53
    %p55 = scmp.eq.s32.totalorder %s17, 0
    %p56 = por %p54, %p55
    %s58 = sadd.s32 %s57, 1
    %p61 = scmp.eq.s32.totalorder %s11, 1
    %p62 = scmp.ne.s32.totalorder %s57, %s59
    %p63 = scmp.eq.s32.totalorder %s11, 0
    %p64 = por %p62, %p63
    %p65 = scmp.ne.s32.totalorder %s57, %s59
    %p66 = scmp.eq.s32.totalorder %s16, 1
    %p67 = por %p65, %p66
    %p68 = scmp.ne.s32.totalorder %s59, %s60
    %p69 = scmp.eq.s32.totalorder %s16, 0
    %p70 = por %p68, %p69
    %p71 = scmp.ne.s32.totalorder %s59, %s60
    %p72 = scmp.eq.s32.totalorder %s17, 1
    %p73 = por %p71, %p72
    %p75 = scmp.ne.s32.totalorder %s60, %s74
    %p76 = scmp.eq.s32.totalorder %s17, 0
    %p77 = por %p75, %p76
    %s79 = sadd.s32 %s78, 1
    %p82 = scmp.eq.s32.totalorder %s11, 1
    %p83 = scmp.ne.s32.totalorder %s78, %s80
    %p84 = scmp.eq.s32.totalorder %s11, 0
    %p85 = por %p83, %p84
    %p86 = scmp.ne.s32.totalorder %s78, %s80
    %p87 = scmp.eq.s32.totalorder %s16, 1
    %p88 = por %p86, %p87
    %p89 = scmp.ne.s32.totalorder %s80, %s81
    %p90 = scmp.eq.s32.totalorder %s16, 0
    %p91 = por %p89, %p90
    %p92 = scmp.ne.s32.totalorder %s80, %s81
    %p93 = scmp.eq.s32.totalorder %s17, 1
    %p94 = por %p92, %p93
    %p96 = scmp.ne.s32.totalorder %s81, %s95
    %p97 = scmp.eq.s32.totalorder %s17, 0
    %p98 = por %p96, %p97
    %s99 = ssub.s32 %s18, %s30
    %s100 = ssub.s32 %s19, %s26
    %s101 = sor.u32 %s99, %s100
    %p102 = scmp.eq.s32.totalorder %s101, 0
    %s104 = sadd.s32 %s103, 1
    %s105 = scalar_select %p102, %s103, %s104
    %p108 = pneg %p102
    %p109 = scmp.eq.s32.totalorder %s11, 1
    %p110 = por %p108, %p109
    %p111 = scmp.ne.s32.totalorder %s103, %s106
    %p112 = scmp.eq.s32.totalorder %s11, 0
    %p113 = por %p111, %p112
    %p114 = scmp.ne.s32.totalorder %s103, %s106
    %p115 = scmp.eq.s32.totalorder %s16, 1
    %p116 = por %p114, %p115
    %p117 = scmp.ne.s32.totalorder %s106, %s107
    %p118 = scmp.eq.s32.totalorder %s16, 0
    %p119 = por %p117, %p118
    %p120 = scmp.ne.s32.totalorder %s106, %s107
    %p121 = scmp.eq.s32.totalorder %s17, 1
    %p122 = por %p120, %p121
    %p124 = scmp.ne.s32.totalorder %s107, %s123
    %p125 = scmp.eq.s32.totalorder %s17, 0
    %p126 = por %p124, %p125
    %s127 = ssub.s32 %s18, %s30
    %p128 = scmp.eq.s32.totalorder %s127, 0
    %s130 = sadd.s32 %s129, 1
    %s131 = scalar_select %p128, %s129, %s130
    %p134 = pneg %p128
    %p135 = scmp.eq.s32.totalorder %s11, 1
    %p136 = por %p134, %p135
    %p137 = scmp.ne.s32.totalorder %s129, %s132
    %p138 = scmp.eq.s32.totalorder %s11, 0
    %p139 = por %p137, %p138
    %p140 = scmp.ne.s32.totalorder %s129, %s132
    %p141 = scmp.eq.s32.totalorder %s16, 1
    %p142 = por %p140, %p141
    %p143 = scmp.ne.s32.totalorder %s132, %s133
    %p144 = scmp.eq.s32.totalorder %s16, 0
    %p145 = por %p143, %p144
    %p146 = scmp.ne.s32.totalorder %s132, %s133
    %p147 = scmp.eq.s32.totalorder %s17, 1
    %p148 = por %p146, %p147
    %p150 = scmp.ne.s32.totalorder %s133, %s149
    %p151 = scmp.eq.s32.totalorder %s17, 0
    %p152 = por %p150, %p151
    %p153 = scmp.le.s32.totalorder 1, %s11
    %p154 = scmp.lt.s32.totalorder %s11, 3
    %p155 = pnand %p153, %p154
    %p156 = pneg %p155
    // Predicated region
    $region9: #{vgg16_block_forward.6} parent=5 // pred_check
      _
    $region10: #{vgg16_block_forward.6} parent=5 // pred_check_branch
      %158 = sbr.rel (%p155) target = $region12
    $region11: #{vgg16_block_forward.6} parent=5 // pred_region
      %s159 = ssub.s32 %s11, 1
      // Predicated region
      $region13: #{vgg16_block_forward.6} parent=11 // pred_check
        %p160 = pneg %p70
      $region14: #{vgg16_block_forward.6} parent=11 // pred_check_branch
        %162 = sbr.rel (%p160) target = $region16
      $region15: #{vgg16_block_forward.6} parent=11 // pred_region
        _
      $region16: #{vgg16_block_forward.6} parent=11 // pred_fallthru
        _
      // Predicated region
      $region17: #{vgg16_block_forward.6} parent=11 // pred_check
        %p163 = pneg %p91
      $region18: #{vgg16_block_forward.6} parent=11 // pred_check_branch
        %165 = sbr.rel (%p163) target = $region20
      $region19: #{vgg16_block_forward.6} parent=11 // pred_region
        _
      $region20: #{vgg16_block_forward.6} parent=11 // pred_fallthru
        _
    $region12: #{vgg16_block_forward.6} parent=5 // pred_fallthru
      _
    %p166 = scmp.lt.s32.totalorder %s11, 2
    // Predicated region
    $region21: #{vgg16_block_forward.6} parent=5 // pred_check
      %p167 = pneg %p166
    $region22: #{vgg16_block_forward.6} parent=5 // pred_check_branch
      %169 = sbr.rel (%p167) target = $region24
    $region23: #{vgg16_block_forward.6} parent=5 // pred_region
      // Predicated region
      $region25: #{vgg16_block_forward.6} parent=23 // pred_check
        %p170 = pneg %p43
      $region26: #{vgg16_block_forward.6} parent=23 // pred_check_branch
        %172 = sbr.rel (%p170) target = $region28
      $region27: #{vgg16_block_forward.6} parent=23 // pred_region
        %p173 = scmp.lt.s32.totalorder %s18, 1
        %s174 = scalar_select %p173, %s18, 1
        %s175 = smul.addr %s174, 54
        %s176 = smul.addr %s175, 4
        %s177 = scalar_lea.vmem %s0, %s176
      $region28: #{vgg16_block_forward.6} parent=23 // pred_fallthru
        _
    $region24: #{vgg16_block_forward.6} parent=5 // pred_fallthru
      _
    %p178 = scmp.le.s32.totalorder 1, %s11
    %p179 = scmp.lt.s32.totalorder %s11, 3
    %p180 = pnand %p178, %p179
    %p181 = pneg %p180
    // Predicated region
    $region29: #{vgg16_block_forward.6} parent=5 // pred_check
      _
    $region30: #{vgg16_block_forward.6} parent=5 // pred_check_branch
      %183 = sbr.rel (%p180) target = $region32
    $region31: #{vgg16_block_forward.6} parent=5 // pred_region
      %s184 = ssub.s32 %s11, 1
      %p185 = scmp.lt.s32.totalorder %s20, 1
      %s186 = scalar_select %p185, %s20, 1
      %s187 = smul.addr %s186, 54
      %s188 = smul.addr %s187, 4
      %s189 = scalar_lea.vmem %s0, %s188
      %p190 = pneg %p49
      %p191 = pneg %p46
      %p192 = pneg %p70
      %p193 = pneg %p67
      %p194 = pneg %p91
      %p195 = pneg %p88
      %p196 = pneg %p119
      %p197 = pneg %p116
      %s198 = smul.u32 32, %s21
      %p199 = scmp.lt.s32.totalorder %s20, 1
      %s200 = scalar_select %p199, %s20, 1
      %p201 = scmp.lt.s32.totalorder %s198, 31
      %s202 = scalar_select %p201, %s198, 31
      %s203 = smul.addr %s200, 32
      %s204 = sadd.s32 %s202, %s203
      %s205 = smul.addr %s204, 4
      %s206 = scalar_lea.vmem %s3, %s205
      %p207 = pneg %p145
      %p208 = pneg %p142
      %p209 = scmp.lt.s32.totalorder %s20, 1
      %s210 = scalar_select %p209, %s20, 1
      %s211 = smul.addr %s210, 2
      %s212 = scalar_lea.vmem %s4, %s211
      %p213 = scmp.lt.s32.totalorder %s20, 1
      %s214 = scalar_select %p213, %s20, 1
      %s215 = smul.addr %s214, 54
      %s216 = smul.addr %s215, 4
      %s217 = scalar_lea.vmem %s0, %s216
      %s218 = smul.u32 32, %s21
      %p219 = scmp.lt.s32.totalorder %s20, 1
      %s220 = scalar_select %p219, %s20, 1
      %p221 = scmp.lt.s32.totalorder %s218, 31
      %s222 = scalar_select %p221, %s218, 31
      %s223 = smul.addr %s220, 32
      %s224 = sadd.s32 %s222, %s223
      %s225 = smul.addr %s224, 4
      %s226 = scalar_lea.vmem %s3, %s225
      %s227 = smul.u32 32, %s21
      %p228 = scmp.lt.s32.totalorder %s20, 1
      %s229 = scalar_select %p228, %s20, 1
      %s230 = smul.addr %s229, 2
      %s231 = scalar_lea.vmem %s4, %s230
      %p233 = scmp.eq.s32.totalorder %s21, 0
      // Predicated region
      $region33: #{vgg16_block_forward.6} parent=31 // pred_check
        %p234 = pneg %p233
      $region34: #{vgg16_block_forward.6} parent=31 // pred_check_branch
        %236 = sbr.rel (%p234) target = $region36
      $region35: #{vgg16_block_forward.6} parent=31 // pred_region
        %237 = vst [vmem:[%s231] sm:$0x3] 0.0
      $region36: #{vgg16_block_forward.6} parent=31 // pred_fallthru
        _
      %v238 = vld [vmem:[%s2] sm:$0x1]
      %v240 = vlaneseq
      %v241 = vshrl.u32 %v240, 7
      %v242 = vsub.s32 0, %v241
      %v243 = vrot.slane %v238, %v242
      %245 = vst [vmem:[#allocation2] sm:$0xff] %v243
      %246 = vst [vmem:[#allocation2 + $0x8] sm:$0xff] %v243
      %247 = vst [vmem:[#allocation2 + $0x10] sm:$0xff] %v243
      %248 = vst [vmem:[#allocation2 + $0x18] sm:$0xff] %v243
      %249 = vst [vmem:[#allocation2 + $0x20] sm:$0xff] %v243
      %250 = vst [vmem:[#allocation2 + $0x28] sm:$0xff] %v243
      %251 = vst [vmem:[#allocation2 + $0x30] sm:$0xff] %v243
      %252 = vst [vmem:[#allocation2 + $0x38] sm:$0xff] %v243
      %253 = vst [vmem:[#allocation2 + $0x40] sm:$0xff] %v243
      %254 = vst [vmem:[#allocation2 + $0x48] sm:$0xff] %v243
      %255 = vst [vmem:[#allocation2 + $0x50] sm:$0xff] %v243
      %256 = vst [vmem:[#allocation2 + $0x58] sm:$0xff] %v243
      %257 = vst [vmem:[#allocation2 + $0x60] sm:$0xff] %v243
      %258 = vst [vmem:[#allocation2 + $0x68] sm:$0xff] %v243
      %259 = vst [vmem:[#allocation2 + $0x70] sm:$0xff] %v243
      %260 = vst [vmem:[#allocation2 + $0x78] sm:$0xff] %v243
      %261 = vst [vmem:[#allocation2 + $0x80] sm:$0xff] %v243
      %262 = vst [vmem:[#allocation2 + $0x88] sm:$0xff] %v243
      %263 = vst [vmem:[#allocation2 + $0x90] sm:$0xff] %v243
      %264 = vst [vmem:[#allocation2 + $0x98] sm:$0xff] %v243
      %265 = vst [vmem:[#allocation2 + $0xa0] sm:$0xff] %v243
      %266 = vst [vmem:[#allocation2 + $0xa8] sm:$0xff] %v243
      %267 = vst [vmem:[#allocation2 + $0xb0] sm:$0xff] %v243
      %268 = vst [vmem:[#allocation2 + $0xb8] sm:$0xff] %v243
      %269 = vst [vmem:[#allocation2 + $0xc0] sm:$0xff] %v243
      %270 = vst [vmem:[#allocation2 + $0xc8] sm:$0xff] %v243
      %271 = vst [vmem:[#allocation2 + $0xd0] sm:$0xff] %v243
      %272 = vst [vmem:[#allocation2 + $0xd8] sm:$0xff] %v243
      %273 = vst [vmem:[#allocation2 + $0xe0] sm:$0xff] %v243
      %274 = vst [vmem:[#allocation2 + $0xe8] sm:$0xff] %v243
      %275 = vst [vmem:[#allocation2 + $0xf0] sm:$0xff] %v243
      %276 = vst [vmem:[#allocation2 + $0xf8] sm:$0xff] %v243
      %s277 = smul.u32 %s21, 16
      %s278 = smul.u32 %s277, 3
      %s279 = smul.addr %s278, 4
      %s280 = scalar_lea.vmem %s217, %s279
      %v281 = vld [vmem:[%s280] sm:$0xf]
      %v282 = vld [vmem:[%s280 + $0x4] sm:$0xf]
      %v283 = vld [vmem:[%s280 + $0x8] sm:$0x1]
      %v284 = vld [vmem:[%s280 + $0xc] sm:$0xf]
      %v285 = vld [vmem:[%s280 + $0x10] sm:$0xf]
      %v286 = vld [vmem:[%s280 + $0x14] sm:$0x1]
      %v287 = vld [vmem:[%s280 + $0x18] sm:$0xf]
      %v288 = vld [vmem:[%s280 + $0x1c] sm:$0xf]
      %v289 = vld [vmem:[%s280 + $0x20] sm:$0x1]
      %v290 = vld [vmem:[%s280 + $0x24] sm:$0xf]
      %v291 = vld [vmem:[%s280 + $0x28] sm:$0xf]
      %v292 = vld [vmem:[%s280 + $0x2c] sm:$0x1]
      %v293 = vld [vmem:[%s280 + $0x30] sm:$0xf]
      %v294 = vld [vmem:[%s280 + $0x34] sm:$0xf]
      %v295 = vld [vmem:[%s280 + $0x38] sm:$0x1]
      %v296 = vld [vmem:[%s280 + $0x3c] sm:$0xf]
      %v297 = vld [vmem:[%s280 + $0x40] sm:$0xf]
      %v298 = vld [vmem:[%s280 + $0x44] sm:$0x1]
      %v299 = vld [vmem:[%s280 + $0x48] sm:$0xf]
      %v300 = vld [vmem:[%s280 + $0x4c] sm:$0xf]
      %v301 = vld [vmem:[%s280 + $0x50] sm:$0x1]
      %v302 = vld [vmem:[%s280 + $0x54] sm:$0xf]
      %v303 = vld [vmem:[%s280 + $0x58] sm:$0xf]
      %v304 = vld [vmem:[%s280 + $0x5c] sm:$0x1]
      %v305 = vld [vmem:[%s280 + $0x60] sm:$0xf]
      %v306 = vld [vmem:[%s280 + $0x64] sm:$0xf]
      %v307 = vld [vmem:[%s280 + $0x68] sm:$0x1]
      %v308 = vld [vmem:[%s280 + $0x6c] sm:$0xf]
      %v309 = vld [vmem:[%s280 + $0x70] sm:$0xf]
      %v310 = vld [vmem:[%s280 + $0x74] sm:$0x1]
      %v311 = vld [vmem:[%s280 + $0x78] sm:$0xf]
      %v312 = vld [vmem:[%s280 + $0x7c] sm:$0xf]
      %v313 = vld [vmem:[%s280 + $0x80] sm:$0x1]
      %v314 = vld [vmem:[%s280 + $0x84] sm:$0xf]
      %v315 = vld [vmem:[%s280 + $0x88] sm:$0xf]
      %v316 = vld [vmem:[%s280 + $0x8c] sm:$0x1]
      %v317 = vld [vmem:[%s280 + $0x90] sm:$0xf]
      %v318 = vld [vmem:[%s280 + $0x94] sm:$0xf]
      %v319 = vld [vmem:[%s280 + $0x98] sm:$0x1]
      %v320 = vld [vmem:[%s280 + $0x9c] sm:$0xf]
      %v321 = vld [vmem:[%s280 + $0xa0] sm:$0xf]
      %v322 = vld [vmem:[%s280 + $0xa4] sm:$0x1]
      %v323 = vld [vmem:[%s280 + $0xa8] sm:$0xf]
      %v324 = vld [vmem:[%s280 + $0xac] sm:$0xf]
      %v325 = vld [vmem:[%s280 + $0xb0] sm:$0x1]
      %v326 = vld [vmem:[%s280 + $0xb4] sm:$0xf]
      %v327 = vld [vmem:[%s280 + $0xb8] sm:$0xf]
      %v328 = vld [vmem:[%s280 + $0xbc] sm:$0x1]
      %v361 = vunpack.c.l.b16 %v281
      %v362 = vunpack.c.l.b16 %v282
      %v363 = vunpack.c.l.b16 %v284
      %v364 = vunpack.c.l.b16 %v285
      %v365 = vunpack.c.l.b16 %v287
      %v366 = vunpack.c.l.b16 %v288
      %v367 = vunpack.c.l.b16 %v290
      %v368 = vunpack.c.l.b16 %v291
      %v369 = vunpack.c.l.b16 %v293
      %v370 = vunpack.c.l.b16 %v294
      %v371 = vunpack.c.l.b16 %v296
      %v372 = vunpack.c.l.b16 %v297
      %v373 = vunpack.c.l.b16 %v299
      %v374 = vunpack.c.l.b16 %v300
      %v375 = vunpack.c.l.b16 %v302
      %v376 = vunpack.c.l.b16 %v303
      %v377 = vunpack.c.l.b16 %v305
      %v378 = vunpack.c.l.b16 %v306
      %v379 = vunpack.c.l.b16 %v308
      %v380 = vunpack.c.l.b16 %v309
      %v381 = vunpack.c.l.b16 %v311
      %v382 = vunpack.c.l.b16 %v312
      %v383 = vunpack.c.l.b16 %v314
      %v384 = vunpack.c.l.b16 %v315
      %v385 = vunpack.c.l.b16 %v317
      %v386 = vunpack.c.l.b16 %v318
      %v387 = vunpack.c.l.b16 %v320
      %v388 = vunpack.c.l.b16 %v321
      %v389 = vunpack.c.l.b16 %v323
      %v390 = vunpack.c.l.b16 %v324
      %v391 = vunpack.c.l.b16 %v326
      %v392 = vunpack.c.l.b16 %v327
      %v393 = vpack.c.b16 %v362, %v361
      %v394 = vpack.c.b16 %v364, %v363
      %v395 = vpack.c.b16 %v366, %v365
      %v396 = vpack.c.b16 %v368, %v367
      %v397 = vpack.c.b16 %v370, %v369
      %v398 = vpack.c.b16 %v372, %v371
      %v399 = vpack.c.b16 %v374, %v373
      %v400 = vpack.c.b16 %v376, %v375
      %v401 = vpack.c.b16 %v378, %v377
      %v402 = vpack.c.b16 %v380, %v379
      %v403 = vpack.c.b16 %v382, %v381
      %v404 = vpack.c.b16 %v384, %v383
      %v405 = vpack.c.b16 %v386, %v385
      %v406 = vpack.c.b16 %v388, %v387
      %v407 = vpack.c.b16 %v390, %v389
      %v408 = vpack.c.b16 %v392, %v391
      %v441 = vunpack.c.l.b16 %v283
      %v442 = vunpack.c.l.b16 %v286
      %v443 = vunpack.c.l.b16 %v289
      %v444 = vunpack.c.l.b16 %v292
      %v445 = vunpack.c.l.b16 %v295
      %v446 = vunpack.c.l.b16 %v298
      %v447 = vunpack.c.l.b16 %v301
      %v448 = vunpack.c.l.b16 %v304
      %v449 = vunpack.c.l.b16 %v307
      %v450 = vunpack.c.l.b16 %v310
      %v451 = vunpack.c.l.b16 %v313
      %v452 = vunpack.c.l.b16 %v316
      %v453 = vunpack.c.l.b16 %v319
      %v454 = vunpack.c.l.b16 %v322
      %v455 = vunpack.c.l.b16 %v325
      %v456 = vunpack.c.l.b16 %v328
      %v457 = vpack.c.b16 %v441, %v441
      %v458 = vpack.c.b16 %v442, %v442
      %v459 = vpack.c.b16 %v443, %v443
      %v460 = vpack.c.b16 %v444, %v444
      %v461 = vpack.c.b16 %v445, %v445
      %v462 = vpack.c.b16 %v446, %v446
      %v463 = vpack.c.b16 %v447, %v447
      %v464 = vpack.c.b16 %v448, %v448
      %v465 = vpack.c.b16 %v449, %v449
      %v466 = vpack.c.b16 %v450, %v450
      %v467 = vpack.c.b16 %v451, %v451
      %v468 = vpack.c.b16 %v452, %v452
      %v469 = vpack.c.b16 %v453, %v453
      %v470 = vpack.c.b16 %v454, %v454
      %v471 = vpack.c.b16 %v455, %v455
      %v472 = vpack.c.b16 %v456, %v456
      %vm473 = vsmask.f32 7424
      %v475 = vshrl.u32 %v393, 16
      %v477 = vshll.u32 %v393, 16
      %v479 = vrot.slane %v477, 1
      %v480 = vor.u32 %v475, %v479
      %v482 = vshll.u32 %v457, 16
      %v484 = vrot.slane %v482, 1
      %v485 = vsel %vm473, %v480, %v484
      %v487 = vshrl.u32 %v394, 16
      %v489 = vshll.u32 %v394, 16
      %v491 = vrot.slane %v489, 1
      %v492 = vor.u32 %v487, %v491
      %v494 = vshll.u32 %v458, 16
      %v496 = vrot.slane %v494, 1
      %v497 = vsel %vm473, %v492, %v496
      %v499 = vshrl.u32 %v395, 16
      %v501 = vshll.u32 %v395, 16
      %v503 = vrot.slane %v501, 1
      %v504 = vor.u32 %v499, %v503
      %v506 = vshll.u32 %v459, 16
      %v508 = vrot.slane %v506, 1
      %v509 = vsel %vm473, %v504, %v508
      %v511 = vshrl.u32 %v396, 16
      %v513 = vshll.u32 %v396, 16
      %v515 = vrot.slane %v513, 1
      %v516 = vor.u32 %v511, %v515
      %v518 = vshll.u32 %v460, 16
      %v520 = vrot.slane %v518, 1
      %v521 = vsel %vm473, %v516, %v520
      %v523 = vshrl.u32 %v397, 16
      %v525 = vshll.u32 %v397, 16
      %v527 = vrot.slane %v525, 1
      %v528 = vor.u32 %v523, %v527
      %v530 = vshll.u32 %v461, 16
      %v532 = vrot.slane %v530, 1
      %v533 = vsel %vm473, %v528, %v532
      %v535 = vshrl.u32 %v398, 16
      %v537 = vshll.u32 %v398, 16
      %v539 = vrot.slane %v537, 1
      %v540 = vor.u32 %v535, %v539
      %v542 = vshll.u32 %v462, 16
      %v544 = vrot.slane %v542, 1
      %v545 = vsel %vm473, %v540, %v544
      %v547 = vshrl.u32 %v399, 16
      %v549 = vshll.u32 %v399, 16
      %v551 = vrot.slane %v549, 1
      %v552 = vor.u32 %v547, %v551
      %v554 = vshll.u32 %v463, 16
      %v556 = vrot.slane %v554, 1
      %v557 = vsel %vm473, %v552, %v556
      %v559 = vshrl.u32 %v400, 16
      %v561 = vshll.u32 %v400, 16
      %v563 = vrot.slane %v561, 1
      %v564 = vor.u32 %v559, %v563
      %v566 = vshll.u32 %v464, 16
      %v568 = vrot.slane %v566, 1
      %v569 = vsel %vm473, %v564, %v568
      %v571 = vshrl.u32 %v401, 16
      %v573 = vshll.u32 %v401, 16
      %v575 = vrot.slane %v573, 1
      %v576 = vor.u32 %v571, %v575
      %v578 = vshll.u32 %v465, 16
      %v580 = vrot.slane %v578, 1
      %v581 = vsel %vm473, %v576, %v580
      %v583 = vshrl.u32 %v402, 16
      %v585 = vshll.u32 %v402, 16
      %v587 = vrot.slane %v585, 1
      %v588 = vor.u32 %v583, %v587
      %v590 = vshll.u32 %v466, 16
      %v592 = vrot.slane %v590, 1
      %v593 = vsel %vm473, %v588, %v592
      %v595 = vshrl.u32 %v403, 16
      %v597 = vshll.u32 %v403, 16
      %v599 = vrot.slane %v597, 1
      %v600 = vor.u32 %v595, %v599
      %v602 = vshll.u32 %v467, 16
      %v604 = vrot.slane %v602, 1
      %v605 = vsel %vm473, %v600, %v604
      %v607 = vshrl.u32 %v404, 16
      %v609 = vshll.u32 %v404, 16
      %v611 = vrot.slane %v609, 1
      %v612 = vor.u32 %v607, %v611
      %v614 = vshll.u32 %v468, 16
      %v616 = vrot.slane %v614, 1
      %v617 = vsel %vm473, %v612, %v616
      %v619 = vshrl.u32 %v405, 16
      %v621 = vshll.u32 %v405, 16
      %v623 = vrot.slane %v621, 1
      %v624 = vor.u32 %v619, %v623
      %v626 = vshll.u32 %v469, 16
      %v628 = vrot.slane %v626, 1
      %v629 = vsel %vm473, %v624, %v628
      %v631 = vshrl.u32 %v406, 16
      %v633 = vshll.u32 %v406, 16
      %v635 = vrot.slane %v633, 1
      %v636 = vor.u32 %v631, %v635
      %v638 = vshll.u32 %v470, 16
      %v640 = vrot.slane %v638, 1
      %v641 = vsel %vm473, %v636, %v640
      %v643 = vshrl.u32 %v407, 16
      %v645 = vshll.u32 %v407, 16
      %v647 = vrot.slane %v645, 1
      %v648 = vor.u32 %v643, %v647
      %v650 = vshll.u32 %v471, 16
      %v652 = vrot.slane %v650, 1
      %v653 = vsel %vm473, %v648, %v652
      %v655 = vshrl.u32 %v408, 16
      %v657 = vshll.u32 %v408, 16
      %v659 = vrot.slane %v657, 1
      %v660 = vor.u32 %v655, %v659
      %v662 = vshll.u32 %v472, 16
      %v664 = vrot.slane %v662, 1
      %v665 = vsel %vm473, %v660, %v664
      %vm682 = vcmask 1046528
      %v683 = vrot.slane %v393, 1
      %v684 = vrot.slane %v457, 1
      %v685 = vsel %vm682, %v683, %v684
      %v686 = vrot.slane %v394, 1
      %v687 = vrot.slane %v458, 1
      %v688 = vsel %vm682, %v686, %v687
      %v689 = vrot.slane %v395, 1
      %v690 = vrot.slane %v459, 1
      %v691 = vsel %vm682, %v689, %v690
      %v692 = vrot.slane %v396, 1
      %v693 = vrot.slane %v460, 1
      %v694 = vsel %vm682, %v692, %v693
      %v695 = vrot.slane %v397, 1
      %v696 = vrot.slane %v461, 1
      %v697 = vsel %vm682, %v695, %v696
      %v698 = vrot.slane %v398, 1
      %v699 = vrot.slane %v462, 1
      %v700 = vsel %vm682, %v698, %v699
      %v701 = vrot.slane %v399, 1
      %v702 = vrot.slane %v463, 1
      %v703 = vsel %vm682, %v701, %v702
      %v704 = vrot.slane %v400, 1
      %v705 = vrot.slane %v464, 1
      %v706 = vsel %vm682, %v704, %v705
      %v707 = vrot.slane %v401, 1
      %v708 = vrot.slane %v465, 1
      %v709 = vsel %vm682, %v707, %v708
      %v710 = vrot.slane %v402, 1
      %v711 = vrot.slane %v466, 1
      %v712 = vsel %vm682, %v710, %v711
      %v713 = vrot.slane %v403, 1
      %v714 = vrot.slane %v467, 1
      %v715 = vsel %vm682, %v713, %v714
      %v716 = vrot.slane %v404, 1
      %v717 = vrot.slane %v468, 1
      %v718 = vsel %vm682, %v716, %v717
      %v719 = vrot.slane %v405, 1
      %v720 = vrot.slane %v469, 1
      %v721 = vsel %vm682, %v719, %v720
      %v722 = vrot.slane %v406, 1
      %v723 = vrot.slane %v470, 1
      %v724 = vsel %vm682, %v722, %v723
      %v725 = vrot.slane %v407, 1
      %v726 = vrot.slane %v471, 1
      %v727 = vsel %vm682, %v725, %v726
      %v728 = vrot.slane %v408, 1
      %v729 = vrot.slane %v472, 1
      %v730 = vsel %vm682, %v728, %v729
      %v747 = vld [vmem:[#allocation2] sm:$0xff]
      %v748 = vld [vmem:[#allocation2 + $0x8] sm:$0xff]
      %v749 = vld [vmem:[#allocation2 + $0x10] sm:$0xff]
      %v750 = vld [vmem:[#allocation2 + $0x18] sm:$0xff]
      %v751 = vld [vmem:[#allocation2 + $0x20] sm:$0xff]
      %v752 = vld [vmem:[#allocation2 + $0x28] sm:$0xff]
      %v753 = vld [vmem:[#allocation2 + $0x30] sm:$0xff]
      %v754 = vld [vmem:[#allocation2 + $0x38] sm:$0xff]
      %v755 = vld [vmem:[#allocation2 + $0x40] sm:$0xff]
      %v756 = vld [vmem:[#allocation2 + $0x48] sm:$0xff]
      %v757 = vld [vmem:[#allocation2 + $0x50] sm:$0xff]
      %v758 = vld [vmem:[#allocation2 + $0x58] sm:$0xff]
      %v759 = vld [vmem:[#allocation2 + $0x60] sm:$0xff]
      %v760 = vld [vmem:[#allocation2 + $0x68] sm:$0xff]
      %v761 = vld [vmem:[#allocation2 + $0x70] sm:$0xff]
      %v762 = vld [vmem:[#allocation2 + $0x78] sm:$0xff]
      %v763 = vld [vmem:[#allocation2 + $0x80] sm:$0xff]
      %v764 = vld [vmem:[#allocation2 + $0x88] sm:$0xff]
      %v765 = vld [vmem:[#allocation2 + $0x90] sm:$0xff]
      %v766 = vld [vmem:[#allocation2 + $0x98] sm:$0xff]
      %v767 = vld [vmem:[#allocation2 + $0xa0] sm:$0xff]
      %v768 = vld [vmem:[#allocation2 + $0xa8] sm:$0xff]
      %v769 = vld [vmem:[#allocation2 + $0xb0] sm:$0xff]
      %v770 = vld [vmem:[#allocation2 + $0xb8] sm:$0xff]
      %v771 = vld [vmem:[#allocation2 + $0xc0] sm:$0xff]
      %v772 = vld [vmem:[#allocation2 + $0xc8] sm:$0xff]
      %v773 = vld [vmem:[#allocation2 + $0xd0] sm:$0xff]
      %v774 = vld [vmem:[#allocation2 + $0xd8] sm:$0xff]
      %v775 = vld [vmem:[#allocation2 + $0xe0] sm:$0xff]
      %v776 = vld [vmem:[#allocation2 + $0xe8] sm:$0xff]
      %v777 = vld [vmem:[#allocation2 + $0xf0] sm:$0xff]
      %v778 = vld [vmem:[#allocation2 + $0xf8] sm:$0xff]
      %v779 = vld [vmem:[%s1] sm:$0xf]
      %v780 = vld [vmem:[%s1 + $0x4] sm:$0xf]
      %v781 = vld [vmem:[%s1 + $0x8] sm:$0xf]
      %v782 = vld [vmem:[%s1 + $0xc] sm:$0xf]
      %v783 = vld [vmem:[%s1 + $0x10] sm:$0xf]
      %v784 = vld [vmem:[%s1 + $0x14] sm:$0xf]
      %v785 = vld [vmem:[%s1 + $0x18] sm:$0xf]
      %v786 = vld [vmem:[%s1 + $0x1c] sm:$0xf]
      %v787 = vld [vmem:[%s1 + $0x20] sm:$0xf]
      %v788 = vld [vmem:[%s1 + $0x24] sm:$0xf]
      %v789 = vld [vmem:[%s1 + $0x28] sm:$0xf]
      %v790 = vld [vmem:[%s1 + $0x2c] sm:$0xf]
      %v791 = vld [vmem:[%s1 + $0x30] sm:$0xf]
      %v792 = vld [vmem:[%s1 + $0x34] sm:$0xf]
      %v793 = vld [vmem:[%s1 + $0x38] sm:$0xf]
      %v794 = vld [vmem:[%s1 + $0x3c] sm:$0xf]
      %v795 = vld [vmem:[%s1 + $0x40] sm:$0xf]
      %v796 = vld [vmem:[%s1 + $0x44] sm:$0xf]
      %v797 = vld [vmem:[%s1 + $0x48] sm:$0xf]
      %v798 = vld [vmem:[%s1 + $0x4c] sm:$0xf]
      %v799 = vld [vmem:[%s1 + $0x50] sm:$0xf]
      %v800 = vld [vmem:[%s1 + $0x54] sm:$0xf]
      %v801 = vld [vmem:[%s1 + $0x58] sm:$0xf]
      %v802 = vld [vmem:[%s1 + $0x5c] sm:$0xf]
      %v803 = vld [vmem:[%s1 + $0x60] sm:$0xf]
      %v804 = vld [vmem:[%s1 + $0x64] sm:$0xf]
      %v805 = vld [vmem:[%s1 + $0x68] sm:$0xf]
      %v806 = vld [vmem:[%s1 + $0x6c] sm:$0xf]
      %v807 = vld [vmem:[%s1 + $0x70] sm:$0xf]
      %v808 = vld [vmem:[%s1 + $0x74] sm:$0xf]
      %v809 = vld [vmem:[%s1 + $0x78] sm:$0xf]
      %v810 = vld [vmem:[%s1 + $0x7c] sm:$0xf]
      %v811 = vld [vmem:[%s1 + $0x80] sm:$0xf]
      %v812 = vld [vmem:[%s1 + $0x84] sm:$0xf]
      %v813 = vld [vmem:[%s1 + $0x88] sm:$0xf]
      %v814 = vld [vmem:[%s1 + $0x8c] sm:$0xf]
      %v815 = vld [vmem:[%s1 + $0x90] sm:$0xf]
      %v816 = vld [vmem:[%s1 + $0x94] sm:$0xf]
      %v817 = vld [vmem:[%s1 + $0x98] sm:$0xf]
      %v818 = vld [vmem:[%s1 + $0x9c] sm:$0xf]
      %v819 = vld [vmem:[%s1 + $0xa0] sm:$0xf]
      %v820 = vld [vmem:[%s1 + $0xa4] sm:$0xf]
      %v821 = vld [vmem:[%s1 + $0xa8] sm:$0xf]
      %v822 = vld [vmem:[%s1 + $0xac] sm:$0xf]
      %v823 = vld [vmem:[%s1 + $0xb0] sm:$0xf]
      %v824 = vld [vmem:[%s1 + $0xb4] sm:$0xf]
      %v825 = vld [vmem:[%s1 + $0xb8] sm:$0xf]
      %v826 = vld [vmem:[%s1 + $0xbc] sm:$0xf]
      %v875 = vunpack.c.l.b16 %v779
      %v876 = vunpack.c.l.b16 %v780
      %v877 = vunpack.c.l.b16 %v781
      %v878 = vunpack.c.l.b16 %v782
      %v879 = vunpack.c.l.b16 %v783
      %v880 = vunpack.c.l.b16 %v784
      %v881 = vunpack.c.l.b16 %v785
      %v882 = vunpack.c.l.b16 %v786
      %v883 = vunpack.c.l.b16 %v787
      %v884 = vunpack.c.l.b16 %v788
      %v885 = vunpack.c.l.b16 %v789
      %v886 = vunpack.c.l.b16 %v790
      %v887 = vunpack.c.l.b16 %v791
      %v888 = vunpack.c.l.b16 %v792
      %v889 = vunpack.c.l.b16 %v793
      %v890 = vunpack.c.l.b16 %v794
      %v891 = vunpack.c.l.b16 %v795
      %v892 = vunpack.c.l.b16 %v796
      %v893 = vunpack.c.l.b16 %v797
      %v894 = vunpack.c.l.b16 %v798
      %v895 = vunpack.c.l.b16 %v799
      %v896 = vunpack.c.l.b16 %v800
      %v897 = vunpack.c.l.b16 %v801
      %v898 = vunpack.c.l.b16 %v802
      %v899 = vunpack.c.l.b16 %v803
      %v900 = vunpack.c.l.b16 %v804
      %v901 = vunpack.c.l.b16 %v805
      %v902 = vunpack.c.l.b16 %v806
      %v903 = vunpack.c.l.b16 %v807
      %v904 = vunpack.c.l.b16 %v808
      %v905 = vunpack.c.l.b16 %v809
      %v906 = vunpack.c.l.b16 %v810
      %v907 = vunpack.c.l.b16 %v811
      %v908 = vunpack.c.l.b16 %v812
      %v909 = vunpack.c.l.b16 %v813
      %v910 = vunpack.c.l.b16 %v814
      %v911 = vunpack.c.l.b16 %v815
      %v912 = vunpack.c.l.b16 %v816
      %v913 = vunpack.c.l.b16 %v817
      %v914 = vunpack.c.l.b16 %v818
      %v915 = vunpack.c.l.b16 %v819
      %v916 = vunpack.c.l.b16 %v820
      %v917 = vunpack.c.l.b16 %v821
      %v918 = vunpack.c.l.b16 %v822
      %v919 = vunpack.c.l.b16 %v823
      %v920 = vunpack.c.l.b16 %v824
      %v921 = vunpack.c.l.b16 %v825
      %v922 = vunpack.c.l.b16 %v826
      %v923 = vpack.c.b16 %v876, %v875
      %v924 = vpack.c.b16 %v878, %v877
      %v925 = vpack.c.b16 %v880, %v879
      %v926 = vpack.c.b16 %v882, %v881
      %v927 = vpack.c.b16 %v884, %v883
      %v928 = vpack.c.b16 %v886, %v885
      %v929 = vpack.c.b16 %v888, %v887
      %v930 = vpack.c.b16 %v890, %v889
      %v931 = vpack.c.b16 %v892, %v891
      %v932 = vpack.c.b16 %v894, %v893
      %v933 = vpack.c.b16 %v896, %v895
      %v934 = vpack.c.b16 %v898, %v897
      %v935 = vpack.c.b16 %v900, %v899
      %v936 = vpack.c.b16 %v902, %v901
      %v937 = vpack.c.b16 %v904, %v903
      %v938 = vpack.c.b16 %v906, %v905
      %v939 = vpack.c.b16 %v908, %v907
      %v940 = vpack.c.b16 %v910, %v909
      %v941 = vpack.c.b16 %v912, %v911
      %v942 = vpack.c.b16 %v914, %v913
      %v943 = vpack.c.b16 %v916, %v915
      %v944 = vpack.c.b16 %v918, %v917
      %v945 = vpack.c.b16 %v920, %v919
      %v946 = vpack.c.b16 %v922, %v921
      %971 = vmatprep.subr.bf16.mxu0 0
      %972 = vmatpush1.bf16.msra.mxu0 %v930
      %973 = vmatprep.subr.bf16.mxu0 0
      %974 = vmatpush1.bf16.msra.mxu0 %v929
      %975 = vmatprep.subr.bf16.mxu0 0
      %976 = vmatpush1.bf16.msra.mxu0 %v928
      %977 = vmatprep.subr.bf16.mxu0 0
      %978 = vmatpush1.bf16.msra.mxu0 %v927
      %979 = vmatprep.subr.bf16.mxu0 0
      %980 = vmatpush1.bf16.msra.mxu0 %v926
      %981 = vmatprep.subr.bf16.mxu0 0
      %982 = vmatpush1.bf16.msra.mxu0 %v925
      %983 = vmatprep.subr.bf16.mxu0 0
      %984 = vmatpush1.bf16.msra.mxu0 %v924
      %985 = vmatprep.subr.bf16.mxu0 0
      %986 = vmatpush1.bf16.msra.mxu0 %v923
      %987 = vmatprep.subr.bf16.mxu0 0
      %988 = vmatpush2.bf16.msra.mxu0 %v938
      %989 = vmatprep.subr.bf16.mxu0 0
      %990 = vmatpush2.bf16.msra.mxu0 %v937
      %991 = vmatprep.subr.bf16.mxu0 0
      %992 = vmatpush2.bf16.msra.mxu0 %v936
      %993 = vmatprep.subr.bf16.mxu0 0
      %994 = vmatpush2.bf16.msra.mxu0 %v935
      %995 = vmatprep.subr.bf16.mxu0 0
      %996 = vmatpush2.bf16.msra.mxu0 %v934
      %997 = vmatprep.subr.bf16.mxu0 0
      %998 = vmatpush2.bf16.msra.mxu0 %v933
      %999 = vmatprep.subr.bf16.mxu0 0
      %1000 = vmatpush2.bf16.msra.mxu0 %v932
      %1001 = vmatprep.subr.bf16.mxu0 0
      %1002 = vmatpush2.bf16.msra.mxu0 %v931
      %1003 = vmatprep.mubr.bf16.mxu0 %v485
      %1004 = vmatmul.mubr.bf16.gmra.mxu0 %v393
      %v1005 = vpop.f32.mrf.mxu0
      %v1006 = vadd.f32 0.0, %v1005
      %v1007 = vpop.f32.mrf.mxu0
      %v1008 = vpop.f32.mrf.mxu0
      %v1009 = vadd.f32 0.0, %v1008
      %v1010 = vpop.f32.mrf.mxu0
      %1011 = vmatprep.mubr.bf16.mxu0 %v497
      %1012 = vmatmul.mubr.bf16.gmra.mxu0 %v394
      %v1013 = vpop.f32.mrf.mxu0
      %v1014 = vadd.f32 0.0, %v1013
      %v1015 = vpop.f32.mrf.mxu0
      %v1016 = vpop.f32.mrf.mxu0
      %v1017 = vadd.f32 0.0, %v1016
      %v1018 = vpop.f32.mrf.mxu0
      %1019 = vmatprep.mubr.bf16.mxu0 %v509
      %1020 = vmatmul.mubr.bf16.gmra.mxu0 %v395
      %v1021 = vpop.f32.mrf.mxu0
      %v1022 = vadd.f32 0.0, %v1021
      %v1023 = vpop.f32.mrf.mxu0
      %v1024 = vpop.f32.mrf.mxu0
      %v1025 = vadd.f32 0.0, %v1024
      %v1026 = vpop.f32.mrf.mxu0
      %1027 = vmatprep.mubr.bf16.mxu0 %v521
      %1028 = vmatmul.mubr.bf16.gmra.mxu0 %v396
      %v1029 = vpop.f32.mrf.mxu0
      %v1030 = vadd.f32 0.0, %v1029
      %v1031 = vpop.f32.mrf.mxu0
      %v1032 = vpop.f32.mrf.mxu0
      %v1033 = vadd.f32 0.0, %v1032
      %v1034 = vpop.f32.mrf.mxu0
      %1035 = vmatprep.mubr.bf16.mxu0 %v533
      %1036 = vmatmul.mubr.bf16.gmra.mxu0 %v397
      %v1037 = vpop.f32.mrf.mxu0
      %v1038 = vadd.f32 0.0, %v1037
      %v1039 = vpop.f32.mrf.mxu0
      %v1040 = vpop.f32.mrf.mxu0
      %v1041 = vadd.f32 0.0, %v1040
      %v1042 = vpop.f32.mrf.mxu0
      %1043 = vmatprep.mubr.bf16.mxu0 %v545
      %1044 = vmatmul.mubr.bf16.gmra.mxu0 %v398
      %v1045 = vpop.f32.mrf.mxu0
      %v1046 = vadd.f32 0.0, %v1045
      %v1047 = vpop.f32.mrf.mxu0
      %v1048 = vpop.f32.mrf.mxu0
      %v1049 = vadd.f32 0.0, %v1048
      %v1050 = vpop.f32.mrf.mxu0
      %1051 = vmatprep.mubr.bf16.mxu0 %v557
      %1052 = vmatmul.mubr.bf16.gmra.mxu0 %v399
      %v1053 = vpop.f32.mrf.mxu0
      %v1054 = vadd.f32 0.0, %v1053
      %v1055 = vpop.f32.mrf.mxu0
      %v1056 = vpop.f32.mrf.mxu0
      %v1057 = vadd.f32 0.0, %v1056
      %v1058 = vpop.f32.mrf.mxu0
      %1059 = vmatprep.mubr.bf16.mxu0 %v569
      %1060 = vmatmul.mubr.bf16.gmra.mxu0 %v400
      %v1061 = vpop.f32.mrf.mxu0
      %v1062 = vadd.f32 0.0, %v1061
      %v1063 = vpop.f32.mrf.mxu0
      %v1064 = vpop.f32.mrf.mxu0
      %v1065 = vadd.f32 0.0, %v1064
      %v1066 = vpop.f32.mrf.mxu0
      %1067 = vmatprep.mubr.bf16.mxu0 %v581
      %1068 = vmatmul.mubr.bf16.gmra.mxu0 %v401
      %v1069 = vpop.f32.mrf.mxu0
      %v1070 = vadd.f32 0.0, %v1069
      %v1071 = vpop.f32.mrf.mxu0
      %v1072 = vpop.f32.mrf.mxu0
      %v1073 = vadd.f32 0.0, %v1072
      %v1074 = vpop.f32.mrf.mxu0
      %1075 = vmatprep.mubr.bf16.mxu0 %v593
      %1076 = vmatmul.mubr.bf16.gmra.mxu0 %v402
      %v1077 = vpop.f32.mrf.mxu0
      %v1078 = vadd.f32 0.0, %v1077
      %v1079 = vpop.f32.mrf.mxu0
      %v1080 = vpop.f32.mrf.mxu0
      %v1081 = vadd.f32 0.0, %v1080
      %v1082 = vpop.f32.mrf.mxu0
      %1083 = vmatprep.mubr.bf16.mxu0 %v605
      %1084 = vmatmul.mubr.bf16.gmra.mxu0 %v403
      %v1085 = vpop.f32.mrf.mxu0
      %v1086 = vadd.f32 0.0, %v1085
      %v1087 = vpop.f32.mrf.mxu0
      %v1088 = vpop.f32.mrf.mxu0
      %v1089 = vadd.f32 0.0, %v1088
      %v1090 = vpop.f32.mrf.mxu0
      %1091 = vmatprep.mubr.bf16.mxu0 %v617
      %1092 = vmatmul.mubr.bf16.gmra.mxu0 %v404
      %v1093 = vpop.f32.mrf.mxu0
      %v1094 = vadd.f32 0.0, %v1093
      %v1095 = vpop.f32.mrf.mxu0
      %v1096 = vpop.f32.mrf.mxu0
      %v1097 = vadd.f32 0.0, %v1096
      %v1098 = vpop.f32.mrf.mxu0
      %1099 = vmatprep.mubr.bf16.mxu0 %v629
      %1100 = vmatmul.mubr.bf16.gmra.mxu0 %v405
      %v1101 = vpop.f32.mrf.mxu0
      %v1102 = vadd.f32 0.0, %v1101
      %v1103 = vpop.f32.mrf.mxu0
      %v1104 = vpop.f32.mrf.mxu0
      %v1105 = vadd.f32 0.0, %v1104
      %v1106 = vpop.f32.mrf.mxu0
      %1107 = vmatprep.mubr.bf16.mxu0 %v641
      %1108 = vmatmul.mubr.bf16.gmra.mxu0 %v406
      %v1109 = vpop.f32.mrf.mxu0
      %v1110 = vadd.f32 0.0, %v1109
      %v1111 = vpop.f32.mrf.mxu0
      %v1112 = vpop.f32.mrf.mxu0
      %v1113 = vadd.f32 0.0, %v1112
      %v1114 = vpop.f32.mrf.mxu0
      %1115 = vmatprep.mubr.bf16.mxu0 %v653
      %1116 = vmatmul.mubr.bf16.gmra.mxu0 %v407
      %v1117 = vpop.f32.mrf.mxu0
      %v1118 = vadd.f32 0.0, %v1117
      %v1119 = vpop.f32.mrf.mxu0
      %v1120 = vpop.f32.mrf.mxu0
      %v1121 = vadd.f32 0.0, %v1120
      %v1122 = vpop.f32.mrf.mxu0
      %1123 = vmatprep.mubr.bf16.mxu0 %v665
      %1124 = vmatmul.mubr.bf16.gmra.mxu0 %v408
      %v1125 = vpop.f32.mrf.mxu0
      %v1126 = vadd.f32 0.0, %v1125
      %v1127 = vpop.f32.mrf.mxu0
      %v1128 = vpop.f32.mrf.mxu0
      %v1129 = vadd.f32 0.0, %v1128
      %v1130 = vpop.f32.mrf.mxu0
      %1131 = vdwg.mxu0
      %1132 = vmatprep.subr.bf16.mxu0 0
      %1133 = vmatpush1.bf16.msra.mxu0 %v946
      %1134 = vmatprep.subr.bf16.mxu0 0
      %1135 = vmatpush1.bf16.msra.mxu0 %v945
      %1136 = vmatprep.subr.bf16.mxu0 0
      %1137 = vmatpush1.bf16.msra.mxu0 %v944
      %1138 = vmatprep.subr.bf16.mxu0 0
      %1139 = vmatpush1.bf16.msra.mxu0 %v943
      %1140 = vmatprep.subr.bf16.mxu0 0
      %1141 = vmatpush1.bf16.msra.mxu0 %v942
      %1142 = vmatprep.subr.bf16.mxu0 0
      %1143 = vmatpush1.bf16.msra.mxu0 %v941
      %1144 = vmatprep.subr.bf16.mxu0 0
      %1145 = vmatpush1.bf16.msra.mxu0 %v940
      %1146 = vmatprep.subr.bf16.mxu0 0
      %1147 = vmatpush1.bf16.msra.mxu0 %v939
      %1148 = vmatprep.subr.bf16.mxu0 0
      %1149 = vmatpush2.bf16.msra.mxu0 0
      %1150 = vmatprep.subr.bf16.mxu0 0
      %1151 = vmatpush2.bf16.msra.mxu0 0
      %1152 = vmatprep.subr.bf16.mxu0 0
      %1153 = vmatpush2.bf16.msra.mxu0 0
      %1154 = vmatprep.subr.bf16.mxu0 0
      %1155 = vmatpush2.bf16.msra.mxu0 0
      %1156 = vmatprep.subr.bf16.mxu0 0
      %1157 = vmatpush2.bf16.msra.mxu0 0
      %1158 = vmatprep.subr.bf16.mxu0 0
      %1159 = vmatpush2.bf16.msra.mxu0 0
      %1160 = vmatprep.subr.bf16.mxu0 0
      %1161 = vmatpush2.bf16.msra.mxu0 0
      %1162 = vmatprep.subr.bf16.mxu0 0
      %1163 = vmatpush2.bf16.msra.mxu0 0
      %1164 = vmatprep.mubr.bf16.mxu0 0
      %1165 = vmatmul.mubr.bf16.gmra.mxu0 %v685
      %v1166 = vpop.f32.mrf.mxu0
      %v1167 = vadd.f32 %v1006, %v1166
      %v1168 = vpop.f32.mrf.mxu0
      %v1169 = vpop.f32.mrf.mxu0
      %v1170 = vadd.f32 %v1009, %v1169
      %v1171 = vpop.f32.mrf.mxu0
      %1172 = vmatprep.mubr.bf16.mxu0 0
      %1173 = vmatmul.mubr.bf16.gmra.mxu0 %v688
      %v1174 = vpop.f32.mrf.mxu0
      %v1175 = vadd.f32 %v1014, %v1174
      %v1176 = vpop.f32.mrf.mxu0
      %v1177 = vpop.f32.mrf.mxu0
      %v1178 = vadd.f32 %v1017, %v1177
      %v1179 = vpop.f32.mrf.mxu0
      %1180 = vmatprep.mubr.bf16.mxu0 0
      %1181 = vmatmul.mubr.bf16.gmra.mxu0 %v691
      %v1182 = vpop.f32.mrf.mxu0
      %v1183 = vadd.f32 %v1022, %v1182
      %v1184 = vpop.f32.mrf.mxu0
      %v1185 = vpop.f32.mrf.mxu0
      %v1186 = vadd.f32 %v1025, %v1185
      %v1187 = vpop.f32.mrf.mxu0
      %1188 = vmatprep.mubr.bf16.mxu0 0
      %1189 = vmatmul.mubr.bf16.gmra.mxu0 %v694
      %v1190 = vpop.f32.mrf.mxu0
      %v1191 = vadd.f32 %v1030, %v1190
      %v1192 = vpop.f32.mrf.mxu0
      %v1193 = vpop.f32.mrf.mxu0
      %v1194 = vadd.f32 %v1033, %v1193
      %v1195 = vpop.f32.mrf.mxu0
      %1196 = vmatprep.mubr.bf16.mxu0 0
      %1197 = vmatmul.mubr.bf16.gmra.mxu0 %v697
      %v1198 = vpop.f32.mrf.mxu0
      %v1199 = vadd.f32 %v1038, %v1198
      %v1200 = vpop.f32.mrf.mxu0
      %v1201 = vpop.f32.mrf.mxu0
      %v1202 = vadd.f32 %v1041, %v1201
      %v1203 = vpop.f32.mrf.mxu0
      %1204 = vmatprep.mubr.bf16.mxu0 0
      %1205 = vmatmul.mubr.bf16.gmra.mxu0 %v700
      %v1206 = vpop.f32.mrf.mxu0
      %v1207 = vadd.f32 %v1046, %v1206
      %v1208 = vpop.f32.mrf.mxu0
      %v1209 = vpop.f32.mrf.mxu0
      %v1210 = vadd.f32 %v1049, %v1209
      %v1211 = vpop.f32.mrf.mxu0
      %1212 = vmatprep.mubr.bf16.mxu0 0
      %1213 = vmatmul.mubr.bf16.gmra.mxu0 %v703
      %v1214 = vpop.f32.mrf.mxu0
      %v1215 = vadd.f32 %v1054, %v1214
      %v1216 = vpop.f32.mrf.mxu0
      %v1217 = vpop.f32.mrf.mxu0
      %v1218 = vadd.f32 %v1057, %v1217
      %v1219 = vpop.f32.mrf.mxu0
      %1220 = vmatprep.mubr.bf16.mxu0 0
      %1221 = vmatmul.mubr.bf16.gmra.mxu0 %v706
      %v1222 = vpop.f32.mrf.mxu0
      %v1223 = vadd.f32 %v1062, %v1222
      %v1224 = vpop.f32.mrf.mxu0
      %v1225 = vpop.f32.mrf.mxu0
      %v1226 = vadd.f32 %v1065, %v1225
      %v1227 = vpop.f32.mrf.mxu0
      %1228 = vmatprep.mubr.bf16.mxu0 0
      %1229 = vmatmul.mubr.bf16.gmra.mxu0 %v709
      %v1230 = vpop.f32.mrf.mxu0
      %v1231 = vadd.f32 %v1070, %v1230
      %v1232 = vpop.f32.mrf.mxu0
      %v1233 = vpop.f32.mrf.mxu0
      %v1234 = vadd.f32 %v1073, %v1233
      %v1235 = vpop.f32.mrf.mxu0
      %1236 = vmatprep.mubr.bf16.mxu0 0
      %1237 = vmatmul.mubr.bf16.gmra.mxu0 %v712
      %v1238 = vpop.f32.mrf.mxu0
      %v1239 = vadd.f32 %v1078, %v1238
      %v1240 = vpop.f32.mrf.mxu0
      %v1241 = vpop.f32.mrf.mxu0
      %v1242 = vadd.f32 %v1081, %v1241
      %v1243 = vpop.f32.mrf.mxu0
      %1244 = vmatprep.mubr.bf16.mxu0 0
      %1245 = vmatmul.mubr.bf16.gmra.mxu0 %v715
      %v1246 = vpop.f32.mrf.mxu0
      %v1247 = vadd.f32 %v1086, %v1246
      %v1248 = vpop.f32.mrf.mxu0
      %v1249 = vpop.f32.mrf.mxu0
      %v1250 = vadd.f32 %v1089, %v1249
      %v1251 = vpop.f32.mrf.mxu0
      %1252 = vmatprep.mubr.bf16.mxu0 0
      %1253 = vmatmul.mubr.bf16.gmra.mxu0 %v718
      %v1254 = vpop.f32.mrf.mxu0
      %v1255 = vadd.f32 %v1094, %v1254
      %v1256 = vpop.f32.mrf.mxu0
      %v1257 = vpop.f32.mrf.mxu0
      %v1258 = vadd.f32 %v1097, %v1257
      %v1259 = vpop.f32.mrf.mxu0
      %1260 = vmatprep.mubr.bf16.mxu0 0
      %1261 = vmatmul.mubr.bf16.gmra.mxu0 %v721
      %v1262 = vpop.f32.mrf.mxu0
      %v1263 = vadd.f32 %v1102, %v1262
      %v1264 = vpop.f32.mrf.mxu0
      %v1265 = vpop.f32.mrf.mxu0
      %v1266 = vadd.f32 %v1105, %v1265
      %v1267 = vpop.f32.mrf.mxu0
      %1268 = vmatprep.mubr.bf16.mxu0 0
      %1269 = vmatmul.mubr.bf16.gmra.mxu0 %v724
      %v1270 = vpop.f32.mrf.mxu0
      %v1271 = vadd.f32 %v1110, %v1270
      %v1272 = vpop.f32.mrf.mxu0
      %v1273 = vpop.f32.mrf.mxu0
      %v1274 = vadd.f32 %v1113, %v1273
      %v1275 = vpop.f32.mrf.mxu0
      %1276 = vmatprep.mubr.bf16.mxu0 0
      %1277 = vmatmul.mubr.bf16.gmra.mxu0 %v727
      %v1278 = vpop.f32.mrf.mxu0
      %v1279 = vadd.f32 %v1118, %v1278
      %v1280 = vpop.f32.mrf.mxu0
      %v1281 = vpop.f32.mrf.mxu0
      %v1282 = vadd.f32 %v1121, %v1281
      %v1283 = vpop.f32.mrf.mxu0
      %1284 = vmatprep.mubr.bf16.mxu0 0
      %1285 = vmatmul.mubr.bf16.gmra.mxu0 %v730
      %v1286 = vpop.f32.mrf.mxu0
      %v1287 = vadd.f32 %v1126, %v1286
      %v1288 = vpop.f32.mrf.mxu0
      %v1289 = vpop.f32.mrf.mxu0
      %v1290 = vadd.f32 %v1129, %v1289
      %v1291 = vpop.f32.mrf.mxu0
      %1292 = vdwg.mxu0
      %v1293 = vadd.f32 %v747, %v1167
      %v1294 = vadd.f32 %v748, %v1170
      %v1295 = vadd.f32 %v749, %v1175
      %v1296 = vadd.f32 %v750, %v1178
      %v1297 = vadd.f32 %v751, %v1183
      %v1298 = vadd.f32 %v752, %v1186
      %v1299 = vadd.f32 %v753, %v1191
      %v1300 = vadd.f32 %v754, %v1194
      %v1301 = vadd.f32 %v755, %v1199
      %v1302 = vadd.f32 %v756, %v1202
      %v1303 = vadd.f32 %v757, %v1207
      %v1304 = vadd.f32 %v758, %v1210
      %v1305 = vadd.f32 %v759, %v1215
      %v1306 = vadd.f32 %v760, %v1218
      %v1307 = vadd.f32 %v761, %v1223
      %v1308 = vadd.f32 %v762, %v1226
      %v1309 = vadd.f32 %v763, %v1231
      %v1310 = vadd.f32 %v764, %v1234
      %v1311 = vadd.f32 %v765, %v1239
      %v1312 = vadd.f32 %v766, %v1242
      %v1313 = vadd.f32 %v767, %v1247
      %v1314 = vadd.f32 %v768, %v1250
      %v1315 = vadd.f32 %v769, %v1255
      %v1316 = vadd.f32 %v770, %v1258
      %v1317 = vadd.f32 %v771, %v1263
      %v1318 = vadd.f32 %v772, %v1266
      %v1319 = vadd.f32 %v773, %v1271
      %v1320 = vadd.f32 %v774, %v1274
      %v1321 = vadd.f32 %v775, %v1279
      %v1322 = vadd.f32 %v776, %v1282
      %v1323 = vadd.f32 %v777, %v1287
      %v1324 = vadd.f32 %v778, %v1290
      %1325 = vst [vmem:[#allocation2] sm:$0xff] %v1293
      %1326 = vst [vmem:[#allocation2 + $0x8] sm:$0xff] %v1294
      %1327 = vst [vmem:[#allocation2 + $0x10] sm:$0xff] %v1295
      %1328 = vst [vmem:[#allocation2 + $0x18] sm:$0xff] %v1296
      %1329 = vst [vmem:[#allocation2 + $0x20] sm:$0xff] %v1297
      %1330 = vst [vmem:[#allocation2 + $0x28] sm:$0xff] %v1298
      %1331 = vst [vmem:[#allocation2 + $0x30] sm:$0xff] %v1299
      %1332 = vst [vmem:[#allocation2 + $0x38] sm:$0xff] %v1300
      %1333 = vst [vmem:[#allocation2 + $0x40] sm:$0xff] %v1301
      %1334 = vst [vmem:[#allocation2 + $0x48] sm:$0xff] %v1302
      %1335 = vst [vmem:[#allocation2 + $0x50] sm:$0xff] %v1303
      %1336 = vst [vmem:[#allocation2 + $0x58] sm:$0xff] %v1304
      %1337 = vst [vmem:[#allocation2 + $0x60] sm:$0xff] %v1305
      %1338 = vst [vmem:[#allocation2 + $0x68] sm:$0xff] %v1306
      %1339 = vst [vmem:[#allocation2 + $0x70] sm:$0xff] %v1307
      %1340 = vst [vmem:[#allocation2 + $0x78] sm:$0xff] %v1308
      %1341 = vst [vmem:[#allocation2 + $0x80] sm:$0xff] %v1309
      %1342 = vst [vmem:[#allocation2 + $0x88] sm:$0xff] %v1310
      %1343 = vst [vmem:[#allocation2 + $0x90] sm:$0xff] %v1311
      %1344 = vst [vmem:[#allocation2 + $0x98] sm:$0xff] %v1312
      %1345 = vst [vmem:[#allocation2 + $0xa0] sm:$0xff] %v1313
      %1346 = vst [vmem:[#allocation2 + $0xa8] sm:$0xff] %v1314
      %1347 = vst [vmem:[#allocation2 + $0xb0] sm:$0xff] %v1315
      %1348 = vst [vmem:[#allocation2 + $0xb8] sm:$0xff] %v1316
      %1349 = vst [vmem:[#allocation2 + $0xc0] sm:$0xff] %v1317
      %1350 = vst [vmem:[#allocation2 + $0xc8] sm:$0xff] %v1318
      %1351 = vst [vmem:[#allocation2 + $0xd0] sm:$0xff] %v1319
      %1352 = vst [vmem:[#allocation2 + $0xd8] sm:$0xff] %v1320
      %1353 = vst [vmem:[#allocation2 + $0xe0] sm:$0xff] %v1321
      %1354 = vst [vmem:[#allocation2 + $0xe8] sm:$0xff] %v1322
      %1355 = vst [vmem:[#allocation2 + $0xf0] sm:$0xff] %v1323
      %1356 = vst [vmem:[#allocation2 + $0xf8] sm:$0xff] %v1324
      %s1357 = sadd.s32 %s277, 1
      %s1358 = smul.u32 %s1357, 3
      %s1359 = smul.addr %s1358, 4
      %s1360 = scalar_lea.vmem %s217, %s1359
      %v1361 = vld [vmem:[%s1360] sm:$0xf]
      %v1362 = vld [vmem:[%s1360 + $0x4] sm:$0xf]
      %v1363 = vld [vmem:[%s1360 + $0x8] sm:$0x1]
      %v1364 = vld [vmem:[%s1360 + $0xc] sm:$0xf]
      %v1365 = vld [vmem:[%s1360 + $0x10] sm:$0xf]
      %v1366 = vld [vmem:[%s1360 + $0x14] sm:$0x1]
      %v1367 = vld [vmem:[%s1360 + $0x18] sm:$0xf]
      %v1368 = vld [vmem:[%s1360 + $0x1c] sm:$0xf]
      %v1369 = vld [vmem:[%s1360 + $0x20] sm:$0x1]
      %v1370 = vld [vmem:[%s1360 + $0x24] sm:$0xf]
      %v1371 = vld [vmem:[%s1360 + $0x28] sm:$0xf]
      %v1372 = vld [vmem:[%s1360 + $0x2c] sm:$0x1]
      %v1373 = vld [vmem:[%s1360 + $0x30] sm:$0xf]
      %v1374 = vld [vmem:[%s1360 + $0x34] sm:$0xf]
      %v1375 = vld [vmem:[%s1360 + $0x38] sm:$0x1]
      %v1376 = vld [vmem:[%s1360 + $0x3c] sm:$0xf]
      %v1377 = vld [vmem:[%s1360 + $0x40] sm:$0xf]
      %v1378 = vld [vmem:[%s1360 + $0x44] sm:$0x1]
      %v1379 = vld [vmem:[%s1360 + $0x48] sm:$0xf]
      %v1380 = vld [vmem:[%s1360 + $0x4c] sm:$0xf]
      %v1381 = vld [vmem:[%s1360 + $0x50] sm:$0x1]
      %v1382 = vld [vmem:[%s1360 + $0x54] sm:$0xf]
      %v1383 = vld [vmem:[%s1360 + $0x58] sm:$0xf]
      %v1384 = vld [vmem:[%s1360 + $0x5c] sm:$0x1]
      %v1385 = vld [vmem:[%s1360 + $0x60] sm:$0xf]
      %v1386 = vld [vmem:[%s1360 + $0x64] sm:$0xf]
      %v1387 = vld [vmem:[%s1360 + $0x68] sm:$0x1]
      %v1388 = vld [vmem:[%s1360 + $0x6c] sm:$0xf]
      %v1389 = vld [vmem:[%s1360 + $0x70] sm:$0xf]
      %v1390 = vld [vmem:[%s1360 + $0x74] sm:$0x1]
      %v1391 = vld [vmem:[%s1360 + $0x78] sm:$0xf]
      %v1392 = vld [vmem:[%s1360 + $0x7c] sm:$0xf]
      %v1393 = vld [vmem:[%s1360 + $0x80] sm:$0x1]
      %v1394 = vld [vmem:[%s1360 + $0x84] sm:$0xf]
      %v1395 = vld [vmem:[%s1360 + $0x88] sm:$0xf]
      %v1396 = vld [vmem:[%s1360 + $0x8c] sm:$0x1]
      %v1397 = vld [vmem:[%s1360 + $0x90] sm:$0xf]
      %v1398 = vld [vmem:[%s1360 + $0x94] sm:$0xf]
      %v1399 = vld [vmem:[%s1360 + $0x98] sm:$0x1]
      %v1400 = vld [vmem:[%s1360 + $0x9c] sm:$0xf]
      %v1401 = vld [vmem:[%s1360 + $0xa0] sm:$0xf]
      %v1402 = vld [vmem:[%s1360 + $0xa4] sm:$0x1]
      %v1403 = vld [vmem:[%s1360 + $0xa8] sm:$0xf]
      %v1404 = vld [vmem:[%s1360 + $0xac] sm:$0xf]
      %v1405 = vld [vmem:[%s1360 + $0xb0] sm:$0x1]
      %v1406 = vld [vmem:[%s1360 + $0xb4] sm:$0xf]
      %v1407 = vld [vmem:[%s1360 + $0xb8] sm:$0xf]
      %v1408 = vld [vmem:[%s1360 + $0xbc] sm:$0x1]
      %v1441 = vunpack.c.l.b16 %v1361
      %v1442 = vunpack.c.l.b16 %v1362
      %v1443 = vunpack.c.l.b16 %v1364
      %v1444 = vunpack.c.l.b16 %v1365
      %v1445 = vunpack.c.l.b16 %v1367
      %v1446 = vunpack.c.l.b16 %v1368
      %v1447 = vunpack.c.l.b16 %v1370
      %v1448 = vunpack.c.l.b16 %v1371
      %v1449 = vunpack.c.l.b16 %v1373
      %v1450 = vunpack.c.l.b16 %v1374
      %v1451 = vunpack.c.l.b16 %v1376
      %v1452 = vunpack.c.l.b16 %v1377
      %v1453 = vunpack.c.l.b16 %v1379
      %v1454 = vunpack.c.l.b16 %v1380
      %v1455 = vunpack.c.l.b16 %v1382
      %v1456 = vunpack.c.l.b16 %v1383
      %v1457 = vunpack.c.l.b16 %v1385
      %v1458 = vunpack.c.l.b16 %v1386
      %v1459 = vunpack.c.l.b16 %v1388
      %v1460 = vunpack.c.l.b16 %v1389
      %v1461 = vunpack.c.l.b16 %v1391
      %v1462 = vunpack.c.l.b16 %v1392
      %v1463 = vunpack.c.l.b16 %v1394
      %v1464 = vunpack.c.l.b16 %v1395
      %v1465 = vunpack.c.l.b16 %v1397
      %v1466 = vunpack.c.l.b16 %v1398
      %v1467 = vunpack.c.l.b16 %v1400
      %v1468 = vunpack.c.l.b16 %v1401
      %v1469 = vunpack.c.l.b16 %v1403
      %v1470 = vunpack.c.l.b16 %v1404
      %v1471 = vunpack.c.l.b16 %v1406
      %v1472 = vunpack.c.l.b16 %v1407
      %v1473 = vpack.c.b16 %v1442, %v1441
      %v1474 = vpack.c.b16 %v1444, %v1443
      %v1475 = vpack.c.b16 %v1446, %v1445
      %v1476 = vpack.c.b16 %v1448, %v1447
      %v1477 = vpack.c.b16 %v1450, %v1449
      %v1478 = vpack.c.b16 %v1452, %v1451
      %v1479 = vpack.c.b16 %v1454, %v1453
      %v1480 = vpack.c.b16 %v1456, %v1455
      %v1481 = vpack.c.b16 %v1458, %v1457
      %v1482 = vpack.c.b16 %v1460, %v1459
      %v1483 = vpack.c.b16 %v1462, %v1461
      %v1484 = vpack.c.b16 %v1464, %v1463
      %v1485 = vpack.c.b16 %v1466, %v1465
      %v1486 = vpack.c.b16 %v1468, %v1467
      %v1487 = vpack.c.b16 %v1470, %v1469
      %v1488 = vpack.c.b16 %v1472, %v1471
      %v1521 = vunpack.c.l.b16 %v1363
      %v1522 = vunpack.c.l.b16 %v1366
      %v1523 = vunpack.c.l.b16 %v1369
      %v1524 = vunpack.c.l.b16 %v1372
      %v1525 = vunpack.c.l.b16 %v1375
      %v1526 = vunpack.c.l.b16 %v1378
      %v1527 = vunpack.c.l.b16 %v1381
      %v1528 = vunpack.c.l.b16 %v1384
      %v1529 = vunpack.c.l.b16 %v1387
      %v1530 = vunpack.c.l.b16 %v1390
      %v1531 = vunpack.c.l.b16 %v1393
      %v1532 = vunpack.c.l.b16 %v1396
      %v1533 = vunpack.c.l.b16 %v1399
      %v1534 = vunpack.c.l.b16 %v1402
      %v1535 = vunpack.c.l.b16 %v1405
      %v1536 = vunpack.c.l.b16 %v1408
      %v1537 = vpack.c.b16 %v1521, %v1521
      %v1538 = vpack.c.b16 %v1522, %v1522
      %v1539 = vpack.c.b16 %v1523, %v1523
      %v1540 = vpack.c.b16 %v1524, %v1524
      %v1541 = vpack.c.b16 %v1525, %v1525
      %v1542 = vpack.c.b16 %v1526, %v1526
      %v1543 = vpack.c.b16 %v1527, %v1527
      %v1544 = vpack.c.b16 %v1528, %v1528
      %v1545 = vpack.c.b16 %v1529, %v1529
      %v1546 = vpack.c.b16 %v1530, %v1530
      %v1547 = vpack.c.b16 %v1531, %v1531
      %v1548 = vpack.c.b16 %v1532, %v1532
      %v1549 = vpack.c.b16 %v1533, %v1533
      %v1550 = vpack.c.b16 %v1534, %v1534
      %v1551 = vpack.c.b16 %v1535, %v1535
      %v1552 = vpack.c.b16 %v1536, %v1536
      %v1554 = vshrl.u32 %v1473, 16
      %v1556 = vshll.u32 %v1473, 16
      %v1558 = vrot.slane %v1556, 1
      %v1559 = vor.u32 %v1554, %v1558
      %v1561 = vshll.u32 %v1537, 16
      %v1563 = vrot.slane %v1561, 1
      %v1564 = vsel %vm473, %v1559, %v1563
      %v1566 = vshrl.u32 %v1474, 16
      %v1568 = vshll.u32 %v1474, 16
      %v1570 = vrot.slane %v1568, 1
      %v1571 = vor.u32 %v1566, %v1570
      %v1573 = vshll.u32 %v1538, 16
      %v1575 = vrot.slane %v1573, 1
      %v1576 = vsel %vm473, %v1571, %v1575
      %v1578 = vshrl.u32 %v1475, 16
      %v1580 = vshll.u32 %v1475, 16
      %v1582 = vrot.slane %v1580, 1
      %v1583 = vor.u32 %v1578, %v1582
      %v1585 = vshll.u32 %v1539, 16
      %v1587 = vrot.slane %v1585, 1
      %v1588 = vsel %vm473, %v1583, %v1587
      %v1590 = vshrl.u32 %v1476, 16
      %v1592 = vshll.u32 %v1476, 16
      %v1594 = vrot.slane %v1592, 1
      %v1595 = vor.u32 %v1590, %v1594
      %v1597 = vshll.u32 %v1540, 16
      %v1599 = vrot.slane %v1597, 1
      %v1600 = vsel %vm473, %v1595, %v1599
      %v1602 = vshrl.u32 %v1477, 16
      %v1604 = vshll.u32 %v1477, 16
      %v1606 = vrot.slane %v1604, 1
      %v1607 = vor.u32 %v1602, %v1606
      %v1609 = vshll.u32 %v1541, 16
      %v1611 = vrot.slane %v1609, 1
      %v1612 = vsel %vm473, %v1607, %v1611
      %v1614 = vshrl.u32 %v1478, 16
      %v1616 = vshll.u32 %v1478, 16
      %v1618 = vrot.slane %v1616, 1
      %v1619 = vor.u32 %v1614, %v1618
      %v1621 = vshll.u32 %v1542, 16
      %v1623 = vrot.slane %v1621, 1
      %v1624 = vsel %vm473, %v1619, %v1623
      %v1626 = vshrl.u32 %v1479, 16
      %v1628 = vshll.u32 %v1479, 16
      %v1630 = vrot.slane %v1628, 1
      %v1631 = vor.u32 %v1626, %v1630
      %v1633 = vshll.u32 %v1543, 16
      %v1635 = vrot.slane %v1633, 1
      %v1636 = vsel %vm473, %v1631, %v1635
      %v1638 = vshrl.u32 %v1480, 16
      %v1640 = vshll.u32 %v1480, 16
      %v1642 = vrot.slane %v1640, 1
      %v1643 = vor.u32 %v1638, %v1642
      %v1645 = vshll.u32 %v1544, 16
      %v1647 = vrot.slane %v1645, 1
      %v1648 = vsel %vm473, %v1643, %v1647
      %v1650 = vshrl.u32 %v1481, 16
      %v1652 = vshll.u32 %v1481, 16
      %v1654 = vrot.slane %v1652, 1
      %v1655 = vor.u32 %v1650, %v1654
      %v1657 = vshll.u32 %v1545, 16
      %v1659 = vrot.slane %v1657, 1
      %v1660 = vsel %vm473, %v1655, %v1659
      %v1662 = vshrl.u32 %v1482, 16
      %v1664 = vshll.u32 %v1482, 16
      %v1666 = vrot.slane %v1664, 1
      %v1667 = vor.u32 %v1662, %v1666
      %v1669 = vshll.u32 %v1546, 16
      %v1671 = vrot.slane %v1669, 1
      %v1672 = vsel %vm473, %v1667, %v1671
      %v1674 = vshrl.u32 %v1483, 16
      %v1676 = vshll.u32 %v1483, 16
      %v1678 = vrot.slane %v1676, 1
      %v1679 = vor.u32 %v1674, %v1678
      %v1681 = vshll.u32 %v1547, 16
      %v1683 = vrot.slane %v1681, 1
      %v1684 = vsel %vm473, %v1679, %v1683
      %v1686 = vshrl.u32 %v1484, 16
      %v1688 = vshll.u32 %v1484, 16
      %v1690 = vrot.slane %v1688, 1
      %v1691 = vor.u32 %v1686, %v1690
      %v1693 = vshll.u32 %v1548, 16
      %v1695 = vrot.slane %v1693, 1
      %v1696 = vsel %vm473, %v1691, %v1695
      %v1698 = vshrl.u32 %v1485, 16
      %v1700 = vshll.u32 %v1485, 16
      %v1702 = vrot.slane %v1700, 1
      %v1703 = vor.u32 %v1698, %v1702
      %v1705 = vshll.u32 %v1549, 16
      %v1707 = vrot.slane %v1705, 1
      %v1708 = vsel %vm473, %v1703, %v1707
      %v1710 = vshrl.u32 %v1486, 16
      %v1712 = vshll.u32 %v1486, 16
      %v1714 = vrot.slane %v1712, 1
      %v1715 = vor.u32 %v1710, %v1714
      %v1717 = vshll.u32 %v1550, 16
      %v1719 = vrot.slane %v1717, 1
      %v1720 = vsel %vm473, %v1715, %v1719
      %v1722 = vshrl.u32 %v1487, 16
      %v1724 = vshll.u32 %v1487, 16
      %v1726 = vrot.slane %v1724, 1
      %v1727 = vor.u32 %v1722, %v1726
      %v1729 = vshll.u32 %v1551, 16
      %v1731 = vrot.slane %v1729, 1
      %v1732 = vsel %vm473, %v1727, %v1731
      %v1734 = vshrl.u32 %v1488, 16
      %v1736 = vshll.u32 %v1488, 16
      %v1738 = vrot.slane %v1736, 1
      %v1739 = vor.u32 %v1734, %v1738
      %v1741 = vshll.u32 %v1552, 16
      %v1743 = vrot.slane %v1741, 1
      %v1744 = vsel %vm473, %v1739, %v1743
      %v1761 = vrot.slane %v1473, 1
      %v1762 = vrot.slane %v1537, 1
      %v1763 = vsel %vm682, %v1761, %v1762
      %v1764 = vrot.slane %v1474, 1
      %v1765 = vrot.slane %v1538, 1
      %v1766 = vsel %vm682, %v1764, %v1765
      %v1767 = vrot.slane %v1475, 1
      %v1768 = vrot.slane %v1539, 1
      %v1769 = vsel %vm682, %v1767, %v1768
      %v1770 = vrot.slane %v1476, 1
      %v1771 = vrot.slane %v1540, 1
      %v1772 = vsel %vm682, %v1770, %v1771
      %v1773 = vrot.slane %v1477, 1
      %v1774 = vrot.slane %v1541, 1
      %v1775 = vsel %vm682, %v1773, %v1774
      %v1776 = vrot.slane %v1478, 1
      %v1777 = vrot.slane %v1542, 1
      %v1778 = vsel %vm682, %v1776, %v1777
      %v1779 = vrot.slane %v1479, 1
      %v1780 = vrot.slane %v1543, 1
      %v1781 = vsel %vm682, %v1779, %v1780
      %v1782 = vrot.slane %v1480, 1
      %v1783 = vrot.slane %v1544, 1
      %v1784 = vsel %vm682, %v1782, %v1783
      %v1785 = vrot.slane %v1481, 1
      %v1786 = vrot.slane %v1545, 1
      %v1787 = vsel %vm682, %v1785, %v1786
      %v1788 = vrot.slane %v1482, 1
      %v1789 = vrot.slane %v1546, 1
      %v1790 = vsel %vm682, %v1788, %v1789
      %v1791 = vrot.slane %v1483, 1
      %v1792 = vrot.slane %v1547, 1
      %v1793 = vsel %vm682, %v1791, %v1792
      %v1794 = vrot.slane %v1484, 1
      %v1795 = vrot.slane %v1548, 1
      %v1796 = vsel %vm682, %v1794, %v1795
      %v1797 = vrot.slane %v1485, 1
      %v1798 = vrot.slane %v1549, 1
      %v1799 = vsel %vm682, %v1797, %v1798
      %v1800 = vrot.slane %v1486, 1
      %v1801 = vrot.slane %v1550, 1
      %v1802 = vsel %vm682, %v1800, %v1801
      %v1803 = vrot.slane %v1487, 1
      %v1804 = vrot.slane %v1551, 1
      %v1805 = vsel %vm682, %v1803, %v1804
      %v1806 = vrot.slane %v1488, 1
      %v1807 = vrot.slane %v1552, 1
      %v1808 = vsel %vm682, %v1806, %v1807
      %v1825 = vld [vmem:[#allocation2] sm:$0xff]
      %v1826 = vld [vmem:[#allocation2 + $0x8] sm:$0xff]
      %v1827 = vld [vmem:[#allocation2 + $0x10] sm:$0xff]
      %v1828 = vld [vmem:[#allocation2 + $0x18] sm:$0xff]
      %v1829 = vld [vmem:[#allocation2 + $0x20] sm:$0xff]
      %v1830 = vld [vmem:[#allocation2 + $0x28] sm:$0xff]
      %v1831 = vld [vmem:[#allocation2 + $0x30] sm:$0xff]
      %v1832 = vld [vmem:[#allocation2 + $0x38] sm:$0xff]
      %v1833 = vld [vmem:[#allocation2 + $0x40] sm:$0xff]
      %v1834 = vld [vmem:[#allocation2 + $0x48] sm:$0xff]
      %v1835 = vld [vmem:[#allocation2 + $0x50] sm:$0xff]
      %v1836 = vld [vmem:[#allocation2 + $0x58] sm:$0xff]
      %v1837 = vld [vmem:[#allocation2 + $0x60] sm:$0xff]
      %v1838 = vld [vmem:[#allocation2 + $0x68] sm:$0xff]
      %v1839 = vld [vmem:[#allocation2 + $0x70] sm:$0xff]
      %v1840 = vld [vmem:[#allocation2 + $0x78] sm:$0xff]
      %v1841 = vld [vmem:[#allocation2 + $0x80] sm:$0xff]
      %v1842 = vld [vmem:[#allocation2 + $0x88] sm:$0xff]
      %v1843 = vld [vmem:[#allocation2 + $0x90] sm:$0xff]
      %v1844 = vld [vmem:[#allocation2 + $0x98] sm:$0xff]
      %v1845 = vld [vmem:[#allocation2 + $0xa0] sm:$0xff]
      %v1846 = vld [vmem:[#allocation2 + $0xa8] sm:$0xff]
      %v1847 = vld [vmem:[#allocation2 + $0xb0] sm:$0xff]
      %v1848 = vld [vmem:[#allocation2 + $0xb8] sm:$0xff]
      %v1849 = vld [vmem:[#allocation2 + $0xc0] sm:$0xff]
      %v1850 = vld [vmem:[#allocation2 + $0xc8] sm:$0xff]
      %v1851 = vld [vmem:[#allocation2 + $0xd0] sm:$0xff]
      %v1852 = vld [vmem:[#allocation2 + $0xd8] sm:$0xff]
      %v1853 = vld [vmem:[#allocation2 + $0xe0] sm:$0xff]
      %v1854 = vld [vmem:[#allocation2 + $0xe8] sm:$0xff]
      %v1855 = vld [vmem:[#allocation2 + $0xf0] sm:$0xff]
      %v1856 = vld [vmem:[#allocation2 + $0xf8] sm:$0xff]
      %s1857 = scalar_lea.vmem %s1, 192
      %v1858 = vld [vmem:[%s1857] sm:$0xf]
      %v1859 = vld [vmem:[%s1857 + $0x4] sm:$0xf]
      %v1860 = vld [vmem:[%s1857 + $0x8] sm:$0xf]
      %v1861 = vld [vmem:[%s1857 + $0xc] sm:$0xf]
      %v1862 = vld [vmem:[%s1857 + $0x10] sm:$0xf]
      %v1863 = vld [vmem:[%s1857 + $0x14] sm:$0xf]
      %v1864 = vld [vmem:[%s1857 + $0x18] sm:$0xf]
      %v1865 = vld [vmem:[%s1857 + $0x1c] sm:$0xf]
      %v1866 = vld [vmem:[%s1857 + $0x20] sm:$0xf]
      %v1867 = vld [vmem:[%s1857 + $0x24] sm:$0xf]
      %v1868 = vld [vmem:[%s1857 + $0x28] sm:$0xf]
      %v1869 = vld [vmem:[%s1857 + $0x2c] sm:$0xf]
      %v1870 = vld [vmem:[%s1857 + $0x30] sm:$0xf]
      %v1871 = vld [vmem:[%s1857 + $0x34] sm:$0xf]
      %v1872 = vld [vmem:[%s1857 + $0x38] sm:$0xf]
      %v1873 = vld [vmem:[%s1857 + $0x3c] sm:$0xf]
      %v1874 = vld [vmem:[%s1857 + $0x40] sm:$0xf]
      %v1875 = vld [vmem:[%s1857 + $0x44] sm:$0xf]
      %v1876 = vld [vmem:[%s1857 + $0x48] sm:$0xf]
      %v1877 = vld [vmem:[%s1857 + $0x4c] sm:$0xf]
      %v1878 = vld [vmem:[%s1857 + $0x50] sm:$0xf]
      %v1879 = vld [vmem:[%s1857 + $0x54] sm:$0xf]
      %v1880 = vld [vmem:[%s1857 + $0x58] sm:$0xf]
      %v1881 = vld [vmem:[%s1857 + $0x5c] sm:$0xf]
      %v1882 = vld [vmem:[%s1857 + $0x60] sm:$0xf]
      %v1883 = vld [vmem:[%s1857 + $0x64] sm:$0xf]
      %v1884 = vld [vmem:[%s1857 + $0x68] sm:$0xf]
      %v1885 = vld [vmem:[%s1857 + $0x6c] sm:$0xf]
      %v1886 = vld [vmem:[%s1857 + $0x70] sm:$0xf]
      %v1887 = vld [vmem:[%s1857 + $0x74] sm:$0xf]
      %v1888 = vld [vmem:[%s1857 + $0x78] sm:$0xf]
      %v1889 = vld [vmem:[%s1857 + $0x7c] sm:$0xf]
      %v1890 = vld [vmem:[%s1857 + $0x80] sm:$0xf]
      %v1891 = vld [vmem:[%s1857 + $0x84] sm:$0xf]
      %v1892 = vld [vmem:[%s1857 + $0x88] sm:$0xf]
      %v1893 = vld [vmem:[%s1857 + $0x8c] sm:$0xf]
      %v1894 = vld [vmem:[%s1857 + $0x90] sm:$0xf]
      %v1895 = vld [vmem:[%s1857 + $0x94] sm:$0xf]
      %v1896 = vld [vmem:[%s1857 + $0x98] sm:$0xf]
      %v1897 = vld [vmem:[%s1857 + $0x9c] sm:$0xf]
      %v1898 = vld [vmem:[%s1857 + $0xa0] sm:$0xf]
      %v1899 = vld [vmem:[%s1857 + $0xa4] sm:$0xf]
      %v1900 = vld [vmem:[%s1857 + $0xa8] sm:$0xf]
      %v1901 = vld [vmem:[%s1857 + $0xac] sm:$0xf]
      %v1902 = vld [vmem:[%s1857 + $0xb0] sm:$0xf]
      %v1903 = vld [vmem:[%s1857 + $0xb4] sm:$0xf]
      %v1904 = vld [vmem:[%s1857 + $0xb8] sm:$0xf]
      %v1905 = vld [vmem:[%s1857 + $0xbc] sm:$0xf]
      %v1954 = vunpack.c.l.b16 %v1858
      %v1955 = vunpack.c.l.b16 %v1859
      %v1956 = vunpack.c.l.b16 %v1860
      %v1957 = vunpack.c.l.b16 %v1861
      %v1958 = vunpack.c.l.b16 %v1862
      %v1959 = vunpack.c.l.b16 %v1863
      %v1960 = vunpack.c.l.b16 %v1864
      %v1961 = vunpack.c.l.b16 %v1865
      %v1962 = vunpack.c.l.b16 %v1866
      %v1963 = vunpack.c.l.b16 %v1867
      %v1964 = vunpack.c.l.b16 %v1868
      %v1965 = vunpack.c.l.b16 %v1869
      %v1966 = vunpack.c.l.b16 %v1870
      %v1967 = vunpack.c.l.b16 %v1871
      %v1968 = vunpack.c.l.b16 %v1872
      %v1969 = vunpack.c.l.b16 %v1873
      %v1970 = vunpack.c.l.b16 %v1874
      %v1971 = vunpack.c.l.b16 %v1875
      %v1972 = vunpack.c.l.b16 %v1876
      %v1973 = vunpack.c.l.b16 %v1877
      %v1974 = vunpack.c.l.b16 %v1878
      %v1975 = vunpack.c.l.b16 %v1879
      %v1976 = vunpack.c.l.b16 %v1880
      %v1977 = vunpack.c.l.b16 %v1881
      %v1978 = vunpack.c.l.b16 %v1882
      %v1979 = vunpack.c.l.b16 %v1883
      %v1980 = vunpack.c.l.b16 %v1884
      %v1981 = vunpack.c.l.b16 %v1885
      %v1982 = vunpack.c.l.b16 %v1886
      %v1983 = vunpack.c.l.b16 %v1887
      %v1984 = vunpack.c.l.b16 %v1888
      %v1985 = vunpack.c.l.b16 %v1889
      %v1986 = vunpack.c.l.b16 %v1890
      %v1987 = vunpack.c.l.b16 %v1891
      %v1988 = vunpack.c.l.b16 %v1892
      %v1989 = vunpack.c.l.b16 %v1893
      %v1990 = vunpack.c.l.b16 %v1894
      %v1991 = vunpack.c.l.b16 %v1895
      %v1992 = vunpack.c.l.b16 %v1896
      %v1993 = vunpack.c.l.b16 %v1897
      %v1994 = vunpack.c.l.b16 %v1898
      %v1995 = vunpack.c.l.b16 %v1899
      %v1996 = vunpack.c.l.b16 %v1900
      %v1997 = vunpack.c.l.b16 %v1901
      %v1998 = vunpack.c.l.b16 %v1902
      %v1999 = vunpack.c.l.b16 %v1903
      %v2000 = vunpack.c.l.b16 %v1904
      %v2001 = vunpack.c.l.b16 %v1905
      %v2002 = vpack.c.b16 %v1955, %v1954
      %v2003 = vpack.c.b16 %v1957, %v1956
      %v2004 = vpack.c.b16 %v1959, %v1958
      %v2005 = vpack.c.b16 %v1961, %v1960
      %v2006 = vpack.c.b16 %v1963, %v1962
      %v2007 = vpack.c.b16 %v1965, %v1964
      %v2008 = vpack.c.b16 %v1967, %v1966
      %v2009 = vpack.c.b16 %v1969, %v1968
      %v2010 = vpack.c.b16 %v1971, %v1970
      %v2011 = vpack.c.b16 %v1973, %v1972
      %v2012 = vpack.c.b16 %v1975, %v1974
      %v2013 = vpack.c.b16 %v1977, %v1976
      %v2014 = vpack.c.b16 %v1979, %v1978
      %v2015 = vpack.c.b16 %v1981, %v1980
      %v2016 = vpack.c.b16 %v1983, %v1982
      %v2017 = vpack.c.b16 %v1985, %v1984
      %v2018 = vpack.c.b16 %v1987, %v1986
      %v2019 = vpack.c.b16 %v1989, %v1988
      %v2020 = vpack.c.b16 %v1991, %v1990
      %v2021 = vpack.c.b16 %v1993, %v1992
      %v2022 = vpack.c.b16 %v1995, %v1994
      %v2023 = vpack.c.b16 %v1997, %v1996
      %v2024 = vpack.c.b16 %v1999, %v1998
      %v2025 = vpack.c.b16 %v2001, %v2000
      %2050 = vmatprep.subr.bf16.mxu0 0
      %2051 = vmatpush1.bf16.msra.mxu0 %v2009
      %2052 = vmatprep.subr.bf16.mxu0 0
      %2053 = vmatpush1.bf16.msra.mxu0 %v2008
      %2054 = vmatprep.subr.bf16.mxu0 0
      %2055 = vmatpush1.bf16.msra.mxu0 %v2007
      %2056 = vmatprep.subr.bf16.mxu0 0
      %2057 = vmatpush1.bf16.msra.mxu0 %v2006
      %2058 = vmatprep.subr.bf16.mxu0 0
      %2059 = vmatpush1.bf16.msra.mxu0 %v2005
      %2060 = vmatprep.subr.bf16.mxu0 0
      %2061 = vmatpush1.bf16.msra.mxu0 %v2004
      %2062 = vmatprep.subr.bf16.mxu0 0
      %2063 = vmatpush1.bf16.msra.mxu0 %v2003
      %2064 = vmatprep.subr.bf16.mxu0 0
      %2065 = vmatpush1.bf16.msra.mxu0 %v2002
      %2066 = vmatprep.subr.bf16.mxu0 0
      %2067 = vmatpush2.bf16.msra.mxu0 %v2017
      %2068 = vmatprep.subr.bf16.mxu0 0
      %2069 = vmatpush2.bf16.msra.mxu0 %v2016
      %2070 = vmatprep.subr.bf16.mxu0 0
      %2071 = vmatpush2.bf16.msra.mxu0 %v2015
      %2072 = vmatprep.subr.bf16.mxu0 0
      %2073 = vmatpush2.bf16.msra.mxu0 %v2014
      %2074 = vmatprep.subr.bf16.mxu0 0
      %2075 = vmatpush2.bf16.msra.mxu0 %v2013
      %2076 = vmatprep.subr.bf16.mxu0 0
      %2077 = vmatpush2.bf16.msra.mxu0 %v2012
      %2078 = vmatprep.subr.bf16.mxu0 0
      %2079 = vmatpush2.bf16.msra.mxu0 %v2011
      %2080 = vmatprep.subr.bf16.mxu0 0
      %2081 = vmatpush2.bf16.msra.mxu0 %v2010
      %2082 = vmatprep.mubr.bf16.mxu0 %v1564
      %2083 = vmatmul.mubr.bf16.gmra.mxu0 %v1473
      %v2084 = vpop.f32.mrf.mxu0
      %v2085 = vadd.f32 0.0, %v2084
      %v2086 = vpop.f32.mrf.mxu0
      %v2087 = vpop.f32.mrf.mxu0
      %v2088 = vadd.f32 0.0, %v2087
      %v2089 = vpop.f32.mrf.mxu0
      %2090 = vmatprep.mubr.bf16.mxu0 %v1576
      %2091 = vmatmul.mubr.bf16.gmra.mxu0 %v1474
      %v2092 = vpop.f32.mrf.mxu0
      %v2093 = vadd.f32 0.0, %v2092
      %v2094 = vpop.f32.mrf.mxu0
      %v2095 = vpop.f32.mrf.mxu0
      %v2096 = vadd.f32 0.0, %v2095
      %v2097 = vpop.f32.mrf.mxu0
      %2098 = vmatprep.mubr.bf16.mxu0 %v1588
      %2099 = vmatmul.mubr.bf16.gmra.mxu0 %v1475
      %v2100 = vpop.f32.mrf.mxu0
      %v2101 = vadd.f32 0.0, %v2100
      %v2102 = vpop.f32.mrf.mxu0
      %v2103 = vpop.f32.mrf.mxu0
      %v2104 = vadd.f32 0.0, %v2103
      %v2105 = vpop.f32.mrf.mxu0
      %2106 = vmatprep.mubr.bf16.mxu0 %v1600
      %2107 = vmatmul.mubr.bf16.gmra.mxu0 %v1476
      %v2108 = vpop.f32.mrf.mxu0
      %v2109 = vadd.f32 0.0, %v2108
      %v2110 = vpop.f32.mrf.mxu0
      %v2111 = vpop.f32.mrf.mxu0
      %v2112 = vadd.f32 0.0, %v2111
      %v2113 = vpop.f32.mrf.mxu0
      %2114 = vmatprep.mubr.bf16.mxu0 %v1612
      %2115 = vmatmul.mubr.bf16.gmra.mxu0 %v1477
      %v2116 = vpop.f32.mrf.mxu0
      %v2117 = vadd.f32 0.0, %v2116
      %v2118 = vpop.f32.mrf.mxu0
      %v2119 = vpop.f32.mrf.mxu0
      %v2120 = vadd.f32 0.0, %v2119
      %v2121 = vpop.f32.mrf.mxu0
      %2122 = vmatprep.mubr.bf16.mxu0 %v1624
      %2123 = vmatmul.mubr.bf16.gmra.mxu0 %v1478
      %v2124 = vpop.f32.mrf.mxu0
      %v2125 = vadd.f32 0.0, %v2124
      %v2126 = vpop.f32.mrf.mxu0
      %v2127 = vpop.f32.mrf.mxu0
      %v2128 = vadd.f32 0.0, %v2127
      %v2129 = vpop.f32.mrf.mxu0
      %2130 = vmatprep.mubr.bf16.mxu0 %v1636
      %2131 = vmatmul.mubr.bf16.gmra.mxu0 %v1479
      %v2132 = vpop.f32.mrf.mxu0
      %v2133 = vadd.f32 0.0, %v2132
      %v2134 = vpop.f32.mrf.mxu0
      %v2135 = vpop.f32.mrf.mxu0
      %v2136 = vadd.f32 0.0, %v2135
      %v2137 = vpop.f32.mrf.mxu0
      %2138 = vmatprep.mubr.bf16.mxu0 %v1648
      %2139 = vmatmul.mubr.bf16.gmra.mxu0 %v1480
      %v2140 = vpop.f32.mrf.mxu0
      %v2141 = vadd.f32 0.0, %v2140
      %v2142 = vpop.f32.mrf.mxu0
      %v2143 = vpop.f32.mrf.mxu0
      %v2144 = vadd.f32 0.0, %v2143
      %v2145 = vpop.f32.mrf.mxu0
      %2146 = vmatprep.mubr.bf16.mxu0 %v1660
      %2147 = vmatmul.mubr.bf16.gmra.mxu0 %v1481
      %v2148 = vpop.f32.mrf.mxu0
      %v2149 = vadd.f32 0.0, %v2148
      %v2150 = vpop.f32.mrf.mxu0
      %v2151 = vpop.f32.mrf.mxu0
      %v2152 = vadd.f32 0.0, %v2151
      %v2153 = vpop.f32.mrf.mxu0
      %2154 = vmatprep.mubr.bf16.mxu0 %v1672
      %2155 = vmatmul.mubr.bf16.gmra.mxu0 %v1482
      %v2156 = vpop.f32.mrf.mxu0
      %v2157 = vadd.f32 0.0, %v2156
      %v2158 = vpop.f32.mrf.mxu0
      %v2159 = vpop.f32.mrf.mxu0
      %v2160 = vadd.f32 0.0, %v2159
      %v2161 = vpop.f32.mrf.mxu0
      %2162 = vmatprep.mubr.bf16.mxu0 %v1684
      %2163 = vmatmul.mubr.bf16.gmra.mxu0 %v1483
      %v2164 = vpop.f32.mrf.mxu0
      %v2165 = vadd.f32 0.0, %v2164
      %v2166 = vpop.f32.mrf.mxu0
      %v2167 = vpop.f32.mrf.mxu0
      %v2168 = vadd.f32 0.0, %v2167
      %v2169 = vpop.f32.mrf.mxu0
      %2170 = vmatprep.mubr.bf16.mxu0 %v1696
      %2171 = vmatmul.mubr.bf16.gmra.mxu0 %v1484
      %v2172 = vpop.f32.mrf.mxu0
      %v2173 = vadd.f32 0.0, %v2172
      %v2174 = vpop.f32.mrf.mxu0
      %v2175 = vpop.f32.mrf.mxu0
      %v2176 = vadd.f32 0.0, %v2175
      %v2177 = vpop.f32.mrf.mxu0
      %2178 = vmatprep.mubr.bf16.mxu0 %v1708
      %2179 = vmatmul.mubr.bf16.gmra.mxu0 %v1485
      %v2180 = vpop.f32.mrf.mxu0
      %v2181 = vadd.f32 0.0, %v2180
      %v2182 = vpop.f32.mrf.mxu0
      %v2183 = vpop.f32.mrf.mxu0
      %v2184 = vadd.f32 0.0, %v2183
      %v2185 = vpop.f32.mrf.mxu0
      %2186 = vmatprep.mubr.bf16.mxu0 %v1720
      %2187 = vmatmul.mubr.bf16.gmra.mxu0 %v1486
      %v2188 = vpop.f32.mrf.mxu0
      %v2189 = vadd.f32 0.0, %v2188
      %v2190 = vpop.f32.mrf.mxu0
      %v2191 = vpop.f32.mrf.mxu0
      %v2192 = vadd.f32 0.0, %v2191
      %v2193 = vpop.f32.mrf.mxu0
      %2194 = vmatprep.mubr.bf16.mxu0 %v1732
      %2195 = vmatmul.mubr.bf16.gmra.mxu0 %v1487
      %v2196 = vpop.f32.mrf.mxu0
      %v2197 = vadd.f32 0.0, %v2196
      %v2198 = vpop.f32.mrf.mxu0
      %v2199 = vpop.f32.mrf.mxu0
      %v2200 = vadd.f32 0.0, %v2199
      %v2201 = vpop.f32.mrf.mxu0
      %2202 = vmatprep.mubr.bf16.mxu0 %v1744
      %2203 = vmatmul.mubr.bf16.gmra.mxu0 %v1488
      %v2204 = vpop.f32.mrf.mxu0
      %v2205 = vadd.f32 0.0, %v2204
      %v2206 = vpop.f32.mrf.mxu0
      %v2207 = vpop.f32.mrf.mxu0
      %v2208 = vadd.f32 0.0, %v2207
      %v2209 = vpop.f32.mrf.mxu0
      %2210 = vdwg.mxu0
      %2211 = vmatprep.subr.bf16.mxu0 0
      %2212 = vmatpush1.bf16.msra.mxu0 %v2025
      %2213 = vmatprep.subr.bf16.mxu0 0
      %2214 = vmatpush1.bf16.msra.mxu0 %v2024
      %2215 = vmatprep.subr.bf16.mxu0 0
      %2216 = vmatpush1.bf16.msra.mxu0 %v2023
      %2217 = vmatprep.subr.bf16.mxu0 0
      %2218 = vmatpush1.bf16.msra.mxu0 %v2022
      %2219 = vmatprep.subr.bf16.mxu0 0
      %2220 = vmatpush1.bf16.msra.mxu0 %v2021
      %2221 = vmatprep.subr.bf16.mxu0 0
      %2222 = vmatpush1.bf16.msra.mxu0 %v2020
      %2223 = vmatprep.subr.bf16.mxu0 0
      %2224 = vmatpush1.bf16.msra.mxu0 %v2019
      %2225 = vmatprep.subr.bf16.mxu0 0
      %2226 = vmatpush1.bf16.msra.mxu0 %v2018
      %2227 = vmatprep.subr.bf16.mxu0 0
      %2228 = vmatpush2.bf16.msra.mxu0 0
      %2229 = vmatprep.subr.bf16.mxu0 0
      %2230 = vmatpush2.bf16.msra.mxu0 0
      %2231 = vmatprep.subr.bf16.mxu0 0
      %2232 = vmatpush2.bf16.msra.mxu0 0
      %2233 = vmatprep.subr.bf16.mxu0 0
      %2234 = vmatpush2.bf16.msra.mxu0 0
      %2235 = vmatprep.subr.bf16.mxu0 0
      %2236 = vmatpush2.bf16.msra.mxu0 0
      %2237 = vmatprep.subr.bf16.mxu0 0
      %2238 = vmatpush2.bf16.msra.mxu0 0
      %2239 = vmatprep.subr.bf16.mxu0 0
      %2240 = vmatpush2.bf16.msra.mxu0 0
      %2241 = vmatprep.subr.bf16.mxu0 0
      %2242 = vmatpush2.bf16.msra.mxu0 0
      %2243 = vmatprep.mubr.bf16.mxu0 0
      %2244 = vmatmul.mubr.bf16.gmra.mxu0 %v1763
      %v2245 = vpop.f32.mrf.mxu0
      %v2246 = vadd.f32 %v2085, %v2245
      %v2247 = vpop.f32.mrf.mxu0
      %v2248 = vpop.f32.mrf.mxu0
      %v2249 = vadd.f32 %v2088, %v2248
      %v2250 = vpop.f32.mrf.mxu0
      %2251 = vmatprep.mubr.bf16.mxu0 0
      %2252 = vmatmul.mubr.bf16.gmra.mxu0 %v1766
      %v2253 = vpop.f32.mrf.mxu0
      %v2254 = vadd.f32 %v2093, %v2253
      %v2255 = vpop.f32.mrf.mxu0
      %v2256 = vpop.f32.mrf.mxu0
      %v2257 = vadd.f32 %v2096, %v2256
      %v2258 = vpop.f32.mrf.mxu0
      %2259 = vmatprep.mubr.bf16.mxu0 0
      %2260 = vmatmul.mubr.bf16.gmra.mxu0 %v1769
      %v2261 = vpop.f32.mrf.mxu0
      %v2262 = vadd.f32 %v2101, %v2261
      %v2263 = vpop.f32.mrf.mxu0
      %v2264 = vpop.f32.mrf.mxu0
      %v2265 = vadd.f32 %v2104, %v2264
      %v2266 = vpop.f32.mrf.mxu0
      %2267 = vmatprep.mubr.bf16.mxu0 0
      %2268 = vmatmul.mubr.bf16.gmra.mxu0 %v1772
      %v2269 = vpop.f32.mrf.mxu0
      %v2270 = vadd.f32 %v2109, %v2269
      %v2271 = vpop.f32.mrf.mxu0
      %v2272 = vpop.f32.mrf.mxu0
      %v2273 = vadd.f32 %v2112, %v2272
      %v2274 = vpop.f32.mrf.mxu0
      %2275 = vmatprep.mubr.bf16.mxu0 0
      %2276 = vmatmul.mubr.bf16.gmra.mxu0 %v1775
      %v2277 = vpop.f32.mrf.mxu0
      %v2278 = vadd.f32 %v2117, %v2277
      %v2279 = vpop.f32.mrf.mxu0
      %v2280 = vpop.f32.mrf.mxu0
      %v2281 = vadd.f32 %v2120, %v2280
      %v2282 = vpop.f32.mrf.mxu0
      %2283 = vmatprep.mubr.bf16.mxu0 0
      %2284 = vmatmul.mubr.bf16.gmra.mxu0 %v1778
      %v2285 = vpop.f32.mrf.mxu0
      %v2286 = vadd.f32 %v2125, %v2285
      %v2287 = vpop.f32.mrf.mxu0
      %v2288 = vpop.f32.mrf.mxu0
      %v2289 = vadd.f32 %v2128, %v2288
      %v2290 = vpop.f32.mrf.mxu0
      %2291 = vmatprep.mubr.bf16.mxu0 0
      %2292 = vmatmul.mubr.bf16.gmra.mxu0 %v1781
      %v2293 = vpop.f32.mrf.mxu0
      %v2294 = vadd.f32 %v2133, %v2293
      %v2295 = vpop.f32.mrf.mxu0
      %v2296 = vpop.f32.mrf.mxu0
      %v2297 = vadd.f32 %v2136, %v2296
      %v2298 = vpop.f32.mrf.mxu0
      %2299 = vmatprep.mubr.bf16.mxu0 0
      %2300 = vmatmul.mubr.bf16.gmra.mxu0 %v1784
      %v2301 = vpop.f32.mrf.mxu0
      %v2302 = vadd.f32 %v2141, %v2301
      %v2303 = vpop.f32.mrf.mxu0
      %v2304 = vpop.f32.mrf.mxu0
      %v2305 = vadd.f32 %v2144, %v2304
      %v2306 = vpop.f32.mrf.mxu0
      %2307 = vmatprep.mubr.bf16.mxu0 0
      %2308 = vmatmul.mubr.bf16.gmra.mxu0 %v1787
      %v2309 = vpop.f32.mrf.mxu0
      %v2310 = vadd.f32 %v2149, %v2309
      %v2311 = vpop.f32.mrf.mxu0
      %v2312 = vpop.f32.mrf.mxu0
      %v2313 = vadd.f32 %v2152, %v2312
      %v2314 = vpop.f32.mrf.mxu0
      %2315 = vmatprep.mubr.bf16.mxu0 0
      %2316 = vmatmul.mubr.bf16.gmra.mxu0 %v1790
      %v2317 = vpop.f32.mrf.mxu0
      %v2318 = vadd.f32 %v2157, %v2317
      %v2319 = vpop.f32.mrf.mxu0
      %v2320 = vpop.f32.mrf.mxu0
      %v2321 = vadd.f32 %v2160, %v2320
      %v2322 = vpop.f32.mrf.mxu0
      %2323 = vmatprep.mubr.bf16.mxu0 0
      %2324 = vmatmul.mubr.bf16.gmra.mxu0 %v1793
      %v2325 = vpop.f32.mrf.mxu0
      %v2326 = vadd.f32 %v2165, %v2325
      %v2327 = vpop.f32.mrf.mxu0
      %v2328 = vpop.f32.mrf.mxu0
      %v2329 = vadd.f32 %v2168, %v2328
      %v2330 = vpop.f32.mrf.mxu0
      %2331 = vmatprep.mubr.bf16.mxu0 0
      %2332 = vmatmul.mubr.bf16.gmra.mxu0 %v1796
      %v2333 = vpop.f32.mrf.mxu0
      %v2334 = vadd.f32 %v2173, %v2333
      %v2335 = vpop.f32.mrf.mxu0
      %v2336 = vpop.f32.mrf.mxu0
      %v2337 = vadd.f32 %v2176, %v2336
      %v2338 = vpop.f32.mrf.mxu0
      %2339 = vmatprep.mubr.bf16.mxu0 0
      %2340 = vmatmul.mubr.bf16.gmra.mxu0 %v1799
      %v2341 = vpop.f32.mrf.mxu0
      %v2342 = vadd.f32 %v2181, %v2341
      %v2343 = vpop.f32.mrf.mxu0
      %v2344 = vpop.f32.mrf.mxu0
      %v2345 = vadd.f32 %v2184, %v2344
      %v2346 = vpop.f32.mrf.mxu0
      %2347 = vmatprep.mubr.bf16.mxu0 0
      %2348 = vmatmul.mubr.bf16.gmra.mxu0 %v1802
      %v2349 = vpop.f32.mrf.mxu0
      %v2350 = vadd.f32 %v2189, %v2349
      %v2351 = vpop.f32.mrf.mxu0
      %v2352 = vpop.f32.mrf.mxu0
      %v2353 = vadd.f32 %v2192, %v2352
      %v2354 = vpop.f32.mrf.mxu0
      %2355 = vmatprep.mubr.bf16.mxu0 0
      %2356 = vmatmul.mubr.bf16.gmra.mxu0 %v1805
      %v2357 = vpop.f32.mrf.mxu0
      %v2358 = vadd.f32 %v2197, %v2357
      %v2359 = vpop.f32.mrf.mxu0
      %v2360 = vpop.f32.mrf.mxu0
      %v2361 = vadd.f32 %v2200, %v2360
      %v2362 = vpop.f32.mrf.mxu0
      %2363 = vmatprep.mubr.bf16.mxu0 0
      %2364 = vmatmul.mubr.bf16.gmra.mxu0 %v1808
      %v2365 = vpop.f32.mrf.mxu0
      %v2366 = vadd.f32 %v2205, %v2365
      %v2367 = vpop.f32.mrf.mxu0
      %v2368 = vpop.f32.mrf.mxu0
      %v2369 = vadd.f32 %v2208, %v2368
      %v2370 = vpop.f32.mrf.mxu0
      %2371 = vdwg.mxu0
      %v2372 = vadd.f32 %v1825, %v2246
      %v2373 = vadd.f32 %v1826, %v2249
      %v2374 = vadd.f32 %v1827, %v2254
      %v2375 = vadd.f32 %v1828, %v2257
      %v2376 = vadd.f32 %v1829, %v2262
      %v2377 = vadd.f32 %v1830, %v2265
      %v2378 = vadd.f32 %v1831, %v2270
      %v2379 = vadd.f32 %v1832, %v2273
      %v2380 = vadd.f32 %v1833, %v2278
      %v2381 = vadd.f32 %v1834, %v2281
      %v2382 = vadd.f32 %v1835, %v2286
      %v2383 = vadd.f32 %v1836, %v2289
      %v2384 = vadd.f32 %v1837, %v2294
      %v2385 = vadd.f32 %v1838, %v2297
      %v2386 = vadd.f32 %v1839, %v2302
      %v2387 = vadd.f32 %v1840, %v2305
      %v2388 = vadd.f32 %v1841, %v2310
      %v2389 = vadd.f32 %v1842, %v2313
      %v2390 = vadd.f32 %v1843, %v2318
      %v2391 = vadd.f32 %v1844, %v2321
      %v2392 = vadd.f32 %v1845, %v2326
      %v2393 = vadd.f32 %v1846, %v2329
      %v2394 = vadd.f32 %v1847, %v2334
      %v2395 = vadd.f32 %v1848, %v2337
      %v2396 = vadd.f32 %v1849, %v2342
      %v2397 = vadd.f32 %v1850, %v2345
      %v2398 = vadd.f32 %v1851, %v2350
      %v2399 = vadd.f32 %v1852, %v2353
      %v2400 = vadd.f32 %v1853, %v2358
      %v2401 = vadd.f32 %v1854, %v2361
      %v2402 = vadd.f32 %v1855, %v2366
      %v2403 = vadd.f32 %v1856, %v2369
      %2404 = vst [vmem:[#allocation2] sm:$0xff] %v2372
      %2405 = vst [vmem:[#allocation2 + $0x8] sm:$0xff] %v2373
      %2406 = vst [vmem:[#allocation2 + $0x10] sm:$0xff] %v2374
      %2407 = vst [vmem:[#allocation2 + $0x18] sm:$0xff] %v2375
      %2408 = vst [vmem:[#allocation2 + $0x20] sm:$0xff] %v2376
      %2409 = vst [vmem:[#allocation2 + $0x28] sm:$0xff] %v2377
      %2410 = vst [vmem:[#allocation2 + $0x30] sm:$0xff] %v2378
      %2411 = vst [vmem:[#allocation2 + $0x38] sm:$0xff] %v2379
      %2412 = vst [vmem:[#allocation2 + $0x40] sm:$0xff] %v2380
      %2413 = vst [vmem:[#allocation2 + $0x48] sm:$0xff] %v2381
      %2414 = vst [vmem:[#allocation2 + $0x50] sm:$0xff] %v2382
      %2415 = vst [vmem:[#allocation2 + $0x58] sm:$0xff] %v2383
      %2416 = vst [vmem:[#allocation2 + $0x60] sm:$0xff] %v2384
      %2417 = vst [vmem:[#allocation2 + $0x68] sm:$0xff] %v2385
      %2418 = vst [vmem:[#allocation2 + $0x70] sm:$0xff] %v2386
      %2419 = vst [vmem:[#allocation2 + $0x78] sm:$0xff] %v2387
      %2420 = vst [vmem:[#allocation2 + $0x80] sm:$0xff] %v2388
      %2421 = vst [vmem:[#allocation2 + $0x88] sm:$0xff] %v2389
      %2422 = vst [vmem:[#allocation2 + $0x90] sm:$0xff] %v2390
      %2423 = vst [vmem:[#allocation2 + $0x98] sm:$0xff] %v2391
      %2424 = vst [vmem:[#allocation2 + $0xa0] sm:$0xff] %v2392
      %2425 = vst [vmem:[#allocation2 + $0xa8] sm:$0xff] %v2393
      %2426 = vst [vmem:[#allocation2 + $0xb0] sm:$0xff] %v2394
      %2427 = vst [vmem:[#allocation2 + $0xb8] sm:$0xff] %v2395
      %2428 = vst [vmem:[#allocation2 + $0xc0] sm:$0xff] %v2396
      %2429 = vst [vmem:[#allocation2 + $0xc8] sm:$0xff] %v2397
      %2430 = vst [vmem:[#allocation2 + $0xd0] sm:$0xff] %v2398
      %2431 = vst [vmem:[#allocation2 + $0xd8] sm:$0xff] %v2399
      %2432 = vst [vmem:[#allocation2 + $0xe0] sm:$0xff] %v2400
      %2433 = vst [vmem:[#allocation2 + $0xe8] sm:$0xff] %v2401
      %2434 = vst [vmem:[#allocation2 + $0xf0] sm:$0xff] %v2402
      %2435 = vst [vmem:[#allocation2 + $0xf8] sm:$0xff] %v2403
      %s2436 = sadd.s32 %s277, 2
      %s2437 = smul.u32 %s2436, 3
      %s2438 = smul.addr %s2437, 4
      %s2439 = scalar_lea.vmem %s217, %s2438
      %v2440 = vld [vmem:[%s2439] sm:$0xf]
      %v2441 = vld [vmem:[%s2439 + $0x4] sm:$0xf]
      %v2442 = vld [vmem:[%s2439 + $0x8] sm:$0x1]
      %v2443 = vld [vmem:[%s2439 + $0xc] sm:$0xf]
      %v2444 = vld [vmem:[%s2439 + $0x10] sm:$0xf]
      %v2445 = vld [vmem:[%s2439 + $0x14] sm:$0x1]
      %v2446 = vld [vmem:[%s2439 + $0x18] sm:$0xf]
      %v2447 = vld [vmem:[%s2439 + $0x1c] sm:$0xf]
      %v2448 = vld [vmem:[%s2439 + $0x20] sm:$0x1]
      %v2449 = vld [vmem:[%s2439 + $0x24] sm:$0xf]
      %v2450 = vld [vmem:[%s2439 + $0x28] sm:$0xf]
      %v2451 = vld [vmem:[%s2439 + $0x2c] sm:$0x1]
      %v2452 = vld [vmem:[%s2439 + $0x30] sm:$0xf]
      %v2453 = vld [vmem:[%s2439 + $0x34] sm:$0xf]
      %v2454 = vld [vmem:[%s2439 + $0x38] sm:$0x1]
      %v2455 = vld [vmem:[%s2439 + $0x3c] sm:$0xf]
      %v2456 = vld [vmem:[%s2439 + $0x40] sm:$0xf]
      %v2457 = vld [vmem:[%s2439 + $0x44] sm:$0x1]
      %v2458 = vld [vmem:[%s2439 + $0x48] sm:$0xf]
      %v2459 = vld [vmem:[%s2439 + $0x4c] sm:$0xf]
      %v2460 = vld [vmem:[%s2439 + $0x50] sm:$0x1]
      %v2461 = vld [vmem:[%s2439 + $0x54] sm:$0xf]
      %v2462 = vld [vmem:[%s2439 + $0x58] sm:$0xf]
      %v2463 = vld [vmem:[%s2439 + $0x5c] sm:$0x1]
      %v2464 = vld [vmem:[%s2439 + $0x60] sm:$0xf]
      %v2465 = vld [vmem:[%s2439 + $0x64] sm:$0xf]
      %v2466 = vld [vmem:[%s2439 + $0x68] sm:$0x1]
      %v2467 = vld [vmem:[%s2439 + $0x6c] sm:$0xf]
      %v2468 = vld [vmem:[%s2439 + $0x70] sm:$0xf]
      %v2469 = vld [vmem:[%s2439 + $0x74] sm:$0x1]
      %v2470 = vld [vmem:[%s2439 + $0x78] sm:$0xf]
      %v2471 = vld [vmem:[%s2439 + $0x7c] sm:$0xf]
      %v2472 = vld [vmem:[%s2439 + $0x80] sm:$0x1]
      %v2473 = vld [vmem:[%s2439 + $0x84] sm:$0xf]
      %v2474 = vld [vmem:[%s2439 + $0x88] sm:$0xf]
      %v2475 = vld [vmem:[%s2439 + $0x8c] sm:$0x1]
      %v2476 = vld [vmem:[%s2439 + $0x90] sm:$0xf]
      %v2477 = vld [vmem:[%s2439 + $0x94] sm:$0xf]
      %v2478 = vld [vmem:[%s2439 + $0x98] sm:$0x1]
      %v2479 = vld [vmem:[%s2439 + $0x9c] sm:$0xf]
      %v2480 = vld [vmem:[%s2439 + $0xa0] sm:$0xf]
      %v2481 = vld [vmem:[%s2439 + $0xa4] sm:$0x1]
      %v2482 = vld [vmem:[%s2439 + $0xa8] sm:$0xf]
      %v2483 = vld [vmem:[%s2439 + $0xac] sm:$0xf]
      %v2484 = vld [vmem:[%s2439 + $0xb0] sm:$0x1]
      %v2485 = vld [vmem:[%s2439 + $0xb4] sm:$0xf]
      %v2486 = vld [vmem:[%s2439 + $0xb8] sm:$0xf]
      %v2487 = vld [vmem:[%s2439 + $0xbc] sm:$0x1]
      %v2520 = vunpack.c.l.b16 %v2440
      %v2521 = vunpack.c.l.b16 %v2441
      %v2522 = vunpack.c.l.b16 %v2443
      %v2523 = vunpack.c.l.b16 %v2444
      %v2524 = vunpack.c.l.b16 %v2446
      %v2525 = vunpack.c.l.b16 %v2447
      %v2526 = vunpack.c.l.b16 %v2449
      %v2527 = vunpack.c.l.b16 %v2450
      %v2528 = vunpack.c.l.b16 %v2452
      %v2529 = vunpack.c.l.b16 %v2453
      %v2530 = vunpack.c.l.b16 %v2455
      %v2531 = vunpack.c.l.b16 %v2456
      %v2532 = vunpack.c.l.b16 %v2458
      %v2533 = vunpack.c.l.b16 %v2459
      %v2534 = vunpack.c.l.b16 %v2461
      %v2535 = vunpack.c.l.b16 %v2462
      %v2536 = vunpack.c.l.b16 %v2464
      %v2537 = vunpack.c.l.b16 %v2465
      %v2538 = vunpack.c.l.b16 %v2467
      %v2539 = vunpack.c.l.b16 %v2468
      %v2540 = vunpack.c.l.b16 %v2470
      %v2541 = vunpack.c.l.b16 %v2471
      %v2542 = vunpack.c.l.b16 %v2473
      %v2543 = vunpack.c.l.b16 %v2474
      %v2544 = vunpack.c.l.b16 %v2476
      %v2545 = vunpack.c.l.b16 %v2477
      %v2546 = vunpack.c.l.b16 %v2479
      %v2547 = vunpack.c.l.b16 %v2480
      %v2548 = vunpack.c.l.b16 %v2482
      %v2549 = vunpack.c.l.b16 %v2483
      %v2550 = vunpack.c.l.b16 %v2485
      %v2551 = vunpack.c.l.b16 %v2486
      %v2552 = vpack.c.b16 %v2521, %v2520
      %v2553 = vpack.c.b16 %v2523, %v2522
      %v2554 = vpack.c.b16 %v2525, %v2524
      %v2555 = vpack.c.b16 %v2527, %v2526
      %v2556 = vpack.c.b16 %v2529, %v2528
      %v2557 = vpack.c.b16 %v2531, %v2530
      %v2558 = vpack.c.b16 %v2533, %v2532
      %v2559 = vpack.c.b16 %v2535, %v2534
      %v2560 = vpack.c.b16 %v2537, %v2536
      %v2561 = vpack.c.b16 %v2539, %v2538
      %v2562 = vpack.c.b16 %v2541, %v2540
      %v2563 = vpack.c.b16 %v2543, %v2542
      %v2564 = vpack.c.b16 %v2545, %v2544
      %v2565 = vpack.c.b16 %v2547, %v2546
      %v2566 = vpack.c.b16 %v2549, %v2548
      %v2567 = vpack.c.b16 %v2551, %v2550
      %v2600 = vunpack.c.l.b16 %v2442
      %v2601 = vunpack.c.l.b16 %v2445
      %v2602 = vunpack.c.l.b16 %v2448
      %v2603 = vunpack.c.l.b16 %v2451
      %v2604 = vunpack.c.l.b16 %v2454
      %v2605 = vunpack.c.l.b16 %v2457
      %v2606 = vunpack.c.l.b16 %v2460
      %v2607 = vunpack.c.l.b16 %v2463
      %v2608 = vunpack.c.l.b16 %v2466
      %v2609 = vunpack.c.l.b16 %v2469
      %v2610 = vunpack.c.l.b16 %v2472
      %v2611 = vunpack.c.l.b16 %v2475
      %v2612 = vunpack.c.l.b16 %v2478
      %v2613 = vunpack.c.l.b16 %v2481
      %v2614 = vunpack.c.l.b16 %v2484
      %v2615 = vunpack.c.l.b16 %v2487
      %v2616 = vpack.c.b16 %v2600, %v2600
      %v2617 = vpack.c.b16 %v2601, %v2601
      %v2618 = vpack.c.b16 %v2602, %v2602
      %v2619 = vpack.c.b16 %v2603, %v2603
      %v2620 = vpack.c.b16 %v2604, %v2604
      %v2621 = vpack.c.b16 %v2605, %v2605
      %v2622 = vpack.c.b16 %v2606, %v2606
      %v2623 = vpack.c.b16 %v2607, %v2607
      %v2624 = vpack.c.b16 %v2608, %v2608
      %v2625 = vpack.c.b16 %v2609, %v2609
      %v2626 = vpack.c.b16 %v2610, %v2610
      %v2627 = vpack.c.b16 %v2611, %v2611
      %v2628 = vpack.c.b16 %v2612, %v2612
      %v2629 = vpack.c.b16 %v2613, %v2613
      %v2630 = vpack.c.b16 %v2614, %v2614
      %v2631 = vpack.c.b16 %v2615, %v2615
      %v2633 = vshrl.u32 %v2552, 16
      %v2635 = vshll.u32 %v2552, 16
      %v2637 = vrot.slane %v2635, 1
      %v2638 = vor.u32 %v2633, %v2637
      %v2640 = vshll.u32 %v2616, 16
      %v2642 = vrot.slane %v2640, 1
      %v2643 = vsel %vm473, %v2638, %v2642
      %v2645 = vshrl.u32 %v2553, 16
      %v2647 = vshll.u32 %v2553, 16
      %v2649 = vrot.slane %v2647, 1
      %v2650 = vor.u32 %v2645, %v2649
      %v2652 = vshll.u32 %v2617, 16
      %v2654 = vrot.slane %v2652, 1
      %v2655 = vsel %vm473, %v2650, %v2654
      %v2657 = vshrl.u32 %v2554, 16
      %v2659 = vshll.u32 %v2554, 16
      %v2661 = vrot.slane %v2659, 1
      %v2662 = vor.u32 %v2657, %v2661
      %v2664 = vshll.u32 %v2618, 16
      %v2666 = vrot.slane %v2664, 1
      %v2667 = vsel %vm473, %v2662, %v2666
      %v2669 = vshrl.u32 %v2555, 16
      %v2671 = vshll.u32 %v2555, 16
      %v2673 = vrot.slane %v2671, 1
      %v2674 = vor.u32 %v2669, %v2673
      %v2676 = vshll.u32 %v2619, 16
      %v2678 = vrot.slane %v2676, 1
      %v2679 = vsel %vm473, %v2674, %v2678
      %v2681 = vshrl.u32 %v2556, 16
      %v2683 = vshll.u32 %v2556, 16
      %v2685 = vrot.slane %v2683, 1
      %v2686 = vor.u32 %v2681, %v2685
      %v2688 = vshll.u32 %v2620, 16
      %v2690 = vrot.slane %v2688, 1
      %v2691 = vsel %vm473, %v2686, %v2690
      %v2693 = vshrl.u32 %v2557, 16
      %v2695 = vshll.u32 %v2557, 16
      %v2697 = vrot.slane %v2695, 1
      %v2698 = vor.u32 %v2693, %v2697
      %v2700 = vshll.u32 %v2621, 16
      %v2702 = vrot.slane %v2700, 1
      %v2703 = vsel %vm473, %v2698, %v2702
      %v2705 = vshrl.u32 %v2558, 16
      %v2707 = vshll.u32 %v2558, 16
      %v2709 = vrot.slane %v2707, 1
      %v2710 = vor.u32 %v2705, %v2709
      %v2712 = vshll.u32 %v2622, 16
      %v2714 = vrot.slane %v2712, 1
      %v2715 = vsel %vm473, %v2710, %v2714
      %v2717 = vshrl.u32 %v2559, 16
      %v2719 = vshll.u32 %v2559, 16
      %v2721 = vrot.slane %v2719, 1
      %v2722 = vor.u32 %v2717, %v2721
      %v2724 = vshll.u32 %v2623, 16
      %v2726 = vrot.slane %v2724, 1
      %v2727 = vsel %vm473, %v2722, %v2726
      %v2729 = vshrl.u32 %v2560, 16
      %v2731 = vshll.u32 %v2560, 16
      %v2733 = vrot.slane %v2731, 1
      %v2734 = vor.u32 %v2729, %v2733
      %v2736 = vshll.u32 %v2624, 16
      %v2738 = vrot.slane %v2736, 1
      %v2739 = vsel %vm473, %v2734, %v2738
      %v2741 = vshrl.u32 %v2561, 16
      %v2743 = vshll.u32 %v2561, 16
      %v2745 = vrot.slane %v2743, 1
      %v2746 = vor.u32 %v2741, %v2745
      %v2748 = vshll.u32 %v2625, 16
      %v2750 = vrot.slane %v2748, 1
      %v2751 = vsel %vm473, %v2746, %v2750
      %v2753 = vshrl.u32 %v2562, 16
      %v2755 = vshll.u32 %v2562, 16
      %v2757 = vrot.slane %v2755, 1
      %v2758 = vor.u32 %v2753, %v2757
      %v2760 = vshll.u32 %v2626, 16
      %v2762 = vrot.slane %v2760, 1
      %v2763 = vsel %vm473, %v2758, %v2762
      %v2765 = vshrl.u32 %v2563, 16
      %v2767 = vshll.u32 %v2563, 16
      %v2769 = vrot.slane %v2767, 1
      %v2770 = vor.u32 %v2765, %v2769
      %v2772 = vshll.u32 %v2627, 16
      %v2774 = vrot.slane %v2772, 1
      %v2775 = vsel %vm473, %v2770, %v2774
      %v2777 = vshrl.u32 %v2564, 16
      %v2779 = vshll.u32 %v2564, 16
      %v2781 = vrot.slane %v2779, 1
      %v2782 = vor.u32 %v2777, %v2781
      %v2784 = vshll.u32 %v2628, 16
      %v2786 = vrot.slane %v2784, 1
      %v2787 = vsel %vm473, %v2782, %v2786
      %v2789 = vshrl.u32 %v2565, 16
      %v2791 = vshll.u32 %v2565, 16
      %v2793 = vrot.slane %v2791, 1
      %v2794 = vor.u32 %v2789, %v2793
      %v2796 = vshll.u32 %v2629, 16
      %v2798 = vrot.slane %v2796, 1
      %v2799 = vsel %vm473, %v2794, %v2798
      %v2801 = vshrl.u32 %v2566, 16
      %v2803 = vshll.u32 %v2566, 16
      %v2805 = vrot.slane %v2803, 1
      %v2806 = vor.u32 %v2801, %v2805
      %v2808 = vshll.u32 %v2630, 16
      %v2810 = vrot.slane %v2808, 1
      %v2811 = vsel %vm473, %v2806, %v2810
      %v2813 = vshrl.u32 %v2567, 16
      %v2815 = vshll.u32 %v2567, 16
      %v2817 = vrot.slane %v2815, 1
      %v2818 = vor.u32 %v2813, %v2817
      %v2820 = vshll.u32 %v2631, 16
      %v2822 = vrot.slane %v2820, 1
      %v2823 = vsel %vm473, %v2818, %v2822
      %v2840 = vrot.slane %v2552, 1
      %v2841 = vrot.slane %v2616, 1
      %v2842 = vsel %vm682, %v2840, %v2841
      %v2843 = vrot.slane %v2553, 1
      %v2844 = vrot.slane %v2617, 1
      %v2845 = vsel %vm682, %v2843, %v2844
      %v2846 = vrot.slane %v2554, 1
      %v2847 = vrot.slane %v2618, 1
      %v2848 = vsel %vm682, %v2846, %v2847
      %v2849 = vrot.slane %v2555, 1
      %v2850 = vrot.slane %v2619, 1
      %v2851 = vsel %vm682, %v2849, %v2850
      %v2852 = vrot.slane %v2556, 1
      %v2853 = vrot.slane %v2620, 1
      %v2854 = vsel %vm682, %v2852, %v2853
      %v2855 = vrot.slane %v2557, 1
      %v2856 = vrot.slane %v2621, 1
      %v2857 = vsel %vm682, %v2855, %v2856
      %v2858 = vrot.slane %v2558, 1
      %v2859 = vrot.slane %v2622, 1
      %v2860 = vsel %vm682, %v2858, %v2859
      %v2861 = vrot.slane %v2559, 1
      %v2862 = vrot.slane %v2623, 1
      %v2863 = vsel %vm682, %v2861, %v2862
      %v2864 = vrot.slane %v2560, 1
      %v2865 = vrot.slane %v2624, 1
      %v2866 = vsel %vm682, %v2864, %v2865
      %v2867 = vrot.slane %v2561, 1
      %v2868 = vrot.slane %v2625, 1
      %v2869 = vsel %vm682, %v2867, %v2868
      %v2870 = vrot.slane %v2562, 1
      %v2871 = vrot.slane %v2626, 1
      %v2872 = vsel %vm682, %v2870, %v2871
      %v2873 = vrot.slane %v2563, 1
      %v2874 = vrot.slane %v2627, 1
      %v2875 = vsel %vm682, %v2873, %v2874
      %v2876 = vrot.slane %v2564, 1
      %v2877 = vrot.slane %v2628, 1
      %v2878 = vsel %vm682, %v2876, %v2877
      %v2879 = vrot.slane %v2565, 1
      %v2880 = vrot.slane %v2629, 1
      %v2881 = vsel %vm682, %v2879, %v2880
      %v2882 = vrot.slane %v2566, 1
      %v2883 = vrot.slane %v2630, 1
      %v2884 = vsel %vm682, %v2882, %v2883
      %v2885 = vrot.slane %v2567, 1
      %v2886 = vrot.slane %v2631, 1
      %v2887 = vsel %vm682, %v2885, %v2886
      %v2904 = vld [vmem:[#allocation2] sm:$0xff]
      %v2905 = vld [vmem:[#allocation2 + $0x8] sm:$0xff]
      %v2906 = vld [vmem:[#allocation2 + $0x10] sm:$0xff]
      %v2907 = vld [vmem:[#allocation2 + $0x18] sm:$0xff]
      %v2908 = vld [vmem:[#allocation2 + $0x20] sm:$0xff]
      %v2909 = vld [vmem:[#allocation2 + $0x28] sm:$0xff]
      %v2910 = vld [vmem:[#allocation2 + $0x30] sm:$0xff]
      %v2911 = vld [vmem:[#allocation2 + $0x38] sm:$0xff]
      %v2912 = vld [vmem:[#allocation2 + $0x40] sm:$0xff]
      %v2913 = vld [vmem:[#allocation2 + $0x48] sm:$0xff]
      %v2914 = vld [vmem:[#allocation2 + $0x50] sm:$0xff]
      %v2915 = vld [vmem:[#allocation2 + $0x58] sm:$0xff]
      %v2916 = vld [vmem:[#allocation2 + $0x60] sm:$0xff]
      %v2917 = vld [vmem:[#allocation2 + $0x68] sm:$0xff]
      %v2918 = vld [vmem:[#allocation2 + $0x70] sm:$0xff]
      %v2919 = vld [vmem:[#allocation2 + $0x78] sm:$0xff]
      %v2920 = vld [vmem:[#allocation2 + $0x80] sm:$0xff]
      %v2921 = vld [vmem:[#allocation2 + $0x88] sm:$0xff]
      %v2922 = vld [vmem:[#allocation2 + $0x90] sm:$0xff]
      %v2923 = vld [vmem:[#allocation2 + $0x98] sm:$0xff]
      %v2924 = vld [vmem:[#allocation2 + $0xa0] sm:$0xff]
      %v2925 = vld [vmem:[#allocation2 + $0xa8] sm:$0xff]
      %v2926 = vld [vmem:[#allocation2 + $0xb0] sm:$0xff]
      %v2927 = vld [vmem:[#allocation2 + $0xb8] sm:$0xff]
      %v2928 = vld [vmem:[#allocation2 + $0xc0] sm:$0xff]
      %v2929 = vld [vmem:[#allocation2 + $0xc8] sm:$0xff]
      %v2930 = vld [vmem:[#allocation2 + $0xd0] sm:$0xff]
      %v2931 = vld [vmem:[#allocation2 + $0xd8] sm:$0xff]
      %v2932 = vld [vmem:[#allocation2 + $0xe0] sm:$0xff]
      %v2933 = vld [vmem:[#allocation2 + $0xe8] sm:$0xff]
      %v2934 = vld [vmem:[#allocation2 + $0xf0] sm:$0xff]
      %v2935 = vld [vmem:[#allocation2 + $0xf8] sm:$0xff]
      %s2936 = scalar_lea.vmem %s1, 384
      %v2937 = vld [vmem:[%s2936] sm:$0xf]
      %v2938 = vld [vmem:[%s2936 + $0x4] sm:$0xf]
      %v2939 = vld [vmem:[%s2936 + $0x8] sm:$0xf]
      %v2940 = vld [vmem:[%s2936 + $0xc] sm:$0xf]
      %v2941 = vld [vmem:[%s2936 + $0x10] sm:$0xf]
      %v2942 = vld [vmem:[%s2936 + $0x14] sm:$0xf]
      %v2943 = vld [vmem:[%s2936 + $0x18] sm:$0xf]
      %v2944 = vld [vmem:[%s2936 + $0x1c] sm:$0xf]
      %v2945 = vld [vmem:[%s2936 + $0x20] sm:$0xf]
      %v2946 = vld [vmem:[%s2936 + $0x24] sm:$0xf]
      %v2947 = vld [vmem:[%s2936 + $0x28] sm:$0xf]
      %v2948 = vld [vmem:[%s2936 + $0x2c] sm:$0xf]
      %v2949 = vld [vmem:[%s2936 + $0x30] sm:$0xf]
      %v2950 = vld [vmem:[%s2936 + $0x34] sm:$0xf]
      %v2951 = vld [vmem:[%s2936 + $0x38] sm:$0xf]
      %v2952 = vld [vmem:[%s2936 + $0x3c] sm:$0xf]
      %v2953 = vld [vmem:[%s2936 + $0x40] sm:$0xf]
      %v2954 = vld [vmem:[%s2936 + $0x44] sm:$0xf]
      %v2955 = vld [vmem:[%s2936 + $0x48] sm:$0xf]
      %v2956 = vld [vmem:[%s2936 + $0x4c] sm:$0xf]
      %v2957 = vld [vmem:[%s2936 + $0x50] sm:$0xf]
      %v2958 = vld [vmem:[%s2936 + $0x54] sm:$0xf]
      %v2959 = vld [vmem:[%s2936 + $0x58] sm:$0xf]
      %v2960 = vld [vmem:[%s2936 + $0x5c] sm:$0xf]
      %v2961 = vld [vmem:[%s2936 + $0x60] sm:$0xf]
      %v2962 = vld [vmem:[%s2936 + $0x64] sm:$0xf]
      %v2963 = vld [vmem:[%s2936 + $0x68] sm:$0xf]
      %v2964 = vld [vmem:[%s2936 + $0x6c] sm:$0xf]
      %v2965 = vld [vmem:[%s2936 + $0x70] sm:$0xf]
      %v2966 = vld [vmem:[%s2936 + $0x74] sm:$0xf]
      %v2967 = vld [vmem:[%s2936 + $0x78] sm:$0xf]
      %v2968 = vld [vmem:[%s2936 + $0x7c] sm:$0xf]
      %v2969 = vld [vmem:[%s2936 + $0x80] sm:$0xf]
      %v2970 = vld [vmem:[%s2936 + $0x84] sm:$0xf]
      %v2971 = vld [vmem:[%s2936 + $0x88] sm:$0xf]
      %v2972 = vld [vmem:[%s2936 + $0x8c] sm:$0xf]
      %v2973 = vld [vmem:[%s2936 + $0x90] sm:$0xf]
      %v2974 = vld [vmem:[%s2936 + $0x94] sm:$0xf]
      %v2975 = vld [vmem:[%s2936 + $0x98] sm:$0xf]
      %v2976 = vld [vmem:[%s2936 + $0x9c] sm:$0xf]
      %v2977 = vld [vmem:[%s2936 + $0xa0] sm:$0xf]
      %v2978 = vld [vmem:[%s2936 + $0xa4] sm:$0xf]
      %v2979 = vld [vmem:[%s2936 + $0xa8] sm:$0xf]
      %v2980 = vld [vmem:[%s2936 + $0xac] sm:$0xf]
      %v2981 = vld [vmem:[%s2936 + $0xb0] sm:$0xf]
      %v2982 = vld [vmem:[%s2936 + $0xb4] sm:$0xf]
      %v2983 = vld [vmem:[%s2936 + $0xb8] sm:$0xf]
      %v2984 = vld [vmem:[%s2936 + $0xbc] sm:$0xf]
      %v3033 = vunpack.c.l.b16 %v2937
      %v3034 = vunpack.c.l.b16 %v2938
      %v3035 = vunpack.c.l.b16 %v2939
      %v3036 = vunpack.c.l.b16 %v2940
      %v3037 = vunpack.c.l.b16 %v2941
      %v3038 = vunpack.c.l.b16 %v2942
      %v3039 = vunpack.c.l.b16 %v2943
      %v3040 = vunpack.c.l.b16 %v2944
      %v3041 = vunpack.c.l.b16 %v2945
      %v3042 = vunpack.c.l.b16 %v2946
      %v3043 = vunpack.c.l.b16 %v2947
      %v3044 = vunpack.c.l.b16 %v2948
      %v3045 = vunpack.c.l.b16 %v2949
      %v3046 = vunpack.c.l.b16 %v2950
      %v3047 = vunpack.c.l.b16 %v2951
      %v3048 = vunpack.c.l.b16 %v2952
      %v3049 = vunpack.c.l.b16 %v2953
      %v3050 = vunpack.c.l.b16 %v2954
      %v3051 = vunpack.c.l.b16 %v2955
      %v3052 = vunpack.c.l.b16 %v2956
      %v3053 = vunpack.c.l.b16 %v2957
      %v3054 = vunpack.c.l.b16 %v2958
      %v3055 = vunpack.c.l.b16 %v2959
      %v3056 = vunpack.c.l.b16 %v2960
      %v3057 = vunpack.c.l.b16 %v2961
      %v3058 = vunpack.c.l.b16 %v2962
      %v3059 = vunpack.c.l.b16 %v2963
      %v3060 = vunpack.c.l.b16 %v2964
      %v3061 = vunpack.c.l.b16 %v2965
      %v3062 = vunpack.c.l.b16 %v2966
      %v3063 = vunpack.c.l.b16 %v2967
      %v3064 = vunpack.c.l.b16 %v2968
      %v3065 = vunpack.c.l.b16 %v2969
      %v3066 = vunpack.c.l.b16 %v2970
      %v3067 = vunpack.c.l.b16 %v2971
      %v3068 = vunpack.c.l.b16 %v2972
      %v3069 = vunpack.c.l.b16 %v2973
      %v3070 = vunpack.c.l.b16 %v2974
      %v3071 = vunpack.c.l.b16 %v2975
      %v3072 = vunpack.c.l.b16 %v2976
      %v3073 = vunpack.c.l.b16 %v2977
      %v3074 = vunpack.c.l.b16 %v2978
      %v3075 = vunpack.c.l.b16 %v2979
      %v3076 = vunpack.c.l.b16 %v2980
      %v3077 = vunpack.c.l.b16 %v2981
      %v3078 = vunpack.c.l.b16 %v2982
      %v3079 = vunpack.c.l.b16 %v2983
      %v3080 = vunpack.c.l.b16 %v2984
      %v3081 = vpack.c.b16 %v3034, %v3033
      %v3082 = vpack.c.b16 %v3036, %v3035
      %v3083 = vpack.c.b16 %v3038, %v3037
      %v3084 = vpack.c.b16 %v3040, %v3039
      %v3085 = vpack.c.b16 %v3042, %v3041
      %v3086 = vpack.c.b16 %v3044, %v3043
      %v3087 = vpack.c.b16 %v3046, %v3045
      %v3088 = vpack.c.b16 %v3048, %v3047
      %v3089 = vpack.c.b16 %v3050, %v3049
      %v3090 = vpack.c.b16 %v3052, %v3051
      %v3091 = vpack.c.b16 %v3054, %v3053
      %v3092 = vpack.c.b16 %v3056, %v3055
      %v3093 = vpack.c.b16 %v3058, %v3057
      %v3094 = vpack.c.b16 %v3060, %v3059
      %v3095 = vpack.c.b16 %v3062, %v3061
      %v3096 = vpack.c.b16 %v3064, %v3063
      %v3097 = vpack.c.b16 %v3066, %v3065
      %v3098 = vpack.c.b16 %v3068, %v3067
      %v3099 = vpack.c.b16 %v3070, %v3069
      %v3100 = vpack.c.b16 %v3072, %v3071
      %v3101 = vpack.c.b16 %v3074, %v3073
      %v3102 = vpack.c.b16 %v3076, %v3075
      %v3103 = vpack.c.b16 %v3078, %v3077
      %v3104 = vpack.c.b16 %v3080, %v3079
      %3129 = vmatprep.subr.bf16.mxu0 0
      %3130 = vmatpush1.bf16.msra.mxu0 %v3088
      %3131 = vmatprep.subr.bf16.mxu0 0
      %3132 = vmatpush1.bf16.msra.mxu0 %v3087
      %3133 = vmatprep.subr.bf16.mxu0 0
      %3134 = vmatpush1.bf16.msra.mxu0 %v3086
      %3135 = vmatprep.subr.bf16.mxu0 0
      %3136 = vmatpush1.bf16.msra.mxu0 %v3085
      %3137 = vmatprep.subr.bf16.mxu0 0
      %3138 = vmatpush1.bf16.msra.mxu0 %v3084
      %3139 = vmatprep.subr.bf16.mxu0 0
      %3140 = vmatpush1.bf16.msra.mxu0 %v3083
      %3141 = vmatprep.subr.bf16.mxu0 0
      %3142 = vmatpush1.bf16.msra.mxu0 %v3082
      %3143 = vmatprep.subr.bf16.mxu0 0
      %3144 = vmatpush1.bf16.msra.mxu0 %v3081
      %3145 = vmatprep.subr.bf16.mxu0 0
      %3146 = vmatpush2.bf16.msra.mxu0 %v3096
      %3147 = vmatprep.subr.bf16.mxu0 0
      %3148 = vmatpush2.bf16.msra.mxu0 %v3095
      %3149 = vmatprep.subr.bf16.mxu0 0
      %3150 = vmatpush2.bf16.msra.mxu0 %v3094
      %3151 = vmatprep.subr.bf16.mxu0 0
      %3152 = vmatpush2.bf16.msra.mxu0 %v3093
      %3153 = vmatprep.subr.bf16.mxu0 0
      %3154 = vmatpush2.bf16.msra.mxu0 %v3092
      %3155 = vmatprep.subr.bf16.mxu0 0
      %3156 = vmatpush2.bf16.msra.mxu0 %v3091
      %3157 = vmatprep.subr.bf16.mxu0 0
      %3158 = vmatpush2.bf16.msra.mxu0 %v3090
      %3159 = vmatprep.subr.bf16.mxu0 0
      %3160 = vmatpush2.bf16.msra.mxu0 %v3089
      %3161 = vmatprep.mubr.bf16.mxu0 %v2643
      %3162 = vmatmul.mubr.bf16.gmra.mxu0 %v2552
      %v3163 = vpop.f32.mrf.mxu0
      %v3164 = vadd.f32 0.0, %v3163
      %v3165 = vpop.f32.mrf.mxu0
      %v3166 = vpop.f32.mrf.mxu0
      %v3167 = vadd.f32 0.0, %v3166
      %v3168 = vpop.f32.mrf.mxu0
      %3169 = vmatprep.mubr.bf16.mxu0 %v2655
      %3170 = vmatmul.mubr.bf16.gmra.mxu0 %v2553
      %v3171 = vpop.f32.mrf.mxu0
      %v3172 = vadd.f32 0.0, %v3171
      %v3173 = vpop.f32.mrf.mxu0
      %v3174 = vpop.f32.mrf.mxu0
      %v3175 = vadd.f32 0.0, %v3174
      %v3176 = vpop.f32.mrf.mxu0
      %3177 = vmatprep.mubr.bf16.mxu0 %v2667
      %3178 = vmatmul.mubr.bf16.gmra.mxu0 %v2554
      %v3179 = vpop.f32.mrf.mxu0
      %v3180 = vadd.f32 0.0, %v3179
      %v3181 = vpop.f32.mrf.mxu0
      %v3182 = vpop.f32.mrf.mxu0
      %v3183 = vadd.f32 0.0, %v3182
      %v3184 = vpop.f32.mrf.mxu0
      %3185 = vmatprep.mubr.bf16.mxu0 %v2679
      %3186 = vmatmul.mubr.bf16.gmra.mxu0 %v2555
      %v3187 = vpop.f32.mrf.mxu0
      %v3188 = vadd.f32 0.0, %v3187
      %v3189 = vpop.f32.mrf.mxu0
      %v3190 = vpop.f32.mrf.mxu0
      %v3191 = vadd.f32 0.0, %v3190
      %v3192 = vpop.f32.mrf.mxu0
      %3193 = vmatprep.mubr.bf16.mxu0 %v2691
      %3194 = vmatmul.mubr.bf16.gmra.mxu0 %v2556
      %v3195 = vpop.f32.mrf.mxu0
      %v3196 = vadd.f32 0.0, %v3195
      %v3197 = vpop.f32.mrf.mxu0
      %v3198 = vpop.f32.mrf.mxu0
      %v3199 = vadd.f32 0.0, %v3198
      %v3200 = vpop.f32.mrf.mxu0
      %3201 = vmatprep.mubr.bf16.mxu0 %v2703
      %3202 = vmatmul.mubr.bf16.gmra.mxu0 %v2557
      %v3203 = vpop.f32.mrf.mxu0
      %v3204 = vadd.f32 0.0, %v3203
      %v3205 = vpop.f32.mrf.mxu0
      %v3206 = vpop.f32.mrf.mxu0
      %v3207 = vadd.f32 0.0, %v3206
      %v3208 = vpop.f32.mrf.mxu0
      %3209 = vmatprep.mubr.bf16.mxu0 %v2715
      %3210 = vmatmul.mubr.bf16.gmra.mxu0 %v2558
      %v3211 = vpop.f32.mrf.mxu0
      %v3212 = vadd.f32 0.0, %v3211
      %v3213 = vpop.f32.mrf.mxu0
      %v3214 = vpop.f32.mrf.mxu0
      %v3215 = vadd.f32 0.0, %v3214
      %v3216 = vpop.f32.mrf.mxu0
      %3217 = vmatprep.mubr.bf16.mxu0 %v2727
      %3218 = vmatmul.mubr.bf16.gmra.mxu0 %v2559
      %v3219 = vpop.f32.mrf.mxu0
      %v3220 = vadd.f32 0.0, %v3219
      %v3221 = vpop.f32.mrf.mxu0
      %v3222 = vpop.f32.mrf.mxu0
      %v3223 = vadd.f32 0.0, %v3222
      %v3224 = vpop.f32.mrf.mxu0
      %3225 = vmatprep.mubr.bf16.mxu0 %v2739
      %3226 = vmatmul.mubr.bf16.gmra.mxu0 %v2560
      %v3227 = vpop.f32.mrf.mxu0
      %v3228 = vadd.f32 0.0, %v3227
      %v3229 = vpop.f32.mrf.mxu0
      %v3230 = vpop.f32.mrf.mxu0
      %v3231 = vadd.f32 0.0, %v3230
      %v3232 = vpop.f32.mrf.mxu0
      %3233 = vmatprep.mubr.bf16.mxu0 %v2751
      %3234 = vmatmul.mubr.bf16.gmra.mxu0 %v2561
      %v3235 = vpop.f32.mrf.mxu0
      %v3236 = vadd.f32 0.0, %v3235
      %v3237 = vpop.f32.mrf.mxu0
      %v3238 = vpop.f32.mrf.mxu0
      %v3239 = vadd.f32 0.0, %v3238
      %v3240 = vpop.f32.mrf.mxu0
      %3241 = vmatprep.mubr.bf16.mxu0 %v2763
      %3242 = vmatmul.mubr.bf16.gmra.mxu0 %v2562
      %v3243 = vpop.f32.mrf.mxu0
      %v3244 = vadd.f32 0.0, %v3243
      %v3245 = vpop.f32.mrf.mxu0
      %v3246 = vpop.f32.mrf.mxu0
      %v3247 = vadd.f32 0.0, %v3246
      %v3248 = vpop.f32.mrf.mxu0
      %3249 = vmatprep.mubr.bf16.mxu0 %v2775
      %3250 = vmatmul.mubr.bf16.gmra.mxu0 %v2563
      %v3251 = vpop.f32.mrf.mxu0
      %v3252 = vadd.f32 0.0, %v3251
      %v3253 = vpop.f32.mrf.mxu0
      %v3254 = vpop.f32.mrf.mxu0
      %v3255 = vadd.f32 0.0, %v3254
      %v3256 = vpop.f32.mrf.mxu0
      %3257 = vmatprep.mubr.bf16.mxu0 %v2787
      %3258 = vmatmul.mubr.bf16.gmra.mxu0 %v2564
      %v3259 = vpop.f32.mrf.mxu0
      %v3260 = vadd.f32 0.0, %v3259
      %v3261 = vpop.f32.mrf.mxu0
      %v3262 = vpop.f32.mrf.mxu0
      %v3263 = vadd.f32 0.0, %v3262
      %v3264 = vpop.f32.mrf.mxu0
      %3265 = vmatprep.mubr.bf16.mxu0 %v2799
      %3266 = vmatmul.mubr.bf16.gmra.mxu0 %v2565
      %v3267 = vpop.f32.mrf.mxu0
      %v3268 = vadd.f32 0.0, %v3267
      %v3269 = vpop.f32.mrf.mxu0
      %v3270 = vpop.f32.mrf.mxu0
      %v3271 = vadd.f32 0.0, %v3270
      %v3272 = vpop.f32.mrf.mxu0
      %3273 = vmatprep.mubr.bf16.mxu0 %v2811
      %3274 = vmatmul.mubr.bf16.gmra.mxu0 %v2566
      %v3275 = vpop.f32.mrf.mxu0
      %v3276 = vadd.f32 0.0, %v3275
      %v3277 = vpop.f32.mrf.mxu0
      %v3278 = vpop.f32.mrf.mxu0
      %v3279 = vadd.f32 0.0, %v3278
      %v3280 = vpop.f32.mrf.mxu0
      %3281 = vmatprep.mubr.bf16.mxu0 %v2823
      %3282 = vmatmul.mubr.bf16.gmra.mxu0 %v2567
      %v3283 = vpop.f32.mrf.mxu0
      %v3284 = vadd.f32 0.0, %v3283
      %v3285 = vpop.f32.mrf.mxu0
      %v3286 = vpop.f32.mrf.mxu0
      %v3287 = vadd.f32 0.0, %v3286
      %v3288 = vpop.f32.mrf.mxu0
      %3289 = vdwg.mxu0
      %3290 = vmatprep.subr.bf16.mxu0 0
      %3291 = vmatpush1.bf16.msra.mxu0 %v3104
      %3292 = vmatprep.subr.bf16.mxu0 0
      %3293 = vmatpush1.bf16.msra.mxu0 %v3103
      %3294 = vmatprep.subr.bf16.mxu0 0
      %3295 = vmatpush1.bf16.msra.mxu0 %v3102
      %3296 = vmatprep.subr.bf16.mxu0 0
      %3297 = vmatpush1.bf16.msra.mxu0 %v3101
      %3298 = vmatprep.subr.bf16.mxu0 0
      %3299 = vmatpush1.bf16.msra.mxu0 %v3100
      %3300 = vmatprep.subr.bf16.mxu0 0
      %3301 = vmatpush1.bf16.msra.mxu0 %v3099
      %3302 = vmatprep.subr.bf16.mxu0 0
      %3303 = vmatpush1.bf16.msra.mxu0 %v3098
      %3304 = vmatprep.subr.bf16.mxu0 0
      %3305 = vmatpush1.bf16.msra.mxu0 %v3097
      %3306 = vmatprep.subr.bf16.mxu0 0
      %3307 = vmatpush2.bf16.msra.mxu0 0
      %3308 = vmatprep.subr.bf16.mxu0 0
      %3309 = vmatpush2.bf16.msra.mxu0 0
      %3310 = vmatprep.subr.bf16.mxu0 0
      %3311 = vmatpush2.bf16.msra.mxu0 0
      %3312 = vmatprep.subr.bf16.mxu0 0
      %3313 = vmatpush2.bf16.msra.mxu0 0
      %3314 = vmatprep.subr.bf16.mxu0 0
      %3315 = vmatpush2.bf16.msra.mxu0 0
      %3316 = vmatprep.subr.bf16.mxu0 0
      %3317 = vmatpush2.bf16.msra.mxu0 0
      %3318 = vmatprep.subr.bf16.mxu0 0
      %3319 = vmatpush2.bf16.msra.mxu0 0
      %3320 = vmatprep.subr.bf16.mxu0 0
      %3321 = vmatpush2.bf16.msra.mxu0 0
      %3322 = vmatprep.mubr.bf16.mxu0 0
      %3323 = vmatmul.mubr.bf16.gmra.mxu0 %v2842
      %v3324 = vpop.f32.mrf.mxu0
      %v3325 = vadd.f32 %v3164, %v3324
      %v3326 = vpop.f32.mrf.mxu0
      %v3327 = vpop.f32.mrf.mxu0
      %v3328 = vadd.f32 %v3167, %v3327
      %v3329 = vpop.f32.mrf.mxu0
      %3330 = vmatprep.mubr.bf16.mxu0 0
      %3331 = vmatmul.mubr.bf16.gmra.mxu0 %v2845
      %v3332 = vpop.f32.mrf.mxu0
      %v3333 = vadd.f32 %v3172, %v3332
      %v3334 = vpop.f32.mrf.mxu0
      %v3335 = vpop.f32.mrf.mxu0
      %v3336 = vadd.f32 %v3175, %v3335
      %v3337 = vpop.f32.mrf.mxu0
      %3338 = vmatprep.mubr.bf16.mxu0 0
      %3339 = vmatmul.mubr.bf16.gmra.mxu0 %v2848
      %v3340 = vpop.f32.mrf.mxu0
      %v3341 = vadd.f32 %v3180, %v3340
      %v3342 = vpop.f32.mrf.mxu0
      %v3343 = vpop.f32.mrf.mxu0
      %v3344 = vadd.f32 %v3183, %v3343
      %v3345 = vpop.f32.mrf.mxu0
      %3346 = vmatprep.mubr.bf16.mxu0 0
      %3347 = vmatmul.mubr.bf16.gmra.mxu0 %v2851
      %v3348 = vpop.f32.mrf.mxu0
      %v3349 = vadd.f32 %v3188, %v3348
      %v3350 = vpop.f32.mrf.mxu0
      %v3351 = vpop.f32.mrf.mxu0
      %v3352 = vadd.f32 %v3191, %v3351
      %v3353 = vpop.f32.mrf.mxu0
      %3354 = vmatprep.mubr.bf16.mxu0 0
      %3355 = vmatmul.mubr.bf16.gmra.mxu0 %v2854
      %v3356 = vpop.f32.mrf.mxu0
      %v3357 = vadd.f32 %v3196, %v3356
      %v3358 = vpop.f32.mrf.mxu0
      %v3359 = vpop.f32.mrf.mxu0
      %v3360 = vadd.f32 %v3199, %v3359
      %v3361 = vpop.f32.mrf.mxu0
      %3362 = vmatprep.mubr.bf16.mxu0 0
      %3363 = vmatmul.mubr.bf16.gmra.mxu0 %v2857
      %v3364 = vpop.f32.mrf.mxu0
      %v3365 = vadd.f32 %v3204, %v3364
      %v3366 = vpop.f32.mrf.mxu0
      %v3367 = vpop.f32.mrf.mxu0
      %v3368 = vadd.f32 %v3207, %v3367
      %v3369 = vpop.f32.mrf.mxu0
      %3370 = vmatprep.mubr.bf16.mxu0 0
      %3371 = vmatmul.mubr.bf16.gmra.mxu0 %v2860
      %v3372 = vpop.f32.mrf.mxu0
      %v3373 = vadd.f32 %v3212, %v3372
      %v3374 = vpop.f32.mrf.mxu0
      %v3375 = vpop.f32.mrf.mxu0
      %v3376 = vadd.f32 %v3215, %v3375
      %v3377 = vpop.f32.mrf.mxu0
      %3378 = vmatprep.mubr.bf16.mxu0 0
      %3379 = vmatmul.mubr.bf16.gmra.mxu0 %v2863
      %v3380 = vpop.f32.mrf.mxu0
      %v3381 = vadd.f32 %v3220, %v3380
      %v3382 = vpop.f32.mrf.mxu0
      %v3383 = vpop.f32.mrf.mxu0
      %v3384 = vadd.f32 %v3223, %v3383
      %v3385 = vpop.f32.mrf.mxu0
      %3386 = vmatprep.mubr.bf16.mxu0 0
      %3387 = vmatmul.mubr.bf16.gmra.mxu0 %v2866
      %v3388 = vpop.f32.mrf.mxu0
      %v3389 = vadd.f32 %v3228, %v3388
      %v3390 = vpop.f32.mrf.mxu0
      %v3391 = vpop.f32.mrf.mxu0
      %v3392 = vadd.f32 %v3231, %v3391
      %v3393 = vpop.f32.mrf.mxu0
      %3394 = vmatprep.mubr.bf16.mxu0 0
      %3395 = vmatmul.mubr.bf16.gmra.mxu0 %v2869
      %v3396 = vpop.f32.mrf.mxu0
      %v3397 = vadd.f32 %v3236, %v3396
      %v3398 = vpop.f32.mrf.mxu0
      %v3399 = vpop.f32.mrf.mxu0
      %v3400 = vadd.f32 %v3239, %v3399
      %v3401 = vpop.f32.mrf.mxu0
      %3402 = vmatprep.mubr.bf16.mxu0 0
      %3403 = vmatmul.mubr.bf16.gmra.mxu0 %v2872
      %v3404 = vpop.f32.mrf.mxu0
      %v3405 = vadd.f32 %v3244, %v3404
      %v3406 = vpop.f32.mrf.mxu0
      %v3407 = vpop.f32.mrf.mxu0
      %v3408 = vadd.f32 %v3247, %v3407
      %v3409 = vpop.f32.mrf.mxu0
      %3410 = vmatprep.mubr.bf16.mxu0 0
      %3411 = vmatmul.mubr.bf16.gmra.mxu0 %v2875
      %v3412 = vpop.f32.mrf.mxu0
      %v3413 = vadd.f32 %v3252, %v3412
      %v3414 = vpop.f32.mrf.mxu0
      %v3415 = vpop.f32.mrf.mxu0
      %v3416 = vadd.f32 %v3255, %v3415
      %v3417 = vpop.f32.mrf.mxu0
      %3418 = vmatprep.mubr.bf16.mxu0 0
      %3419 = vmatmul.mubr.bf16.gmra.mxu0 %v2878
      %v3420 = vpop.f32.mrf.mxu0
      %v3421 = vadd.f32 %v3260, %v3420
      %v3422 = vpop.f32.mrf.mxu0
      %v3423 = vpop.f32.mrf.mxu0
      %v3424 = vadd.f32 %v3263, %v3423
      %v3425 = vpop.f32.mrf.mxu0
      %3426 = vmatprep.mubr.bf16.mxu0 0
      %3427 = vmatmul.mubr.bf16.gmra.mxu0 %v2881
      %v3428 = vpop.f32.mrf.mxu0
      %v3429 = vadd.f32 %v3268, %v3428
      %v3430 = vpop.f32.mrf.mxu0
      %v3431 = vpop.f32.mrf.mxu0
      %v3432 = vadd.f32 %v3271, %v3431
      %v3433 = vpop.f32.mrf.mxu0
      %3434 = vmatprep.mubr.bf16.mxu0 0
      %3435 = vmatmul.mubr.bf16.gmra.mxu0 %v2884
      %v3436 = vpop.f32.mrf.mxu0
      %v3437 = vadd.f32 %v3276, %v3436
      %v3438 = vpop.f32.mrf.mxu0
      %v3439 = vpop.f32.mrf.mxu0
      %v3440 = vadd.f32 %v3279, %v3439
      %v3441 = vpop.f32.mrf.mxu0
      %3442 = vmatprep.mubr.bf16.mxu0 0
      %3443 = vmatmul.mubr.bf16.gmra.mxu0 %v2887
      %v3444 = vpop.f32.mrf.mxu0
      %v3445 = vadd.f32 %v3284, %v3444
      %v3446 = vpop.f32.mrf.mxu0
      %v3447 = vpop.f32.mrf.mxu0
      %v3448 = vadd.f32 %v3287, %v3447
      %v3449 = vpop.f32.mrf.mxu0
      %3450 = vdwg.mxu0
      %v3451 = vadd.f32 %v2904, %v3325
      %v3452 = vadd.f32 %v2905, %v3328
      %v3453 = vadd.f32 %v2906, %v3333
      %v3454 = vadd.f32 %v2907, %v3336
      %v3455 = vadd.f32 %v2908, %v3341
      %v3456 = vadd.f32 %v2909, %v3344
      %v3457 = vadd.f32 %v2910, %v3349
      %v3458 = vadd.f32 %v2911, %v3352
      %v3459 = vadd.f32 %v2912, %v3357
      %v3460 = vadd.f32 %v2913, %v3360
      %v3461 = vadd.f32 %v2914, %v3365
      %v3462 = vadd.f32 %v2915, %v3368
      %v3463 = vadd.f32 %v2916, %v3373
      %v3464 = vadd.f32 %v2917, %v3376
      %v3465 = vadd.f32 %v2918, %v3381
      %v3466 = vadd.f32 %v2919, %v3384
      %v3467 = vadd.f32 %v2920, %v3389
      %v3468 = vadd.f32 %v2921, %v3392
      %v3469 = vadd.f32 %v2922, %v3397
      %v3470 = vadd.f32 %v2923, %v3400
      %v3471 = vadd.f32 %v2924, %v3405
      %v3472 = vadd.f32 %v2925, %v3408
      %v3473 = vadd.f32 %v2926, %v3413
      %v3474 = vadd.f32 %v2927, %v3416
      %v3475 = vadd.f32 %v2928, %v3421
      %v3476 = vadd.f32 %v2929, %v3424
      %v3477 = vadd.f32 %v2930, %v3429
      %v3478 = vadd.f32 %v2931, %v3432
      %v3479 = vadd.f32 %v2932, %v3437
      %v3480 = vadd.f32 %v2933, %v3440
      %v3481 = vadd.f32 %v2934, %v3445
      %v3482 = vadd.f32 %v2935, %v3448
      %3483 = vst [vmem:[#allocation2] sm:$0xff] %v3451
      %3484 = vst [vmem:[#allocation2 + $0x8] sm:$0xff] %v3452
      %3485 = vst [vmem:[#allocation2 + $0x10] sm:$0xff] %v3453
      %3486 = vst [vmem:[#allocation2 + $0x18] sm:$0xff] %v3454
      %3487 = vst [vmem:[#allocation2 + $0x20] sm:$0xff] %v3455
      %3488 = vst [vmem:[#allocation2 + $0x28] sm:$0xff] %v3456
      %3489 = vst [vmem:[#allocation2 + $0x30] sm:$0xff] %v3457
      %3490 = vst [vmem:[#allocation2 + $0x38] sm:$0xff] %v3458
      %3491 = vst [vmem:[#allocation2 + $0x40] sm:$0xff] %v3459
      %3492 = vst [vmem:[#allocation2 + $0x48] sm:$0xff] %v3460
      %3493 = vst [vmem:[#allocation2 + $0x50] sm:$0xff] %v3461
      %3494 = vst [vmem:[#allocation2 + $0x58] sm:$0xff] %v3462
      %3495 = vst [vmem:[#allocation2 + $0x60] sm:$0xff] %v3463
      %3496 = vst [vmem:[#allocation2 + $0x68] sm:$0xff] %v3464
      %3497 = vst [vmem:[#allocation2 + $0x70] sm:$0xff] %v3465
      %3498 = vst [vmem:[#allocation2 + $0x78] sm:$0xff] %v3466
      %3499 = vst [vmem:[#allocation2 + $0x80] sm:$0xff] %v3467
      %3500 = vst [vmem:[#allocation2 + $0x88] sm:$0xff] %v3468
      %3501 = vst [vmem:[#allocation2 + $0x90] sm:$0xff] %v3469
      %3502 = vst [vmem:[#allocation2 + $0x98] sm:$0xff] %v3470
      %3503 = vst [vmem:[#allocation2 + $0xa0] sm:$0xff] %v3471
      %3504 = vst [vmem:[#allocation2 + $0xa8] sm:$0xff] %v3472
      %3505 = vst [vmem:[#allocation2 + $0xb0] sm:$0xff] %v3473
      %3506 = vst [vmem:[#allocation2 + $0xb8] sm:$0xff] %v3474
      %3507 = vst [vmem:[#allocation2 + $0xc0] sm:$0xff] %v3475
      %3508 = vst [vmem:[#allocation2 + $0xc8] sm:$0xff] %v3476
      %3509 = vst [vmem:[#allocation2 + $0xd0] sm:$0xff] %v3477
      %3510 = vst [vmem:[#allocation2 + $0xd8] sm:$0xff] %v3478
      %3511 = vst [vmem:[#allocation2 + $0xe0] sm:$0xff] %v3479
      %3512 = vst [vmem:[#allocation2 + $0xe8] sm:$0xff] %v3480
      %3513 = vst [vmem:[#allocation2 + $0xf0] sm:$0xff] %v3481
      %3514 = vst [vmem:[#allocation2 + $0xf8] sm:$0xff] %v3482
      %v3515 = vld [vmem:[#allocation2] sm:$0xff]
      %v3516 = vld [vmem:[#allocation2 + $0x8] sm:$0xff]
      %v3517 = vld [vmem:[#allocation2 + $0x10] sm:$0xff]
      %v3518 = vld [vmem:[#allocation2 + $0x18] sm:$0xff]
      %v3519 = vld [vmem:[#allocation2 + $0x20] sm:$0xff]
      %v3520 = vld [vmem:[#allocation2 + $0x28] sm:$0xff]
      %v3521 = vld [vmem:[#allocation2 + $0x30] sm:$0xff]
      %v3522 = vld [vmem:[#allocation2 + $0x38] sm:$0xff]
      %v3523 = vld [vmem:[#allocation2 + $0x40] sm:$0xff]
      %v3524 = vld [vmem:[#allocation2 + $0x48] sm:$0xff]
      %v3525 = vld [vmem:[#allocation2 + $0x50] sm:$0xff]
      %v3526 = vld [vmem:[#allocation2 + $0x58] sm:$0xff]
      %v3527 = vld [vmem:[#allocation2 + $0x60] sm:$0xff]
      %v3528 = vld [vmem:[#allocation2 + $0x68] sm:$0xff]
      %v3529 = vld [vmem:[#allocation2 + $0x70] sm:$0xff]
      %v3530 = vld [vmem:[#allocation2 + $0x78] sm:$0xff]
      %v3531 = vld [vmem:[#allocation2 + $0x80] sm:$0xff]
      %v3532 = vld [vmem:[#allocation2 + $0x88] sm:$0xff]
      %v3533 = vld [vmem:[#allocation2 + $0x90] sm:$0xff]
      %v3534 = vld [vmem:[#allocation2 + $0x98] sm:$0xff]
      %v3535 = vld [vmem:[#allocation2 + $0xa0] sm:$0xff]
      %v3536 = vld [vmem:[#allocation2 + $0xa8] sm:$0xff]
      %v3537 = vld [vmem:[#allocation2 + $0xb0] sm:$0xff]
      %v3538 = vld [vmem:[#allocation2 + $0xb8] sm:$0xff]
      %v3539 = vld [vmem:[#allocation2 + $0xc0] sm:$0xff]
      %v3540 = vld [vmem:[#allocation2 + $0xc8] sm:$0xff]
      %v3541 = vld [vmem:[#allocation2 + $0xd0] sm:$0xff]
      %v3542 = vld [vmem:[#allocation2 + $0xd8] sm:$0xff]
      %v3543 = vld [vmem:[#allocation2 + $0xe0] sm:$0xff]
      %v3544 = vld [vmem:[#allocation2 + $0xe8] sm:$0xff]
      %v3545 = vld [vmem:[#allocation2 + $0xf0] sm:$0xff]
      %v3546 = vld [vmem:[#allocation2 + $0xf8] sm:$0xff]
      %v3547 = vpack.c.bf16 %v3516, %v3515
      %v3548 = vpack.c.bf16 %v3518, %v3517
      %v3549 = vpack.c.bf16 %v3520, %v3519
      %v3550 = vpack.c.bf16 %v3522, %v3521
      %v3551 = vpack.c.bf16 %v3524, %v3523
      %v3552 = vpack.c.bf16 %v3526, %v3525
      %v3553 = vpack.c.bf16 %v3528, %v3527
      %v3554 = vpack.c.bf16 %v3530, %v3529
      %v3555 = vpack.c.bf16 %v3532, %v3531
      %v3556 = vpack.c.bf16 %v3534, %v3533
      %v3557 = vpack.c.bf16 %v3536, %v3535
      %v3558 = vpack.c.bf16 %v3538, %v3537
      %v3559 = vpack.c.bf16 %v3540, %v3539
      %v3560 = vpack.c.bf16 %v3542, %v3541
      %v3561 = vpack.c.bf16 %v3544, %v3543
      %v3562 = vpack.c.bf16 %v3546, %v3545
      %v3579 = vunpack.c.l.b16 %v3547
      %v3580 = vunpack.c.h.b16 %v3547
      %v3581 = vunpack.c.l.b16 %v3548
      %v3582 = vunpack.c.h.b16 %v3548
      %v3583 = vunpack.c.l.b16 %v3549
      %v3584 = vunpack.c.h.b16 %v3549
      %v3585 = vunpack.c.l.b16 %v3550
      %v3586 = vunpack.c.h.b16 %v3550
      %v3587 = vunpack.c.l.b16 %v3551
      %v3588 = vunpack.c.h.b16 %v3551
      %v3589 = vunpack.c.l.b16 %v3552
      %v3590 = vunpack.c.h.b16 %v3552
      %v3591 = vunpack.c.l.b16 %v3553
      %v3592 = vunpack.c.h.b16 %v3553
      %v3593 = vunpack.c.l.b16 %v3554
      %v3594 = vunpack.c.h.b16 %v3554
      %v3595 = vunpack.c.l.b16 %v3555
      %v3596 = vunpack.c.h.b16 %v3555
      %v3597 = vunpack.c.l.b16 %v3556
      %v3598 = vunpack.c.h.b16 %v3556
      %v3599 = vunpack.c.l.b16 %v3557
      %v3600 = vunpack.c.h.b16 %v3557
      %v3601 = vunpack.c.l.b16 %v3558
      %v3602 = vunpack.c.h.b16 %v3558
      %v3603 = vunpack.c.l.b16 %v3559
      %v3604 = vunpack.c.h.b16 %v3559
      %v3605 = vunpack.c.l.b16 %v3560
      %v3606 = vunpack.c.h.b16 %v3560
      %v3607 = vunpack.c.l.b16 %v3561
      %v3608 = vunpack.c.h.b16 %v3561
      %v3609 = vunpack.c.l.b16 %v3562
      %v3610 = vunpack.c.h.b16 %v3562
      %v3611 = vpack.c.b16 %v3579, %v3579
      %v3612 = vpack.c.b16 %v3580, %v3580
      %v3613 = vpack.c.b16 %v3581, %v3581
      %v3614 = vpack.c.b16 %v3582, %v3582
      %v3615 = vpack.c.b16 %v3583, %v3583
      %v3616 = vpack.c.b16 %v3584, %v3584
      %v3617 = vpack.c.b16 %v3585, %v3585
      %v3618 = vpack.c.b16 %v3586, %v3586
      %v3619 = vpack.c.b16 %v3587, %v3587
      %v3620 = vpack.c.b16 %v3588, %v3588
      %v3621 = vpack.c.b16 %v3589, %v3589
      %v3622 = vpack.c.b16 %v3590, %v3590
      %v3623 = vpack.c.b16 %v3591, %v3591
      %v3624 = vpack.c.b16 %v3592, %v3592
      %v3625 = vpack.c.b16 %v3593, %v3593
      %v3626 = vpack.c.b16 %v3594, %v3594
      %v3627 = vpack.c.b16 %v3595, %v3595
      %v3628 = vpack.c.b16 %v3596, %v3596
      %v3629 = vpack.c.b16 %v3597, %v3597
      %v3630 = vpack.c.b16 %v3598, %v3598
      %v3631 = vpack.c.b16 %v3599, %v3599
      %v3632 = vpack.c.b16 %v3600, %v3600
      %v3633 = vpack.c.b16 %v3601, %v3601
      %v3634 = vpack.c.b16 %v3602, %v3602
      %v3635 = vpack.c.b16 %v3603, %v3603
      %v3636 = vpack.c.b16 %v3604, %v3604
      %v3637 = vpack.c.b16 %v3605, %v3605
      %v3638 = vpack.c.b16 %v3606, %v3606
      %v3639 = vpack.c.b16 %v3607, %v3607
      %v3640 = vpack.c.b16 %v3608, %v3608
      %v3641 = vpack.c.b16 %v3609, %v3609
      %v3642 = vpack.c.b16 %v3610, %v3610
      %3675 = vst [vmem:[%s226] sm:$0xf] %v3611
      %3676 = vst [vmem:[%s226 + $0x4] sm:$0xf] %v3612
      %3677 = vst [vmem:[%s226 + $0x8] sm:$0xf] %v3613
      %3678 = vst [vmem:[%s226 + $0xc] sm:$0xf] %v3614
      %3679 = vst [vmem:[%s226 + $0x10] sm:$0xf] %v3615
      %3680 = vst [vmem:[%s226 + $0x14] sm:$0xf] %v3616
      %3681 = vst [vmem:[%s226 + $0x18] sm:$0xf] %v3617
      %3682 = vst [vmem:[%s226 + $0x1c] sm:$0xf] %v3618
      %3683 = vst [vmem:[%s226 + $0x20] sm:$0xf] %v3619
      %3684 = vst [vmem:[%s226 + $0x24] sm:$0xf] %v3620
      %3685 = vst [vmem:[%s226 + $0x28] sm:$0xf] %v3621
      %3686 = vst [vmem:[%s226 + $0x2c] sm:$0xf] %v3622
      %3687 = vst [vmem:[%s226 + $0x30] sm:$0xf] %v3623
      %3688 = vst [vmem:[%s226 + $0x34] sm:$0xf] %v3624
      %3689 = vst [vmem:[%s226 + $0x38] sm:$0xf] %v3625
      %3690 = vst [vmem:[%s226 + $0x3c] sm:$0xf] %v3626
      %3691 = vst [vmem:[%s226 + $0x40] sm:$0xf] %v3627
      %3692 = vst [vmem:[%s226 + $0x44] sm:$0xf] %v3628
      %3693 = vst [vmem:[%s226 + $0x48] sm:$0xf] %v3629
      %3694 = vst [vmem:[%s226 + $0x4c] sm:$0xf] %v3630
      %3695 = vst [vmem:[%s226 + $0x50] sm:$0xf] %v3631
      %3696 = vst [vmem:[%s226 + $0x54] sm:$0xf] %v3632
      %3697 = vst [vmem:[%s226 + $0x58] sm:$0xf] %v3633
      %3698 = vst [vmem:[%s226 + $0x5c] sm:$0xf] %v3634
      %3699 = vst [vmem:[%s226 + $0x60] sm:$0xf] %v3635
      %3700 = vst [vmem:[%s226 + $0x64] sm:$0xf] %v3636
      %3701 = vst [vmem:[%s226 + $0x68] sm:$0xf] %v3637
      %3702 = vst [vmem:[%s226 + $0x6c] sm:$0xf] %v3638
      %3703 = vst [vmem:[%s226 + $0x70] sm:$0xf] %v3639
      %3704 = vst [vmem:[%s226 + $0x74] sm:$0xf] %v3640
      %3705 = vst [vmem:[%s226 + $0x78] sm:$0xf] %v3641
      %3706 = vst [vmem:[%s226 + $0x7c] sm:$0xf] %v3642
      %v3707 = vld [vmem:[#allocation2] sm:$0xff]
      %v3708 = vld [vmem:[#allocation2 + $0x8] sm:$0xff]
      %v3709 = vld [vmem:[#allocation2 + $0x10] sm:$0xff]
      %v3710 = vld [vmem:[#allocation2 + $0x18] sm:$0xff]
      %v3711 = vld [vmem:[#allocation2 + $0x20] sm:$0xff]
      %v3712 = vld [vmem:[#allocation2 + $0x28] sm:$0xff]
      %v3713 = vld [vmem:[#allocation2 + $0x30] sm:$0xff]
      %v3714 = vld [vmem:[#allocation2 + $0x38] sm:$0xff]
      %v3715 = vld [vmem:[#allocation2 + $0x40] sm:$0xff]
      %v3716 = vld [vmem:[#allocation2 + $0x48] sm:$0xff]
      %v3717 = vld [vmem:[#allocation2 + $0x50] sm:$0xff]
      %v3718 = vld [vmem:[#allocation2 + $0x58] sm:$0xff]
      %v3719 = vld [vmem:[#allocation2 + $0x60] sm:$0xff]
      %v3720 = vld [vmem:[#allocation2 + $0x68] sm:$0xff]
      %v3721 = vld [vmem:[#allocation2 + $0x70] sm:$0xff]
      %v3722 = vld [vmem:[#allocation2 + $0x78] sm:$0xff]
      %v3723 = vld [vmem:[#allocation2 + $0x80] sm:$0xff]
      %v3724 = vld [vmem:[#allocation2 + $0x88] sm:$0xff]
      %v3725 = vld [vmem:[#allocation2 + $0x90] sm:$0xff]
      %v3726 = vld [vmem:[#allocation2 + $0x98] sm:$0xff]
      %v3727 = vld [vmem:[#allocation2 + $0xa0] sm:$0xff]
      %v3728 = vld [vmem:[#allocation2 + $0xa8] sm:$0xff]
      %v3729 = vld [vmem:[#allocation2 + $0xb0] sm:$0xff]
      %v3730 = vld [vmem:[#allocation2 + $0xb8] sm:$0xff]
      %v3731 = vld [vmem:[#allocation2 + $0xc0] sm:$0xff]
      %v3732 = vld [vmem:[#allocation2 + $0xc8] sm:$0xff]
      %v3733 = vld [vmem:[#allocation2 + $0xd0] sm:$0xff]
      %v3734 = vld [vmem:[#allocation2 + $0xd8] sm:$0xff]
      %v3735 = vld [vmem:[#allocation2 + $0xe0] sm:$0xff]
      %v3736 = vld [vmem:[#allocation2 + $0xe8] sm:$0xff]
      %v3737 = vld [vmem:[#allocation2 + $0xf0] sm:$0xff]
      %v3738 = vld [vmem:[#allocation2 + $0xf8] sm:$0xff]
      %v3739 = vadd.f32 %v3707, %v3708
      %v3740 = vadd.f32 %v3739, %v3709
      %v3741 = vadd.f32 %v3740, %v3710
      %v3742 = vadd.f32 %v3741, %v3711
      %v3743 = vadd.f32 %v3742, %v3712
      %v3744 = vadd.f32 %v3743, %v3713
      %v3745 = vadd.f32 %v3744, %v3714
      %v3746 = vadd.f32 %v3745, %v3715
      %v3747 = vadd.f32 %v3746, %v3716
      %v3748 = vadd.f32 %v3747, %v3717
      %v3749 = vadd.f32 %v3748, %v3718
      %v3750 = vadd.f32 %v3749, %v3719
      %v3751 = vadd.f32 %v3750, %v3720
      %v3752 = vadd.f32 %v3751, %v3721
      %v3753 = vadd.f32 %v3752, %v3722
      %v3754 = vadd.f32 %v3753, %v3723
      %v3755 = vadd.f32 %v3754, %v3724
      %v3756 = vadd.f32 %v3755, %v3725
      %v3757 = vadd.f32 %v3756, %v3726
      %v3758 = vadd.f32 %v3757, %v3727
      %v3759 = vadd.f32 %v3758, %v3728
      %v3760 = vadd.f32 %v3759, %v3729
      %v3761 = vadd.f32 %v3760, %v3730
      %v3762 = vadd.f32 %v3761, %v3731
      %v3763 = vadd.f32 %v3762, %v3732
      %v3764 = vadd.f32 %v3763, %v3733
      %v3765 = vadd.f32 %v3764, %v3734
      %v3766 = vadd.f32 %v3765, %v3735
      %v3767 = vadd.f32 %v3766, %v3736
      %v3768 = vadd.f32 %v3767, %v3737
      %v3769 = vadd.f32 %v3768, %v3738
      %v3770 = vrot.slane %v3769, 4
      %v3771 = vadd.f32 %v3769, %v3770
      %v3772 = vrot.slane %v3771, 2
      %v3773 = vadd.f32 %v3771, %v3772
      %v3774 = vrot.slane %v3773, 1
      %v3775 = vadd.f32 %v3773, %v3774
      %v3776 = vmul.f32 %v3707, %v3707
      %v3777 = vmul.f32 %v3708, %v3708
      %v3778 = vmul.f32 %v3709, %v3709
      %v3779 = vmul.f32 %v3710, %v3710
      %v3780 = vmul.f32 %v3711, %v3711
      %v3781 = vmul.f32 %v3712, %v3712
      %v3782 = vmul.f32 %v3713, %v3713
      %v3783 = vmul.f32 %v3714, %v3714
      %v3784 = vmul.f32 %v3715, %v3715
      %v3785 = vmul.f32 %v3716, %v3716
      %v3786 = vmul.f32 %v3717, %v3717
      %v3787 = vmul.f32 %v3718, %v3718
      %v3788 = vmul.f32 %v3719, %v3719
      %v3789 = vmul.f32 %v3720, %v3720
      %v3790 = vmul.f32 %v3721, %v3721
      %v3791 = vmul.f32 %v3722, %v3722
      %v3792 = vmul.f32 %v3723, %v3723
      %v3793 = vmul.f32 %v3724, %v3724
      %v3794 = vmul.f32 %v3725, %v3725
      %v3795 = vmul.f32 %v3726, %v3726
      %v3796 = vmul.f32 %v3727, %v3727
      %v3797 = vmul.f32 %v3728, %v3728
      %v3798 = vmul.f32 %v3729, %v3729
      %v3799 = vmul.f32 %v3730, %v3730
      %v3800 = vmul.f32 %v3731, %v3731
      %v3801 = vmul.f32 %v3732, %v3732
      %v3802 = vmul.f32 %v3733, %v3733
      %v3803 = vmul.f32 %v3734, %v3734
      %v3804 = vmul.f32 %v3735, %v3735
      %v3805 = vmul.f32 %v3736, %v3736
      %v3806 = vmul.f32 %v3737, %v3737
      %v3807 = vmul.f32 %v3738, %v3738
      %v3808 = vadd.f32 %v3776, %v3777
      %v3809 = vadd.f32 %v3808, %v3778
      %v3810 = vadd.f32 %v3809, %v3779
      %v3811 = vadd.f32 %v3810, %v3780
      %v3812 = vadd.f32 %v3811, %v3781
      %v3813 = vadd.f32 %v3812, %v3782
      %v3814 = vadd.f32 %v3813, %v3783
      %v3815 = vadd.f32 %v3814, %v3784
      %v3816 = vadd.f32 %v3815, %v3785
      %v3817 = vadd.f32 %v3816, %v3786
      %v3818 = vadd.f32 %v3817, %v3787
      %v3819 = vadd.f32 %v3818, %v3788
      %v3820 = vadd.f32 %v3819, %v3789
      %v3821 = vadd.f32 %v3820, %v3790
      %v3822 = vadd.f32 %v3821, %v3791
      %v3823 = vadd.f32 %v3822, %v3792
      %v3824 = vadd.f32 %v3823, %v3793
      %v3825 = vadd.f32 %v3824, %v3794
      %v3826 = vadd.f32 %v3825, %v3795
      %v3827 = vadd.f32 %v3826, %v3796
      %v3828 = vadd.f32 %v3827, %v3797
      %v3829 = vadd.f32 %v3828, %v3798
      %v3830 = vadd.f32 %v3829, %v3799
      %v3831 = vadd.f32 %v3830, %v3800
      %v3832 = vadd.f32 %v3831, %v3801
      %v3833 = vadd.f32 %v3832, %v3802
      %v3834 = vadd.f32 %v3833, %v3803
      %v3835 = vadd.f32 %v3834, %v3804
      %v3836 = vadd.f32 %v3835, %v3805
      %v3837 = vadd.f32 %v3836, %v3806
      %v3838 = vadd.f32 %v3837, %v3807
      %v3839 = vrot.slane %v3838, 4
      %v3840 = vadd.f32 %v3838, %v3839
      %v3841 = vrot.slane %v3840, 2
      %v3842 = vadd.f32 %v3840, %v3841
      %v3843 = vrot.slane %v3842, 1
      %v3844 = vadd.f32 %v3842, %v3843
      %v3845 = vld [vmem:[%s231] sm:$0x3]
      %vm3846 = vcmask 1040384
      %v3847 = vsel %vm3846, %v3775, %v3844
      %v3848 = vadd.f32 %v3845, %v3847
      %3849 = vst [vmem:[%s231] sm:$0x3] %v3848
      %s3850 = smul.u32 32, %s21
      %p3851 = scmp.lt.s32.totalorder %s20, 1
      %s3852 = scalar_select %p3851, %s20, 1
      %p3853 = scmp.lt.s32.totalorder %s3850, 31
      %s3854 = scalar_select %p3853, %s3850, 31
      %s3855 = smul.addr %s3852, 32
      %s3856 = sadd.s32 %s3854, %s3855
      %s3857 = smul.addr %s3856, 4
      %s3858 = scalar_lea.vmem %s3, %s3857
      %p3859 = scmp.lt.s32.totalorder %s20, 1
      %s3860 = scalar_select %p3859, %s20, 1
      %s3861 = smul.addr %s3860, 2
      %s3862 = scalar_lea.vmem %s4, %s3861
      // Predicated region
      $region37: #{vgg16_block_forward.6} parent=31 // pred_check
        %p3863 = pneg %p116
      $region38: #{vgg16_block_forward.6} parent=31 // pred_check_branch
        %3865 = sbr.rel (%p3863) target = $region40
      $region39: #{vgg16_block_forward.6} parent=31 // pred_region
        %s3866 = smul.u32 32, %s21
      $region40: #{vgg16_block_forward.6} parent=31 // pred_fallthru
        _
      // Predicated region
      $region41: #{vgg16_block_forward.6} parent=31 // pred_check
        %p3867 = pneg %p142
      $region42: #{vgg16_block_forward.6} parent=31 // pred_check_branch
        %3869 = sbr.rel (%p3867) target = $region44
      $region43: #{vgg16_block_forward.6} parent=31 // pred_region
        _
      $region44: #{vgg16_block_forward.6} parent=31 // pred_fallthru
        _
    $region32: #{vgg16_block_forward.6} parent=5 // pred_fallthru
      _
    %p3870 = scmp.le.s32.totalorder 2, %s11
    // Predicated region
    $region45: #{vgg16_block_forward.6} parent=5 // pred_check
      %p3871 = pneg %p3870
    $region46: #{vgg16_block_forward.6} parent=5 // pred_check_branch
      %3873 = sbr.rel (%p3871) target = $region48
    $region47: #{vgg16_block_forward.6} parent=5 // pred_region
      %s3874 = ssub.s32 %s11, 2
      // Predicated region
      $region49: #{vgg16_block_forward.6} parent=47 // pred_check
        %p3875 = pneg %p122
      $region50: #{vgg16_block_forward.6} parent=47 // pred_check_branch
        %3877 = sbr.rel (%p3875) target = $region52
      $region51: #{vgg16_block_forward.6} parent=47 // pred_region
        %s3878 = smul.u32 32, %s23
        %p3879 = scmp.lt.s32.totalorder %s22, 1
        %s3880 = scalar_select %p3879, %s22, 1
        %p3881 = scmp.lt.s32.totalorder %s3878, 31
        %s3882 = scalar_select %p3881, %s3878, 31
        %s3883 = smul.addr %s3880, 32
        %s3884 = sadd.s32 %s3882, %s3883
        %s3885 = smul.addr %s3884, 4
        %s3886 = scalar_lea.vmem %s3, %s3885
      $region52: #{vgg16_block_forward.6} parent=47 // pred_fallthru
        _
      // Predicated region
      $region53: #{vgg16_block_forward.6} parent=47 // pred_check
        %p3887 = pneg %p148
      $region54: #{vgg16_block_forward.6} parent=47 // pred_check_branch
        %3889 = sbr.rel (%p3887) target = $region56
      $region55: #{vgg16_block_forward.6} parent=47 // pred_region
        %p3890 = scmp.lt.s32.totalorder %s22, 1
        %s3891 = scalar_select %p3890, %s22, 1
        %s3892 = smul.addr %s3891, 2
        %s3893 = scalar_lea.vmem %s4, %s3892
      $region56: #{vgg16_block_forward.6} parent=47 // pred_fallthru
        _
    $region48: #{vgg16_block_forward.6} parent=5 // pred_fallthru
      _
  $region6: #{vgg16_block_forward.6} parent=0 // loop_footer
    %s15 = sadd.s32 1, %s11
  $region7: #{vgg16_block_forward.6} parent=0 // loop_footer_branch
    %10 = sbr.rel target = $region3
  $region8: #{vgg16_block_forward.6} parent=0 // loop_exit
    _

</llo_original>
